<compile_context>
chip_gen: v6e
topology: v6e:2x2x1
jax: 0.10.0
libtpu: 0.0.40
codegen_flags: <defaults>
</compile_context>

<pallas_src>
import functools

import jax
import jax.numpy as jnp
from jax.experimental import pallas as pl
from jax.experimental.pallas import tpu as pltpu


def _round_up(x, m):
    return (x + m - 1) // m * m


def _vmem_limit_bytes():
    """Generation-aware VMEM cap: ~48 MiB on v7x (64 MiB/TC), ~96 MiB on v5e/v6e."""
    cap = 128 * 1024 * 1024
    try:
        cap = int(getattr(pltpu.get_tpu_info(), "vmem_capacity_bytes", cap))
    except Exception:
        pass
    return min((cap // 4) * 3, 100 * 1024 * 1024)


# ----------------------------- kernels ------------------------------------ #

def _mlp_kernel_onehot(x_ref, tbl_ref, w1_ref, w2_ref, w3_ref, b3_ref,
                       o_ref, e_scr, *, t_lane):
    """Fused forward with in-kernel one-hot embedding gather (small n_steps).

    x_ref  : (blk, cond_p) f32  -- x in lanes [0:cond_num], float(t) in lane t_lane
    tbl_ref: (cond_p + n_steps_p, 3U) bf16 -- [[w0;0;0],[emb0+b0|emb1+b1|emb2+b2]]
    """
    blk, cond_p = x_ref.shape
    n_steps_p = tbl_ref.shape[0] - cond_p
    U = w1_ref.shape[0]
    cdt = w1_ref.dtype          # MXU input dtype (bf16); accumulation stays f32
    f32 = jnp.float32

    xt = x_ref[...]                                          # (blk, cond_p) f32
    t_i = xt[:, t_lane:t_lane + 1].astype(jnp.int32)         # (blk, 1)
    steps = jax.lax.broadcasted_iota(jnp.int32, (blk, n_steps_p), 1)
    onehot = (steps == t_i).astype(cdt)                      # exact 0/1 in bf16

    # Single MXU launch: cols [0:U) -> layer-0 pre-act (x@w0 + b0 + emb0[t]),
    # cols [U:3U) -> emb1[t]+b1 | emb2[t]+b2.  The t lane multiplies zero table
    # rows, so it contributes nothing.
    xo = jnp.concatenate([xt.astype(cdt), onehot], axis=1)   # (blk, cond_p+n_steps_p)
    h0 = jnp.dot(xo, tbl_ref[...], preferred_element_type=f32)  # (blk, 3U)

    # Park the later embedding adds in VMEM to shrink their live range.
    e_scr[...] = h0[:, U:]

    h = jnp.maximum(h0[:, :U], 0.0)
    h = jnp.maximum(
        jnp.dot(h.astype(cdt), w1_ref[...], preferred_element_type=f32)
        + e_scr[:, :U], 0.0)
    h = jnp.maximum(
        jnp.dot(h.astype(cdt), w2_ref[...], preferred_element_type=f32)
        + e_scr[:, U:], 0.0)

    out = jnp.dot(h.astype(cdt), w3_ref[...], preferred_element_type=f32) + b3_ref[...]
    o_ref[...] = out.astype(o_ref.dtype)


def _mlp_kernel_pregather(x_ref, emb_ref, w0_ref, w1_ref, w2_ref, w3_ref,
                          b3_ref, o_ref):
    """Fused forward with a pre-gathered (blk, 3U) bf16 embedding stream
    (the large-n_steps fallback). Embedding slices are loaded per layer from
    the ref so their live range stays short."""
    U = w1_ref.shape[0]
    cdt = w1_ref.dtype
    f32 = jnp.float32

    h = jnp.dot(x_ref[...].astype(cdt), w0_ref[...], preferred_element_type=f32)
    h = jnp.maximum(h + emb_ref[:, :U].astype(f32), 0.0)
    h = jnp.dot(h.astype(cdt), w1_ref[...], preferred_element_type=f32)
    h = jnp.maximum(h + emb_ref[:, U:2 * U].astype(f32), 0.0)
    h = jnp.dot(h.astype(cdt), w2_ref[...], preferred_element_type=f32)
    h = jnp.maximum(h + emb_ref[:, 2 * U:].astype(f32), 0.0)
    out = jnp.dot(h.astype(cdt), w3_ref[...], preferred_element_type=f32) + b3_ref[...]
    o_ref[...] = out.astype(o_ref.dtype)


# --------------------------- pallas_call glue ------------------------------ #

def _pallas_forward(kernel, batch_ins, rep_ins, scratch_shapes, *,
                    block_b, nb, B_p, cond_p, vmem_limit, single_buffer_weights):
    def batch_spec(a):
        return pl.BlockSpec((block_b, a.shape[1]), lambda i: (i, 0))

    def rep_spec(a):
        if single_buffer_weights:
            # Grid-invariant operands gain nothing from double buffering.
            return pl.BlockSpec(a.shape, lambda i: (0, 0),
                                pipeline_mode=pl.Buffered(1))
        return pl.BlockSpec(a.shape, lambda i: (0, 0))

    return pl.pallas_call(
        kernel,
        out_shape=jax.ShapeDtypeStruct((B_p, cond_p), jnp.float32),
        grid_spec=pltpu.PrefetchScalarGridSpec(
            num_scalar_prefetch=0,
            grid=(nb,),
            in_specs=[batch_spec(a) for a in batch_ins]
                     + [rep_spec(a) for a in rep_ins],
            out_specs=pl.BlockSpec((block_b, cond_p), lambda i: (i, 0)),
            scratch_shapes=scratch_shapes,
        ),
        compiler_params=pltpu.CompilerParams(
            dimension_semantics=("parallel",),
            vmem_limit_bytes=vmem_limit,
        ),
    )(*batch_ins, *rep_ins)


# ------------------------------ wrappers ----------------------------------- #

def prepare_params(params, *, onehot_threshold=512):
    """Build kernel-ready padded/fused constants ONCE (not per forward call)."""
    cond_num, U = params["w0"].shape
    n_steps = params["emb0"].shape[0]
    cond_p = _round_up(cond_num, 128)
    n_steps_p = _round_up(n_steps, 128)
    wdt = params["w0"].dtype   # bf16 recommended: f32 weights are correct but
                               # take the slow multi-pass f32 MXU path.
    f32 = jnp.float32

    # Folded embedding table: [emb0+b0 | emb1+b1 | emb2+b2]  (n_steps, 3U).
    emb_fold = jnp.concatenate(
        [params[f"emb{i}"] + params[f"b{i}"][None, :] for i in range(3)], axis=1)

    prep = {
        "cond_num": int(cond_num), "num_units": int(U), "n_steps": int(n_steps),
        "cond_p": int(cond_p), "n_steps_p": int(n_steps_p),
        "use_onehot": bool(n_steps_p <= onehot_threshold),
        "w1": params["w1"].astype(wdt),
        "w2": params["w2"].astype(wdt),
        # Lane-dense final layer (output padded to a 128 multiple).
        "w3_p": jnp.zeros((U, cond_p), wdt).at[:, :cond_num].set(
            params["w3"].astype(wdt)),
        "b3_p": jnp.zeros((1, cond_p), f32).at[:, :cond_num].set(
            params["b3"][None, :]),
    }

    if prep["use_onehot"]:
        # [[w0 ; 0 ; 0], [emb0+b0 | emb1+b1 | emb2+b2]]: one fused matmul
        # against [x | onehot(t)] gives layer-0 pre-act + later emb adds.
        tbl = jnp.zeros((cond_p + n_steps_p, 3 * U), wdt)
        tbl = tbl.at[:cond_num, :U].set(params["w0"].astype(wdt))
        tbl = tbl.at[cond_p:cond_p + n_steps, :].set(emb_fold.astype(wdt))
        prep["tbl"] = tbl
    else:
        prep["w0_p"] = jnp.zeros((cond_p, U), wdt).at[:cond_num, :].set(
            params["w0"].astype(wdt))
        prep["emb_fold"] = emb_fold.astype(wdt)   # gathered per call (XLA gather)
    return prep


def mlp_diffusion_forward(x_0, t, prep, *, block_b=512):
    """x_0: (B, cond_num) f32, t: (B,) int. Returns (B, cond_num) f32."""
    B, cond_num = x_0.shape
    assert cond_num == prep["cond_num"]
    U, cond_p = prep["num_units"], prep["cond_p"]
    f32 = jnp.float32

    # Batch tiling: big tiles (kernel is overhead/prologue-bound), ragged-safe.
    block_b = _round_up(max(8, min(block_b, _round_up(B, 8))), 8)
    B_p = _round_up(B, block_b)
    nb = B_p // block_b
    t = t.astype(jnp.int32)
    if B_p != B:
        x_0 = jnp.pad(x_0, ((0, B_p - B), (0, 0)))
        t = jnp.pad(t, (0, B_p - B))

    if prep["use_onehot"]:
        # Lane-dense x tile with t packed (as float) into spare lane `cond_num`
        # -> no lane-sparse (blk,1) t stream.  (Out-of-range t yields a zero
        # embedding instead of nn.Embedding's index error.)
        x_pack = jnp.zeros((B_p, cond_p), f32)
        x_pack = x_pack.at[:, :cond_num].set(x_0)
        x_pack = x_pack.at[:, cond_num].set(t.astype(f32))
        kernel = functools.partial(_mlp_kernel_onehot, t_lane=cond_num)
        batch_ins = (x_pack,)
        rep_ins = (prep["tbl"], prep["w1"], prep["w2"], prep["w3_p"], prep["b3_p"])
        scratch = [pltpu.VMEM((block_b, 2 * U), f32)]
    else:
        x_pack = jnp.zeros((B_p, cond_p), f32).at[:, :cond_num].set(x_0)
        emb = jnp.take(prep["emb_fold"], t, axis=0)          # (B_p, 3U) bf16
        kernel = _mlp_kernel_pregather
        batch_ins = (x_pack, emb)
        rep_ins = (prep["w0_p"], prep["w1"], prep["w2"], prep["w3_p"], prep["b3_p"])
        scratch = []

    call = functools.partial(
        _pallas_forward, kernel, batch_ins, rep_ins, scratch,
        block_b=block_b, nb=nb, B_p=B_p, cond_p=cond_p,
        vmem_limit=_vmem_limit_bytes())
    try:
        out = call(single_buffer_weights=True)
    except Exception:
        # pl.Buffered(1) not accepted by this jax/Mosaic version -> default
        # double-buffered replicated operands.
        out = call(single_buffer_weights=False)

    return out[:B, :cond_num]


# ------------------------------ params / ref ------------------------------- #

def init_params(key, cond_num, n_steps, num_units, weight_dtype=jnp.bfloat16):
    ks = jax.random.split(key, 11)
    s_in = 1.0 / jnp.sqrt(cond_num)
    s_u = 1.0 / jnp.sqrt(num_units)
    f32 = jnp.float32
    return {
        # nn.Linear weights stored as (in, out); bf16 for the MXU.
        "w0": jax.random.uniform(ks[0], (cond_num, num_units), f32, -s_in, s_in).astype(weight_dtype),
        "b0": jax.random.uniform(ks[1], (num_units,), f32, -s_in, s_in),
        "w1": jax.random.uniform(ks[2], (num_units, num_units), f32, -s_u, s_u).astype(weight_dtype),
        "b1": jax.random.uniform(ks[3], (num_units,), f32, -s_u, s_u),
        "w2": jax.random.uniform(ks[4], (num_units, num_units), f32, -s_u, s_u).astype(weight_dtype),
        "b2": jax.random.uniform(ks[5], (num_units,), f32, -s_u, s_u),
        "w3": jax.random.uniform(ks[6], (num_units, cond_num), f32, -s_u, s_u).astype(weight_dtype),
        "b3": jax.random.uniform(ks[7], (cond_num,), f32, -s_u, s_u),
        # nn.Embedding tables: (n_steps, num_units), N(0, 1).
        "emb0": jax.random.normal(ks[8], (n_steps, num_units), f32),
        "emb1": jax.random.normal(ks[9], (n_steps, num_units), f32),
        "emb2": jax.random.normal(ks[10], (n_steps, num_units), f32),
    }


def reference_forward(x_0, t, params):
    """Pure-JAX mirror of the PyTorch forward with the kernel's numerics
    (bf16 weights / bf16-folded embeddings, f32 accumulation)."""
    cdt = params["w0"].dtype
    x = x_0
    for i in range(3):
        w, b, emb = params[f"w{i}"], params[f"b{i}"], params[f"emb{i}"]
        add = (emb[t] + b[None, :]).astype(cdt).astype(jnp.float32)
        h = jnp.dot(x.astype(cdt), w, preferred_element_type=jnp.float32)
        x = jnp.maximum(h + add, 0.0)
    return (jnp.dot(x.astype(cdt), params["w3"], preferred_element_type=jnp.float32)
            + params["b3"])


# --------------------------------- demo ------------------------------------ #

if __name__ == "__main__":
    cond_num = 16
    n_steps = 100
    num_units = 128
    batch = 1024          # block_b=512 -> grid=(2,): one step per v7x TensorCore

    key = jax.random.PRNGKey(0)
    k_params, k_x, k_t = jax.random.split(key, 3)
    params = init_params(k_params, cond_num, n_steps, num_units)
    x_0 = jax.random.normal(k_x, (batch, cond_num), jnp.float32)
    t = jax.random.randint(k_t, (batch,), 0, n_steps, dtype=jnp.int32)

    ref = jax.block_until_ready(reference_forward(x_0, t, params))

    # Path A: fused in-kernel one-hot gather (n_steps small enough).
    prep_a = prepare_params(params)
    assert prep_a["use_onehot"]
    out_a = jax.block_until_ready(mlp_diffusion_forward(x_0, t, prep_a, block_b=512))
    assert out_a.shape == (batch, cond_num)
    assert jnp.allclose(out_a, ref, atol=1e-2, rtol=1e-2), "one-hot path mismatch"

    # Path B: pre-gathered bf16 embedding stream (the large-n_steps fallback),
    # forced here so both code paths are validated at demo sizes.
    prep_b = prepare_params(params, onehot_threshold=0)
    assert not prep_b["use_onehot"]
    out_b = jax.block_until_ready(mlp_diffusion_forward(x_0, t, prep_b, block_b=512))
    assert jnp.allclose(out_b, ref, atol=1e-2, rtol=1e-2), "pre-gather path mismatch"

    print("KERNEL_OK")
</pallas_src>

<mosaic_0001>
module attributes {stable_mosaic.version = 11 : i64} {
  func.func @_mlp_kernel_onehot(%arg0: i32, %arg1: memref<512x128xf32, #tpu.memory_space<vmem>>, %arg2: memref<256x384xbf16, #tpu.memory_space<vmem>>, %arg3: memref<128x128xbf16, #tpu.memory_space<vmem>>, %arg4: memref<128x128xbf16, #tpu.memory_space<vmem>>, %arg5: memref<128x128xbf16, #tpu.memory_space<vmem>>, %arg6: memref<1x128xf32, #tpu.memory_space<vmem>>, %arg7: memref<512x128xf32, #tpu.memory_space<vmem>>, %arg8: memref<512x256xf32, #tpu.memory_space<vmem>>) attributes {dimension_semantics = [#tpu.dimension_semantics<parallel>], iteration_bounds = array<i64: 2>, scalar_prefetch = 0 : i64, scratch_operands = 1 : i64, tpu.core_type = #tpu.core_type<tc>, window_params = [{transform_indices = @transform_0, window_bounds = array<i64: 512, 128>}, {pipeline_mode = #tpu.pipeline_mode<synchronous>, transform_indices = @transform_1, window_bounds = array<i64: 256, 384>}, {pipeline_mode = #tpu.pipeline_mode<synchronous>, transform_indices = @transform_2, window_bounds = array<i64: 128, 128>}, {pipeline_mode = #tpu.pipeline_mode<synchronous>, transform_indices = @transform_3, window_bounds = array<i64: 128, 128>}, {pipeline_mode = #tpu.pipeline_mode<synchronous>, transform_indices = @transform_4, window_bounds = array<i64: 128, 128>}, {pipeline_mode = #tpu.pipeline_mode<synchronous>, transform_indices = @transform_5, window_bounds = array<i64: 1, 128>}, {transform_indices = @transform_6, window_bounds = array<i64: 512, 128>}]} {
    %c0 = arith.constant 0 : index
    %c0_0 = arith.constant 0 : index
    %0 = vector.load %arg1[%c0, %c0_0] : memref<512x128xf32, #tpu.memory_space<vmem>>, vector<512x128xf32>
    %1 = vector.extract_strided_slice %0 {offsets = [0, 16], sizes = [512, 1], strides = [1, 1]} : vector<512x128xf32> to vector<512x1xf32>
    %2 = arith.fptosi %1 : vector<512x1xf32> to vector<512x1xi32>
    %3 = tpu.iota {dimensions = array<i32: 1>} : vector<512x128xi32>
    %4 = vector.broadcast %2 : vector<512x1xi32> to vector<512x128xi32>
    %5 = arith.cmpi eq, %3, %4 : vector<512x128xi32>
    %6 = arith.extui %5 : vector<512x128xi1> to vector<512x128xi32>
    %7 = arith.sitofp %6 : vector<512x128xi32> to vector<512x128xf32>
    %8 = arith.truncf %7 : vector<512x128xf32> to vector<512x128xbf16>
    %9 = arith.truncf %0 : vector<512x128xf32> to vector<512x128xbf16>
    %10 = tpu.concatenate %9, %8 in 1 : vector<512x128xbf16>, vector<512x128xbf16> -> vector<512x256xbf16>
    %c0_1 = arith.constant 0 : index
    %c0_2 = arith.constant 0 : index
    %11 = vector.load %arg2[%c0_1, %c0_2] : memref<256x384xbf16, #tpu.memory_space<vmem>>, vector<256x384xbf16>
    %cst = arith.constant dense<0.000000e+00> : vector<512x384xf32>
    %12 = tpu.matmul %10, %11, %cst {dimension_numbers = #tpu.dot_dimension_numbers<[1], [0], [0], [1], [0, 0, 1, 1], [], []>} : vector<512x256xbf16>, vector<256x384xbf16>, vector<512x384xf32> -> vector<512x384xf32>
    %13 = vector.extract_strided_slice %12 {offsets = [0, 128], sizes = [512, 256], strides = [1, 1]} : vector<512x384xf32> to vector<512x256xf32>
    %c0_3 = arith.constant 0 : index
    %c0_4 = arith.constant 0 : index
    %14 = vector.load %arg8[%c0_3, %c0_4] : memref<512x256xf32, #tpu.memory_space<vmem>>, vector<512x256xf32>
    tpu.vector_store %arg8[%c0_3, %c0_4], %13 {strides = array<i32>} : memref<512x256xf32, #tpu.memory_space<vmem>>, vector<512x256xf32>,
    %15 = vector.extract_strided_slice %12 {offsets = [0, 0], sizes = [512, 128], strides = [1, 1]} : vector<512x384xf32> to vector<512x128xf32>
    %cst_5 = arith.constant 0.000000e+00 : f32
    %16 = vector.broadcast %cst_5 : f32 to vector<512x128xf32>
    %17 = arith.maximumf %15, %16 : vector<512x128xf32>
    %18 = arith.truncf %17 : vector<512x128xf32> to vector<512x128xbf16>
    %c0_6 = arith.constant 0 : index
    %c0_7 = arith.constant 0 : index
    %19 = vector.load %arg3[%c0_6, %c0_7] : memref<128x128xbf16, #tpu.memory_space<vmem>>, vector<128x128xbf16>
    %cst_8 = arith.constant dense<0.000000e+00> : vector<512x128xf32>
    %20 = tpu.matmul %18, %19, %cst_8 {dimension_numbers = #tpu.dot_dimension_numbers<[1], [0], [0], [1], [0, 0, 1, 1], [], []>} : vector<512x128xbf16>, vector<128x128xbf16>, vector<512x128xf32> -> vector<512x128xf32>
    %c0_9 = arith.constant 0 : index
    %c0_10 = arith.constant 0 : index
    %21 = vector.load %arg8[%c0_9, %c0_10] : memref<512x256xf32, #tpu.memory_space<vmem>>, vector<512x128xf32>
    %22 = arith.addf %20, %21 : vector<512x128xf32>
    %cst_11 = arith.constant 0.000000e+00 : f32
    %23 = vector.broadcast %cst_11 : f32 to vector<512x128xf32>
    %24 = arith.maximumf %22, %23 : vector<512x128xf32>
    %25 = arith.truncf %24 : vector<512x128xf32> to vector<512x128xbf16>
    %c0_12 = arith.constant 0 : index
    %c0_13 = arith.constant 0 : index
    %26 = vector.load %arg4[%c0_12, %c0_13] : memref<128x128xbf16, #tpu.memory_space<vmem>>, vector<128x128xbf16>
    %cst_14 = arith.constant dense<0.000000e+00> : vector<512x128xf32>
    %27 = tpu.matmul %25, %26, %cst_14 {dimension_numbers = #tpu.dot_dimension_numbers<[1], [0], [0], [1], [0, 0, 1, 1], [], []>} : vector<512x128xbf16>, vector<128x128xbf16>, vector<512x128xf32> -> vector<512x128xf32>
    %c0_15 = arith.constant 0 : index
    %c128 = arith.constant 128 : index
    %28 = vector.load %arg8[%c0_15, %c128] : memref<512x256xf32, #tpu.memory_space<vmem>>, vector<512x128xf32>
    %29 = arith.addf %27, %28 : vector<512x128xf32>
    %cst_16 = arith.constant 0.000000e+00 : f32
    %30 = vector.broadcast %cst_16 : f32 to vector<512x128xf32>
    %31 = arith.maximumf %29, %30 : vector<512x128xf32>
    %32 = arith.truncf %31 : vector<512x128xf32> to vector<512x128xbf16>
    %c0_17 = arith.constant 0 : index
    %c0_18 = arith.constant 0 : index
    %33 = vector.load %arg5[%c0_17, %c0_18] : memref<128x128xbf16, #tpu.memory_space<vmem>>, vector<128x128xbf16>
    %cst_19 = arith.constant dense<0.000000e+00> : vector<512x128xf32>
    %34 = tpu.matmul %32, %33, %cst_19 {dimension_numbers = #tpu.dot_dimension_numbers<[1], [0], [0], [1], [0, 0, 1, 1], [], []>} : vector<512x128xbf16>, vector<128x128xbf16>, vector<512x128xf32> -> vector<512x128xf32>
    %c0_20 = arith.constant 0 : index
    %c0_21 = arith.constant 0 : index
    %35 = vector.load %arg6[%c0_20, %c0_21] : memref<1x128xf32, #tpu.memory_space<vmem>>, vector<1x128xf32>
    %36 = vector.broadcast %35 : vector<1x128xf32> to vector<512x128xf32>
    %37 = arith.addf %34, %36 : vector<512x128xf32>
    %c0_22 = arith.constant 0 : index
    %c0_23 = arith.constant 0 : index
    %38 = vector.load %arg7[%c0_22, %c0_23] : memref<512x128xf32, #tpu.memory_space<vmem>>, vector<512x128xf32>
    tpu.vector_store %arg7[%c0_22, %c0_23], %37 {strides = array<i32>} : memref<512x128xf32, #tpu.memory_space<vmem>>, vector<512x128xf32>,
    return
  }
  func.func @transform_0(%arg0: i32) -> (i32, i32) {
    %c0_i32 = arith.constant 0 : i32
    %c0_i32_0 = arith.constant 0 : i32
    return %arg0, %c0_i32 : i32, i32
  }
  func.func @transform_1(%arg0: i32) -> (i32, i32) {
    %c0_i32 = arith.constant 0 : i32
    %c0_i32_0 = arith.constant 0 : i32
    %c0_i32_1 = arith.constant 0 : i32
    return %c0_i32, %c0_i32_0 : i32, i32
  }
  func.func @transform_2(%arg0: i32) -> (i32, i32) {
    %c0_i32 = arith.constant 0 : i32
    %c0_i32_0 = arith.constant 0 : i32
    %c0_i32_1 = arith.constant 0 : i32
    return %c0_i32, %c0_i32_0 : i32, i32
  }
  func.func @transform_3(%arg0: i32) -> (i32, i32) {
    %c0_i32 = arith.constant 0 : i32
    %c0_i32_0 = arith.constant 0 : i32
    %c0_i32_1 = arith.constant 0 : i32
    return %c0_i32, %c0_i32_0 : i32, i32
  }
  func.func @transform_4(%arg0: i32) -> (i32, i32) {
    %c0_i32 = arith.constant 0 : i32
    %c0_i32_0 = arith.constant 0 : i32
    %c0_i32_1 = arith.constant 0 : i32
    return %c0_i32, %c0_i32_0 : i32, i32
  }
  func.func @transform_5(%arg0: i32) -> (i32, i32) {
    %c0_i32 = arith.constant 0 : i32
    %c0_i32_0 = arith.constant 0 : i32
    %c0_i32_1 = arith.constant 0 : i32
    return %c0_i32, %c0_i32_0 : i32, i32
  }
  func.func @transform_6(%arg0: i32) -> (i32, i32) {
    %c0_i32 = arith.constant 0 : i32
    %c0_i32_0 = arith.constant 0 : i32
    return %arg0, %c0_i32 : i32, i32
  }
}

module attributes {stable_mosaic.version = 11 : i64} {
  func.func @_mlp_kernel_onehot(%arg0: i32, %arg1: memref<512x128xf32, #tpu.memory_space<vmem>>, %arg2: memref<256x384xbf16, #tpu.memory_space<vmem>>, %arg3: memref<128x128xbf16, #tpu.memory_space<vmem>>, %arg4: memref<128x128xbf16, #tpu.memory_space<vmem>>, %arg5: memref<128x128xbf16, #tpu.memory_space<vmem>>, %arg6: memref<1x128xf32, #tpu.memory_space<vmem>>, %arg7: memref<512x128xf32, #tpu.memory_space<vmem>>, %arg8: memref<512x256xf32, #tpu.memory_space<vmem>>) attributes {dimension_semantics = [#tpu.dimension_semantics<parallel>], iteration_bounds = array<i64: 2>, scalar_prefetch = 0 : i64, scratch_operands = 1 : i64, tpu.core_type = #tpu.core_type<tc>, window_params = [{transform_indices = @transform_0, window_bounds = array<i64: 512, 128>}, {pipeline_mode = #tpu.pipeline_mode<synchronous>, transform_indices = @transform_1, window_bounds = array<i64: 256, 384>}, {pipeline_mode = #tpu.pipeline_mode<synchronous>, transform_indices = @transform_2, window_bounds = array<i64: 128, 128>}, {pipeline_mode = #tpu.pipeline_mode<synchronous>, transform_indices = @transform_3, window_bounds = array<i64: 128, 128>}, {pipeline_mode = #tpu.pipeline_mode<synchronous>, transform_indices = @transform_4, window_bounds = array<i64: 128, 128>}, {pipeline_mode = #tpu.pipeline_mode<synchronous>, transform_indices = @transform_5, window_bounds = array<i64: 1, 128>}, {transform_indices = @transform_6, window_bounds = array<i64: 512, 128>}]} {
    %c0 = arith.constant 0 : index
    %c0_0 = arith.constant 0 : index
    %0 = vector.load %arg1[%c0, %c0_0] : memref<512x128xf32, #tpu.memory_space<vmem>>, vector<512x128xf32>
    %1 = vector.extract_strided_slice %0 {offsets = [0, 16], sizes = [512, 1], strides = [1, 1]} : vector<512x128xf32> to vector<512x1xf32>
    %2 = arith.fptosi %1 : vector<512x1xf32> to vector<512x1xi32>
    %3 = tpu.iota {dimensions = array<i32: 1>} : vector<512x128xi32>
    %4 = vector.broadcast %2 : vector<512x1xi32> to vector<512x128xi32>
    %5 = arith.cmpi eq, %3, %4 : vector<512x128xi32>
    %6 = arith.extui %5 : vector<512x128xi1> to vector<512x128xi32>
    %7 = arith.sitofp %6 : vector<512x128xi32> to vector<512x128xf32>
    %8 = arith.truncf %7 : vector<512x128xf32> to vector<512x128xbf16>
    %9 = arith.truncf %0 : vector<512x128xf32> to vector<512x128xbf16>
    %10 = tpu.concatenate %9, %8 in 1 : vector<512x128xbf16>, vector<512x128xbf16> -> vector<512x256xbf16>
    %c0_1 = arith.constant 0 : index
    %c0_2 = arith.constant 0 : index
    %11 = vector.load %arg2[%c0_1, %c0_2] : memref<256x384xbf16, #tpu.memory_space<vmem>>, vector<256x384xbf16>
    %cst = arith.constant dense<0.000000e+00> : vector<512x384xf32>
    %12 = tpu.matmul %10, %11, %cst {dimension_numbers = #tpu.dot_dimension_numbers<[1], [0], [0], [1], [0, 0, 1, 1], [], []>} : vector<512x256xbf16>, vector<256x384xbf16>, vector<512x384xf32> -> vector<512x384xf32>
    %13 = vector.extract_strided_slice %12 {offsets = [0, 128], sizes = [512, 256], strides = [1, 1]} : vector<512x384xf32> to vector<512x256xf32>
    %c0_3 = arith.constant 0 : index
    %c0_4 = arith.constant 0 : index
    %14 = vector.load %arg8[%c0_3, %c0_4] : memref<512x256xf32, #tpu.memory_space<vmem>>, vector<512x256xf32>
    tpu.vector_store %arg8[%c0_3, %c0_4], %13 {strides = array<i32>} : memref<512x256xf32, #tpu.memory_space<vmem>>, vector<512x256xf32>,
    %15 = vector.extract_strided_slice %12 {offsets = [0, 0], sizes = [512, 128], strides = [1, 1]} : vector<512x384xf32> to vector<512x128xf32>
    %cst_5 = arith.constant 0.000000e+00 : f32
    %16 = vector.broadcast %cst_5 : f32 to vector<512x128xf32>
    %17 = arith.maximumf %15, %16 : vector<512x128xf32>
    %18 = arith.truncf %17 : vector<512x128xf32> to vector<512x128xbf16>
    %c0_6 = arith.constant 0 : index
    %c0_7 = arith.constant 0 : index
    %19 = vector.load %arg3[%c0_6, %c0_7] : memref<128x128xbf16, #tpu.memory_space<vmem>>, vector<128x128xbf16>
    %cst_8 = arith.constant dense<0.000000e+00> : vector<512x128xf32>
    %20 = tpu.matmul %18, %19, %cst_8 {dimension_numbers = #tpu.dot_dimension_numbers<[1], [0], [0], [1], [0, 0, 1, 1], [], []>} : vector<512x128xbf16>, vector<128x128xbf16>, vector<512x128xf32> -> vector<512x128xf32>
    %c0_9 = arith.constant 0 : index
    %c0_10 = arith.constant 0 : index
    %21 = vector.load %arg8[%c0_9, %c0_10] : memref<512x256xf32, #tpu.memory_space<vmem>>, vector<512x128xf32>
    %22 = arith.addf %20, %21 : vector<512x128xf32>
    %cst_11 = arith.constant 0.000000e+00 : f32
    %23 = vector.broadcast %cst_11 : f32 to vector<512x128xf32>
    %24 = arith.maximumf %22, %23 : vector<512x128xf32>
    %25 = arith.truncf %24 : vector<512x128xf32> to vector<512x128xbf16>
    %c0_12 = arith.constant 0 : index
    %c0_13 = arith.constant 0 : index
    %26 = vector.load %arg4[%c0_12, %c0_13] : memref<128x128xbf16, #tpu.memory_space<vmem>>, vector<128x128xbf16>
    %cst_14 = arith.constant dense<0.000000e+00> : vector<512x128xf32>
    %27 = tpu.matmul %25, %26, %cst_14 {dimension_numbers = #tpu.dot_dimension_numbers<[1], [0], [0], [1], [0, 0, 1, 1], [], []>} : vector<512x128xbf16>, vector<128x128xbf16>, vector<512x128xf32> -> vector<512x128xf32>
    %c0_15 = arith.constant 0 : index
    %c128 = arith.constant 128 : index
    %28 = vector.load %arg8[%c0_15, %c128] : memref<512x256xf32, #tpu.memory_space<vmem>>, vector<512x128xf32>
    %29 = arith.addf %27, %28 : vector<512x128xf32>
    %cst_16 = arith.constant 0.000000e+00 : f32
    %30 = vector.broadcast %cst_16 : f32 to vector<512x128xf32>
    %31 = arith.maximumf %29, %30 : vector<512x128xf32>
    %32 = arith.truncf %31 : vector<512x128xf32> to vector<512x128xbf16>
    %c0_17 = arith.constant 0 : index
    %c0_18 = arith.constant 0 : index
    %33 = vector.load %arg5[%c0_17, %c0_18] : memref<128x128xbf16, #tpu.memory_space<vmem>>, vector<128x128xbf16>
    %cst_19 = arith.constant dense<0.000000e+00> : vector<512x128xf32>
    %34 = tpu.matmul %32, %33, %cst_19 {dimension_numbers = #tpu.dot_dimension_numbers<[1], [0], [0], [1], [0, 0, 1, 1], [], []>} : vector<512x128xbf16>, vector<128x128xbf16>, vector<512x128xf32> -> vector<512x128xf32>
    %c0_20 = arith.constant 0 : index
    %c0_21 = arith.constant 0 : index
    %35 = vector.load %arg6[%c0_20, %c0_21] : memref<1x128xf32, #tpu.memory_space<vmem>>, vector<1x128xf32>
    %36 = vector.broadcast %35 : vector<1x128xf32> to vector<512x128xf32>
    %37 = arith.addf %34, %36 : vector<512x128xf32>
    %c0_22 = arith.constant 0 : index
    %c0_23 = arith.constant 0 : index
    %38 = vector.load %arg7[%c0_22, %c0_23] : memref<512x128xf32, #tpu.memory_space<vmem>>, vector<512x128xf32>
    tpu.vector_store %arg7[%c0_22, %c0_23], %37 {strides = array<i32>} : memref<512x128xf32, #tpu.memory_space<vmem>>, vector<512x128xf32>,
    return
  }
  func.func @transform_0(%arg0: i32) -> (i32, i32) {
    %c0_i32 = arith.constant 0 : i32
    %c0_i32_0 = arith.constant 0 : i32
    return %arg0, %c0_i32 : i32, i32
  }
  func.func @transform_1(%arg0: i32) -> (i32, i32) {
    %c0_i32 = arith.constant 0 : i32
    %c0_i32_0 = arith.constant 0 : i32
    %c0_i32_1 = arith.constant 0 : i32
    return %c0_i32, %c0_i32_0 : i32, i32
  }
  func.func @transform_2(%arg0: i32) -> (i32, i32) {
    %c0_i32 = arith.constant 0 : i32
    %c0_i32_0 = arith.constant 0 : i32
    %c0_i32_1 = arith.constant 0 : i32
    return %c0_i32, %c0_i32_0 : i32, i32
  }
  func.func @transform_3(%arg0: i32) -> (i32, i32) {
    %c0_i32 = arith.constant 0 : i32
    %c0_i32_0 = arith.constant 0 : i32
    %c0_i32_1 = arith.constant 0 : i32
    return %c0_i32, %c0_i32_0 : i32, i32
  }
  func.func @transform_4(%arg0: i32) -> (i32, i32) {
    %c0_i32 = arith.constant 0 : i32
    %c0_i32_0 = arith.constant 0 : i32
    %c0_i32_1 = arith.constant 0 : i32
    return %c0_i32, %c0_i32_0 : i32, i32
  }
  func.func @transform_5(%arg0: i32) -> (i32, i32) {
    %c0_i32 = arith.constant 0 : i32
    %c0_i32_0 = arith.constant 0 : i32
    %c0_i32_1 = arith.constant 0 : i32
    return %c0_i32, %c0_i32_0 : i32, i32
  }
  func.func @transform_6(%arg0: i32) -> (i32, i32) {
    %c0_i32 = arith.constant 0 : i32
    %c0_i32_0 = arith.constant 0 : i32
    return %arg0, %c0_i32 : i32, i32
  }
}

</mosaic_0001>

<llo_original>
// kernel: tpu_custom_call.1
$region0: #{tpu_custom_call.1}
  #allocation0 [shape = 'u32[]', space=smem, size = 0x4, offset = 0x4, fixed_abs, tag = 'smem constant byte address 0x4 - core index']
  #allocation1 [shape = 'u32[144,128]{1,0:T(1,128)}', space=vmem, size = 0x12000, scoped, tag = 'internal scratch']
  #allocation2 [shape = 'f32[512,256]{1,0:T(8,128)}', space=vmem, size = 0x80000, scoped, tag = 'scratch operand']
  %s0 = inlined_call_operand.hbm [shape: f32[1024,128], index: 0, kind: input, shape index: {}]
  %s1 = inlined_call_operand.hbm [shape: bf16[256,384], index: 1, kind: input, shape index: {}]
  %s2 = inlined_call_operand.hbm [shape: bf16[128,128], index: 2, kind: input, shape index: {}]
  %s3 = inlined_call_operand.hbm [shape: bf16[128,128], index: 3, kind: input, shape index: {}]
  %s4 = inlined_call_operand.hbm [shape: bf16[128,128], index: 4, kind: input, shape index: {}]
  %s5 = inlined_call_operand.vmem [shape: f32[1,128], index: 5, kind: input, shape index: {}]
  %s6 = inlined_call_operand.hbm [shape: f32[1024,128], index: 6, kind: output, shape index: {}]
  %s7 = sld [smem:[#allocation0]]
  $region77: #{tpu_custom_call.1} parent=0
    _
  %s9 = ssub.s32 1, %s7
  %s10 = scalar_select 0, %s9, %s7
  $region1: #{tpu_custom_call.1} parent=0
    #allocation3 [shape = 'u8[524288]{0}', space=vmem, size = 0x80000, scoped, tag = 'input window, operand 0']
    #allocation4 [shape = 's32[2]{0}', space=sflag, size = 0x8, scoped, tag = 'scoped memory for tpu_custom_call.1']
    #allocation5 [shape = 's32[2]{0}', space=sflag, size = 0x8, scoped, tag = 'scoped memory for tpu_custom_call.1']
    #allocation6 [shape = 'u8[196608]{0}', space=vmem, size = 0x30000, scoped, tag = 'input window, operand 1, single buffered']
    #allocation7 [shape = 's32[1]{0}', space=sflag, size = 0x4, scoped, tag = 'scoped memory for tpu_custom_call.1']
    #allocation8 [shape = 'u8[32768]{0}', space=vmem, size = 0x8000, scoped, tag = 'input window, operand 2, single buffered']
    #allocation9 [shape = 'u8[32768]{0}', space=vmem, size = 0x8000, scoped, tag = 'input window, operand 3, single buffered']
    #allocation10 [shape = 's32[1]{0}', space=sflag, size = 0x4, scoped, tag = 'scoped memory for tpu_custom_call.1']
    #allocation11 [shape = 'u8[32768]{0}', space=vmem, size = 0x8000, scoped, tag = 'input window, operand 4, single buffered']
    #allocation12 [shape = 'u8[524288]{0}', space=vmem, size = 0x80000, scoped, tag = 'output window, operand 0']
    %11 = vsyncpa [#allocation4], 0
    %s12 = scalar_lea.sflag [#allocation4], 1
    %13 = vsyncpa %s12, 0
    %14 = vsyncpa [#allocation7], 0
    %15 = vsyncpa [#allocation10], 0
    %16 = vsyncpa [#allocation5], 0
    %s17 = scalar_lea.sflag [#allocation5], 1
    %18 = vsyncpa %s17, 0
    loop: start=0, step=1, limit=4
    $region2: #{tpu_custom_call.1} parent=1 // loop_pre_header
      _
    $region3: #{tpu_custom_call.1} parent=1 // loop_header
      %s20 = sphi 0, %s24
      %p21 = scmp.ge.s32.totalorder %s20, 4
      %s30 = sphi 0, %s32
      %s33 = sphi 0, %s30
      %s34 = sphi 0, %s33
      %s50 = sphi 0, %s34
      %s54 = sphi 0, %s54
      %s56 = sphi 0, %s54
      %s57 = sphi 0, %s56
      %s71 = sphi 0, %s57
      %s75 = sphi 0, %s75
      %s77 = sphi 0, %s75
      %s78 = sphi 0, %s77
      %s92 = sphi 0, %s78
      %s96 = sphi 0, %s96
      %s98 = sphi 0, %s96
      %s99 = sphi 0, %s98
      %s113 = sphi 0, %s99
      %s117 = sphi 0, %s117
      %s119 = sphi 0, %s117
      %s120 = sphi 0, %s119
      %s134 = sphi 0, %s120
      %s138 = sphi 0, %s138
      %s140 = sphi 0, %s138
      %s141 = sphi 0, %s140
      %s155 = sphi 0, %s141
      %s161 = sphi 0, %s163
      %s164 = sphi 0, %s161
      %s165 = sphi 0, %s164
      %s181 = sphi 0, %s165
    $region4: #{tpu_custom_call.1} parent=1 // loop_header_branch
      %23 = sbr.rel (%p21) target = $region8
    $region5: #{tpu_custom_call.1} parent=1 // loop_body
      %s25 = ssub.s32 %s20, 1
      %s26 = ssub.s32 %s20, 2
      %s27 = sadd.s32 %s20, 1
      %s28 = ssub.s32 %s20, %s27
      %p29 = scmp.eq.s32.totalorder %s28, 0
      %s31 = sadd.s32 %s30, 1
      %s32 = scalar_select %p29, %s30, %s31
      %p35 = pneg %p29
      %p36 = scmp.eq.s32.totalorder %s20, 1
      %p37 = por %p35, %p36
      %p38 = scmp.ne.s32.totalorder %s30, %s33
      %p39 = scmp.eq.s32.totalorder %s20, 0
      %p40 = por %p38, %p39
      %p41 = scmp.ne.s32.totalorder %s30, %s33
      %p42 = scmp.eq.s32.totalorder %s25, 1
      %p43 = por %p41, %p42
      %p44 = scmp.ne.s32.totalorder %s33, %s34
      %p45 = scmp.eq.s32.totalorder %s25, 0
      %p46 = por %p44, %p45
      %p47 = scmp.ne.s32.totalorder %s33, %s34
      %p48 = scmp.eq.s32.totalorder %s26, 1
      %p49 = por %p47, %p48
      %p51 = scmp.ne.s32.totalorder %s34, %s50
      %p52 = scmp.eq.s32.totalorder %s26, 0
      %p53 = por %p51, %p52
      %s55 = sadd.s32 %s54, 1
      %p58 = scmp.eq.s32.totalorder %s20, 1
      %p59 = scmp.ne.s32.totalorder %s54, %s56
      %p60 = scmp.eq.s32.totalorder %s20, 0
      %p61 = por %p59, %p60
      %p62 = scmp.ne.s32.totalorder %s54, %s56
      %p63 = scmp.eq.s32.totalorder %s25, 1
      %p64 = por %p62, %p63
      %p65 = scmp.ne.s32.totalorder %s56, %s57
      %p66 = scmp.eq.s32.totalorder %s25, 0
      %p67 = por %p65, %p66
      %p68 = scmp.ne.s32.totalorder %s56, %s57
      %p69 = scmp.eq.s32.totalorder %s26, 1
      %p70 = por %p68, %p69
      %p72 = scmp.ne.s32.totalorder %s57, %s71
      %p73 = scmp.eq.s32.totalorder %s26, 0
      %p74 = por %p72, %p73
      %s76 = sadd.s32 %s75, 1
      %p79 = scmp.eq.s32.totalorder %s20, 1
      %p80 = scmp.ne.s32.totalorder %s75, %s77
      %p81 = scmp.eq.s32.totalorder %s20, 0
      %p82 = por %p80, %p81
      %p83 = scmp.ne.s32.totalorder %s75, %s77
      %p84 = scmp.eq.s32.totalorder %s25, 1
      %p85 = por %p83, %p84
      %p86 = scmp.ne.s32.totalorder %s77, %s78
      %p87 = scmp.eq.s32.totalorder %s25, 0
      %p88 = por %p86, %p87
      %p89 = scmp.ne.s32.totalorder %s77, %s78
      %p90 = scmp.eq.s32.totalorder %s26, 1
      %p91 = por %p89, %p90
      %p93 = scmp.ne.s32.totalorder %s78, %s92
      %p94 = scmp.eq.s32.totalorder %s26, 0
      %p95 = por %p93, %p94
      %s97 = sadd.s32 %s96, 1
      %p100 = scmp.eq.s32.totalorder %s20, 1
      %p101 = scmp.ne.s32.totalorder %s96, %s98
      %p102 = scmp.eq.s32.totalorder %s20, 0
      %p103 = por %p101, %p102
      %p104 = scmp.ne.s32.totalorder %s96, %s98
      %p105 = scmp.eq.s32.totalorder %s25, 1
      %p106 = por %p104, %p105
      %p107 = scmp.ne.s32.totalorder %s98, %s99
      %p108 = scmp.eq.s32.totalorder %s25, 0
      %p109 = por %p107, %p108
      %p110 = scmp.ne.s32.totalorder %s98, %s99
      %p111 = scmp.eq.s32.totalorder %s26, 1
      %p112 = por %p110, %p111
      %p114 = scmp.ne.s32.totalorder %s99, %s113
      %p115 = scmp.eq.s32.totalorder %s26, 0
      %p116 = por %p114, %p115
      %s118 = sadd.s32 %s117, 1
      %p121 = scmp.eq.s32.totalorder %s20, 1
      %p122 = scmp.ne.s32.totalorder %s117, %s119
      %p123 = scmp.eq.s32.totalorder %s20, 0
      %p124 = por %p122, %p123
      %p125 = scmp.ne.s32.totalorder %s117, %s119
      %p126 = scmp.eq.s32.totalorder %s25, 1
      %p127 = por %p125, %p126
      %p128 = scmp.ne.s32.totalorder %s119, %s120
      %p129 = scmp.eq.s32.totalorder %s25, 0
      %p130 = por %p128, %p129
      %p131 = scmp.ne.s32.totalorder %s119, %s120
      %p132 = scmp.eq.s32.totalorder %s26, 1
      %p133 = por %p131, %p132
      %p135 = scmp.ne.s32.totalorder %s120, %s134
      %p136 = scmp.eq.s32.totalorder %s26, 0
      %p137 = por %p135, %p136
      %s139 = sadd.s32 %s138, 1
      %p142 = scmp.eq.s32.totalorder %s20, 1
      %p143 = scmp.ne.s32.totalorder %s138, %s140
      %p144 = scmp.eq.s32.totalorder %s20, 0
      %p145 = por %p143, %p144
      %p146 = scmp.ne.s32.totalorder %s138, %s140
      %p147 = scmp.eq.s32.totalorder %s25, 1
      %p148 = por %p146, %p147
      %p149 = scmp.ne.s32.totalorder %s140, %s141
      %p150 = scmp.eq.s32.totalorder %s25, 0
      %p151 = por %p149, %p150
      %p152 = scmp.ne.s32.totalorder %s140, %s141
      %p153 = scmp.eq.s32.totalorder %s26, 1
      %p154 = por %p152, %p153
      %p156 = scmp.ne.s32.totalorder %s141, %s155
      %p157 = scmp.eq.s32.totalorder %s26, 0
      %p158 = por %p156, %p157
      %s159 = ssub.s32 %s20, %s27
      %p160 = scmp.eq.s32.totalorder %s159, 0
      %s162 = sadd.s32 %s161, 1
      %s163 = scalar_select %p160, %s161, %s162
      %p166 = pneg %p160
      %p167 = scmp.eq.s32.totalorder %s20, 1
      %p168 = por %p166, %p167
      %p169 = scmp.ne.s32.totalorder %s161, %s164
      %p170 = scmp.eq.s32.totalorder %s20, 0
      %p171 = por %p169, %p170
      %p172 = scmp.ne.s32.totalorder %s161, %s164
      %p173 = scmp.eq.s32.totalorder %s25, 1
      %p174 = por %p172, %p173
      %p175 = scmp.ne.s32.totalorder %s164, %s165
      %p176 = scmp.eq.s32.totalorder %s25, 0
      %p177 = por %p175, %p176
      %p178 = scmp.ne.s32.totalorder %s164, %s165
      %p179 = scmp.eq.s32.totalorder %s26, 1
      %p180 = por %p178, %p179
      %p182 = scmp.ne.s32.totalorder %s165, %s181
      %p183 = scmp.eq.s32.totalorder %s26, 0
      %p184 = por %p182, %p183
      %p185 = scmp.le.s32.totalorder 1, %s20
      %p186 = scmp.lt.s32.totalorder %s20, 3
      %p187 = pnand %p185, %p186
      %p188 = pneg %p187
      // Predicated region
      $region9: #{tpu_custom_call.1} parent=5 // pred_check
        _
      $region10: #{tpu_custom_call.1} parent=5 // pred_check_branch
        %190 = sbr.rel (%p187) target = $region12
      $region11: #{tpu_custom_call.1} parent=5 // pred_region
        %s191 = ssub.s32 %s20, 1
        // Predicated region
        $region13: #{tpu_custom_call.1} parent=11 // pred_check
          %p192 = pneg %p67
        $region14: #{tpu_custom_call.1} parent=11 // pred_check_branch
          %194 = sbr.rel (%p192) target = $region16
        $region15: #{tpu_custom_call.1} parent=11 // pred_region
          %s196 = ssub.s32 6144, 6144
          %197 = vsyncadd [#allocation7], %s196
          %s198 = sshll.u32 [#allocation6], 4
          %s199 = int_to_ptr.vmem [resolvable:$true] %s198
          %204 = dma.hbm_to_vmem [thread:$0]  %s1, 6144, %s199, [#allocation7], 192, 192, 12
        $region16: #{tpu_custom_call.1} parent=11 // pred_fallthru
          _
        // Predicated region
        $region17: #{tpu_custom_call.1} parent=11 // pred_check
          %p205 = pneg %p88
        $region18: #{tpu_custom_call.1} parent=11 // pred_check_branch
          %207 = sbr.rel (%p205) target = $region20
        $region19: #{tpu_custom_call.1} parent=11 // pred_region
          %s209 = ssub.s32 1024, 1024
          %210 = vsyncadd [#allocation7], %s209
          %s211 = sshll.u32 [#allocation8], 4
          %s212 = int_to_ptr.vmem [resolvable:$true] %s211
          %217 = dma.hbm_to_vmem [thread:$0]  %s2, 1024, %s212, [#allocation7], 64, 64, 4
        $region20: #{tpu_custom_call.1} parent=11 // pred_fallthru
          _
        // Predicated region
        $region21: #{tpu_custom_call.1} parent=11 // pred_check
          %p218 = pneg %p109
        $region22: #{tpu_custom_call.1} parent=11 // pred_check_branch
          %220 = sbr.rel (%p218) target = $region24
        $region23: #{tpu_custom_call.1} parent=11 // pred_region
          %s222 = ssub.s32 1024, 1024
          %223 = vsyncadd [#allocation10], %s222
          %s224 = sshll.u32 [#allocation9], 4
          %s225 = int_to_ptr.vmem [resolvable:$true] %s224
          %230 = dma.hbm_to_vmem [thread:$0]  %s3, 1024, %s225, [#allocation10], 64, 64, 4
        $region24: #{tpu_custom_call.1} parent=11 // pred_fallthru
          _
        // Predicated region
        $region25: #{tpu_custom_call.1} parent=11 // pred_check
          %p231 = pneg %p130
        $region26: #{tpu_custom_call.1} parent=11 // pred_check_branch
          %233 = sbr.rel (%p231) target = $region28
        $region27: #{tpu_custom_call.1} parent=11 // pred_region
          %s235 = ssub.s32 1024, 1024
          %236 = vsyncadd [#allocation10], %s235
          %s237 = sshll.u32 [#allocation11], 4
          %s238 = int_to_ptr.vmem [resolvable:$true] %s237
          %243 = dma.hbm_to_vmem [thread:$0]  %s4, 1024, %s238, [#allocation10], 64, 64, 4
        $region28: #{tpu_custom_call.1} parent=11 // pred_fallthru
          _
        // Predicated region
        $region29: #{tpu_custom_call.1} parent=11 // pred_check
          %p244 = pneg %p151
        $region30: #{tpu_custom_call.1} parent=11 // pred_check_branch
          %246 = sbr.rel (%p244) target = $region32
        $region31: #{tpu_custom_call.1} parent=11 // pred_region
          _
        $region32: #{tpu_custom_call.1} parent=11 // pred_fallthru
          _
      $region12: #{tpu_custom_call.1} parent=5 // pred_fallthru
        _
      %p247 = scmp.lt.s32.totalorder %s20, 2
      // Predicated region
      $region33: #{tpu_custom_call.1} parent=5 // pred_check
        %p248 = pneg %p247
      $region34: #{tpu_custom_call.1} parent=5 // pred_check_branch
        %250 = sbr.rel (%p248) target = $region36
      $region35: #{tpu_custom_call.1} parent=5 // pred_region
        // Predicated region
        $region37: #{tpu_custom_call.1} parent=35 // pred_check
          %p251 = pneg %p40
        $region38: #{tpu_custom_call.1} parent=35 // pred_check_branch
          %253 = sbr.rel (%p251) target = $region40
        $region39: #{tpu_custom_call.1} parent=35 // pred_region
          %s254 = sand.u32 %s30, 1
          %s255 = scalar_lea.sflag [#allocation4], %s254
          %s256 = sand.u32 %s30, 1
          %s257 = smul.addr %s256, 512
          %s258 = scalar_lea.vmem [#allocation3], %s257
          %s259 = smul.u32 64, %s20
          %s261 = ssub.s32 8192, 8192
          %262 = vsyncadd %s255, %s261
          %s263 = smul.addr %s259, 128
          %s264 = scalar_lea.hbm %s0, %s263
          %s265 = sshll.u32 %s258, 4
          %s266 = int_to_ptr.vmem [resolvable:$true] %s265
          %271 = dma.hbm_to_vmem [thread:$0]  %s264, 8192, %s266, %s255, 128, 128, 8
        $region40: #{tpu_custom_call.1} parent=35 // pred_fallthru
          _
      $region36: #{tpu_custom_call.1} parent=5 // pred_fallthru
        _
      %p272 = scmp.le.s32.totalorder 1, %s20
      %p273 = scmp.lt.s32.totalorder %s20, 3
      %p274 = pnand %p272, %p273
      %p275 = pneg %p274
      // Predicated region
      $region41: #{tpu_custom_call.1} parent=5 // pred_check
        _
      $region42: #{tpu_custom_call.1} parent=5 // pred_check_branch
        %277 = sbr.rel (%p274) target = $region44
      $region43: #{tpu_custom_call.1} parent=5 // pred_region
        %s278 = ssub.s32 %s20, 1
        %s279 = sand.u32 %s33, 1
        %s280 = scalar_lea.sflag [#allocation4], %s279
        %s281 = sand.u32 %s33, 1
        %s282 = smul.addr %s281, 512
        %s283 = scalar_lea.vmem [#allocation3], %s282
        // Predicated region
        $region45: #{tpu_custom_call.1} parent=43 // pred_check
          %p284 = pneg %p46
        $region46: #{tpu_custom_call.1} parent=43 // pred_check_branch
          %286 = sbr.rel (%p284) target = $region48
        $region47: #{tpu_custom_call.1} parent=43 // pred_region
          %287 = dma.done %s280, 8192
        $region48: #{tpu_custom_call.1} parent=43 // pred_fallthru
          _
        // Predicated region
        $region49: #{tpu_custom_call.1} parent=43 // pred_check
          %p288 = pneg %p67
        $region50: #{tpu_custom_call.1} parent=43 // pred_check_branch
          %290 = sbr.rel (%p288) target = $region52
        $region51: #{tpu_custom_call.1} parent=43 // pred_region
          %291 = dma.done [#allocation7], 6144
        $region52: #{tpu_custom_call.1} parent=43 // pred_fallthru
          _
        // Predicated region
        $region53: #{tpu_custom_call.1} parent=43 // pred_check
          %p292 = pneg %p88
        $region54: #{tpu_custom_call.1} parent=43 // pred_check_branch
          %294 = sbr.rel (%p292) target = $region56
        $region55: #{tpu_custom_call.1} parent=43 // pred_region
          %295 = dma.done [#allocation7], 1024
        $region56: #{tpu_custom_call.1} parent=43 // pred_fallthru
          _
        // Predicated region
        $region57: #{tpu_custom_call.1} parent=43 // pred_check
          %p296 = pneg %p109
        $region58: #{tpu_custom_call.1} parent=43 // pred_check_branch
          %298 = sbr.rel (%p296) target = $region60
        $region59: #{tpu_custom_call.1} parent=43 // pred_region
          %299 = dma.done [#allocation10], 1024
        $region60: #{tpu_custom_call.1} parent=43 // pred_fallthru
          _
        // Predicated region
        $region61: #{tpu_custom_call.1} parent=43 // pred_check
          %p300 = pneg %p130
        $region62: #{tpu_custom_call.1} parent=43 // pred_check_branch
          %302 = sbr.rel (%p300) target = $region64
        $region63: #{tpu_custom_call.1} parent=43 // pred_region
          %303 = dma.done [#allocation10], 1024
        $region64: #{tpu_custom_call.1} parent=43 // pred_fallthru
          _
        %s304 = sand.u32 %s33, 1
        %s305 = scalar_lea.sflag [#allocation4], %s304
        %s306 = sand.u32 %s33, 1
        %s307 = smul.addr %s306, 512
        %s308 = scalar_lea.vmem [#allocation3], %s307
        %p309 = pneg %p46
        %p310 = pneg %p43
        %p311 = pneg %p67
        %p312 = pneg %p64
        %p313 = pneg %p88
        %p314 = pneg %p85
        %p315 = pneg %p109
        %p316 = pneg %p106
        %p317 = pneg %p130
        %p318 = pneg %p127
        %p319 = pneg %p151
        %p320 = pneg %p148
        %p321 = pneg %p177
        %p322 = pneg %p174
        %s323 = sand.u32 %s164, 1
        %s324 = scalar_lea.sflag [#allocation5], %s323
        %s325 = sand.u32 %s164, 1
        %s326 = smul.addr %s325, 512
        %s327 = scalar_lea.vmem [#allocation12], %s326
        %s328 = smul.u32 64, %s25
        %s329 = smul.u32 64, %s25
        %v331 = vld [vmem:[%s283] sm:$0xff]
        %v332 = vld [vmem:[%s283 + $0x8] sm:$0xff]
        %v333 = vld [vmem:[%s283 + $0x10] sm:$0xff]
        %v334 = vld [vmem:[%s283 + $0x18] sm:$0xff]
        %v335 = vld [vmem:[%s283 + $0x20] sm:$0xff]
        %v336 = vld [vmem:[%s283 + $0x28] sm:$0xff]
        %v337 = vld [vmem:[%s283 + $0x30] sm:$0xff]
        %v338 = vld [vmem:[%s283 + $0x38] sm:$0xff]
        %v339 = vld [vmem:[%s283 + $0x40] sm:$0xff]
        %v340 = vld [vmem:[%s283 + $0x48] sm:$0xff]
        %v341 = vld [vmem:[%s283 + $0x50] sm:$0xff]
        %v342 = vld [vmem:[%s283 + $0x58] sm:$0xff]
        %v343 = vld [vmem:[%s283 + $0x60] sm:$0xff]
        %v344 = vld [vmem:[%s283 + $0x68] sm:$0xff]
        %v345 = vld [vmem:[%s283 + $0x70] sm:$0xff]
        %v346 = vld [vmem:[%s283 + $0x78] sm:$0xff]
        %v347 = vld [vmem:[%s283 + $0x80] sm:$0xff]
        %v348 = vld [vmem:[%s283 + $0x88] sm:$0xff]
        %v349 = vld [vmem:[%s283 + $0x90] sm:$0xff]
        %v350 = vld [vmem:[%s283 + $0x98] sm:$0xff]
        %v351 = vld [vmem:[%s283 + $0xa0] sm:$0xff]
        %v352 = vld [vmem:[%s283 + $0xa8] sm:$0xff]
        %v353 = vld [vmem:[%s283 + $0xb0] sm:$0xff]
        %v354 = vld [vmem:[%s283 + $0xb8] sm:$0xff]
        %v355 = vld [vmem:[%s283 + $0xc0] sm:$0xff]
        %v356 = vld [vmem:[%s283 + $0xc8] sm:$0xff]
        %v357 = vld [vmem:[%s283 + $0xd0] sm:$0xff]
        %v358 = vld [vmem:[%s283 + $0xd8] sm:$0xff]
        %v359 = vld [vmem:[%s283 + $0xe0] sm:$0xff]
        %v360 = vld [vmem:[%s283 + $0xe8] sm:$0xff]
        %v361 = vld [vmem:[%s283 + $0xf0] sm:$0xff]
        %v362 = vld [vmem:[%s283 + $0xf8] sm:$0xff]
        %v363 = vld [vmem:[%s283 + $0x100] sm:$0xff]
        %v364 = vld [vmem:[%s283 + $0x108] sm:$0xff]
        %v365 = vld [vmem:[%s283 + $0x110] sm:$0xff]
        %v366 = vld [vmem:[%s283 + $0x118] sm:$0xff]
        %v367 = vld [vmem:[%s283 + $0x120] sm:$0xff]
        %v368 = vld [vmem:[%s283 + $0x128] sm:$0xff]
        %v369 = vld [vmem:[%s283 + $0x130] sm:$0xff]
        %v370 = vld [vmem:[%s283 + $0x138] sm:$0xff]
        %v371 = vld [vmem:[%s283 + $0x140] sm:$0xff]
        %v372 = vld [vmem:[%s283 + $0x148] sm:$0xff]
        %v373 = vld [vmem:[%s283 + $0x150] sm:$0xff]
        %v374 = vld [vmem:[%s283 + $0x158] sm:$0xff]
        %v375 = vld [vmem:[%s283 + $0x160] sm:$0xff]
        %v376 = vld [vmem:[%s283 + $0x168] sm:$0xff]
        %v377 = vld [vmem:[%s283 + $0x170] sm:$0xff]
        %v378 = vld [vmem:[%s283 + $0x178] sm:$0xff]
        %v379 = vld [vmem:[%s283 + $0x180] sm:$0xff]
        %v380 = vld [vmem:[%s283 + $0x188] sm:$0xff]
        %v381 = vld [vmem:[%s283 + $0x190] sm:$0xff]
        %v382 = vld [vmem:[%s283 + $0x198] sm:$0xff]
        %v383 = vld [vmem:[%s283 + $0x1a0] sm:$0xff]
        %v384 = vld [vmem:[%s283 + $0x1a8] sm:$0xff]
        %v385 = vld [vmem:[%s283 + $0x1b0] sm:$0xff]
        %v386 = vld [vmem:[%s283 + $0x1b8] sm:$0xff]
        %v387 = vld [vmem:[%s283 + $0x1c0] sm:$0xff]
        %v388 = vld [vmem:[%s283 + $0x1c8] sm:$0xff]
        %v389 = vld [vmem:[%s283 + $0x1d0] sm:$0xff]
        %v390 = vld [vmem:[%s283 + $0x1d8] sm:$0xff]
        %v391 = vld [vmem:[%s283 + $0x1e0] sm:$0xff]
        %v392 = vld [vmem:[%s283 + $0x1e8] sm:$0xff]
        %v393 = vld [vmem:[%s283 + $0x1f0] sm:$0xff]
        %v394 = vld [vmem:[%s283 + $0x1f8] sm:$0xff]
        %v395 = vcvt.f32.s32.to.zero.pseudo %v331
        %v396 = vcvt.f32.s32.to.zero.pseudo %v332
        %v397 = vcvt.f32.s32.to.zero.pseudo %v333
        %v398 = vcvt.f32.s32.to.zero.pseudo %v334
        %v399 = vcvt.f32.s32.to.zero.pseudo %v335
        %v400 = vcvt.f32.s32.to.zero.pseudo %v336
        %v401 = vcvt.f32.s32.to.zero.pseudo %v337
        %v402 = vcvt.f32.s32.to.zero.pseudo %v338
        %v403 = vcvt.f32.s32.to.zero.pseudo %v339
        %v404 = vcvt.f32.s32.to.zero.pseudo %v340
        %v405 = vcvt.f32.s32.to.zero.pseudo %v341
        %v406 = vcvt.f32.s32.to.zero.pseudo %v342
        %v407 = vcvt.f32.s32.to.zero.pseudo %v343
        %v408 = vcvt.f32.s32.to.zero.pseudo %v344
        %v409 = vcvt.f32.s32.to.zero.pseudo %v345
        %v410 = vcvt.f32.s32.to.zero.pseudo %v346
        %v411 = vcvt.f32.s32.to.zero.pseudo %v347
        %v412 = vcvt.f32.s32.to.zero.pseudo %v348
        %v413 = vcvt.f32.s32.to.zero.pseudo %v349
        %v414 = vcvt.f32.s32.to.zero.pseudo %v350
        %v415 = vcvt.f32.s32.to.zero.pseudo %v351
        %v416 = vcvt.f32.s32.to.zero.pseudo %v352
        %v417 = vcvt.f32.s32.to.zero.pseudo %v353
        %v418 = vcvt.f32.s32.to.zero.pseudo %v354
        %v419 = vcvt.f32.s32.to.zero.pseudo %v355
        %v420 = vcvt.f32.s32.to.zero.pseudo %v356
        %v421 = vcvt.f32.s32.to.zero.pseudo %v357
        %v422 = vcvt.f32.s32.to.zero.pseudo %v358
        %v423 = vcvt.f32.s32.to.zero.pseudo %v359
        %v424 = vcvt.f32.s32.to.zero.pseudo %v360
        %v425 = vcvt.f32.s32.to.zero.pseudo %v361
        %v426 = vcvt.f32.s32.to.zero.pseudo %v362
        %v427 = vcvt.f32.s32.to.zero.pseudo %v363
        %v428 = vcvt.f32.s32.to.zero.pseudo %v364
        %v429 = vcvt.f32.s32.to.zero.pseudo %v365
        %v430 = vcvt.f32.s32.to.zero.pseudo %v366
        %v431 = vcvt.f32.s32.to.zero.pseudo %v367
        %v432 = vcvt.f32.s32.to.zero.pseudo %v368
        %v433 = vcvt.f32.s32.to.zero.pseudo %v369
        %v434 = vcvt.f32.s32.to.zero.pseudo %v370
        %v435 = vcvt.f32.s32.to.zero.pseudo %v371
        %v436 = vcvt.f32.s32.to.zero.pseudo %v372
        %v437 = vcvt.f32.s32.to.zero.pseudo %v373
        %v438 = vcvt.f32.s32.to.zero.pseudo %v374
        %v439 = vcvt.f32.s32.to.zero.pseudo %v375
        %v440 = vcvt.f32.s32.to.zero.pseudo %v376
        %v441 = vcvt.f32.s32.to.zero.pseudo %v377
        %v442 = vcvt.f32.s32.to.zero.pseudo %v378
        %v443 = vcvt.f32.s32.to.zero.pseudo %v379
        %v444 = vcvt.f32.s32.to.zero.pseudo %v380
        %v445 = vcvt.f32.s32.to.zero.pseudo %v381
        %v446 = vcvt.f32.s32.to.zero.pseudo %v382
        %v447 = vcvt.f32.s32.to.zero.pseudo %v383
        %v448 = vcvt.f32.s32.to.zero.pseudo %v384
        %v449 = vcvt.f32.s32.to.zero.pseudo %v385
        %v450 = vcvt.f32.s32.to.zero.pseudo %v386
        %v451 = vcvt.f32.s32.to.zero.pseudo %v387
        %v452 = vcvt.f32.s32.to.zero.pseudo %v388
        %v453 = vcvt.f32.s32.to.zero.pseudo %v389
        %v454 = vcvt.f32.s32.to.zero.pseudo %v390
        %v455 = vcvt.f32.s32.to.zero.pseudo %v391
        %v456 = vcvt.f32.s32.to.zero.pseudo %v392
        %v457 = vcvt.f32.s32.to.zero.pseudo %v393
        %v458 = vcvt.f32.s32.to.zero.pseudo %v394
        %v459 = vlaneseq
        %v460 = vand.u32 %v459, 127
        %461 = vset.pattern.permute.xlu0 16
        %462 = vperm.xlu0 %461, %v395
        %v463 = vpop.permute.xlu0 %462
        %464 = vset.pattern.permute.xlu0 16
        %465 = vperm.xlu0 %464, %v396
        %v466 = vpop.permute.xlu0 %465
        %467 = vset.pattern.permute.xlu0 16
        %468 = vperm.xlu0 %467, %v397
        %v469 = vpop.permute.xlu0 %468
        %470 = vset.pattern.permute.xlu0 16
        %471 = vperm.xlu0 %470, %v398
        %v472 = vpop.permute.xlu0 %471
        %473 = vset.pattern.permute.xlu0 16
        %474 = vperm.xlu0 %473, %v399
        %v475 = vpop.permute.xlu0 %474
        %476 = vset.pattern.permute.xlu0 16
        %477 = vperm.xlu0 %476, %v400
        %v478 = vpop.permute.xlu0 %477
        %479 = vset.pattern.permute.xlu0 16
        %480 = vperm.xlu0 %479, %v401
        %v481 = vpop.permute.xlu0 %480
        %482 = vset.pattern.permute.xlu0 16
        %483 = vperm.xlu0 %482, %v402
        %v484 = vpop.permute.xlu0 %483
        %485 = vset.pattern.permute.xlu0 16
        %486 = vperm.xlu0 %485, %v403
        %v487 = vpop.permute.xlu0 %486
        %488 = vset.pattern.permute.xlu0 16
        %489 = vperm.xlu0 %488, %v404
        %v490 = vpop.permute.xlu0 %489
        %491 = vset.pattern.permute.xlu0 16
        %492 = vperm.xlu0 %491, %v405
        %v493 = vpop.permute.xlu0 %492
        %494 = vset.pattern.permute.xlu0 16
        %495 = vperm.xlu0 %494, %v406
        %v496 = vpop.permute.xlu0 %495
        %497 = vset.pattern.permute.xlu0 16
        %498 = vperm.xlu0 %497, %v407
        %v499 = vpop.permute.xlu0 %498
        %500 = vset.pattern.permute.xlu0 16
        %501 = vperm.xlu0 %500, %v408
        %v502 = vpop.permute.xlu0 %501
        %503 = vset.pattern.permute.xlu0 16
        %504 = vperm.xlu0 %503, %v409
        %v505 = vpop.permute.xlu0 %504
        %506 = vset.pattern.permute.xlu0 16
        %507 = vperm.xlu0 %506, %v410
        %v508 = vpop.permute.xlu0 %507
        %509 = vset.pattern.permute.xlu0 16
        %510 = vperm.xlu0 %509, %v411
        %v511 = vpop.permute.xlu0 %510
        %512 = vset.pattern.permute.xlu0 16
        %513 = vperm.xlu0 %512, %v412
        %v514 = vpop.permute.xlu0 %513
        %515 = vset.pattern.permute.xlu0 16
        %516 = vperm.xlu0 %515, %v413
        %v517 = vpop.permute.xlu0 %516
        %518 = vset.pattern.permute.xlu0 16
        %519 = vperm.xlu0 %518, %v414
        %v520 = vpop.permute.xlu0 %519
        %521 = vset.pattern.permute.xlu0 16
        %522 = vperm.xlu0 %521, %v415
        %v523 = vpop.permute.xlu0 %522
        %524 = vset.pattern.permute.xlu0 16
        %525 = vperm.xlu0 %524, %v416
        %v526 = vpop.permute.xlu0 %525
        %527 = vset.pattern.permute.xlu0 16
        %528 = vperm.xlu0 %527, %v417
        %v529 = vpop.permute.xlu0 %528
        %530 = vset.pattern.permute.xlu0 16
        %531 = vperm.xlu0 %530, %v418
        %v532 = vpop.permute.xlu0 %531
        %533 = vset.pattern.permute.xlu0 16
        %534 = vperm.xlu0 %533, %v419
        %v535 = vpop.permute.xlu0 %534
        %536 = vset.pattern.permute.xlu0 16
        %537 = vperm.xlu0 %536, %v420
        %v538 = vpop.permute.xlu0 %537
        %539 = vset.pattern.permute.xlu0 16
        %540 = vperm.xlu0 %539, %v421
        %v541 = vpop.permute.xlu0 %540
        %542 = vset.pattern.permute.xlu0 16
        %543 = vperm.xlu0 %542, %v422
        %v544 = vpop.permute.xlu0 %543
        %545 = vset.pattern.permute.xlu0 16
        %546 = vperm.xlu0 %545, %v423
        %v547 = vpop.permute.xlu0 %546
        %548 = vset.pattern.permute.xlu0 16
        %549 = vperm.xlu0 %548, %v424
        %v550 = vpop.permute.xlu0 %549
        %551 = vset.pattern.permute.xlu0 16
        %552 = vperm.xlu0 %551, %v425
        %v553 = vpop.permute.xlu0 %552
        %554 = vset.pattern.permute.xlu0 16
        %555 = vperm.xlu0 %554, %v426
        %v556 = vpop.permute.xlu0 %555
        %557 = vset.pattern.permute.xlu0 16
        %558 = vperm.xlu0 %557, %v427
        %v559 = vpop.permute.xlu0 %558
        %560 = vset.pattern.permute.xlu0 16
        %561 = vperm.xlu0 %560, %v428
        %v562 = vpop.permute.xlu0 %561
        %563 = vset.pattern.permute.xlu0 16
        %564 = vperm.xlu0 %563, %v429
        %v565 = vpop.permute.xlu0 %564
        %566 = vset.pattern.permute.xlu0 16
        %567 = vperm.xlu0 %566, %v430
        %v568 = vpop.permute.xlu0 %567
        %569 = vset.pattern.permute.xlu0 16
        %570 = vperm.xlu0 %569, %v431
        %v571 = vpop.permute.xlu0 %570
        %572 = vset.pattern.permute.xlu0 16
        %573 = vperm.xlu0 %572, %v432
        %v574 = vpop.permute.xlu0 %573
        %575 = vset.pattern.permute.xlu0 16
        %576 = vperm.xlu0 %575, %v433
        %v577 = vpop.permute.xlu0 %576
        %578 = vset.pattern.permute.xlu0 16
        %579 = vperm.xlu0 %578, %v434
        %v580 = vpop.permute.xlu0 %579
        %581 = vset.pattern.permute.xlu0 16
        %582 = vperm.xlu0 %581, %v435
        %v583 = vpop.permute.xlu0 %582
        %584 = vset.pattern.permute.xlu0 16
        %585 = vperm.xlu0 %584, %v436
        %v586 = vpop.permute.xlu0 %585
        %587 = vset.pattern.permute.xlu0 16
        %588 = vperm.xlu0 %587, %v437
        %v589 = vpop.permute.xlu0 %588
        %590 = vset.pattern.permute.xlu0 16
        %591 = vperm.xlu0 %590, %v438
        %v592 = vpop.permute.xlu0 %591
        %593 = vset.pattern.permute.xlu0 16
        %594 = vperm.xlu0 %593, %v439
        %v595 = vpop.permute.xlu0 %594
        %596 = vset.pattern.permute.xlu0 16
        %597 = vperm.xlu0 %596, %v440
        %v598 = vpop.permute.xlu0 %597
        %599 = vset.pattern.permute.xlu0 16
        %600 = vperm.xlu0 %599, %v441
        %v601 = vpop.permute.xlu0 %600
        %602 = vset.pattern.permute.xlu0 16
        %603 = vperm.xlu0 %602, %v442
        %v604 = vpop.permute.xlu0 %603
        %605 = vset.pattern.permute.xlu0 16
        %606 = vperm.xlu0 %605, %v443
        %v607 = vpop.permute.xlu0 %606
        %608 = vset.pattern.permute.xlu0 16
        %609 = vperm.xlu0 %608, %v444
        %v610 = vpop.permute.xlu0 %609
        %611 = vset.pattern.permute.xlu0 16
        %612 = vperm.xlu0 %611, %v445
        %v613 = vpop.permute.xlu0 %612
        %614 = vset.pattern.permute.xlu0 16
        %615 = vperm.xlu0 %614, %v446
        %v616 = vpop.permute.xlu0 %615
        %617 = vset.pattern.permute.xlu0 16
        %618 = vperm.xlu0 %617, %v447
        %v619 = vpop.permute.xlu0 %618
        %620 = vset.pattern.permute.xlu0 16
        %621 = vperm.xlu0 %620, %v448
        %v622 = vpop.permute.xlu0 %621
        %623 = vset.pattern.permute.xlu0 16
        %624 = vperm.xlu0 %623, %v449
        %v625 = vpop.permute.xlu0 %624
        %626 = vset.pattern.permute.xlu0 16
        %627 = vperm.xlu0 %626, %v450
        %v628 = vpop.permute.xlu0 %627
        %629 = vset.pattern.permute.xlu0 16
        %630 = vperm.xlu0 %629, %v451
        %v631 = vpop.permute.xlu0 %630
        %632 = vset.pattern.permute.xlu0 16
        %633 = vperm.xlu0 %632, %v452
        %v634 = vpop.permute.xlu0 %633
        %635 = vset.pattern.permute.xlu0 16
        %636 = vperm.xlu0 %635, %v453
        %v637 = vpop.permute.xlu0 %636
        %638 = vset.pattern.permute.xlu0 16
        %639 = vperm.xlu0 %638, %v454
        %v640 = vpop.permute.xlu0 %639
        %641 = vset.pattern.permute.xlu0 16
        %642 = vperm.xlu0 %641, %v455
        %v643 = vpop.permute.xlu0 %642
        %644 = vset.pattern.permute.xlu0 16
        %645 = vperm.xlu0 %644, %v456
        %v646 = vpop.permute.xlu0 %645
        %647 = vset.pattern.permute.xlu0 16
        %648 = vperm.xlu0 %647, %v457
        %v649 = vpop.permute.xlu0 %648
        %650 = vset.pattern.permute.xlu0 16
        %651 = vperm.xlu0 %650, %v458
        %v652 = vpop.permute.xlu0 %651
        %vm653 = vcmp.eq.s32.totalorder %v460, %v463
        %vm654 = vcmp.eq.s32.totalorder %v460, %v466
        %vm655 = vcmp.eq.s32.totalorder %v460, %v469
        %vm656 = vcmp.eq.s32.totalorder %v460, %v472
        %vm657 = vcmp.eq.s32.totalorder %v460, %v475
        %vm658 = vcmp.eq.s32.totalorder %v460, %v478
        %vm659 = vcmp.eq.s32.totalorder %v460, %v481
        %vm660 = vcmp.eq.s32.totalorder %v460, %v484
        %vm661 = vcmp.eq.s32.totalorder %v460, %v487
        %vm662 = vcmp.eq.s32.totalorder %v460, %v490
        %vm663 = vcmp.eq.s32.totalorder %v460, %v493
        %vm664 = vcmp.eq.s32.totalorder %v460, %v496
        %vm665 = vcmp.eq.s32.totalorder %v460, %v499
        %vm666 = vcmp.eq.s32.totalorder %v460, %v502
        %vm667 = vcmp.eq.s32.totalorder %v460, %v505
        %vm668 = vcmp.eq.s32.totalorder %v460, %v508
        %vm669 = vcmp.eq.s32.totalorder %v460, %v511
        %vm670 = vcmp.eq.s32.totalorder %v460, %v514
        %vm671 = vcmp.eq.s32.totalorder %v460, %v517
        %vm672 = vcmp.eq.s32.totalorder %v460, %v520
        %vm673 = vcmp.eq.s32.totalorder %v460, %v523
        %vm674 = vcmp.eq.s32.totalorder %v460, %v526
        %vm675 = vcmp.eq.s32.totalorder %v460, %v529
        %vm676 = vcmp.eq.s32.totalorder %v460, %v532
        %vm677 = vcmp.eq.s32.totalorder %v460, %v535
        %vm678 = vcmp.eq.s32.totalorder %v460, %v538
        %vm679 = vcmp.eq.s32.totalorder %v460, %v541
        %vm680 = vcmp.eq.s32.totalorder %v460, %v544
        %vm681 = vcmp.eq.s32.totalorder %v460, %v547
        %vm682 = vcmp.eq.s32.totalorder %v460, %v550
        %vm683 = vcmp.eq.s32.totalorder %v460, %v553
        %vm684 = vcmp.eq.s32.totalorder %v460, %v556
        %vm685 = vcmp.eq.s32.totalorder %v460, %v559
        %vm686 = vcmp.eq.s32.totalorder %v460, %v562
        %vm687 = vcmp.eq.s32.totalorder %v460, %v565
        %vm688 = vcmp.eq.s32.totalorder %v460, %v568
        %vm689 = vcmp.eq.s32.totalorder %v460, %v571
        %vm690 = vcmp.eq.s32.totalorder %v460, %v574
        %vm691 = vcmp.eq.s32.totalorder %v460, %v577
        %vm692 = vcmp.eq.s32.totalorder %v460, %v580
        %vm693 = vcmp.eq.s32.totalorder %v460, %v583
        %vm694 = vcmp.eq.s32.totalorder %v460, %v586
        %vm695 = vcmp.eq.s32.totalorder %v460, %v589
        %vm696 = vcmp.eq.s32.totalorder %v460, %v592
        %vm697 = vcmp.eq.s32.totalorder %v460, %v595
        %vm698 = vcmp.eq.s32.totalorder %v460, %v598
        %vm699 = vcmp.eq.s32.totalorder %v460, %v601
        %vm700 = vcmp.eq.s32.totalorder %v460, %v604
        %vm701 = vcmp.eq.s32.totalorder %v460, %v607
        %vm702 = vcmp.eq.s32.totalorder %v460, %v610
        %vm703 = vcmp.eq.s32.totalorder %v460, %v613
        %vm704 = vcmp.eq.s32.totalorder %v460, %v616
        %vm705 = vcmp.eq.s32.totalorder %v460, %v619
        %vm706 = vcmp.eq.s32.totalorder %v460, %v622
        %vm707 = vcmp.eq.s32.totalorder %v460, %v625
        %vm708 = vcmp.eq.s32.totalorder %v460, %v628
        %vm709 = vcmp.eq.s32.totalorder %v460, %v631
        %vm710 = vcmp.eq.s32.totalorder %v460, %v634
        %vm711 = vcmp.eq.s32.totalorder %v460, %v637
        %vm712 = vcmp.eq.s32.totalorder %v460, %v640
        %vm713 = vcmp.eq.s32.totalorder %v460, %v643
        %vm714 = vcmp.eq.s32.totalorder %v460, %v646
        %vm715 = vcmp.eq.s32.totalorder %v460, %v649
        %vm716 = vcmp.eq.s32.totalorder %v460, %v652
        %v717 = vsel %vm653, 1, 0
        %v718 = vsel %vm654, 1, 0
        %v719 = vsel %vm655, 1, 0
        %v720 = vsel %vm656, 1, 0
        %v721 = vsel %vm657, 1, 0
        %v722 = vsel %vm658, 1, 0
        %v723 = vsel %vm659, 1, 0
        %v724 = vsel %vm660, 1, 0
        %v725 = vsel %vm661, 1, 0
        %v726 = vsel %vm662, 1, 0
        %v727 = vsel %vm663, 1, 0
        %v728 = vsel %vm664, 1, 0
        %v729 = vsel %vm665, 1, 0
        %v730 = vsel %vm666, 1, 0
        %v731 = vsel %vm667, 1, 0
        %v732 = vsel %vm668, 1, 0
        %v733 = vsel %vm669, 1, 0
        %v734 = vsel %vm670, 1, 0
        %v735 = vsel %vm671, 1, 0
        %v736 = vsel %vm672, 1, 0
        %v737 = vsel %vm673, 1, 0
        %v738 = vsel %vm674, 1, 0
        %v739 = vsel %vm675, 1, 0
        %v740 = vsel %vm676, 1, 0
        %v741 = vsel %vm677, 1, 0
        %v742 = vsel %vm678, 1, 0
        %v743 = vsel %vm679, 1, 0
        %v744 = vsel %vm680, 1, 0
        %v745 = vsel %vm681, 1, 0
        %v746 = vsel %vm682, 1, 0
        %v747 = vsel %vm683, 1, 0
        %v748 = vsel %vm684, 1, 0
        %v749 = vsel %vm685, 1, 0
        %v750 = vsel %vm686, 1, 0
        %v751 = vsel %vm687, 1, 0
        %v752 = vsel %vm688, 1, 0
        %v753 = vsel %vm689, 1, 0
        %v754 = vsel %vm690, 1, 0
        %v755 = vsel %vm691, 1, 0
        %v756 = vsel %vm692, 1, 0
        %v757 = vsel %vm693, 1, 0
        %v758 = vsel %vm694, 1, 0
        %v759 = vsel %vm695, 1, 0
        %v760 = vsel %vm696, 1, 0
        %v761 = vsel %vm697, 1, 0
        %v762 = vsel %vm698, 1, 0
        %v763 = vsel %vm699, 1, 0
        %v764 = vsel %vm700, 1, 0
        %v765 = vsel %vm701, 1, 0
        %v766 = vsel %vm702, 1, 0
        %v767 = vsel %vm703, 1, 0
        %v768 = vsel %vm704, 1, 0
        %v769 = vsel %vm705, 1, 0
        %v770 = vsel %vm706, 1, 0
        %v771 = vsel %vm707, 1, 0
        %v772 = vsel %vm708, 1, 0
        %v773 = vsel %vm709, 1, 0
        %v774 = vsel %vm710, 1, 0
        %v775 = vsel %vm711, 1, 0
        %v776 = vsel %vm712, 1, 0
        %v777 = vsel %vm713, 1, 0
        %v778 = vsel %vm714, 1, 0
        %v779 = vsel %vm715, 1, 0
        %v780 = vsel %vm716, 1, 0
        %v781 = vcvt.s32.f32 %v717
        %v782 = vcvt.s32.f32 %v718
        %v783 = vcvt.s32.f32 %v719
        %v784 = vcvt.s32.f32 %v720
        %v785 = vcvt.s32.f32 %v721
        %v786 = vcvt.s32.f32 %v722
        %v787 = vcvt.s32.f32 %v723
        %v788 = vcvt.s32.f32 %v724
        %v789 = vcvt.s32.f32 %v725
        %v790 = vcvt.s32.f32 %v726
        %v791 = vcvt.s32.f32 %v727
        %v792 = vcvt.s32.f32 %v728
        %v793 = vcvt.s32.f32 %v729
        %v794 = vcvt.s32.f32 %v730
        %v795 = vcvt.s32.f32 %v731
        %v796 = vcvt.s32.f32 %v732
        %v797 = vcvt.s32.f32 %v733
        %v798 = vcvt.s32.f32 %v734
        %v799 = vcvt.s32.f32 %v735
        %v800 = vcvt.s32.f32 %v736
        %v801 = vcvt.s32.f32 %v737
        %v802 = vcvt.s32.f32 %v738
        %v803 = vcvt.s32.f32 %v739
        %v804 = vcvt.s32.f32 %v740
        %v805 = vcvt.s32.f32 %v741
        %v806 = vcvt.s32.f32 %v742
        %v807 = vcvt.s32.f32 %v743
        %v808 = vcvt.s32.f32 %v744
        %v809 = vcvt.s32.f32 %v745
        %v810 = vcvt.s32.f32 %v746
        %v811 = vcvt.s32.f32 %v747
        %v812 = vcvt.s32.f32 %v748
        %v813 = vcvt.s32.f32 %v749
        %v814 = vcvt.s32.f32 %v750
        %v815 = vcvt.s32.f32 %v751
        %v816 = vcvt.s32.f32 %v752
        %v817 = vcvt.s32.f32 %v753
        %v818 = vcvt.s32.f32 %v754
        %v819 = vcvt.s32.f32 %v755
        %v820 = vcvt.s32.f32 %v756
        %v821 = vcvt.s32.f32 %v757
        %v822 = vcvt.s32.f32 %v758
        %v823 = vcvt.s32.f32 %v759
        %v824 = vcvt.s32.f32 %v760
        %v825 = vcvt.s32.f32 %v761
        %v826 = vcvt.s32.f32 %v762
        %v827 = vcvt.s32.f32 %v763
        %v828 = vcvt.s32.f32 %v764
        %v829 = vcvt.s32.f32 %v765
        %v830 = vcvt.s32.f32 %v766
        %v831 = vcvt.s32.f32 %v767
        %v832 = vcvt.s32.f32 %v768
        %v833 = vcvt.s32.f32 %v769
        %v834 = vcvt.s32.f32 %v770
        %v835 = vcvt.s32.f32 %v771
        %v836 = vcvt.s32.f32 %v772
        %v837 = vcvt.s32.f32 %v773
        %v838 = vcvt.s32.f32 %v774
        %v839 = vcvt.s32.f32 %v775
        %v840 = vcvt.s32.f32 %v776
        %v841 = vcvt.s32.f32 %v777
        %v842 = vcvt.s32.f32 %v778
        %v843 = vcvt.s32.f32 %v779
        %v844 = vcvt.s32.f32 %v780
        %v845 = vpack.c.bf16 %v782, %v781
        %v846 = vpack.c.bf16 %v784, %v783
        %v847 = vpack.c.bf16 %v786, %v785
        %v848 = vpack.c.bf16 %v788, %v787
        %v849 = vpack.c.bf16 %v790, %v789
        %v850 = vpack.c.bf16 %v792, %v791
        %v851 = vpack.c.bf16 %v794, %v793
        %v852 = vpack.c.bf16 %v796, %v795
        %v853 = vpack.c.bf16 %v798, %v797
        %v854 = vpack.c.bf16 %v800, %v799
        %v855 = vpack.c.bf16 %v802, %v801
        %v856 = vpack.c.bf16 %v804, %v803
        %v857 = vpack.c.bf16 %v806, %v805
        %v858 = vpack.c.bf16 %v808, %v807
        %v859 = vpack.c.bf16 %v810, %v809
        %v860 = vpack.c.bf16 %v812, %v811
        %v861 = vpack.c.bf16 %v814, %v813
        %v862 = vpack.c.bf16 %v816, %v815
        %v863 = vpack.c.bf16 %v818, %v817
        %v864 = vpack.c.bf16 %v820, %v819
        %v865 = vpack.c.bf16 %v822, %v821
        %v866 = vpack.c.bf16 %v824, %v823
        %v867 = vpack.c.bf16 %v826, %v825
        %v868 = vpack.c.bf16 %v828, %v827
        %v869 = vpack.c.bf16 %v830, %v829
        %v870 = vpack.c.bf16 %v832, %v831
        %v871 = vpack.c.bf16 %v834, %v833
        %v872 = vpack.c.bf16 %v836, %v835
        %v873 = vpack.c.bf16 %v838, %v837
        %v874 = vpack.c.bf16 %v840, %v839
        %v875 = vpack.c.bf16 %v842, %v841
        %v876 = vpack.c.bf16 %v844, %v843
        %v877 = vpack.c.bf16 %v332, %v331
        %v878 = vpack.c.bf16 %v334, %v333
        %v879 = vpack.c.bf16 %v336, %v335
        %v880 = vpack.c.bf16 %v338, %v337
        %v881 = vpack.c.bf16 %v340, %v339
        %v882 = vpack.c.bf16 %v342, %v341
        %v883 = vpack.c.bf16 %v344, %v343
        %v884 = vpack.c.bf16 %v346, %v345
        %v885 = vpack.c.bf16 %v348, %v347
        %v886 = vpack.c.bf16 %v350, %v349
        %v887 = vpack.c.bf16 %v352, %v351
        %v888 = vpack.c.bf16 %v354, %v353
        %v889 = vpack.c.bf16 %v356, %v355
        %v890 = vpack.c.bf16 %v358, %v357
        %v891 = vpack.c.bf16 %v360, %v359
        %v892 = vpack.c.bf16 %v362, %v361
        %v893 = vpack.c.bf16 %v364, %v363
        %v894 = vpack.c.bf16 %v366, %v365
        %v895 = vpack.c.bf16 %v368, %v367
        %v896 = vpack.c.bf16 %v370, %v369
        %v897 = vpack.c.bf16 %v372, %v371
        %v898 = vpack.c.bf16 %v374, %v373
        %v899 = vpack.c.bf16 %v376, %v375
        %v900 = vpack.c.bf16 %v378, %v377
        %v901 = vpack.c.bf16 %v380, %v379
        %v902 = vpack.c.bf16 %v382, %v381
        %v903 = vpack.c.bf16 %v384, %v383
        %v904 = vpack.c.bf16 %v386, %v385
        %v905 = vpack.c.bf16 %v388, %v387
        %v906 = vpack.c.bf16 %v390, %v389
        %v907 = vpack.c.bf16 %v392, %v391
        %v908 = vpack.c.bf16 %v394, %v393
        %v909 = vld [vmem:[#allocation6] sm:$0xff]
        %v910 = vld [vmem:[#allocation6 + $0x8] sm:$0xf]
        %v911 = vld [vmem:[#allocation6 + $0xc] sm:$0xff]
        %v912 = vld [vmem:[#allocation6 + $0x14] sm:$0xf]
        %v913 = vld [vmem:[#allocation6 + $0x18] sm:$0xff]
        %v914 = vld [vmem:[#allocation6 + $0x20] sm:$0xf]
        %v915 = vld [vmem:[#allocation6 + $0x24] sm:$0xff]
        %v916 = vld [vmem:[#allocation6 + $0x2c] sm:$0xf]
        %v917 = vld [vmem:[#allocation6 + $0x30] sm:$0xff]
        %v918 = vld [vmem:[#allocation6 + $0x38] sm:$0xf]
        %v919 = vld [vmem:[#allocation6 + $0x3c] sm:$0xff]
        %v920 = vld [vmem:[#allocation6 + $0x44] sm:$0xf]
        %v921 = vld [vmem:[#allocation6 + $0x48] sm:$0xff]
        %v922 = vld [vmem:[#allocation6 + $0x50] sm:$0xf]
        %v923 = vld [vmem:[#allocation6 + $0x54] sm:$0xff]
        %v924 = vld [vmem:[#allocation6 + $0x5c] sm:$0xf]
        %v925 = vld [vmem:[#allocation6 + $0x60] sm:$0xff]
        %v926 = vld [vmem:[#allocation6 + $0x68] sm:$0xf]
        %v927 = vld [vmem:[#allocation6 + $0x6c] sm:$0xff]
        %v928 = vld [vmem:[#allocation6 + $0x74] sm:$0xf]
        %v929 = vld [vmem:[#allocation6 + $0x78] sm:$0xff]
        %v930 = vld [vmem:[#allocation6 + $0x80] sm:$0xf]
        %v931 = vld [vmem:[#allocation6 + $0x84] sm:$0xff]
        %v932 = vld [vmem:[#allocation6 + $0x8c] sm:$0xf]
        %v933 = vld [vmem:[#allocation6 + $0x90] sm:$0xff]
        %v934 = vld [vmem:[#allocation6 + $0x98] sm:$0xf]
        %v935 = vld [vmem:[#allocation6 + $0x9c] sm:$0xff]
        %v936 = vld [vmem:[#allocation6 + $0xa4] sm:$0xf]
        %v937 = vld [vmem:[#allocation6 + $0xa8] sm:$0xff]
        %v938 = vld [vmem:[#allocation6 + $0xb0] sm:$0xf]
        %v939 = vld [vmem:[#allocation6 + $0xb4] sm:$0xff]
        %v940 = vld [vmem:[#allocation6 + $0xbc] sm:$0xf]
        %v941 = vld [vmem:[#allocation6 + $0xc0] sm:$0xff]
        %v942 = vld [vmem:[#allocation6 + $0xc8] sm:$0xf]
        %v943 = vld [vmem:[#allocation6 + $0xcc] sm:$0xff]
        %v944 = vld [vmem:[#allocation6 + $0xd4] sm:$0xf]
        %v945 = vld [vmem:[#allocation6 + $0xd8] sm:$0xff]
        %v946 = vld [vmem:[#allocation6 + $0xe0] sm:$0xf]
        %v947 = vld [vmem:[#allocation6 + $0xe4] sm:$0xff]
        %v948 = vld [vmem:[#allocation6 + $0xec] sm:$0xf]
        %v949 = vld [vmem:[#allocation6 + $0xf0] sm:$0xff]
        %v950 = vld [vmem:[#allocation6 + $0xf8] sm:$0xf]
        %v951 = vld [vmem:[#allocation6 + $0xfc] sm:$0xff]
        %v952 = vld [vmem:[#allocation6 + $0x104] sm:$0xf]
        %v953 = vld [vmem:[#allocation6 + $0x108] sm:$0xff]
        %v954 = vld [vmem:[#allocation6 + $0x110] sm:$0xf]
        %v955 = vld [vmem:[#allocation6 + $0x114] sm:$0xff]
        %v956 = vld [vmem:[#allocation6 + $0x11c] sm:$0xf]
        %v957 = vld [vmem:[#allocation6 + $0x120] sm:$0xff]
        %v958 = vld [vmem:[#allocation6 + $0x128] sm:$0xf]
        %v959 = vld [vmem:[#allocation6 + $0x12c] sm:$0xff]
        %v960 = vld [vmem:[#allocation6 + $0x134] sm:$0xf]
        %v961 = vld [vmem:[#allocation6 + $0x138] sm:$0xff]
        %v962 = vld [vmem:[#allocation6 + $0x140] sm:$0xf]
        %v963 = vld [vmem:[#allocation6 + $0x144] sm:$0xff]
        %v964 = vld [vmem:[#allocation6 + $0x14c] sm:$0xf]
        %v965 = vld [vmem:[#allocation6 + $0x150] sm:$0xff]
        %v966 = vld [vmem:[#allocation6 + $0x158] sm:$0xf]
        %v967 = vld [vmem:[#allocation6 + $0x15c] sm:$0xff]
        %v968 = vld [vmem:[#allocation6 + $0x164] sm:$0xf]
        %v969 = vld [vmem:[#allocation6 + $0x168] sm:$0xff]
        %v970 = vld [vmem:[#allocation6 + $0x170] sm:$0xf]
        %v971 = vld [vmem:[#allocation6 + $0x174] sm:$0xff]
        %v972 = vld [vmem:[#allocation6 + $0x17c] sm:$0xf]
        %v1037 = vunpack.c.l.b16 %v909
        %v1038 = vunpack.c.h.b16 %v909
        %v1039 = vunpack.c.l.b16 %v910
        %v1040 = vunpack.c.l.b16 %v911
        %v1041 = vunpack.c.h.b16 %v911
        %v1042 = vunpack.c.l.b16 %v912
        %v1043 = vunpack.c.l.b16 %v913
        %v1044 = vunpack.c.h.b16 %v913
        %v1045 = vunpack.c.l.b16 %v914
        %v1046 = vunpack.c.l.b16 %v915
        %v1047 = vunpack.c.h.b16 %v915
        %v1048 = vunpack.c.l.b16 %v916
        %v1049 = vunpack.c.l.b16 %v917
        %v1050 = vunpack.c.h.b16 %v917
        %v1051 = vunpack.c.l.b16 %v918
        %v1052 = vunpack.c.l.b16 %v919
        %v1053 = vunpack.c.h.b16 %v919
        %v1054 = vunpack.c.l.b16 %v920
        %v1055 = vunpack.c.l.b16 %v921
        %v1056 = vunpack.c.h.b16 %v921
        %v1057 = vunpack.c.l.b16 %v922
        %v1058 = vunpack.c.l.b16 %v923
        %v1059 = vunpack.c.h.b16 %v923
        %v1060 = vunpack.c.l.b16 %v924
        %v1061 = vunpack.c.l.b16 %v925
        %v1062 = vunpack.c.h.b16 %v925
        %v1063 = vunpack.c.l.b16 %v926
        %v1064 = vunpack.c.l.b16 %v927
        %v1065 = vunpack.c.h.b16 %v927
        %v1066 = vunpack.c.l.b16 %v928
        %v1067 = vunpack.c.l.b16 %v929
        %v1068 = vunpack.c.h.b16 %v929
        %v1069 = vunpack.c.l.b16 %v930
        %v1070 = vunpack.c.l.b16 %v931
        %v1071 = vunpack.c.h.b16 %v931
        %v1072 = vunpack.c.l.b16 %v932
        %v1073 = vunpack.c.l.b16 %v933
        %v1074 = vunpack.c.h.b16 %v933
        %v1075 = vunpack.c.l.b16 %v934
        %v1076 = vunpack.c.l.b16 %v935
        %v1077 = vunpack.c.h.b16 %v935
        %v1078 = vunpack.c.l.b16 %v936
        %v1079 = vunpack.c.l.b16 %v937
        %v1080 = vunpack.c.h.b16 %v937
        %v1081 = vunpack.c.l.b16 %v938
        %v1082 = vunpack.c.l.b16 %v939
        %v1083 = vunpack.c.h.b16 %v939
        %v1084 = vunpack.c.l.b16 %v940
        %v1085 = vunpack.c.l.b16 %v941
        %v1086 = vunpack.c.h.b16 %v941
        %v1087 = vunpack.c.l.b16 %v942
        %v1088 = vunpack.c.l.b16 %v943
        %v1089 = vunpack.c.h.b16 %v943
        %v1090 = vunpack.c.l.b16 %v944
        %v1091 = vunpack.c.l.b16 %v945
        %v1092 = vunpack.c.h.b16 %v945
        %v1093 = vunpack.c.l.b16 %v946
        %v1094 = vunpack.c.l.b16 %v947
        %v1095 = vunpack.c.h.b16 %v947
        %v1096 = vunpack.c.l.b16 %v948
        %v1097 = vunpack.c.l.b16 %v949
        %v1098 = vunpack.c.h.b16 %v949
        %v1099 = vunpack.c.l.b16 %v950
        %v1100 = vunpack.c.l.b16 %v951
        %v1101 = vunpack.c.h.b16 %v951
        %v1102 = vunpack.c.l.b16 %v952
        %v1103 = vunpack.c.l.b16 %v953
        %v1104 = vunpack.c.h.b16 %v953
        %v1105 = vunpack.c.l.b16 %v954
        %v1106 = vunpack.c.l.b16 %v955
        %v1107 = vunpack.c.h.b16 %v955
        %v1108 = vunpack.c.l.b16 %v956
        %v1109 = vunpack.c.l.b16 %v957
        %v1110 = vunpack.c.h.b16 %v957
        %v1111 = vunpack.c.l.b16 %v958
        %v1112 = vunpack.c.l.b16 %v959
        %v1113 = vunpack.c.h.b16 %v959
        %v1114 = vunpack.c.l.b16 %v960
        %v1115 = vunpack.c.l.b16 %v961
        %v1116 = vunpack.c.h.b16 %v961
        %v1117 = vunpack.c.l.b16 %v962
        %v1118 = vunpack.c.l.b16 %v963
        %v1119 = vunpack.c.h.b16 %v963
        %v1120 = vunpack.c.l.b16 %v964
        %v1121 = vunpack.c.l.b16 %v965
        %v1122 = vunpack.c.h.b16 %v965
        %v1123 = vunpack.c.l.b16 %v966
        %v1124 = vunpack.c.l.b16 %v967
        %v1125 = vunpack.c.h.b16 %v967
        %v1126 = vunpack.c.l.b16 %v968
        %v1127 = vunpack.c.l.b16 %v969
        %v1128 = vunpack.c.h.b16 %v969
        %v1129 = vunpack.c.l.b16 %v970
        %v1130 = vunpack.c.l.b16 %v971
        %v1131 = vunpack.c.h.b16 %v971
        %v1132 = vunpack.c.l.b16 %v972
        %v1133 = vpack.c.b16 %v1040, %v1037
        %v1134 = vpack.c.b16 %v1041, %v1038
        %v1135 = vpack.c.b16 %v1042, %v1039
        %v1136 = vpack.c.b16 %v1046, %v1043
        %v1137 = vpack.c.b16 %v1047, %v1044
        %v1138 = vpack.c.b16 %v1048, %v1045
        %v1139 = vpack.c.b16 %v1052, %v1049
        %v1140 = vpack.c.b16 %v1053, %v1050
        %v1141 = vpack.c.b16 %v1054, %v1051
        %v1142 = vpack.c.b16 %v1058, %v1055
        %v1143 = vpack.c.b16 %v1059, %v1056
        %v1144 = vpack.c.b16 %v1060, %v1057
        %v1145 = vpack.c.b16 %v1064, %v1061
        %v1146 = vpack.c.b16 %v1065, %v1062
        %v1147 = vpack.c.b16 %v1066, %v1063
        %v1148 = vpack.c.b16 %v1070, %v1067
        %v1149 = vpack.c.b16 %v1071, %v1068
        %v1150 = vpack.c.b16 %v1072, %v1069
        %v1151 = vpack.c.b16 %v1076, %v1073
        %v1152 = vpack.c.b16 %v1077, %v1074
        %v1153 = vpack.c.b16 %v1078, %v1075
        %v1154 = vpack.c.b16 %v1082, %v1079
        %v1155 = vpack.c.b16 %v1083, %v1080
        %v1156 = vpack.c.b16 %v1084, %v1081
        %v1157 = vpack.c.b16 %v1088, %v1085
        %v1158 = vpack.c.b16 %v1089, %v1086
        %v1159 = vpack.c.b16 %v1090, %v1087
        %v1160 = vpack.c.b16 %v1094, %v1091
        %v1161 = vpack.c.b16 %v1095, %v1092
        %v1162 = vpack.c.b16 %v1096, %v1093
        %v1163 = vpack.c.b16 %v1100, %v1097
        %v1164 = vpack.c.b16 %v1101, %v1098
        %v1165 = vpack.c.b16 %v1102, %v1099
        %v1166 = vpack.c.b16 %v1106, %v1103
        %v1167 = vpack.c.b16 %v1107, %v1104
        %v1168 = vpack.c.b16 %v1108, %v1105
        %v1169 = vpack.c.b16 %v1112, %v1109
        %v1170 = vpack.c.b16 %v1113, %v1110
        %v1171 = vpack.c.b16 %v1114, %v1111
        %v1172 = vpack.c.b16 %v1118, %v1115
        %v1173 = vpack.c.b16 %v1119, %v1116
        %v1174 = vpack.c.b16 %v1120, %v1117
        %v1175 = vpack.c.b16 %v1124, %v1121
        %v1176 = vpack.c.b16 %v1125, %v1122
        %v1177 = vpack.c.b16 %v1126, %v1123
        %v1178 = vpack.c.b16 %v1130, %v1127
        %v1179 = vpack.c.b16 %v1131, %v1128
        %v1180 = vpack.c.b16 %v1132, %v1129
        %1229 = vmatprep.subr.bf16.mxu0 %v1155
        %1230 = vmatpush1.bf16.msra.mxu0 %v1154
        %1231 = vmatprep.subr.bf16.mxu0 %v1152
        %1232 = vmatpush1.bf16.msra.mxu0 %v1151
        %1233 = vmatprep.subr.bf16.mxu0 %v1149
        %1234 = vmatpush1.bf16.msra.mxu0 %v1148
        %1235 = vmatprep.subr.bf16.mxu0 %v1146
        %1236 = vmatpush1.bf16.msra.mxu0 %v1145
        %1237 = vmatprep.subr.bf16.mxu0 %v1143
        %1238 = vmatpush1.bf16.msra.mxu0 %v1142
        %1239 = vmatprep.subr.bf16.mxu0 %v1140
        %1240 = vmatpush1.bf16.msra.mxu0 %v1139
        %1241 = vmatprep.subr.bf16.mxu0 %v1137
        %1242 = vmatpush1.bf16.msra.mxu0 %v1136
        %1243 = vmatprep.subr.bf16.mxu0 %v1134
        %1244 = vmatpush1.bf16.msra.mxu0 %v1133
        %1245 = vmatprep.subr.bf16.mxu0 %v1179
        %1246 = vmatpush2.bf16.msra.mxu0 %v1178
        %1247 = vmatprep.subr.bf16.mxu0 %v1176
        %1248 = vmatpush2.bf16.msra.mxu0 %v1175
        %1249 = vmatprep.subr.bf16.mxu0 %v1173
        %1250 = vmatpush2.bf16.msra.mxu0 %v1172
        %1251 = vmatprep.subr.bf16.mxu0 %v1170
        %1252 = vmatpush2.bf16.msra.mxu0 %v1169
        %1253 = vmatprep.subr.bf16.mxu0 %v1167
        %1254 = vmatpush2.bf16.msra.mxu0 %v1166
        %1255 = vmatprep.subr.bf16.mxu0 %v1164
        %1256 = vmatpush2.bf16.msra.mxu0 %v1163
        %1257 = vmatprep.subr.bf16.mxu0 %v1161
        %1258 = vmatpush2.bf16.msra.mxu0 %v1160
        %1259 = vmatprep.subr.bf16.mxu0 %v1158
        %1260 = vmatpush2.bf16.msra.mxu0 %v1157
        %1261 = vmatprep.mubr.bf16.mxu0 %v845
        %1262 = vmatmul.mubr.bf16.gmra.mxu0 %v877
        %v1263 = vpop.f32.mrf.mxu0
        %v1264 = vadd.f32 0.0, %v1263
        %v1265 = vpop.f32.mrf.mxu0
        %v1266 = vadd.f32 0.0, %v1265
        %v1267 = vpop.f32.mrf.mxu0
        %v1268 = vadd.f32 0.0, %v1267
        %v1269 = vpop.f32.mrf.mxu0
        %v1270 = vadd.f32 0.0, %v1269
        %1271 = vmatprep.mubr.bf16.mxu0 %v846
        %1272 = vmatmul.mubr.bf16.gmra.mxu0 %v878
        %v1273 = vpop.f32.mrf.mxu0
        %v1274 = vadd.f32 0.0, %v1273
        %v1275 = vpop.f32.mrf.mxu0
        %v1276 = vadd.f32 0.0, %v1275
        %v1277 = vpop.f32.mrf.mxu0
        %v1278 = vadd.f32 0.0, %v1277
        %v1279 = vpop.f32.mrf.mxu0
        %v1280 = vadd.f32 0.0, %v1279
        %1281 = vmatprep.mubr.bf16.mxu0 %v847
        %1282 = vmatmul.mubr.bf16.gmra.mxu0 %v879
        %v1283 = vpop.f32.mrf.mxu0
        %v1284 = vadd.f32 0.0, %v1283
        %v1285 = vpop.f32.mrf.mxu0
        %v1286 = vadd.f32 0.0, %v1285
        %v1287 = vpop.f32.mrf.mxu0
        %v1288 = vadd.f32 0.0, %v1287
        %v1289 = vpop.f32.mrf.mxu0
        %v1290 = vadd.f32 0.0, %v1289
        %1291 = vmatprep.mubr.bf16.mxu0 %v848
        %1292 = vmatmul.mubr.bf16.gmra.mxu0 %v880
        %v1293 = vpop.f32.mrf.mxu0
        %v1294 = vadd.f32 0.0, %v1293
        %v1295 = vpop.f32.mrf.mxu0
        %v1296 = vadd.f32 0.0, %v1295
        %v1297 = vpop.f32.mrf.mxu0
        %v1298 = vadd.f32 0.0, %v1297
        %v1299 = vpop.f32.mrf.mxu0
        %v1300 = vadd.f32 0.0, %v1299
        %1301 = vmatprep.mubr.bf16.mxu0 %v849
        %1302 = vmatmul.mubr.bf16.gmra.mxu0 %v881
        %v1303 = vpop.f32.mrf.mxu0
        %v1304 = vadd.f32 0.0, %v1303
        %v1305 = vpop.f32.mrf.mxu0
        %v1306 = vadd.f32 0.0, %v1305
        %v1307 = vpop.f32.mrf.mxu0
        %v1308 = vadd.f32 0.0, %v1307
        %v1309 = vpop.f32.mrf.mxu0
        %v1310 = vadd.f32 0.0, %v1309
        %1311 = vmatprep.mubr.bf16.mxu0 %v850
        %1312 = vmatmul.mubr.bf16.gmra.mxu0 %v882
        %v1313 = vpop.f32.mrf.mxu0
        %v1314 = vadd.f32 0.0, %v1313
        %v1315 = vpop.f32.mrf.mxu0
        %v1316 = vadd.f32 0.0, %v1315
        %v1317 = vpop.f32.mrf.mxu0
        %v1318 = vadd.f32 0.0, %v1317
        %v1319 = vpop.f32.mrf.mxu0
        %v1320 = vadd.f32 0.0, %v1319
        %1321 = vmatprep.mubr.bf16.mxu0 %v851
        %1322 = vmatmul.mubr.bf16.gmra.mxu0 %v883
        %v1323 = vpop.f32.mrf.mxu0
        %v1324 = vadd.f32 0.0, %v1323
        %v1325 = vpop.f32.mrf.mxu0
        %v1326 = vadd.f32 0.0, %v1325
        %v1327 = vpop.f32.mrf.mxu0
        %v1328 = vadd.f32 0.0, %v1327
        %v1329 = vpop.f32.mrf.mxu0
        %v1330 = vadd.f32 0.0, %v1329
        %1331 = vmatprep.mubr.bf16.mxu0 %v852
        %1332 = vmatmul.mubr.bf16.gmra.mxu0 %v884
        %v1333 = vpop.f32.mrf.mxu0
        %v1334 = vadd.f32 0.0, %v1333
        %v1335 = vpop.f32.mrf.mxu0
        %v1336 = vadd.f32 0.0, %v1335
        %v1337 = vpop.f32.mrf.mxu0
        %v1338 = vadd.f32 0.0, %v1337
        %v1339 = vpop.f32.mrf.mxu0
        %v1340 = vadd.f32 0.0, %v1339
        %1341 = vmatprep.mubr.bf16.mxu0 %v853
        %1342 = vmatmul.mubr.bf16.gmra.mxu0 %v885
        %v1343 = vpop.f32.mrf.mxu0
        %v1344 = vadd.f32 0.0, %v1343
        %v1345 = vpop.f32.mrf.mxu0
        %v1346 = vadd.f32 0.0, %v1345
        %v1347 = vpop.f32.mrf.mxu0
        %v1348 = vadd.f32 0.0, %v1347
        %v1349 = vpop.f32.mrf.mxu0
        %v1350 = vadd.f32 0.0, %v1349
        %1351 = vmatprep.mubr.bf16.mxu0 %v854
        %1352 = vmatmul.mubr.bf16.gmra.mxu0 %v886
        %v1353 = vpop.f32.mrf.mxu0
        %v1354 = vadd.f32 0.0, %v1353
        %v1355 = vpop.f32.mrf.mxu0
        %v1356 = vadd.f32 0.0, %v1355
        %v1357 = vpop.f32.mrf.mxu0
        %v1358 = vadd.f32 0.0, %v1357
        %v1359 = vpop.f32.mrf.mxu0
        %v1360 = vadd.f32 0.0, %v1359
        %1361 = vmatprep.mubr.bf16.mxu0 %v855
        %1362 = vmatmul.mubr.bf16.gmra.mxu0 %v887
        %v1363 = vpop.f32.mrf.mxu0
        %v1364 = vadd.f32 0.0, %v1363
        %v1365 = vpop.f32.mrf.mxu0
        %v1366 = vadd.f32 0.0, %v1365
        %v1367 = vpop.f32.mrf.mxu0
        %v1368 = vadd.f32 0.0, %v1367
        %v1369 = vpop.f32.mrf.mxu0
        %v1370 = vadd.f32 0.0, %v1369
        %1371 = vmatprep.mubr.bf16.mxu0 %v856
        %1372 = vmatmul.mubr.bf16.gmra.mxu0 %v888
        %v1373 = vpop.f32.mrf.mxu0
        %v1374 = vadd.f32 0.0, %v1373
        %v1375 = vpop.f32.mrf.mxu0
        %v1376 = vadd.f32 0.0, %v1375
        %v1377 = vpop.f32.mrf.mxu0
        %v1378 = vadd.f32 0.0, %v1377
        %v1379 = vpop.f32.mrf.mxu0
        %v1380 = vadd.f32 0.0, %v1379
        %1381 = vmatprep.mubr.bf16.mxu0 %v857
        %1382 = vmatmul.mubr.bf16.gmra.mxu0 %v889
        %v1383 = vpop.f32.mrf.mxu0
        %v1384 = vadd.f32 0.0, %v1383
        %v1385 = vpop.f32.mrf.mxu0
        %v1386 = vadd.f32 0.0, %v1385
        %v1387 = vpop.f32.mrf.mxu0
        %v1388 = vadd.f32 0.0, %v1387
        %v1389 = vpop.f32.mrf.mxu0
        %v1390 = vadd.f32 0.0, %v1389
        %1391 = vmatprep.mubr.bf16.mxu0 %v858
        %1392 = vmatmul.mubr.bf16.gmra.mxu0 %v890
        %v1393 = vpop.f32.mrf.mxu0
        %v1394 = vadd.f32 0.0, %v1393
        %v1395 = vpop.f32.mrf.mxu0
        %v1396 = vadd.f32 0.0, %v1395
        %v1397 = vpop.f32.mrf.mxu0
        %v1398 = vadd.f32 0.0, %v1397
        %v1399 = vpop.f32.mrf.mxu0
        %v1400 = vadd.f32 0.0, %v1399
        %1401 = vmatprep.mubr.bf16.mxu0 %v859
        %1402 = vmatmul.mubr.bf16.gmra.mxu0 %v891
        %v1403 = vpop.f32.mrf.mxu0
        %v1404 = vadd.f32 0.0, %v1403
        %v1405 = vpop.f32.mrf.mxu0
        %v1406 = vadd.f32 0.0, %v1405
        %v1407 = vpop.f32.mrf.mxu0
        %v1408 = vadd.f32 0.0, %v1407
        %v1409 = vpop.f32.mrf.mxu0
        %v1410 = vadd.f32 0.0, %v1409
        %1411 = vmatprep.mubr.bf16.mxu0 %v860
        %1412 = vmatmul.mubr.bf16.gmra.mxu0 %v892
        %v1413 = vpop.f32.mrf.mxu0
        %v1414 = vadd.f32 0.0, %v1413
        %v1415 = vpop.f32.mrf.mxu0
        %v1416 = vadd.f32 0.0, %v1415
        %v1417 = vpop.f32.mrf.mxu0
        %v1418 = vadd.f32 0.0, %v1417
        %v1419 = vpop.f32.mrf.mxu0
        %v1420 = vadd.f32 0.0, %v1419
        %1421 = vmatprep.mubr.bf16.mxu0 %v861
        %1422 = vmatmul.mubr.bf16.gmra.mxu0 %v893
        %v1423 = vpop.f32.mrf.mxu0
        %v1424 = vadd.f32 0.0, %v1423
        %v1425 = vpop.f32.mrf.mxu0
        %v1426 = vadd.f32 0.0, %v1425
        %v1427 = vpop.f32.mrf.mxu0
        %v1428 = vadd.f32 0.0, %v1427
        %v1429 = vpop.f32.mrf.mxu0
        %v1430 = vadd.f32 0.0, %v1429
        %1431 = vmatprep.mubr.bf16.mxu0 %v862
        %1432 = vmatmul.mubr.bf16.gmra.mxu0 %v894
        %v1433 = vpop.f32.mrf.mxu0
        %v1434 = vadd.f32 0.0, %v1433
        %v1435 = vpop.f32.mrf.mxu0
        %v1436 = vadd.f32 0.0, %v1435
        %v1437 = vpop.f32.mrf.mxu0
        %v1438 = vadd.f32 0.0, %v1437
        %v1439 = vpop.f32.mrf.mxu0
        %v1440 = vadd.f32 0.0, %v1439
        %1441 = vmatprep.mubr.bf16.mxu0 %v863
        %1442 = vmatmul.mubr.bf16.gmra.mxu0 %v895
        %v1443 = vpop.f32.mrf.mxu0
        %v1444 = vadd.f32 0.0, %v1443
        %v1445 = vpop.f32.mrf.mxu0
        %v1446 = vadd.f32 0.0, %v1445
        %v1447 = vpop.f32.mrf.mxu0
        %v1448 = vadd.f32 0.0, %v1447
        %v1449 = vpop.f32.mrf.mxu0
        %v1450 = vadd.f32 0.0, %v1449
        %1451 = vmatprep.mubr.bf16.mxu0 %v864
        %1452 = vmatmul.mubr.bf16.gmra.mxu0 %v896
        %v1453 = vpop.f32.mrf.mxu0
        %v1454 = vadd.f32 0.0, %v1453
        %v1455 = vpop.f32.mrf.mxu0
        %v1456 = vadd.f32 0.0, %v1455
        %v1457 = vpop.f32.mrf.mxu0
        %v1458 = vadd.f32 0.0, %v1457
        %v1459 = vpop.f32.mrf.mxu0
        %v1460 = vadd.f32 0.0, %v1459
        %1461 = vmatprep.mubr.bf16.mxu0 %v865
        %1462 = vmatmul.mubr.bf16.gmra.mxu0 %v897
        %v1463 = vpop.f32.mrf.mxu0
        %v1464 = vadd.f32 0.0, %v1463
        %v1465 = vpop.f32.mrf.mxu0
        %v1466 = vadd.f32 0.0, %v1465
        %v1467 = vpop.f32.mrf.mxu0
        %v1468 = vadd.f32 0.0, %v1467
        %v1469 = vpop.f32.mrf.mxu0
        %v1470 = vadd.f32 0.0, %v1469
        %1471 = vmatprep.mubr.bf16.mxu0 %v866
        %1472 = vmatmul.mubr.bf16.gmra.mxu0 %v898
        %v1473 = vpop.f32.mrf.mxu0
        %v1474 = vadd.f32 0.0, %v1473
        %v1475 = vpop.f32.mrf.mxu0
        %v1476 = vadd.f32 0.0, %v1475
        %v1477 = vpop.f32.mrf.mxu0
        %v1478 = vadd.f32 0.0, %v1477
        %v1479 = vpop.f32.mrf.mxu0
        %v1480 = vadd.f32 0.0, %v1479
        %1481 = vmatprep.mubr.bf16.mxu0 %v867
        %1482 = vmatmul.mubr.bf16.gmra.mxu0 %v899
        %v1483 = vpop.f32.mrf.mxu0
        %v1484 = vadd.f32 0.0, %v1483
        %v1485 = vpop.f32.mrf.mxu0
        %v1486 = vadd.f32 0.0, %v1485
        %v1487 = vpop.f32.mrf.mxu0
        %v1488 = vadd.f32 0.0, %v1487
        %v1489 = vpop.f32.mrf.mxu0
        %v1490 = vadd.f32 0.0, %v1489
        %1491 = vmatprep.mubr.bf16.mxu0 %v868
        %1492 = vmatmul.mubr.bf16.gmra.mxu0 %v900
        %v1493 = vpop.f32.mrf.mxu0
        %v1494 = vadd.f32 0.0, %v1493
        %v1495 = vpop.f32.mrf.mxu0
        %v1496 = vadd.f32 0.0, %v1495
        %v1497 = vpop.f32.mrf.mxu0
        %v1498 = vadd.f32 0.0, %v1497
        %v1499 = vpop.f32.mrf.mxu0
        %v1500 = vadd.f32 0.0, %v1499
        %1501 = vmatprep.mubr.bf16.mxu0 %v869
        %1502 = vmatmul.mubr.bf16.gmra.mxu0 %v901
        %v1503 = vpop.f32.mrf.mxu0
        %v1504 = vadd.f32 0.0, %v1503
        %v1505 = vpop.f32.mrf.mxu0
        %v1506 = vadd.f32 0.0, %v1505
        %v1507 = vpop.f32.mrf.mxu0
        %v1508 = vadd.f32 0.0, %v1507
        %v1509 = vpop.f32.mrf.mxu0
        %v1510 = vadd.f32 0.0, %v1509
        %1511 = vmatprep.mubr.bf16.mxu0 %v870
        %1512 = vmatmul.mubr.bf16.gmra.mxu0 %v902
        %v1513 = vpop.f32.mrf.mxu0
        %v1514 = vadd.f32 0.0, %v1513
        %v1515 = vpop.f32.mrf.mxu0
        %v1516 = vadd.f32 0.0, %v1515
        %v1517 = vpop.f32.mrf.mxu0
        %v1518 = vadd.f32 0.0, %v1517
        %v1519 = vpop.f32.mrf.mxu0
        %v1520 = vadd.f32 0.0, %v1519
        %1521 = vmatprep.mubr.bf16.mxu0 %v871
        %1522 = vmatmul.mubr.bf16.gmra.mxu0 %v903
        %v1523 = vpop.f32.mrf.mxu0
        %v1524 = vadd.f32 0.0, %v1523
        %v1525 = vpop.f32.mrf.mxu0
        %v1526 = vadd.f32 0.0, %v1525
        %v1527 = vpop.f32.mrf.mxu0
        %v1528 = vadd.f32 0.0, %v1527
        %v1529 = vpop.f32.mrf.mxu0
        %v1530 = vadd.f32 0.0, %v1529
        %1531 = vmatprep.mubr.bf16.mxu0 %v872
        %1532 = vmatmul.mubr.bf16.gmra.mxu0 %v904
        %v1533 = vpop.f32.mrf.mxu0
        %v1534 = vadd.f32 0.0, %v1533
        %v1535 = vpop.f32.mrf.mxu0
        %v1536 = vadd.f32 0.0, %v1535
        %v1537 = vpop.f32.mrf.mxu0
        %v1538 = vadd.f32 0.0, %v1537
        %v1539 = vpop.f32.mrf.mxu0
        %v1540 = vadd.f32 0.0, %v1539
        %1541 = vmatprep.mubr.bf16.mxu0 %v873
        %1542 = vmatmul.mubr.bf16.gmra.mxu0 %v905
        %v1543 = vpop.f32.mrf.mxu0
        %v1544 = vadd.f32 0.0, %v1543
        %v1545 = vpop.f32.mrf.mxu0
        %v1546 = vadd.f32 0.0, %v1545
        %v1547 = vpop.f32.mrf.mxu0
        %v1548 = vadd.f32 0.0, %v1547
        %v1549 = vpop.f32.mrf.mxu0
        %v1550 = vadd.f32 0.0, %v1549
        %1551 = vmatprep.mubr.bf16.mxu0 %v874
        %1552 = vmatmul.mubr.bf16.gmra.mxu0 %v906
        %v1553 = vpop.f32.mrf.mxu0
        %v1554 = vadd.f32 0.0, %v1553
        %v1555 = vpop.f32.mrf.mxu0
        %v1556 = vadd.f32 0.0, %v1555
        %v1557 = vpop.f32.mrf.mxu0
        %v1558 = vadd.f32 0.0, %v1557
        %v1559 = vpop.f32.mrf.mxu0
        %v1560 = vadd.f32 0.0, %v1559
        %1561 = vmatprep.mubr.bf16.mxu0 %v875
        %1562 = vmatmul.mubr.bf16.gmra.mxu0 %v907
        %v1563 = vpop.f32.mrf.mxu0
        %v1564 = vadd.f32 0.0, %v1563
        %v1565 = vpop.f32.mrf.mxu0
        %v1566 = vadd.f32 0.0, %v1565
        %v1567 = vpop.f32.mrf.mxu0
        %v1568 = vadd.f32 0.0, %v1567
        %v1569 = vpop.f32.mrf.mxu0
        %v1570 = vadd.f32 0.0, %v1569
        %1571 = vmatprep.mubr.bf16.mxu0 %v876
        %1572 = vmatmul.mubr.bf16.gmra.mxu0 %v908
        %v1573 = vpop.f32.mrf.mxu0
        %v1574 = vadd.f32 0.0, %v1573
        %v1575 = vpop.f32.mrf.mxu0
        %v1576 = vadd.f32 0.0, %v1575
        %v1577 = vpop.f32.mrf.mxu0
        %v1578 = vadd.f32 0.0, %v1577
        %v1579 = vpop.f32.mrf.mxu0
        %v1580 = vadd.f32 0.0, %v1579
        %1581 = vdwg.mxu0
        %1582 = vmatprep.subr.bf16.mxu0 0
        %1583 = vmatpush1.bf16.msra.mxu0 %v1156
        %1584 = vmatprep.subr.bf16.mxu0 0
        %1585 = vmatpush1.bf16.msra.mxu0 %v1153
        %1586 = vmatprep.subr.bf16.mxu0 0
        %1587 = vmatpush1.bf16.msra.mxu0 %v1150
        %1588 = vmatprep.subr.bf16.mxu0 0
        %1589 = vmatpush1.bf16.msra.mxu0 %v1147
        %1590 = vmatprep.subr.bf16.mxu0 0
        %1591 = vmatpush1.bf16.msra.mxu0 %v1144
        %1592 = vmatprep.subr.bf16.mxu0 0
        %1593 = vmatpush1.bf16.msra.mxu0 %v1141
        %1594 = vmatprep.subr.bf16.mxu0 0
        %1595 = vmatpush1.bf16.msra.mxu0 %v1138
        %1596 = vmatprep.subr.bf16.mxu0 0
        %1597 = vmatpush1.bf16.msra.mxu0 %v1135
        %1598 = vmatprep.subr.bf16.mxu0 0
        %1599 = vmatpush2.bf16.msra.mxu0 %v1180
        %1600 = vmatprep.subr.bf16.mxu0 0
        %1601 = vmatpush2.bf16.msra.mxu0 %v1177
        %1602 = vmatprep.subr.bf16.mxu0 0
        %1603 = vmatpush2.bf16.msra.mxu0 %v1174
        %1604 = vmatprep.subr.bf16.mxu0 0
        %1605 = vmatpush2.bf16.msra.mxu0 %v1171
        %1606 = vmatprep.subr.bf16.mxu0 0
        %1607 = vmatpush2.bf16.msra.mxu0 %v1168
        %1608 = vmatprep.subr.bf16.mxu0 0
        %1609 = vmatpush2.bf16.msra.mxu0 %v1165
        %1610 = vmatprep.subr.bf16.mxu0 0
        %1611 = vmatpush2.bf16.msra.mxu0 %v1162
        %1612 = vmatprep.subr.bf16.mxu0 0
        %1613 = vmatpush2.bf16.msra.mxu0 %v1159
        %1614 = vmatprep.mubr.bf16.mxu0 %v845
        %1615 = vmatmul.mubr.bf16.gmra.mxu0 %v877
        %v1616 = vpop.f32.mrf.mxu0
        %v1617 = vadd.f32 0.0, %v1616
        %v1618 = vpop.f32.mrf.mxu0
        %v1619 = vpop.f32.mrf.mxu0
        %v1620 = vadd.f32 0.0, %v1619
        %v1621 = vpop.f32.mrf.mxu0
        %1622 = vmatprep.mubr.bf16.mxu0 %v846
        %1623 = vmatmul.mubr.bf16.gmra.mxu0 %v878
        %v1624 = vpop.f32.mrf.mxu0
        %v1625 = vadd.f32 0.0, %v1624
        %v1626 = vpop.f32.mrf.mxu0
        %v1627 = vpop.f32.mrf.mxu0
        %v1628 = vadd.f32 0.0, %v1627
        %v1629 = vpop.f32.mrf.mxu0
        %1630 = vmatprep.mubr.bf16.mxu0 %v847
        %1631 = vmatmul.mubr.bf16.gmra.mxu0 %v879
        %v1632 = vpop.f32.mrf.mxu0
        %v1633 = vadd.f32 0.0, %v1632
        %v1634 = vpop.f32.mrf.mxu0
        %v1635 = vpop.f32.mrf.mxu0
        %v1636 = vadd.f32 0.0, %v1635
        %v1637 = vpop.f32.mrf.mxu0
        %1638 = vmatprep.mubr.bf16.mxu0 %v848
        %1639 = vmatmul.mubr.bf16.gmra.mxu0 %v880
        %v1640 = vpop.f32.mrf.mxu0
        %v1641 = vadd.f32 0.0, %v1640
        %v1642 = vpop.f32.mrf.mxu0
        %v1643 = vpop.f32.mrf.mxu0
        %v1644 = vadd.f32 0.0, %v1643
        %v1645 = vpop.f32.mrf.mxu0
        %1646 = vmatprep.mubr.bf16.mxu0 %v849
        %1647 = vmatmul.mubr.bf16.gmra.mxu0 %v881
        %v1648 = vpop.f32.mrf.mxu0
        %v1649 = vadd.f32 0.0, %v1648
        %v1650 = vpop.f32.mrf.mxu0
        %v1651 = vpop.f32.mrf.mxu0
        %v1652 = vadd.f32 0.0, %v1651
        %v1653 = vpop.f32.mrf.mxu0
        %1654 = vmatprep.mubr.bf16.mxu0 %v850
        %1655 = vmatmul.mubr.bf16.gmra.mxu0 %v882
        %v1656 = vpop.f32.mrf.mxu0
        %v1657 = vadd.f32 0.0, %v1656
        %v1658 = vpop.f32.mrf.mxu0
        %v1659 = vpop.f32.mrf.mxu0
        %v1660 = vadd.f32 0.0, %v1659
        %v1661 = vpop.f32.mrf.mxu0
        %1662 = vmatprep.mubr.bf16.mxu0 %v851
        %1663 = vmatmul.mubr.bf16.gmra.mxu0 %v883
        %v1664 = vpop.f32.mrf.mxu0
        %v1665 = vadd.f32 0.0, %v1664
        %v1666 = vpop.f32.mrf.mxu0
        %v1667 = vpop.f32.mrf.mxu0
        %v1668 = vadd.f32 0.0, %v1667
        %v1669 = vpop.f32.mrf.mxu0
        %1670 = vmatprep.mubr.bf16.mxu0 %v852
        %1671 = vmatmul.mubr.bf16.gmra.mxu0 %v884
        %v1672 = vpop.f32.mrf.mxu0
        %v1673 = vadd.f32 0.0, %v1672
        %v1674 = vpop.f32.mrf.mxu0
        %v1675 = vpop.f32.mrf.mxu0
        %v1676 = vadd.f32 0.0, %v1675
        %v1677 = vpop.f32.mrf.mxu0
        %1678 = vmatprep.mubr.bf16.mxu0 %v853
        %1679 = vmatmul.mubr.bf16.gmra.mxu0 %v885
        %v1680 = vpop.f32.mrf.mxu0
        %v1681 = vadd.f32 0.0, %v1680
        %v1682 = vpop.f32.mrf.mxu0
        %v1683 = vpop.f32.mrf.mxu0
        %v1684 = vadd.f32 0.0, %v1683
        %v1685 = vpop.f32.mrf.mxu0
        %1686 = vmatprep.mubr.bf16.mxu0 %v854
        %1687 = vmatmul.mubr.bf16.gmra.mxu0 %v886
        %v1688 = vpop.f32.mrf.mxu0
        %v1689 = vadd.f32 0.0, %v1688
        %v1690 = vpop.f32.mrf.mxu0
        %v1691 = vpop.f32.mrf.mxu0
        %v1692 = vadd.f32 0.0, %v1691
        %v1693 = vpop.f32.mrf.mxu0
        %1694 = vmatprep.mubr.bf16.mxu0 %v855
        %1695 = vmatmul.mubr.bf16.gmra.mxu0 %v887
        %v1696 = vpop.f32.mrf.mxu0
        %v1697 = vadd.f32 0.0, %v1696
        %v1698 = vpop.f32.mrf.mxu0
        %v1699 = vpop.f32.mrf.mxu0
        %v1700 = vadd.f32 0.0, %v1699
        %v1701 = vpop.f32.mrf.mxu0
        %1702 = vmatprep.mubr.bf16.mxu0 %v856
        %1703 = vmatmul.mubr.bf16.gmra.mxu0 %v888
        %v1704 = vpop.f32.mrf.mxu0
        %v1705 = vadd.f32 0.0, %v1704
        %v1706 = vpop.f32.mrf.mxu0
        %v1707 = vpop.f32.mrf.mxu0
        %v1708 = vadd.f32 0.0, %v1707
        %v1709 = vpop.f32.mrf.mxu0
        %1710 = vmatprep.mubr.bf16.mxu0 %v857
        %1711 = vmatmul.mubr.bf16.gmra.mxu0 %v889
        %v1712 = vpop.f32.mrf.mxu0
        %v1713 = vadd.f32 0.0, %v1712
        %v1714 = vpop.f32.mrf.mxu0
        %v1715 = vpop.f32.mrf.mxu0
        %v1716 = vadd.f32 0.0, %v1715
        %v1717 = vpop.f32.mrf.mxu0
        %1718 = vmatprep.mubr.bf16.mxu0 %v858
        %1719 = vmatmul.mubr.bf16.gmra.mxu0 %v890
        %v1720 = vpop.f32.mrf.mxu0
        %v1721 = vadd.f32 0.0, %v1720
        %v1722 = vpop.f32.mrf.mxu0
        %v1723 = vpop.f32.mrf.mxu0
        %v1724 = vadd.f32 0.0, %v1723
        %v1725 = vpop.f32.mrf.mxu0
        %1726 = vmatprep.mubr.bf16.mxu0 %v859
        %1727 = vmatmul.mubr.bf16.gmra.mxu0 %v891
        %v1728 = vpop.f32.mrf.mxu0
        %v1729 = vadd.f32 0.0, %v1728
        %v1730 = vpop.f32.mrf.mxu0
        %v1731 = vpop.f32.mrf.mxu0
        %v1732 = vadd.f32 0.0, %v1731
        %v1733 = vpop.f32.mrf.mxu0
        %1734 = vmatprep.mubr.bf16.mxu0 %v860
        %1735 = vmatmul.mubr.bf16.gmra.mxu0 %v892
        %v1736 = vpop.f32.mrf.mxu0
        %v1737 = vadd.f32 0.0, %v1736
        %v1738 = vpop.f32.mrf.mxu0
        %v1739 = vpop.f32.mrf.mxu0
        %v1740 = vadd.f32 0.0, %v1739
        %v1741 = vpop.f32.mrf.mxu0
        %1742 = vmatprep.mubr.bf16.mxu0 %v861
        %1743 = vmatmul.mubr.bf16.gmra.mxu0 %v893
        %v1744 = vpop.f32.mrf.mxu0
        %v1745 = vadd.f32 0.0, %v1744
        %v1746 = vpop.f32.mrf.mxu0
        %v1747 = vpop.f32.mrf.mxu0
        %v1748 = vadd.f32 0.0, %v1747
        %v1749 = vpop.f32.mrf.mxu0
        %1750 = vmatprep.mubr.bf16.mxu0 %v862
        %1751 = vmatmul.mubr.bf16.gmra.mxu0 %v894
        %v1752 = vpop.f32.mrf.mxu0
        %v1753 = vadd.f32 0.0, %v1752
        %v1754 = vpop.f32.mrf.mxu0
        %v1755 = vpop.f32.mrf.mxu0
        %v1756 = vadd.f32 0.0, %v1755
        %v1757 = vpop.f32.mrf.mxu0
        %1758 = vmatprep.mubr.bf16.mxu0 %v863
        %1759 = vmatmul.mubr.bf16.gmra.mxu0 %v895
        %v1760 = vpop.f32.mrf.mxu0
        %v1761 = vadd.f32 0.0, %v1760
        %v1762 = vpop.f32.mrf.mxu0
        %v1763 = vpop.f32.mrf.mxu0
        %v1764 = vadd.f32 0.0, %v1763
        %v1765 = vpop.f32.mrf.mxu0
        %1766 = vmatprep.mubr.bf16.mxu0 %v864
        %1767 = vmatmul.mubr.bf16.gmra.mxu0 %v896
        %v1768 = vpop.f32.mrf.mxu0
        %v1769 = vadd.f32 0.0, %v1768
        %v1770 = vpop.f32.mrf.mxu0
        %v1771 = vpop.f32.mrf.mxu0
        %v1772 = vadd.f32 0.0, %v1771
        %v1773 = vpop.f32.mrf.mxu0
        %1774 = vmatprep.mubr.bf16.mxu0 %v865
        %1775 = vmatmul.mubr.bf16.gmra.mxu0 %v897
        %v1776 = vpop.f32.mrf.mxu0
        %v1777 = vadd.f32 0.0, %v1776
        %v1778 = vpop.f32.mrf.mxu0
        %v1779 = vpop.f32.mrf.mxu0
        %v1780 = vadd.f32 0.0, %v1779
        %v1781 = vpop.f32.mrf.mxu0
        %1782 = vmatprep.mubr.bf16.mxu0 %v866
        %1783 = vmatmul.mubr.bf16.gmra.mxu0 %v898
        %v1784 = vpop.f32.mrf.mxu0
        %v1785 = vadd.f32 0.0, %v1784
        %v1786 = vpop.f32.mrf.mxu0
        %v1787 = vpop.f32.mrf.mxu0
        %v1788 = vadd.f32 0.0, %v1787
        %v1789 = vpop.f32.mrf.mxu0
        %1790 = vmatprep.mubr.bf16.mxu0 %v867
        %1791 = vmatmul.mubr.bf16.gmra.mxu0 %v899
        %v1792 = vpop.f32.mrf.mxu0
        %v1793 = vadd.f32 0.0, %v1792
        %v1794 = vpop.f32.mrf.mxu0
        %v1795 = vpop.f32.mrf.mxu0
        %v1796 = vadd.f32 0.0, %v1795
        %v1797 = vpop.f32.mrf.mxu0
        %1798 = vmatprep.mubr.bf16.mxu0 %v868
        %1799 = vmatmul.mubr.bf16.gmra.mxu0 %v900
        %v1800 = vpop.f32.mrf.mxu0
        %v1801 = vadd.f32 0.0, %v1800
        %v1802 = vpop.f32.mrf.mxu0
        %v1803 = vpop.f32.mrf.mxu0
        %v1804 = vadd.f32 0.0, %v1803
        %v1805 = vpop.f32.mrf.mxu0
        %1806 = vmatprep.mubr.bf16.mxu0 %v869
        %1807 = vmatmul.mubr.bf16.gmra.mxu0 %v901
        %v1808 = vpop.f32.mrf.mxu0
        %v1809 = vadd.f32 0.0, %v1808
        %v1810 = vpop.f32.mrf.mxu0
        %v1811 = vpop.f32.mrf.mxu0
        %v1812 = vadd.f32 0.0, %v1811
        %v1813 = vpop.f32.mrf.mxu0
        %1814 = vmatprep.mubr.bf16.mxu0 %v870
        %1815 = vmatmul.mubr.bf16.gmra.mxu0 %v902
        %v1816 = vpop.f32.mrf.mxu0
        %v1817 = vadd.f32 0.0, %v1816
        %v1818 = vpop.f32.mrf.mxu0
        %v1819 = vpop.f32.mrf.mxu0
        %v1820 = vadd.f32 0.0, %v1819
        %v1821 = vpop.f32.mrf.mxu0
        %1822 = vmatprep.mubr.bf16.mxu0 %v871
        %1823 = vmatmul.mubr.bf16.gmra.mxu0 %v903
        %v1824 = vpop.f32.mrf.mxu0
        %v1825 = vadd.f32 0.0, %v1824
        %v1826 = vpop.f32.mrf.mxu0
        %v1827 = vpop.f32.mrf.mxu0
        %v1828 = vadd.f32 0.0, %v1827
        %v1829 = vpop.f32.mrf.mxu0
        %1830 = vmatprep.mubr.bf16.mxu0 %v872
        %1831 = vmatmul.mubr.bf16.gmra.mxu0 %v904
        %v1832 = vpop.f32.mrf.mxu0
        %v1833 = vadd.f32 0.0, %v1832
        %v1834 = vpop.f32.mrf.mxu0
        %v1835 = vpop.f32.mrf.mxu0
        %v1836 = vadd.f32 0.0, %v1835
        %v1837 = vpop.f32.mrf.mxu0
        %1838 = vmatprep.mubr.bf16.mxu0 %v873
        %1839 = vmatmul.mubr.bf16.gmra.mxu0 %v905
        %v1840 = vpop.f32.mrf.mxu0
        %v1841 = vadd.f32 0.0, %v1840
        %v1842 = vpop.f32.mrf.mxu0
        %v1843 = vpop.f32.mrf.mxu0
        %v1844 = vadd.f32 0.0, %v1843
        %v1845 = vpop.f32.mrf.mxu0
        %1846 = vmatprep.mubr.bf16.mxu0 %v874
        %1847 = vmatmul.mubr.bf16.gmra.mxu0 %v906
        %v1848 = vpop.f32.mrf.mxu0
        %v1849 = vadd.f32 0.0, %v1848
        %v1850 = vpop.f32.mrf.mxu0
        %v1851 = vpop.f32.mrf.mxu0
        %v1852 = vadd.f32 0.0, %v1851
        %v1853 = vpop.f32.mrf.mxu0
        %1854 = vmatprep.mubr.bf16.mxu0 %v875
        %1855 = vmatmul.mubr.bf16.gmra.mxu0 %v907
        %v1856 = vpop.f32.mrf.mxu0
        %v1857 = vadd.f32 0.0, %v1856
        %v1858 = vpop.f32.mrf.mxu0
        %v1859 = vpop.f32.mrf.mxu0
        %v1860 = vadd.f32 0.0, %v1859
        %v1861 = vpop.f32.mrf.mxu0
        %1862 = vmatprep.mubr.bf16.mxu0 %v876
        %1863 = vmatmul.mubr.bf16.gmra.mxu0 %v908
        %v1864 = vpop.f32.mrf.mxu0
        %v1865 = vadd.f32 0.0, %v1864
        %v1866 = vpop.f32.mrf.mxu0
        %v1867 = vpop.f32.mrf.mxu0
        %v1868 = vadd.f32 0.0, %v1867
        %v1869 = vpop.f32.mrf.mxu0
        %1870 = vdwg.mxu0
        %1871 = vst [vmem:[#allocation2] sm:$0xff] %v1266
        %1872 = vst [vmem:[#allocation2 + $0x8] sm:$0xff] %v1617
        %1873 = vst [vmem:[#allocation2 + $0x10] sm:$0xff] %v1270
        %1874 = vst [vmem:[#allocation2 + $0x18] sm:$0xff] %v1620
        %1875 = vst [vmem:[#allocation2 + $0x20] sm:$0xff] %v1276
        %1876 = vst [vmem:[#allocation2 + $0x28] sm:$0xff] %v1625
        %1877 = vst [vmem:[#allocation2 + $0x30] sm:$0xff] %v1280
        %1878 = vst [vmem:[#allocation2 + $0x38] sm:$0xff] %v1628
        %1879 = vst [vmem:[#allocation2 + $0x40] sm:$0xff] %v1286
        %1880 = vst [vmem:[#allocation2 + $0x48] sm:$0xff] %v1633
        %1881 = vst [vmem:[#allocation2 + $0x50] sm:$0xff] %v1290
        %1882 = vst [vmem:[#allocation2 + $0x58] sm:$0xff] %v1636
        %1883 = vst [vmem:[#allocation2 + $0x60] sm:$0xff] %v1296
        %1884 = vst [vmem:[#allocation2 + $0x68] sm:$0xff] %v1641
        %1885 = vst [vmem:[#allocation2 + $0x70] sm:$0xff] %v1300
        %1886 = vst [vmem:[#allocation2 + $0x78] sm:$0xff] %v1644
        %1887 = vst [vmem:[#allocation2 + $0x80] sm:$0xff] %v1306
        %1888 = vst [vmem:[#allocation2 + $0x88] sm:$0xff] %v1649
        %1889 = vst [vmem:[#allocation2 + $0x90] sm:$0xff] %v1310
        %1890 = vst [vmem:[#allocation2 + $0x98] sm:$0xff] %v1652
        %1891 = vst [vmem:[#allocation2 + $0xa0] sm:$0xff] %v1316
        %1892 = vst [vmem:[#allocation2 + $0xa8] sm:$0xff] %v1657
        %1893 = vst [vmem:[#allocation2 + $0xb0] sm:$0xff] %v1320
        %1894 = vst [vmem:[#allocation2 + $0xb8] sm:$0xff] %v1660
        %1895 = vst [vmem:[#allocation2 + $0xc0] sm:$0xff] %v1326
        %1896 = vst [vmem:[#allocation2 + $0xc8] sm:$0xff] %v1665
        %1897 = vst [vmem:[#allocation2 + $0xd0] sm:$0xff] %v1330
        %1898 = vst [vmem:[#allocation2 + $0xd8] sm:$0xff] %v1668
        %1899 = vst [vmem:[#allocation2 + $0xe0] sm:$0xff] %v1336
        %1900 = vst [vmem:[#allocation2 + $0xe8] sm:$0xff] %v1673
        %1901 = vst [vmem:[#allocation2 + $0xf0] sm:$0xff] %v1340
        %1902 = vst [vmem:[#allocation2 + $0xf8] sm:$0xff] %v1676
        %1903 = vst [vmem:[#allocation2 + $0x100] sm:$0xff] %v1346
        %1904 = vst [vmem:[#allocation2 + $0x108] sm:$0xff] %v1681
        %1905 = vst [vmem:[#allocation2 + $0x110] sm:$0xff] %v1350
        %1906 = vst [vmem:[#allocation2 + $0x118] sm:$0xff] %v1684
        %1907 = vst [vmem:[#allocation2 + $0x120] sm:$0xff] %v1356
        %1908 = vst [vmem:[#allocation2 + $0x128] sm:$0xff] %v1689
        %1909 = vst [vmem:[#allocation2 + $0x130] sm:$0xff] %v1360
        %1910 = vst [vmem:[#allocation2 + $0x138] sm:$0xff] %v1692
        %1911 = vst [vmem:[#allocation2 + $0x140] sm:$0xff] %v1366
        %1912 = vst [vmem:[#allocation2 + $0x148] sm:$0xff] %v1697
        %1913 = vst [vmem:[#allocation2 + $0x150] sm:$0xff] %v1370
        %1914 = vst [vmem:[#allocation2 + $0x158] sm:$0xff] %v1700
        %1915 = vst [vmem:[#allocation2 + $0x160] sm:$0xff] %v1376
        %1916 = vst [vmem:[#allocation2 + $0x168] sm:$0xff] %v1705
        %1917 = vst [vmem:[#allocation2 + $0x170] sm:$0xff] %v1380
        %1918 = vst [vmem:[#allocation2 + $0x178] sm:$0xff] %v1708
        %1919 = vst [vmem:[#allocation2 + $0x180] sm:$0xff] %v1386
        %1920 = vst [vmem:[#allocation2 + $0x188] sm:$0xff] %v1713
        %1921 = vst [vmem:[#allocation2 + $0x190] sm:$0xff] %v1390
        %1922 = vst [vmem:[#allocation2 + $0x198] sm:$0xff] %v1716
        %1923 = vst [vmem:[#allocation2 + $0x1a0] sm:$0xff] %v1396
        %1924 = vst [vmem:[#allocation2 + $0x1a8] sm:$0xff] %v1721
        %1925 = vst [vmem:[#allocation2 + $0x1b0] sm:$0xff] %v1400
        %1926 = vst [vmem:[#allocation2 + $0x1b8] sm:$0xff] %v1724
        %1927 = vst [vmem:[#allocation2 + $0x1c0] sm:$0xff] %v1406
        %1928 = vst [vmem:[#allocation2 + $0x1c8] sm:$0xff] %v1729
        %1929 = vst [vmem:[#allocation2 + $0x1d0] sm:$0xff] %v1410
        %1930 = vst [vmem:[#allocation2 + $0x1d8] sm:$0xff] %v1732
        %1931 = vst [vmem:[#allocation2 + $0x1e0] sm:$0xff] %v1416
        %1932 = vst [vmem:[#allocation2 + $0x1e8] sm:$0xff] %v1737
        %1933 = vst [vmem:[#allocation2 + $0x1f0] sm:$0xff] %v1420
        %1934 = vst [vmem:[#allocation2 + $0x1f8] sm:$0xff] %v1740
        %1935 = vst [vmem:[#allocation2 + $0x200] sm:$0xff] %v1426
        %1936 = vst [vmem:[#allocation2 + $0x208] sm:$0xff] %v1745
        %1937 = vst [vmem:[#allocation2 + $0x210] sm:$0xff] %v1430
        %1938 = vst [vmem:[#allocation2 + $0x218] sm:$0xff] %v1748
        %1939 = vst [vmem:[#allocation2 + $0x220] sm:$0xff] %v1436
        %1940 = vst [vmem:[#allocation2 + $0x228] sm:$0xff] %v1753
        %1941 = vst [vmem:[#allocation2 + $0x230] sm:$0xff] %v1440
        %1942 = vst [vmem:[#allocation2 + $0x238] sm:$0xff] %v1756
        %1943 = vst [vmem:[#allocation2 + $0x240] sm:$0xff] %v1446
        %1944 = vst [vmem:[#allocation2 + $0x248] sm:$0xff] %v1761
        %1945 = vst [vmem:[#allocation2 + $0x250] sm:$0xff] %v1450
        %1946 = vst [vmem:[#allocation2 + $0x258] sm:$0xff] %v1764
        %1947 = vst [vmem:[#allocation2 + $0x260] sm:$0xff] %v1456
        %1948 = vst [vmem:[#allocation2 + $0x268] sm:$0xff] %v1769
        %1949 = vst [vmem:[#allocation2 + $0x270] sm:$0xff] %v1460
        %1950 = vst [vmem:[#allocation2 + $0x278] sm:$0xff] %v1772
        %1951 = vst [vmem:[#allocation2 + $0x280] sm:$0xff] %v1466
        %1952 = vst [vmem:[#allocation2 + $0x288] sm:$0xff] %v1777
        %1953 = vst [vmem:[#allocation2 + $0x290] sm:$0xff] %v1470
        %1954 = vst [vmem:[#allocation2 + $0x298] sm:$0xff] %v1780
        %1955 = vst [vmem:[#allocation2 + $0x2a0] sm:$0xff] %v1476
        %1956 = vst [vmem:[#allocation2 + $0x2a8] sm:$0xff] %v1785
        %1957 = vst [vmem:[#allocation2 + $0x2b0] sm:$0xff] %v1480
        %1958 = vst [vmem:[#allocation2 + $0x2b8] sm:$0xff] %v1788
        %1959 = vst [vmem:[#allocation2 + $0x2c0] sm:$0xff] %v1486
        %1960 = vst [vmem:[#allocation2 + $0x2c8] sm:$0xff] %v1793
        %1961 = vst [vmem:[#allocation2 + $0x2d0] sm:$0xff] %v1490
        %1962 = vst [vmem:[#allocation2 + $0x2d8] sm:$0xff] %v1796
        %1963 = vst [vmem:[#allocation2 + $0x2e0] sm:$0xff] %v1496
        %1964 = vst [vmem:[#allocation2 + $0x2e8] sm:$0xff] %v1801
        %1965 = vst [vmem:[#allocation2 + $0x2f0] sm:$0xff] %v1500
        %1966 = vst [vmem:[#allocation2 + $0x2f8] sm:$0xff] %v1804
        %1967 = vst [vmem:[#allocation2 + $0x300] sm:$0xff] %v1506
        %1968 = vst [vmem:[#allocation2 + $0x308] sm:$0xff] %v1809
        %1969 = vst [vmem:[#allocation2 + $0x310] sm:$0xff] %v1510
        %1970 = vst [vmem:[#allocation2 + $0x318] sm:$0xff] %v1812
        %1971 = vst [vmem:[#allocation2 + $0x320] sm:$0xff] %v1516
        %1972 = vst [vmem:[#allocation2 + $0x328] sm:$0xff] %v1817
        %1973 = vst [vmem:[#allocation2 + $0x330] sm:$0xff] %v1520
        %1974 = vst [vmem:[#allocation2 + $0x338] sm:$0xff] %v1820
        %1975 = vst [vmem:[#allocation2 + $0x340] sm:$0xff] %v1526
        %1976 = vst [vmem:[#allocation2 + $0x348] sm:$0xff] %v1825
        %1977 = vst [vmem:[#allocation2 + $0x350] sm:$0xff] %v1530
        %1978 = vst [vmem:[#allocation2 + $0x358] sm:$0xff] %v1828
        %1979 = vst [vmem:[#allocation2 + $0x360] sm:$0xff] %v1536
        %1980 = vst [vmem:[#allocation2 + $0x368] sm:$0xff] %v1833
        %1981 = vst [vmem:[#allocation2 + $0x370] sm:$0xff] %v1540
        %1982 = vst [vmem:[#allocation2 + $0x378] sm:$0xff] %v1836
        %1983 = vst [vmem:[#allocation2 + $0x380] sm:$0xff] %v1546
        %1984 = vst [vmem:[#allocation2 + $0x388] sm:$0xff] %v1841
        %1985 = vst [vmem:[#allocation2 + $0x390] sm:$0xff] %v1550
        %1986 = vst [vmem:[#allocation2 + $0x398] sm:$0xff] %v1844
        %1987 = vst [vmem:[#allocation2 + $0x3a0] sm:$0xff] %v1556
        %1988 = vst [vmem:[#allocation2 + $0x3a8] sm:$0xff] %v1849
        %1989 = vst [vmem:[#allocation2 + $0x3b0] sm:$0xff] %v1560
        %1990 = vst [vmem:[#allocation2 + $0x3b8] sm:$0xff] %v1852
        %1991 = vst [vmem:[#allocation2 + $0x3c0] sm:$0xff] %v1566
        %1992 = vst [vmem:[#allocation2 + $0x3c8] sm:$0xff] %v1857
        %1993 = vst [vmem:[#allocation2 + $0x3d0] sm:$0xff] %v1570
        %1994 = vst [vmem:[#allocation2 + $0x3d8] sm:$0xff] %v1860
        %1995 = vst [vmem:[#allocation2 + $0x3e0] sm:$0xff] %v1576
        %1996 = vst [vmem:[#allocation2 + $0x3e8] sm:$0xff] %v1865
        %1997 = vst [vmem:[#allocation2 + $0x3f0] sm:$0xff] %v1580
        %1998 = vst [vmem:[#allocation2 + $0x3f8] sm:$0xff] %v1868
        %v1999 = vmax.f32 %v1264, 0.0
        %v2000 = vmax.f32 %v1268, 0.0
        %v2001 = vmax.f32 %v1274, 0.0
        %v2002 = vmax.f32 %v1278, 0.0
        %v2003 = vmax.f32 %v1284, 0.0
        %v2004 = vmax.f32 %v1288, 0.0
        %v2005 = vmax.f32 %v1294, 0.0
        %v2006 = vmax.f32 %v1298, 0.0
        %v2007 = vmax.f32 %v1304, 0.0
        %v2008 = vmax.f32 %v1308, 0.0
        %v2009 = vmax.f32 %v1314, 0.0
        %v2010 = vmax.f32 %v1318, 0.0
        %v2011 = vmax.f32 %v1324, 0.0
        %v2012 = vmax.f32 %v1328, 0.0
        %v2013 = vmax.f32 %v1334, 0.0
        %v2014 = vmax.f32 %v1338, 0.0
        %v2015 = vmax.f32 %v1344, 0.0
        %v2016 = vmax.f32 %v1348, 0.0
        %v2017 = vmax.f32 %v1354, 0.0
        %v2018 = vmax.f32 %v1358, 0.0
        %v2019 = vmax.f32 %v1364, 0.0
        %v2020 = vmax.f32 %v1368, 0.0
        %v2021 = vmax.f32 %v1374, 0.0
        %v2022 = vmax.f32 %v1378, 0.0
        %v2023 = vmax.f32 %v1384, 0.0
        %v2024 = vmax.f32 %v1388, 0.0
        %v2025 = vmax.f32 %v1394, 0.0
        %v2026 = vmax.f32 %v1398, 0.0
        %v2027 = vmax.f32 %v1404, 0.0
        %v2028 = vmax.f32 %v1408, 0.0
        %v2029 = vmax.f32 %v1414, 0.0
        %v2030 = vmax.f32 %v1418, 0.0
        %v2031 = vmax.f32 %v1424, 0.0
        %v2032 = vmax.f32 %v1428, 0.0
        %v2033 = vmax.f32 %v1434, 0.0
        %v2034 = vmax.f32 %v1438, 0.0
        %v2035 = vmax.f32 %v1444, 0.0
        %v2036 = vmax.f32 %v1448, 0.0
        %v2037 = vmax.f32 %v1454, 0.0
        %v2038 = vmax.f32 %v1458, 0.0
        %v2039 = vmax.f32 %v1464, 0.0
        %v2040 = vmax.f32 %v1468, 0.0
        %v2041 = vmax.f32 %v1474, 0.0
        %v2042 = vmax.f32 %v1478, 0.0
        %v2043 = vmax.f32 %v1484, 0.0
        %v2044 = vmax.f32 %v1488, 0.0
        %v2045 = vmax.f32 %v1494, 0.0
        %v2046 = vmax.f32 %v1498, 0.0
        %v2047 = vmax.f32 %v1504, 0.0
        %v2048 = vmax.f32 %v1508, 0.0
        %v2049 = vmax.f32 %v1514, 0.0
        %v2050 = vmax.f32 %v1518, 0.0
        %v2051 = vmax.f32 %v1524, 0.0
        %v2052 = vmax.f32 %v1528, 0.0
        %v2053 = vmax.f32 %v1534, 0.0
        %v2054 = vmax.f32 %v1538, 0.0
        %v2055 = vmax.f32 %v1544, 0.0
        %v2056 = vmax.f32 %v1548, 0.0
        %v2057 = vmax.f32 %v1554, 0.0
        %v2058 = vmax.f32 %v1558, 0.0
        %v2059 = vmax.f32 %v1564, 0.0
        %v2060 = vmax.f32 %v1568, 0.0
        %v2061 = vmax.f32 %v1574, 0.0
        %v2062 = vmax.f32 %v1578, 0.0
        %v2063 = vpack.c.bf16 %v2000, %v1999
        %v2064 = vpack.c.bf16 %v2002, %v2001
        %v2065 = vpack.c.bf16 %v2004, %v2003
        %v2066 = vpack.c.bf16 %v2006, %v2005
        %v2067 = vpack.c.bf16 %v2008, %v2007
        %v2068 = vpack.c.bf16 %v2010, %v2009
        %v2069 = vpack.c.bf16 %v2012, %v2011
        %v2070 = vpack.c.bf16 %v2014, %v2013
        %v2071 = vpack.c.bf16 %v2016, %v2015
        %v2072 = vpack.c.bf16 %v2018, %v2017
        %v2073 = vpack.c.bf16 %v2020, %v2019
        %v2074 = vpack.c.bf16 %v2022, %v2021
        %v2075 = vpack.c.bf16 %v2024, %v2023
        %v2076 = vpack.c.bf16 %v2026, %v2025
        %v2077 = vpack.c.bf16 %v2028, %v2027
        %v2078 = vpack.c.bf16 %v2030, %v2029
        %v2079 = vpack.c.bf16 %v2032, %v2031
        %v2080 = vpack.c.bf16 %v2034, %v2033
        %v2081 = vpack.c.bf16 %v2036, %v2035
        %v2082 = vpack.c.bf16 %v2038, %v2037
        %v2083 = vpack.c.bf16 %v2040, %v2039
        %v2084 = vpack.c.bf16 %v2042, %v2041
        %v2085 = vpack.c.bf16 %v2044, %v2043
        %v2086 = vpack.c.bf16 %v2046, %v2045
        %v2087 = vpack.c.bf16 %v2048, %v2047
        %v2088 = vpack.c.bf16 %v2050, %v2049
        %v2089 = vpack.c.bf16 %v2052, %v2051
        %v2090 = vpack.c.bf16 %v2054, %v2053
        %v2091 = vpack.c.bf16 %v2056, %v2055
        %v2092 = vpack.c.bf16 %v2058, %v2057
        %v2093 = vpack.c.bf16 %v2060, %v2059
        %v2094 = vpack.c.bf16 %v2062, %v2061
        %v2095 = vld [vmem:[#allocation8] sm:$0xf]
        %v2096 = vld [vmem:[#allocation8 + $0x4] sm:$0xf]
        %v2097 = vld [vmem:[#allocation8 + $0x8] sm:$0xf]
        %v2098 = vld [vmem:[#allocation8 + $0xc] sm:$0xf]
        %v2099 = vld [vmem:[#allocation8 + $0x10] sm:$0xf]
        %v2100 = vld [vmem:[#allocation8 + $0x14] sm:$0xf]
        %v2101 = vld [vmem:[#allocation8 + $0x18] sm:$0xf]
        %v2102 = vld [vmem:[#allocation8 + $0x1c] sm:$0xf]
        %v2103 = vld [vmem:[#allocation8 + $0x20] sm:$0xf]
        %v2104 = vld [vmem:[#allocation8 + $0x24] sm:$0xf]
        %v2105 = vld [vmem:[#allocation8 + $0x28] sm:$0xf]
        %v2106 = vld [vmem:[#allocation8 + $0x2c] sm:$0xf]
        %v2107 = vld [vmem:[#allocation8 + $0x30] sm:$0xf]
        %v2108 = vld [vmem:[#allocation8 + $0x34] sm:$0xf]
        %v2109 = vld [vmem:[#allocation8 + $0x38] sm:$0xf]
        %v2110 = vld [vmem:[#allocation8 + $0x3c] sm:$0xf]
        %v2111 = vld [vmem:[#allocation2] sm:$0xff]
        %v2112 = vld [vmem:[#allocation2 + $0x10] sm:$0xff]
        %v2113 = vld [vmem:[#allocation2 + $0x20] sm:$0xff]
        %v2114 = vld [vmem:[#allocation2 + $0x30] sm:$0xff]
        %v2115 = vld [vmem:[#allocation2 + $0x40] sm:$0xff]
        %v2116 = vld [vmem:[#allocation2 + $0x50] sm:$0xff]
        %v2117 = vld [vmem:[#allocation2 + $0x60] sm:$0xff]
        %v2118 = vld [vmem:[#allocation2 + $0x70] sm:$0xff]
        %v2119 = vld [vmem:[#allocation2 + $0x80] sm:$0xff]
        %v2120 = vld [vmem:[#allocation2 + $0x90] sm:$0xff]
        %v2121 = vld [vmem:[#allocation2 + $0xa0] sm:$0xff]
        %v2122 = vld [vmem:[#allocation2 + $0xb0] sm:$0xff]
        %v2123 = vld [vmem:[#allocation2 + $0xc0] sm:$0xff]
        %v2124 = vld [vmem:[#allocation2 + $0xd0] sm:$0xff]
        %v2125 = vld [vmem:[#allocation2 + $0xe0] sm:$0xff]
        %v2126 = vld [vmem:[#allocation2 + $0xf0] sm:$0xff]
        %v2127 = vld [vmem:[#allocation2 + $0x100] sm:$0xff]
        %v2128 = vld [vmem:[#allocation2 + $0x110] sm:$0xff]
        %v2129 = vld [vmem:[#allocation2 + $0x120] sm:$0xff]
        %v2130 = vld [vmem:[#allocation2 + $0x130] sm:$0xff]
        %v2131 = vld [vmem:[#allocation2 + $0x140] sm:$0xff]
        %v2132 = vld [vmem:[#allocation2 + $0x150] sm:$0xff]
        %v2133 = vld [vmem:[#allocation2 + $0x160] sm:$0xff]
        %v2134 = vld [vmem:[#allocation2 + $0x170] sm:$0xff]
        %v2135 = vld [vmem:[#allocation2 + $0x180] sm:$0xff]
        %v2136 = vld [vmem:[#allocation2 + $0x190] sm:$0xff]
        %v2137 = vld [vmem:[#allocation2 + $0x1a0] sm:$0xff]
        %v2138 = vld [vmem:[#allocation2 + $0x1b0] sm:$0xff]
        %v2139 = vld [vmem:[#allocation2 + $0x1c0] sm:$0xff]
        %v2140 = vld [vmem:[#allocation2 + $0x1d0] sm:$0xff]
        %v2141 = vld [vmem:[#allocation2 + $0x1e0] sm:$0xff]
        %v2142 = vld [vmem:[#allocation2 + $0x1f0] sm:$0xff]
        %v2143 = vld [vmem:[#allocation2 + $0x200] sm:$0xff]
        %v2144 = vld [vmem:[#allocation2 + $0x210] sm:$0xff]
        %v2145 = vld [vmem:[#allocation2 + $0x220] sm:$0xff]
        %v2146 = vld [vmem:[#allocation2 + $0x230] sm:$0xff]
        %v2147 = vld [vmem:[#allocation2 + $0x240] sm:$0xff]
        %v2148 = vld [vmem:[#allocation2 + $0x250] sm:$0xff]
        %v2149 = vld [vmem:[#allocation2 + $0x260] sm:$0xff]
        %v2150 = vld [vmem:[#allocation2 + $0x270] sm:$0xff]
        %v2151 = vld [vmem:[#allocation2 + $0x280] sm:$0xff]
        %v2152 = vld [vmem:[#allocation2 + $0x290] sm:$0xff]
        %v2153 = vld [vmem:[#allocation2 + $0x2a0] sm:$0xff]
        %v2154 = vld [vmem:[#allocation2 + $0x2b0] sm:$0xff]
        %v2155 = vld [vmem:[#allocation2 + $0x2c0] sm:$0xff]
        %v2156 = vld [vmem:[#allocation2 + $0x2d0] sm:$0xff]
        %v2157 = vld [vmem:[#allocation2 + $0x2e0] sm:$0xff]
        %v2158 = vld [vmem:[#allocation2 + $0x2f0] sm:$0xff]
        %v2159 = vld [vmem:[#allocation2 + $0x300] sm:$0xff]
        %v2160 = vld [vmem:[#allocation2 + $0x310] sm:$0xff]
        %v2161 = vld [vmem:[#allocation2 + $0x320] sm:$0xff]
        %v2162 = vld [vmem:[#allocation2 + $0x330] sm:$0xff]
        %v2163 = vld [vmem:[#allocation2 + $0x340] sm:$0xff]
        %v2164 = vld [vmem:[#allocation2 + $0x350] sm:$0xff]
        %v2165 = vld [vmem:[#allocation2 + $0x360] sm:$0xff]
        %v2166 = vld [vmem:[#allocation2 + $0x370] sm:$0xff]
        %v2167 = vld [vmem:[#allocation2 + $0x380] sm:$0xff]
        %v2168 = vld [vmem:[#allocation2 + $0x390] sm:$0xff]
        %v2169 = vld [vmem:[#allocation2 + $0x3a0] sm:$0xff]
        %v2170 = vld [vmem:[#allocation2 + $0x3b0] sm:$0xff]
        %v2171 = vld [vmem:[#allocation2 + $0x3c0] sm:$0xff]
        %v2172 = vld [vmem:[#allocation2 + $0x3d0] sm:$0xff]
        %v2173 = vld [vmem:[#allocation2 + $0x3e0] sm:$0xff]
        %v2174 = vld [vmem:[#allocation2 + $0x3f0] sm:$0xff]
        %v2191 = vunpack.c.l.b16 %v2095
        %v2192 = vunpack.c.l.b16 %v2096
        %v2193 = vunpack.c.l.b16 %v2097
        %v2194 = vunpack.c.l.b16 %v2098
        %v2195 = vunpack.c.l.b16 %v2099
        %v2196 = vunpack.c.l.b16 %v2100
        %v2197 = vunpack.c.l.b16 %v2101
        %v2198 = vunpack.c.l.b16 %v2102
        %v2199 = vunpack.c.l.b16 %v2103
        %v2200 = vunpack.c.l.b16 %v2104
        %v2201 = vunpack.c.l.b16 %v2105
        %v2202 = vunpack.c.l.b16 %v2106
        %v2203 = vunpack.c.l.b16 %v2107
        %v2204 = vunpack.c.l.b16 %v2108
        %v2205 = vunpack.c.l.b16 %v2109
        %v2206 = vunpack.c.l.b16 %v2110
        %v2207 = vpack.c.b16 %v2192, %v2191
        %v2208 = vpack.c.b16 %v2194, %v2193
        %v2209 = vpack.c.b16 %v2196, %v2195
        %v2210 = vpack.c.b16 %v2198, %v2197
        %v2211 = vpack.c.b16 %v2200, %v2199
        %v2212 = vpack.c.b16 %v2202, %v2201
        %v2213 = vpack.c.b16 %v2204, %v2203
        %v2214 = vpack.c.b16 %v2206, %v2205
        %2223 = vmatprep.subr.bf16.mxu0 0
        %2224 = vmatpush1.bf16.msra.mxu0 %v2214
        %2225 = vmatprep.subr.bf16.mxu0 0
        %2226 = vmatpush1.bf16.msra.mxu0 %v2213
        %2227 = vmatprep.subr.bf16.mxu0 0
        %2228 = vmatpush1.bf16.msra.mxu0 %v2212
        %2229 = vmatprep.subr.bf16.mxu0 0
        %2230 = vmatpush1.bf16.msra.mxu0 %v2211
        %2231 = vmatprep.subr.bf16.mxu0 0
        %2232 = vmatpush1.bf16.msra.mxu0 %v2210
        %2233 = vmatprep.subr.bf16.mxu0 0
        %2234 = vmatpush1.bf16.msra.mxu0 %v2209
        %2235 = vmatprep.subr.bf16.mxu0 0
        %2236 = vmatpush1.bf16.msra.mxu0 %v2208
        %2237 = vmatprep.subr.bf16.mxu0 0
        %2238 = vmatpush1.bf16.msra.mxu0 %v2207
        %2239 = vmatprep.subr.bf16.mxu0 0
        %2240 = vmatpush2.bf16.msra.mxu0 0
        %2241 = vmatprep.subr.bf16.mxu0 0
        %2242 = vmatpush2.bf16.msra.mxu0 0
        %2243 = vmatprep.subr.bf16.mxu0 0
        %2244 = vmatpush2.bf16.msra.mxu0 0
        %2245 = vmatprep.subr.bf16.mxu0 0
        %2246 = vmatpush2.bf16.msra.mxu0 0
        %2247 = vmatprep.subr.bf16.mxu0 0
        %2248 = vmatpush2.bf16.msra.mxu0 0
        %2249 = vmatprep.subr.bf16.mxu0 0
        %2250 = vmatpush2.bf16.msra.mxu0 0
        %2251 = vmatprep.subr.bf16.mxu0 0
        %2252 = vmatpush2.bf16.msra.mxu0 0
        %2253 = vmatprep.subr.bf16.mxu0 0
        %2254 = vmatpush2.bf16.msra.mxu0 0
        %2255 = vmatprep.mubr.bf16.mxu0 0
        %2256 = vmatmul.mubr.bf16.gmra.mxu0 %v2063
        %v2257 = vpop.f32.mrf.mxu0
        %v2258 = vadd.f32 %v2111, %v2257
        %v2259 = vpop.f32.mrf.mxu0
        %v2260 = vpop.f32.mrf.mxu0
        %v2261 = vadd.f32 %v2112, %v2260
        %v2262 = vpop.f32.mrf.mxu0
        %2263 = vmatprep.mubr.bf16.mxu0 0
        %2264 = vmatmul.mubr.bf16.gmra.mxu0 %v2064
        %v2265 = vpop.f32.mrf.mxu0
        %v2266 = vadd.f32 %v2113, %v2265
        %v2267 = vpop.f32.mrf.mxu0
        %v2268 = vpop.f32.mrf.mxu0
        %v2269 = vadd.f32 %v2114, %v2268
        %v2270 = vpop.f32.mrf.mxu0
        %2271 = vmatprep.mubr.bf16.mxu0 0
        %2272 = vmatmul.mubr.bf16.gmra.mxu0 %v2065
        %v2273 = vpop.f32.mrf.mxu0
        %v2274 = vadd.f32 %v2115, %v2273
        %v2275 = vpop.f32.mrf.mxu0
        %v2276 = vpop.f32.mrf.mxu0
        %v2277 = vadd.f32 %v2116, %v2276
        %v2278 = vpop.f32.mrf.mxu0
        %2279 = vmatprep.mubr.bf16.mxu0 0
        %2280 = vmatmul.mubr.bf16.gmra.mxu0 %v2066
        %v2281 = vpop.f32.mrf.mxu0
        %v2282 = vadd.f32 %v2117, %v2281
        %v2283 = vpop.f32.mrf.mxu0
        %v2284 = vpop.f32.mrf.mxu0
        %v2285 = vadd.f32 %v2118, %v2284
        %v2286 = vpop.f32.mrf.mxu0
        %2287 = vmatprep.mubr.bf16.mxu0 0
        %2288 = vmatmul.mubr.bf16.gmra.mxu0 %v2067
        %v2289 = vpop.f32.mrf.mxu0
        %v2290 = vadd.f32 %v2119, %v2289
        %v2291 = vpop.f32.mrf.mxu0
        %v2292 = vpop.f32.mrf.mxu0
        %v2293 = vadd.f32 %v2120, %v2292
        %v2294 = vpop.f32.mrf.mxu0
        %2295 = vmatprep.mubr.bf16.mxu0 0
        %2296 = vmatmul.mubr.bf16.gmra.mxu0 %v2068
        %v2297 = vpop.f32.mrf.mxu0
        %v2298 = vadd.f32 %v2121, %v2297
        %v2299 = vpop.f32.mrf.mxu0
        %v2300 = vpop.f32.mrf.mxu0
        %v2301 = vadd.f32 %v2122, %v2300
        %v2302 = vpop.f32.mrf.mxu0
        %2303 = vmatprep.mubr.bf16.mxu0 0
        %2304 = vmatmul.mubr.bf16.gmra.mxu0 %v2069
        %v2305 = vpop.f32.mrf.mxu0
        %v2306 = vadd.f32 %v2123, %v2305
        %v2307 = vpop.f32.mrf.mxu0
        %v2308 = vpop.f32.mrf.mxu0
        %v2309 = vadd.f32 %v2124, %v2308
        %v2310 = vpop.f32.mrf.mxu0
        %2311 = vmatprep.mubr.bf16.mxu0 0
        %2312 = vmatmul.mubr.bf16.gmra.mxu0 %v2070
        %v2313 = vpop.f32.mrf.mxu0
        %v2314 = vadd.f32 %v2125, %v2313
        %v2315 = vpop.f32.mrf.mxu0
        %v2316 = vpop.f32.mrf.mxu0
        %v2317 = vadd.f32 %v2126, %v2316
        %v2318 = vpop.f32.mrf.mxu0
        %2319 = vmatprep.mubr.bf16.mxu0 0
        %2320 = vmatmul.mubr.bf16.gmra.mxu0 %v2071
        %v2321 = vpop.f32.mrf.mxu0
        %v2322 = vadd.f32 %v2127, %v2321
        %v2323 = vpop.f32.mrf.mxu0
        %v2324 = vpop.f32.mrf.mxu0
        %v2325 = vadd.f32 %v2128, %v2324
        %v2326 = vpop.f32.mrf.mxu0
        %2327 = vmatprep.mubr.bf16.mxu0 0
        %2328 = vmatmul.mubr.bf16.gmra.mxu0 %v2072
        %v2329 = vpop.f32.mrf.mxu0
        %v2330 = vadd.f32 %v2129, %v2329
        %v2331 = vpop.f32.mrf.mxu0
        %v2332 = vpop.f32.mrf.mxu0
        %v2333 = vadd.f32 %v2130, %v2332
        %v2334 = vpop.f32.mrf.mxu0
        %2335 = vmatprep.mubr.bf16.mxu0 0
        %2336 = vmatmul.mubr.bf16.gmra.mxu0 %v2073
        %v2337 = vpop.f32.mrf.mxu0
        %v2338 = vadd.f32 %v2131, %v2337
        %v2339 = vpop.f32.mrf.mxu0
        %v2340 = vpop.f32.mrf.mxu0
        %v2341 = vadd.f32 %v2132, %v2340
        %v2342 = vpop.f32.mrf.mxu0
        %2343 = vmatprep.mubr.bf16.mxu0 0
        %2344 = vmatmul.mubr.bf16.gmra.mxu0 %v2074
        %v2345 = vpop.f32.mrf.mxu0
        %v2346 = vadd.f32 %v2133, %v2345
        %v2347 = vpop.f32.mrf.mxu0
        %v2348 = vpop.f32.mrf.mxu0
        %v2349 = vadd.f32 %v2134, %v2348
        %v2350 = vpop.f32.mrf.mxu0
        %2351 = vmatprep.mubr.bf16.mxu0 0
        %2352 = vmatmul.mubr.bf16.gmra.mxu0 %v2075
        %v2353 = vpop.f32.mrf.mxu0
        %v2354 = vadd.f32 %v2135, %v2353
        %v2355 = vpop.f32.mrf.mxu0
        %v2356 = vpop.f32.mrf.mxu0
        %v2357 = vadd.f32 %v2136, %v2356
        %v2358 = vpop.f32.mrf.mxu0
        %2359 = vmatprep.mubr.bf16.mxu0 0
        %2360 = vmatmul.mubr.bf16.gmra.mxu0 %v2076
        %v2361 = vpop.f32.mrf.mxu0
        %v2362 = vadd.f32 %v2137, %v2361
        %v2363 = vpop.f32.mrf.mxu0
        %v2364 = vpop.f32.mrf.mxu0
        %v2365 = vadd.f32 %v2138, %v2364
        %v2366 = vpop.f32.mrf.mxu0
        %2367 = vmatprep.mubr.bf16.mxu0 0
        %2368 = vmatmul.mubr.bf16.gmra.mxu0 %v2077
        %v2369 = vpop.f32.mrf.mxu0
        %v2370 = vadd.f32 %v2139, %v2369
        %v2371 = vpop.f32.mrf.mxu0
        %v2372 = vpop.f32.mrf.mxu0
        %v2373 = vadd.f32 %v2140, %v2372
        %v2374 = vpop.f32.mrf.mxu0
        %2375 = vmatprep.mubr.bf16.mxu0 0
        %2376 = vmatmul.mubr.bf16.gmra.mxu0 %v2078
        %v2377 = vpop.f32.mrf.mxu0
        %v2378 = vadd.f32 %v2141, %v2377
        %v2379 = vpop.f32.mrf.mxu0
        %v2380 = vpop.f32.mrf.mxu0
        %v2381 = vadd.f32 %v2142, %v2380
        %v2382 = vpop.f32.mrf.mxu0
        %2383 = vmatprep.mubr.bf16.mxu0 0
        %2384 = vmatmul.mubr.bf16.gmra.mxu0 %v2079
        %v2385 = vpop.f32.mrf.mxu0
        %v2386 = vadd.f32 %v2143, %v2385
        %v2387 = vpop.f32.mrf.mxu0
        %v2388 = vpop.f32.mrf.mxu0
        %v2389 = vadd.f32 %v2144, %v2388
        %v2390 = vpop.f32.mrf.mxu0
        %2391 = vmatprep.mubr.bf16.mxu0 0
        %2392 = vmatmul.mubr.bf16.gmra.mxu0 %v2080
        %v2393 = vpop.f32.mrf.mxu0
        %v2394 = vadd.f32 %v2145, %v2393
        %v2395 = vpop.f32.mrf.mxu0
        %v2396 = vpop.f32.mrf.mxu0
        %v2397 = vadd.f32 %v2146, %v2396
        %v2398 = vpop.f32.mrf.mxu0
        %2399 = vmatprep.mubr.bf16.mxu0 0
        %2400 = vmatmul.mubr.bf16.gmra.mxu0 %v2081
        %v2401 = vpop.f32.mrf.mxu0
        %v2402 = vadd.f32 %v2147, %v2401
        %v2403 = vpop.f32.mrf.mxu0
        %v2404 = vpop.f32.mrf.mxu0
        %v2405 = vadd.f32 %v2148, %v2404
        %v2406 = vpop.f32.mrf.mxu0
        %2407 = vmatprep.mubr.bf16.mxu0 0
        %2408 = vmatmul.mubr.bf16.gmra.mxu0 %v2082
        %v2409 = vpop.f32.mrf.mxu0
        %v2410 = vadd.f32 %v2149, %v2409
        %v2411 = vpop.f32.mrf.mxu0
        %v2412 = vpop.f32.mrf.mxu0
        %v2413 = vadd.f32 %v2150, %v2412
        %v2414 = vpop.f32.mrf.mxu0
        %2415 = vmatprep.mubr.bf16.mxu0 0
        %2416 = vmatmul.mubr.bf16.gmra.mxu0 %v2083
        %v2417 = vpop.f32.mrf.mxu0
        %v2418 = vadd.f32 %v2151, %v2417
        %v2419 = vpop.f32.mrf.mxu0
        %v2420 = vpop.f32.mrf.mxu0
        %v2421 = vadd.f32 %v2152, %v2420
        %v2422 = vpop.f32.mrf.mxu0
        %2423 = vmatprep.mubr.bf16.mxu0 0
        %2424 = vmatmul.mubr.bf16.gmra.mxu0 %v2084
        %v2425 = vpop.f32.mrf.mxu0
        %v2426 = vadd.f32 %v2153, %v2425
        %v2427 = vpop.f32.mrf.mxu0
        %v2428 = vpop.f32.mrf.mxu0
        %v2429 = vadd.f32 %v2154, %v2428
        %v2430 = vpop.f32.mrf.mxu0
        %2431 = vmatprep.mubr.bf16.mxu0 0
        %2432 = vmatmul.mubr.bf16.gmra.mxu0 %v2085
        %v2433 = vpop.f32.mrf.mxu0
        %v2434 = vadd.f32 %v2155, %v2433
        %v2435 = vpop.f32.mrf.mxu0
        %v2436 = vpop.f32.mrf.mxu0
        %v2437 = vadd.f32 %v2156, %v2436
        %v2438 = vpop.f32.mrf.mxu0
        %2439 = vmatprep.mubr.bf16.mxu0 0
        %2440 = vmatmul.mubr.bf16.gmra.mxu0 %v2086
        %v2441 = vpop.f32.mrf.mxu0
        %v2442 = vadd.f32 %v2157, %v2441
        %v2443 = vpop.f32.mrf.mxu0
        %v2444 = vpop.f32.mrf.mxu0
        %v2445 = vadd.f32 %v2158, %v2444
        %v2446 = vpop.f32.mrf.mxu0
        %2447 = vmatprep.mubr.bf16.mxu0 0
        %2448 = vmatmul.mubr.bf16.gmra.mxu0 %v2087
        %v2449 = vpop.f32.mrf.mxu0
        %v2450 = vadd.f32 %v2159, %v2449
        %v2451 = vpop.f32.mrf.mxu0
        %v2452 = vpop.f32.mrf.mxu0
        %v2453 = vadd.f32 %v2160, %v2452
        %v2454 = vpop.f32.mrf.mxu0
        %2455 = vmatprep.mubr.bf16.mxu0 0
        %2456 = vmatmul.mubr.bf16.gmra.mxu0 %v2088
        %v2457 = vpop.f32.mrf.mxu0
        %v2458 = vadd.f32 %v2161, %v2457
        %v2459 = vpop.f32.mrf.mxu0
        %v2460 = vpop.f32.mrf.mxu0
        %v2461 = vadd.f32 %v2162, %v2460
        %v2462 = vpop.f32.mrf.mxu0
        %2463 = vmatprep.mubr.bf16.mxu0 0
        %2464 = vmatmul.mubr.bf16.gmra.mxu0 %v2089
        %v2465 = vpop.f32.mrf.mxu0
        %v2466 = vadd.f32 %v2163, %v2465
        %v2467 = vpop.f32.mrf.mxu0
        %v2468 = vpop.f32.mrf.mxu0
        %v2469 = vadd.f32 %v2164, %v2468
        %v2470 = vpop.f32.mrf.mxu0
        %2471 = vmatprep.mubr.bf16.mxu0 0
        %2472 = vmatmul.mubr.bf16.gmra.mxu0 %v2090
        %v2473 = vpop.f32.mrf.mxu0
        %v2474 = vadd.f32 %v2165, %v2473
        %v2475 = vpop.f32.mrf.mxu0
        %v2476 = vpop.f32.mrf.mxu0
        %v2477 = vadd.f32 %v2166, %v2476
        %v2478 = vpop.f32.mrf.mxu0
        %2479 = vmatprep.mubr.bf16.mxu0 0
        %2480 = vmatmul.mubr.bf16.gmra.mxu0 %v2091
        %v2481 = vpop.f32.mrf.mxu0
        %v2482 = vadd.f32 %v2167, %v2481
        %v2483 = vpop.f32.mrf.mxu0
        %v2484 = vpop.f32.mrf.mxu0
        %v2485 = vadd.f32 %v2168, %v2484
        %v2486 = vpop.f32.mrf.mxu0
        %2487 = vmatprep.mubr.bf16.mxu0 0
        %2488 = vmatmul.mubr.bf16.gmra.mxu0 %v2092
        %v2489 = vpop.f32.mrf.mxu0
        %v2490 = vadd.f32 %v2169, %v2489
        %v2491 = vpop.f32.mrf.mxu0
        %v2492 = vpop.f32.mrf.mxu0
        %v2493 = vadd.f32 %v2170, %v2492
        %v2494 = vpop.f32.mrf.mxu0
        %2495 = vmatprep.mubr.bf16.mxu0 0
        %2496 = vmatmul.mubr.bf16.gmra.mxu0 %v2093
        %v2497 = vpop.f32.mrf.mxu0
        %v2498 = vadd.f32 %v2171, %v2497
        %v2499 = vpop.f32.mrf.mxu0
        %v2500 = vpop.f32.mrf.mxu0
        %v2501 = vadd.f32 %v2172, %v2500
        %v2502 = vpop.f32.mrf.mxu0
        %2503 = vmatprep.mubr.bf16.mxu0 0
        %2504 = vmatmul.mubr.bf16.gmra.mxu0 %v2094
        %v2505 = vpop.f32.mrf.mxu0
        %v2506 = vadd.f32 %v2173, %v2505
        %v2507 = vpop.f32.mrf.mxu0
        %v2508 = vpop.f32.mrf.mxu0
        %v2509 = vadd.f32 %v2174, %v2508
        %v2510 = vpop.f32.mrf.mxu0
        %2511 = vdwg.mxu0
        %v2512 = vmax.f32 %v2258, 0.0
        %v2513 = vmax.f32 %v2261, 0.0
        %v2514 = vmax.f32 %v2266, 0.0
        %v2515 = vmax.f32 %v2269, 0.0
        %v2516 = vmax.f32 %v2274, 0.0
        %v2517 = vmax.f32 %v2277, 0.0
        %v2518 = vmax.f32 %v2282, 0.0
        %v2519 = vmax.f32 %v2285, 0.0
        %v2520 = vmax.f32 %v2290, 0.0
        %v2521 = vmax.f32 %v2293, 0.0
        %v2522 = vmax.f32 %v2298, 0.0
        %v2523 = vmax.f32 %v2301, 0.0
        %v2524 = vmax.f32 %v2306, 0.0
        %v2525 = vmax.f32 %v2309, 0.0
        %v2526 = vmax.f32 %v2314, 0.0
        %v2527 = vmax.f32 %v2317, 0.0
        %v2528 = vmax.f32 %v2322, 0.0
        %v2529 = vmax.f32 %v2325, 0.0
        %v2530 = vmax.f32 %v2330, 0.0
        %v2531 = vmax.f32 %v2333, 0.0
        %v2532 = vmax.f32 %v2338, 0.0
        %v2533 = vmax.f32 %v2341, 0.0
        %v2534 = vmax.f32 %v2346, 0.0
        %v2535 = vmax.f32 %v2349, 0.0
        %v2536 = vmax.f32 %v2354, 0.0
        %v2537 = vmax.f32 %v2357, 0.0
        %v2538 = vmax.f32 %v2362, 0.0
        %v2539 = vmax.f32 %v2365, 0.0
        %v2540 = vmax.f32 %v2370, 0.0
        %v2541 = vmax.f32 %v2373, 0.0
        %v2542 = vmax.f32 %v2378, 0.0
        %v2543 = vmax.f32 %v2381, 0.0
        %v2544 = vmax.f32 %v2386, 0.0
        %v2545 = vmax.f32 %v2389, 0.0
        %v2546 = vmax.f32 %v2394, 0.0
        %v2547 = vmax.f32 %v2397, 0.0
        %v2548 = vmax.f32 %v2402, 0.0
        %v2549 = vmax.f32 %v2405, 0.0
        %v2550 = vmax.f32 %v2410, 0.0
        %v2551 = vmax.f32 %v2413, 0.0
        %v2552 = vmax.f32 %v2418, 0.0
        %v2553 = vmax.f32 %v2421, 0.0
        %v2554 = vmax.f32 %v2426, 0.0
        %v2555 = vmax.f32 %v2429, 0.0
        %v2556 = vmax.f32 %v2434, 0.0
        %v2557 = vmax.f32 %v2437, 0.0
        %v2558 = vmax.f32 %v2442, 0.0
        %v2559 = vmax.f32 %v2445, 0.0
        %v2560 = vmax.f32 %v2450, 0.0
        %v2561 = vmax.f32 %v2453, 0.0
        %v2562 = vmax.f32 %v2458, 0.0
        %v2563 = vmax.f32 %v2461, 0.0
        %v2564 = vmax.f32 %v2466, 0.0
        %v2565 = vmax.f32 %v2469, 0.0
        %v2566 = vmax.f32 %v2474, 0.0
        %v2567 = vmax.f32 %v2477, 0.0
        %v2568 = vmax.f32 %v2482, 0.0
        %v2569 = vmax.f32 %v2485, 0.0
        %v2570 = vmax.f32 %v2490, 0.0
        %v2571 = vmax.f32 %v2493, 0.0
        %v2572 = vmax.f32 %v2498, 0.0
        %v2573 = vmax.f32 %v2501, 0.0
        %v2574 = vmax.f32 %v2506, 0.0
        %v2575 = vmax.f32 %v2509, 0.0
        %v2576 = vpack.c.bf16 %v2513, %v2512
        %v2577 = vpack.c.bf16 %v2515, %v2514
        %v2578 = vpack.c.bf16 %v2517, %v2516
        %v2579 = vpack.c.bf16 %v2519, %v2518
        %v2580 = vpack.c.bf16 %v2521, %v2520
        %v2581 = vpack.c.bf16 %v2523, %v2522
        %v2582 = vpack.c.bf16 %v2525, %v2524
        %v2583 = vpack.c.bf16 %v2527, %v2526
        %v2584 = vpack.c.bf16 %v2529, %v2528
        %v2585 = vpack.c.bf16 %v2531, %v2530
        %v2586 = vpack.c.bf16 %v2533, %v2532
        %v2587 = vpack.c.bf16 %v2535, %v2534
        %v2588 = vpack.c.bf16 %v2537, %v2536
        %v2589 = vpack.c.bf16 %v2539, %v2538
        %v2590 = vpack.c.bf16 %v2541, %v2540
        %v2591 = vpack.c.bf16 %v2543, %v2542
        %v2592 = vpack.c.bf16 %v2545, %v2544
        %v2593 = vpack.c.bf16 %v2547, %v2546
        %v2594 = vpack.c.bf16 %v2549, %v2548
        %v2595 = vpack.c.bf16 %v2551, %v2550
        %v2596 = vpack.c.bf16 %v2553, %v2552
        %v2597 = vpack.c.bf16 %v2555, %v2554
        %v2598 = vpack.c.bf16 %v2557, %v2556
        %v2599 = vpack.c.bf16 %v2559, %v2558
        %v2600 = vpack.c.bf16 %v2561, %v2560
        %v2601 = vpack.c.bf16 %v2563, %v2562
        %v2602 = vpack.c.bf16 %v2565, %v2564
        %v2603 = vpack.c.bf16 %v2567, %v2566
        %v2604 = vpack.c.bf16 %v2569, %v2568
        %v2605 = vpack.c.bf16 %v2571, %v2570
        %v2606 = vpack.c.bf16 %v2573, %v2572
        %v2607 = vpack.c.bf16 %v2575, %v2574
        %v2608 = vld [vmem:[#allocation9] sm:$0xf]
        %v2609 = vld [vmem:[#allocation9 + $0x4] sm:$0xf]
        %v2610 = vld [vmem:[#allocation9 + $0x8] sm:$0xf]
        %v2611 = vld [vmem:[#allocation9 + $0xc] sm:$0xf]
        %v2612 = vld [vmem:[#allocation9 + $0x10] sm:$0xf]
        %v2613 = vld [vmem:[#allocation9 + $0x14] sm:$0xf]
        %v2614 = vld [vmem:[#allocation9 + $0x18] sm:$0xf]
        %v2615 = vld [vmem:[#allocation9 + $0x1c] sm:$0xf]
        %v2616 = vld [vmem:[#allocation9 + $0x20] sm:$0xf]
        %v2617 = vld [vmem:[#allocation9 + $0x24] sm:$0xf]
        %v2618 = vld [vmem:[#allocation9 + $0x28] sm:$0xf]
        %v2619 = vld [vmem:[#allocation9 + $0x2c] sm:$0xf]
        %v2620 = vld [vmem:[#allocation9 + $0x30] sm:$0xf]
        %v2621 = vld [vmem:[#allocation9 + $0x34] sm:$0xf]
        %v2622 = vld [vmem:[#allocation9 + $0x38] sm:$0xf]
        %v2623 = vld [vmem:[#allocation9 + $0x3c] sm:$0xf]
        %v2624 = vld [vmem:[#allocation2 + $0x8] sm:$0xff]
        %v2625 = vld [vmem:[#allocation2 + $0x18] sm:$0xff]
        %v2626 = vld [vmem:[#allocation2 + $0x28] sm:$0xff]
        %v2627 = vld [vmem:[#allocation2 + $0x38] sm:$0xff]
        %v2628 = vld [vmem:[#allocation2 + $0x48] sm:$0xff]
        %v2629 = vld [vmem:[#allocation2 + $0x58] sm:$0xff]
        %v2630 = vld [vmem:[#allocation2 + $0x68] sm:$0xff]
        %v2631 = vld [vmem:[#allocation2 + $0x78] sm:$0xff]
        %v2632 = vld [vmem:[#allocation2 + $0x88] sm:$0xff]
        %v2633 = vld [vmem:[#allocation2 + $0x98] sm:$0xff]
        %v2634 = vld [vmem:[#allocation2 + $0xa8] sm:$0xff]
        %v2635 = vld [vmem:[#allocation2 + $0xb8] sm:$0xff]
        %v2636 = vld [vmem:[#allocation2 + $0xc8] sm:$0xff]
        %v2637 = vld [vmem:[#allocation2 + $0xd8] sm:$0xff]
        %v2638 = vld [vmem:[#allocation2 + $0xe8] sm:$0xff]
        %v2639 = vld [vmem:[#allocation2 + $0xf8] sm:$0xff]
        %v2640 = vld [vmem:[#allocation2 + $0x108] sm:$0xff]
        %v2641 = vld [vmem:[#allocation2 + $0x118] sm:$0xff]
        %v2642 = vld [vmem:[#allocation2 + $0x128] sm:$0xff]
        %v2643 = vld [vmem:[#allocation2 + $0x138] sm:$0xff]
        %v2644 = vld [vmem:[#allocation2 + $0x148] sm:$0xff]
        %v2645 = vld [vmem:[#allocation2 + $0x158] sm:$0xff]
        %v2646 = vld [vmem:[#allocation2 + $0x168] sm:$0xff]
        %v2647 = vld [vmem:[#allocation2 + $0x178] sm:$0xff]
        %v2648 = vld [vmem:[#allocation2 + $0x188] sm:$0xff]
        %v2649 = vld [vmem:[#allocation2 + $0x198] sm:$0xff]
        %v2650 = vld [vmem:[#allocation2 + $0x1a8] sm:$0xff]
        %v2651 = vld [vmem:[#allocation2 + $0x1b8] sm:$0xff]
        %v2652 = vld [vmem:[#allocation2 + $0x1c8] sm:$0xff]
        %v2653 = vld [vmem:[#allocation2 + $0x1d8] sm:$0xff]
        %v2654 = vld [vmem:[#allocation2 + $0x1e8] sm:$0xff]
        %v2655 = vld [vmem:[#allocation2 + $0x1f8] sm:$0xff]
        %v2656 = vld [vmem:[#allocation2 + $0x208] sm:$0xff]
        %v2657 = vld [vmem:[#allocation2 + $0x218] sm:$0xff]
        %v2658 = vld [vmem:[#allocation2 + $0x228] sm:$0xff]
        %v2659 = vld [vmem:[#allocation2 + $0x238] sm:$0xff]
        %v2660 = vld [vmem:[#allocation2 + $0x248] sm:$0xff]
        %v2661 = vld [vmem:[#allocation2 + $0x258] sm:$0xff]
        %v2662 = vld [vmem:[#allocation2 + $0x268] sm:$0xff]
        %v2663 = vld [vmem:[#allocation2 + $0x278] sm:$0xff]
        %v2664 = vld [vmem:[#allocation2 + $0x288] sm:$0xff]
        %v2665 = vld [vmem:[#allocation2 + $0x298] sm:$0xff]
        %v2666 = vld [vmem:[#allocation2 + $0x2a8] sm:$0xff]
        %v2667 = vld [vmem:[#allocation2 + $0x2b8] sm:$0xff]
        %v2668 = vld [vmem:[#allocation2 + $0x2c8] sm:$0xff]
        %v2669 = vld [vmem:[#allocation2 + $0x2d8] sm:$0xff]
        %v2670 = vld [vmem:[#allocation2 + $0x2e8] sm:$0xff]
        %v2671 = vld [vmem:[#allocation2 + $0x2f8] sm:$0xff]
        %v2672 = vld [vmem:[#allocation2 + $0x308] sm:$0xff]
        %v2673 = vld [vmem:[#allocation2 + $0x318] sm:$0xff]
        %v2674 = vld [vmem:[#allocation2 + $0x328] sm:$0xff]
        %v2675 = vld [vmem:[#allocation2 + $0x338] sm:$0xff]
        %v2676 = vld [vmem:[#allocation2 + $0x348] sm:$0xff]
        %v2677 = vld [vmem:[#allocation2 + $0x358] sm:$0xff]
        %v2678 = vld [vmem:[#allocation2 + $0x368] sm:$0xff]
        %v2679 = vld [vmem:[#allocation2 + $0x378] sm:$0xff]
        %v2680 = vld [vmem:[#allocation2 + $0x388] sm:$0xff]
        %v2681 = vld [vmem:[#allocation2 + $0x398] sm:$0xff]
        %v2682 = vld [vmem:[#allocation2 + $0x3a8] sm:$0xff]
        %v2683 = vld [vmem:[#allocation2 + $0x3b8] sm:$0xff]
        %v2684 = vld [vmem:[#allocation2 + $0x3c8] sm:$0xff]
        %v2685 = vld [vmem:[#allocation2 + $0x3d8] sm:$0xff]
        %v2686 = vld [vmem:[#allocation2 + $0x3e8] sm:$0xff]
        %v2687 = vld [vmem:[#allocation2 + $0x3f8] sm:$0xff]
        %v2704 = vunpack.c.l.b16 %v2608
        %v2705 = vunpack.c.l.b16 %v2609
        %v2706 = vunpack.c.l.b16 %v2610
        %v2707 = vunpack.c.l.b16 %v2611
        %v2708 = vunpack.c.l.b16 %v2612
        %v2709 = vunpack.c.l.b16 %v2613
        %v2710 = vunpack.c.l.b16 %v2614
        %v2711 = vunpack.c.l.b16 %v2615
        %v2712 = vunpack.c.l.b16 %v2616
        %v2713 = vunpack.c.l.b16 %v2617
        %v2714 = vunpack.c.l.b16 %v2618
        %v2715 = vunpack.c.l.b16 %v2619
        %v2716 = vunpack.c.l.b16 %v2620
        %v2717 = vunpack.c.l.b16 %v2621
        %v2718 = vunpack.c.l.b16 %v2622
        %v2719 = vunpack.c.l.b16 %v2623
        %v2720 = vpack.c.b16 %v2705, %v2704
        %v2721 = vpack.c.b16 %v2707, %v2706
        %v2722 = vpack.c.b16 %v2709, %v2708
        %v2723 = vpack.c.b16 %v2711, %v2710
        %v2724 = vpack.c.b16 %v2713, %v2712
        %v2725 = vpack.c.b16 %v2715, %v2714
        %v2726 = vpack.c.b16 %v2717, %v2716
        %v2727 = vpack.c.b16 %v2719, %v2718
        %2736 = vmatprep.subr.bf16.mxu0 0
        %2737 = vmatpush1.bf16.msra.mxu0 %v2727
        %2738 = vmatprep.subr.bf16.mxu0 0
        %2739 = vmatpush1.bf16.msra.mxu0 %v2726
        %2740 = vmatprep.subr.bf16.mxu0 0
        %2741 = vmatpush1.bf16.msra.mxu0 %v2725
        %2742 = vmatprep.subr.bf16.mxu0 0
        %2743 = vmatpush1.bf16.msra.mxu0 %v2724
        %2744 = vmatprep.subr.bf16.mxu0 0
        %2745 = vmatpush1.bf16.msra.mxu0 %v2723
        %2746 = vmatprep.subr.bf16.mxu0 0
        %2747 = vmatpush1.bf16.msra.mxu0 %v2722
        %2748 = vmatprep.subr.bf16.mxu0 0
        %2749 = vmatpush1.bf16.msra.mxu0 %v2721
        %2750 = vmatprep.subr.bf16.mxu0 0
        %2751 = vmatpush1.bf16.msra.mxu0 %v2720
        %2752 = vmatprep.subr.bf16.mxu0 0
        %2753 = vmatpush2.bf16.msra.mxu0 0
        %2754 = vmatprep.subr.bf16.mxu0 0
        %2755 = vmatpush2.bf16.msra.mxu0 0
        %2756 = vmatprep.subr.bf16.mxu0 0
        %2757 = vmatpush2.bf16.msra.mxu0 0
        %2758 = vmatprep.subr.bf16.mxu0 0
        %2759 = vmatpush2.bf16.msra.mxu0 0
        %2760 = vmatprep.subr.bf16.mxu0 0
        %2761 = vmatpush2.bf16.msra.mxu0 0
        %2762 = vmatprep.subr.bf16.mxu0 0
        %2763 = vmatpush2.bf16.msra.mxu0 0
        %2764 = vmatprep.subr.bf16.mxu0 0
        %2765 = vmatpush2.bf16.msra.mxu0 0
        %2766 = vmatprep.subr.bf16.mxu0 0
        %2767 = vmatpush2.bf16.msra.mxu0 0
        %2768 = vmatprep.mubr.bf16.mxu0 0
        %2769 = vmatmul.mubr.bf16.gmra.mxu0 %v2576
        %v2770 = vpop.f32.mrf.mxu0
        %v2771 = vadd.f32 %v2624, %v2770
        %v2772 = vpop.f32.mrf.mxu0
        %v2773 = vpop.f32.mrf.mxu0
        %v2774 = vadd.f32 %v2625, %v2773
        %v2775 = vpop.f32.mrf.mxu0
        %2776 = vmatprep.mubr.bf16.mxu0 0
        %2777 = vmatmul.mubr.bf16.gmra.mxu0 %v2577
        %v2778 = vpop.f32.mrf.mxu0
        %v2779 = vadd.f32 %v2626, %v2778
        %v2780 = vpop.f32.mrf.mxu0
        %v2781 = vpop.f32.mrf.mxu0
        %v2782 = vadd.f32 %v2627, %v2781
        %v2783 = vpop.f32.mrf.mxu0
        %2784 = vmatprep.mubr.bf16.mxu0 0
        %2785 = vmatmul.mubr.bf16.gmra.mxu0 %v2578
        %v2786 = vpop.f32.mrf.mxu0
        %v2787 = vadd.f32 %v2628, %v2786
        %v2788 = vpop.f32.mrf.mxu0
        %v2789 = vpop.f32.mrf.mxu0
        %v2790 = vadd.f32 %v2629, %v2789
        %v2791 = vpop.f32.mrf.mxu0
        %2792 = vmatprep.mubr.bf16.mxu0 0
        %2793 = vmatmul.mubr.bf16.gmra.mxu0 %v2579
        %v2794 = vpop.f32.mrf.mxu0
        %v2795 = vadd.f32 %v2630, %v2794
        %v2796 = vpop.f32.mrf.mxu0
        %v2797 = vpop.f32.mrf.mxu0
        %v2798 = vadd.f32 %v2631, %v2797
        %v2799 = vpop.f32.mrf.mxu0
        %2800 = vmatprep.mubr.bf16.mxu0 0
        %2801 = vmatmul.mubr.bf16.gmra.mxu0 %v2580
        %v2802 = vpop.f32.mrf.mxu0
        %v2803 = vadd.f32 %v2632, %v2802
        %v2804 = vpop.f32.mrf.mxu0
        %v2805 = vpop.f32.mrf.mxu0
        %v2806 = vadd.f32 %v2633, %v2805
        %v2807 = vpop.f32.mrf.mxu0
        %2808 = vmatprep.mubr.bf16.mxu0 0
        %2809 = vmatmul.mubr.bf16.gmra.mxu0 %v2581
        %v2810 = vpop.f32.mrf.mxu0
        %v2811 = vadd.f32 %v2634, %v2810
        %v2812 = vpop.f32.mrf.mxu0
        %v2813 = vpop.f32.mrf.mxu0
        %v2814 = vadd.f32 %v2635, %v2813
        %v2815 = vpop.f32.mrf.mxu0
        %2816 = vmatprep.mubr.bf16.mxu0 0
        %2817 = vmatmul.mubr.bf16.gmra.mxu0 %v2582
        %v2818 = vpop.f32.mrf.mxu0
        %v2819 = vadd.f32 %v2636, %v2818
        %v2820 = vpop.f32.mrf.mxu0
        %v2821 = vpop.f32.mrf.mxu0
        %v2822 = vadd.f32 %v2637, %v2821
        %v2823 = vpop.f32.mrf.mxu0
        %2824 = vmatprep.mubr.bf16.mxu0 0
        %2825 = vmatmul.mubr.bf16.gmra.mxu0 %v2583
        %v2826 = vpop.f32.mrf.mxu0
        %v2827 = vadd.f32 %v2638, %v2826
        %v2828 = vpop.f32.mrf.mxu0
        %v2829 = vpop.f32.mrf.mxu0
        %v2830 = vadd.f32 %v2639, %v2829
        %v2831 = vpop.f32.mrf.mxu0
        %2832 = vmatprep.mubr.bf16.mxu0 0
        %2833 = vmatmul.mubr.bf16.gmra.mxu0 %v2584
        %v2834 = vpop.f32.mrf.mxu0
        %v2835 = vadd.f32 %v2640, %v2834
        %v2836 = vpop.f32.mrf.mxu0
        %v2837 = vpop.f32.mrf.mxu0
        %v2838 = vadd.f32 %v2641, %v2837
        %v2839 = vpop.f32.mrf.mxu0
        %2840 = vmatprep.mubr.bf16.mxu0 0
        %2841 = vmatmul.mubr.bf16.gmra.mxu0 %v2585
        %v2842 = vpop.f32.mrf.mxu0
        %v2843 = vadd.f32 %v2642, %v2842
        %v2844 = vpop.f32.mrf.mxu0
        %v2845 = vpop.f32.mrf.mxu0
        %v2846 = vadd.f32 %v2643, %v2845
        %v2847 = vpop.f32.mrf.mxu0
        %2848 = vmatprep.mubr.bf16.mxu0 0
        %2849 = vmatmul.mubr.bf16.gmra.mxu0 %v2586
        %v2850 = vpop.f32.mrf.mxu0
        %v2851 = vadd.f32 %v2644, %v2850
        %v2852 = vpop.f32.mrf.mxu0
        %v2853 = vpop.f32.mrf.mxu0
        %v2854 = vadd.f32 %v2645, %v2853
        %v2855 = vpop.f32.mrf.mxu0
        %2856 = vmatprep.mubr.bf16.mxu0 0
        %2857 = vmatmul.mubr.bf16.gmra.mxu0 %v2587
        %v2858 = vpop.f32.mrf.mxu0
        %v2859 = vadd.f32 %v2646, %v2858
        %v2860 = vpop.f32.mrf.mxu0
        %v2861 = vpop.f32.mrf.mxu0
        %v2862 = vadd.f32 %v2647, %v2861
        %v2863 = vpop.f32.mrf.mxu0
        %2864 = vmatprep.mubr.bf16.mxu0 0
        %2865 = vmatmul.mubr.bf16.gmra.mxu0 %v2588
        %v2866 = vpop.f32.mrf.mxu0
        %v2867 = vadd.f32 %v2648, %v2866
        %v2868 = vpop.f32.mrf.mxu0
        %v2869 = vpop.f32.mrf.mxu0
        %v2870 = vadd.f32 %v2649, %v2869
        %v2871 = vpop.f32.mrf.mxu0
        %2872 = vmatprep.mubr.bf16.mxu0 0
        %2873 = vmatmul.mubr.bf16.gmra.mxu0 %v2589
        %v2874 = vpop.f32.mrf.mxu0
        %v2875 = vadd.f32 %v2650, %v2874
        %v2876 = vpop.f32.mrf.mxu0
        %v2877 = vpop.f32.mrf.mxu0
        %v2878 = vadd.f32 %v2651, %v2877
        %v2879 = vpop.f32.mrf.mxu0
        %2880 = vmatprep.mubr.bf16.mxu0 0
        %2881 = vmatmul.mubr.bf16.gmra.mxu0 %v2590
        %v2882 = vpop.f32.mrf.mxu0
        %v2883 = vadd.f32 %v2652, %v2882
        %v2884 = vpop.f32.mrf.mxu0
        %v2885 = vpop.f32.mrf.mxu0
        %v2886 = vadd.f32 %v2653, %v2885
        %v2887 = vpop.f32.mrf.mxu0
        %2888 = vmatprep.mubr.bf16.mxu0 0
        %2889 = vmatmul.mubr.bf16.gmra.mxu0 %v2591
        %v2890 = vpop.f32.mrf.mxu0
        %v2891 = vadd.f32 %v2654, %v2890
        %v2892 = vpop.f32.mrf.mxu0
        %v2893 = vpop.f32.mrf.mxu0
        %v2894 = vadd.f32 %v2655, %v2893
        %v2895 = vpop.f32.mrf.mxu0
        %2896 = vmatprep.mubr.bf16.mxu0 0
        %2897 = vmatmul.mubr.bf16.gmra.mxu0 %v2592
        %v2898 = vpop.f32.mrf.mxu0
        %v2899 = vadd.f32 %v2656, %v2898
        %v2900 = vpop.f32.mrf.mxu0
        %v2901 = vpop.f32.mrf.mxu0
        %v2902 = vadd.f32 %v2657, %v2901
        %v2903 = vpop.f32.mrf.mxu0
        %2904 = vmatprep.mubr.bf16.mxu0 0
        %2905 = vmatmul.mubr.bf16.gmra.mxu0 %v2593
        %v2906 = vpop.f32.mrf.mxu0
        %v2907 = vadd.f32 %v2658, %v2906
        %v2908 = vpop.f32.mrf.mxu0
        %v2909 = vpop.f32.mrf.mxu0
        %v2910 = vadd.f32 %v2659, %v2909
        %v2911 = vpop.f32.mrf.mxu0
        %2912 = vmatprep.mubr.bf16.mxu0 0
        %2913 = vmatmul.mubr.bf16.gmra.mxu0 %v2594
        %v2914 = vpop.f32.mrf.mxu0
        %v2915 = vadd.f32 %v2660, %v2914
        %v2916 = vpop.f32.mrf.mxu0
        %v2917 = vpop.f32.mrf.mxu0
        %v2918 = vadd.f32 %v2661, %v2917
        %v2919 = vpop.f32.mrf.mxu0
        %2920 = vmatprep.mubr.bf16.mxu0 0
        %2921 = vmatmul.mubr.bf16.gmra.mxu0 %v2595
        %v2922 = vpop.f32.mrf.mxu0
        %v2923 = vadd.f32 %v2662, %v2922
        %v2924 = vpop.f32.mrf.mxu0
        %v2925 = vpop.f32.mrf.mxu0
        %v2926 = vadd.f32 %v2663, %v2925
        %v2927 = vpop.f32.mrf.mxu0
        %2928 = vmatprep.mubr.bf16.mxu0 0
        %2929 = vmatmul.mubr.bf16.gmra.mxu0 %v2596
        %v2930 = vpop.f32.mrf.mxu0
        %v2931 = vadd.f32 %v2664, %v2930
        %v2932 = vpop.f32.mrf.mxu0
        %v2933 = vpop.f32.mrf.mxu0
        %v2934 = vadd.f32 %v2665, %v2933
        %v2935 = vpop.f32.mrf.mxu0
        %2936 = vmatprep.mubr.bf16.mxu0 0
        %2937 = vmatmul.mubr.bf16.gmra.mxu0 %v2597
        %v2938 = vpop.f32.mrf.mxu0
        %v2939 = vadd.f32 %v2666, %v2938
        %v2940 = vpop.f32.mrf.mxu0
        %v2941 = vpop.f32.mrf.mxu0
        %v2942 = vadd.f32 %v2667, %v2941
        %v2943 = vpop.f32.mrf.mxu0
        %2944 = vmatprep.mubr.bf16.mxu0 0
        %2945 = vmatmul.mubr.bf16.gmra.mxu0 %v2598
        %v2946 = vpop.f32.mrf.mxu0
        %v2947 = vadd.f32 %v2668, %v2946
        %v2948 = vpop.f32.mrf.mxu0
        %v2949 = vpop.f32.mrf.mxu0
        %v2950 = vadd.f32 %v2669, %v2949
        %v2951 = vpop.f32.mrf.mxu0
        %2952 = vmatprep.mubr.bf16.mxu0 0
        %2953 = vmatmul.mubr.bf16.gmra.mxu0 %v2599
        %v2954 = vpop.f32.mrf.mxu0
        %v2955 = vadd.f32 %v2670, %v2954
        %v2956 = vpop.f32.mrf.mxu0
        %v2957 = vpop.f32.mrf.mxu0
        %v2958 = vadd.f32 %v2671, %v2957
        %v2959 = vpop.f32.mrf.mxu0
        %2960 = vmatprep.mubr.bf16.mxu0 0
        %2961 = vmatmul.mubr.bf16.gmra.mxu0 %v2600
        %v2962 = vpop.f32.mrf.mxu0
        %v2963 = vadd.f32 %v2672, %v2962
        %v2964 = vpop.f32.mrf.mxu0
        %v2965 = vpop.f32.mrf.mxu0
        %v2966 = vadd.f32 %v2673, %v2965
        %v2967 = vpop.f32.mrf.mxu0
        %2968 = vmatprep.mubr.bf16.mxu0 0
        %2969 = vmatmul.mubr.bf16.gmra.mxu0 %v2601
        %v2970 = vpop.f32.mrf.mxu0
        %v2971 = vadd.f32 %v2674, %v2970
        %v2972 = vpop.f32.mrf.mxu0
        %v2973 = vpop.f32.mrf.mxu0
        %v2974 = vadd.f32 %v2675, %v2973
        %v2975 = vpop.f32.mrf.mxu0
        %2976 = vmatprep.mubr.bf16.mxu0 0
        %2977 = vmatmul.mubr.bf16.gmra.mxu0 %v2602
        %v2978 = vpop.f32.mrf.mxu0
        %v2979 = vadd.f32 %v2676, %v2978
        %v2980 = vpop.f32.mrf.mxu0
        %v2981 = vpop.f32.mrf.mxu0
        %v2982 = vadd.f32 %v2677, %v2981
        %v2983 = vpop.f32.mrf.mxu0
        %2984 = vmatprep.mubr.bf16.mxu0 0
        %2985 = vmatmul.mubr.bf16.gmra.mxu0 %v2603
        %v2986 = vpop.f32.mrf.mxu0
        %v2987 = vadd.f32 %v2678, %v2986
        %v2988 = vpop.f32.mrf.mxu0
        %v2989 = vpop.f32.mrf.mxu0
        %v2990 = vadd.f32 %v2679, %v2989
        %v2991 = vpop.f32.mrf.mxu0
        %2992 = vmatprep.mubr.bf16.mxu0 0
        %2993 = vmatmul.mubr.bf16.gmra.mxu0 %v2604
        %v2994 = vpop.f32.mrf.mxu0
        %v2995 = vadd.f32 %v2680, %v2994
        %v2996 = vpop.f32.mrf.mxu0
        %v2997 = vpop.f32.mrf.mxu0
        %v2998 = vadd.f32 %v2681, %v2997
        %v2999 = vpop.f32.mrf.mxu0
        %3000 = vmatprep.mubr.bf16.mxu0 0
        %3001 = vmatmul.mubr.bf16.gmra.mxu0 %v2605
        %v3002 = vpop.f32.mrf.mxu0
        %v3003 = vadd.f32 %v2682, %v3002
        %v3004 = vpop.f32.mrf.mxu0
        %v3005 = vpop.f32.mrf.mxu0
        %v3006 = vadd.f32 %v2683, %v3005
        %v3007 = vpop.f32.mrf.mxu0
        %3008 = vmatprep.mubr.bf16.mxu0 0
        %3009 = vmatmul.mubr.bf16.gmra.mxu0 %v2606
        %v3010 = vpop.f32.mrf.mxu0
        %v3011 = vadd.f32 %v2684, %v3010
        %v3012 = vpop.f32.mrf.mxu0
        %v3013 = vpop.f32.mrf.mxu0
        %v3014 = vadd.f32 %v2685, %v3013
        %v3015 = vpop.f32.mrf.mxu0
        %3016 = vmatprep.mubr.bf16.mxu0 0
        %3017 = vmatmul.mubr.bf16.gmra.mxu0 %v2607
        %v3018 = vpop.f32.mrf.mxu0
        %v3019 = vadd.f32 %v2686, %v3018
        %v3020 = vpop.f32.mrf.mxu0
        %v3021 = vpop.f32.mrf.mxu0
        %v3022 = vadd.f32 %v2687, %v3021
        %v3023 = vpop.f32.mrf.mxu0
        %3024 = vdwg.mxu0
        %v3025 = vmax.f32 %v2771, 0.0
        %v3026 = vmax.f32 %v2774, 0.0
        %v3027 = vmax.f32 %v2779, 0.0
        %v3028 = vmax.f32 %v2782, 0.0
        %v3029 = vmax.f32 %v2787, 0.0
        %v3030 = vmax.f32 %v2790, 0.0
        %v3031 = vmax.f32 %v2795, 0.0
        %v3032 = vmax.f32 %v2798, 0.0
        %v3033 = vmax.f32 %v2803, 0.0
        %v3034 = vmax.f32 %v2806, 0.0
        %v3035 = vmax.f32 %v2811, 0.0
        %v3036 = vmax.f32 %v2814, 0.0
        %v3037 = vmax.f32 %v2819, 0.0
        %v3038 = vmax.f32 %v2822, 0.0
        %v3039 = vmax.f32 %v2827, 0.0
        %v3040 = vmax.f32 %v2830, 0.0
        %v3041 = vmax.f32 %v2835, 0.0
        %v3042 = vmax.f32 %v2838, 0.0
        %v3043 = vmax.f32 %v2843, 0.0
        %v3044 = vmax.f32 %v2846, 0.0
        %v3045 = vmax.f32 %v2851, 0.0
        %v3046 = vmax.f32 %v2854, 0.0
        %v3047 = vmax.f32 %v2859, 0.0
        %v3048 = vmax.f32 %v2862, 0.0
        %v3049 = vmax.f32 %v2867, 0.0
        %v3050 = vmax.f32 %v2870, 0.0
        %v3051 = vmax.f32 %v2875, 0.0
        %v3052 = vmax.f32 %v2878, 0.0
        %v3053 = vmax.f32 %v2883, 0.0
        %v3054 = vmax.f32 %v2886, 0.0
        %v3055 = vmax.f32 %v2891, 0.0
        %v3056 = vmax.f32 %v2894, 0.0
        %v3057 = vmax.f32 %v2899, 0.0
        %v3058 = vmax.f32 %v2902, 0.0
        %v3059 = vmax.f32 %v2907, 0.0
        %v3060 = vmax.f32 %v2910, 0.0
        %v3061 = vmax.f32 %v2915, 0.0
        %v3062 = vmax.f32 %v2918, 0.0
        %v3063 = vmax.f32 %v2923, 0.0
        %v3064 = vmax.f32 %v2926, 0.0
        %v3065 = vmax.f32 %v2931, 0.0
        %v3066 = vmax.f32 %v2934, 0.0
        %v3067 = vmax.f32 %v2939, 0.0
        %v3068 = vmax.f32 %v2942, 0.0
        %v3069 = vmax.f32 %v2947, 0.0
        %v3070 = vmax.f32 %v2950, 0.0
        %v3071 = vmax.f32 %v2955, 0.0
        %v3072 = vmax.f32 %v2958, 0.0
        %v3073 = vmax.f32 %v2963, 0.0
        %v3074 = vmax.f32 %v2966, 0.0
        %v3075 = vmax.f32 %v2971, 0.0
        %v3076 = vmax.f32 %v2974, 0.0
        %v3077 = vmax.f32 %v2979, 0.0
        %v3078 = vmax.f32 %v2982, 0.0
        %v3079 = vmax.f32 %v2987, 0.0
        %v3080 = vmax.f32 %v2990, 0.0
        %v3081 = vmax.f32 %v2995, 0.0
        %v3082 = vmax.f32 %v2998, 0.0
        %v3083 = vmax.f32 %v3003, 0.0
        %v3084 = vmax.f32 %v3006, 0.0
        %v3085 = vmax.f32 %v3011, 0.0
        %v3086 = vmax.f32 %v3014, 0.0
        %v3087 = vmax.f32 %v3019, 0.0
        %v3088 = vmax.f32 %v3022, 0.0
        %v3089 = vpack.c.bf16 %v3026, %v3025
        %v3090 = vpack.c.bf16 %v3028, %v3027
        %v3091 = vpack.c.bf16 %v3030, %v3029
        %v3092 = vpack.c.bf16 %v3032, %v3031
        %v3093 = vpack.c.bf16 %v3034, %v3033
        %v3094 = vpack.c.bf16 %v3036, %v3035
        %v3095 = vpack.c.bf16 %v3038, %v3037
        %v3096 = vpack.c.bf16 %v3040, %v3039
        %v3097 = vpack.c.bf16 %v3042, %v3041
        %v3098 = vpack.c.bf16 %v3044, %v3043
        %v3099 = vpack.c.bf16 %v3046, %v3045
        %v3100 = vpack.c.bf16 %v3048, %v3047
        %v3101 = vpack.c.bf16 %v3050, %v3049
        %v3102 = vpack.c.bf16 %v3052, %v3051
        %v3103 = vpack.c.bf16 %v3054, %v3053
        %v3104 = vpack.c.bf16 %v3056, %v3055
        %v3105 = vpack.c.bf16 %v3058, %v3057
        %v3106 = vpack.c.bf16 %v3060, %v3059
        %v3107 = vpack.c.bf16 %v3062, %v3061
        %v3108 = vpack.c.bf16 %v3064, %v3063
        %v3109 = vpack.c.bf16 %v3066, %v3065
        %v3110 = vpack.c.bf16 %v3068, %v3067
        %v3111 = vpack.c.bf16 %v3070, %v3069
        %v3112 = vpack.c.bf16 %v3072, %v3071
        %v3113 = vpack.c.bf16 %v3074, %v3073
        %v3114 = vpack.c.bf16 %v3076, %v3075
        %v3115 = vpack.c.bf16 %v3078, %v3077
        %v3116 = vpack.c.bf16 %v3080, %v3079
        %v3117 = vpack.c.bf16 %v3082, %v3081
        %v3118 = vpack.c.bf16 %v3084, %v3083
        %v3119 = vpack.c.bf16 %v3086, %v3085
        %v3120 = vpack.c.bf16 %v3088, %v3087
        %v3121 = vld [vmem:[#allocation11] sm:$0xf]
        %v3122 = vld [vmem:[#allocation11 + $0x4] sm:$0xf]
        %v3123 = vld [vmem:[#allocation11 + $0x8] sm:$0xf]
        %v3124 = vld [vmem:[#allocation11 + $0xc] sm:$0xf]
        %v3125 = vld [vmem:[#allocation11 + $0x10] sm:$0xf]
        %v3126 = vld [vmem:[#allocation11 + $0x14] sm:$0xf]
        %v3127 = vld [vmem:[#allocation11 + $0x18] sm:$0xf]
        %v3128 = vld [vmem:[#allocation11 + $0x1c] sm:$0xf]
        %v3129 = vld [vmem:[#allocation11 + $0x20] sm:$0xf]
        %v3130 = vld [vmem:[#allocation11 + $0x24] sm:$0xf]
        %v3131 = vld [vmem:[#allocation11 + $0x28] sm:$0xf]
        %v3132 = vld [vmem:[#allocation11 + $0x2c] sm:$0xf]
        %v3133 = vld [vmem:[#allocation11 + $0x30] sm:$0xf]
        %v3134 = vld [vmem:[#allocation11 + $0x34] sm:$0xf]
        %v3135 = vld [vmem:[#allocation11 + $0x38] sm:$0xf]
        %v3136 = vld [vmem:[#allocation11 + $0x3c] sm:$0xf]
        %v3137 = vld [vmem:[%s5] sm:$0x1]
        %v3139 = vlaneseq
        %v3140 = vshrl.u32 %v3139, 7
        %v3141 = vsub.s32 0, %v3140
        %v3142 = vrot.slane %v3137, %v3141
        %v3160 = vunpack.c.l.b16 %v3121
        %v3161 = vunpack.c.l.b16 %v3122
        %v3162 = vunpack.c.l.b16 %v3123
        %v3163 = vunpack.c.l.b16 %v3124
        %v3164 = vunpack.c.l.b16 %v3125
        %v3165 = vunpack.c.l.b16 %v3126
        %v3166 = vunpack.c.l.b16 %v3127
        %v3167 = vunpack.c.l.b16 %v3128
        %v3168 = vunpack.c.l.b16 %v3129
        %v3169 = vunpack.c.l.b16 %v3130
        %v3170 = vunpack.c.l.b16 %v3131
        %v3171 = vunpack.c.l.b16 %v3132
        %v3172 = vunpack.c.l.b16 %v3133
        %v3173 = vunpack.c.l.b16 %v3134
        %v3174 = vunpack.c.l.b16 %v3135
        %v3175 = vunpack.c.l.b16 %v3136
        %v3176 = vpack.c.b16 %v3161, %v3160
        %v3177 = vpack.c.b16 %v3163, %v3162
        %v3178 = vpack.c.b16 %v3165, %v3164
        %v3179 = vpack.c.b16 %v3167, %v3166
        %v3180 = vpack.c.b16 %v3169, %v3168
        %v3181 = vpack.c.b16 %v3171, %v3170
        %v3182 = vpack.c.b16 %v3173, %v3172
        %v3183 = vpack.c.b16 %v3175, %v3174
        %3192 = vmatprep.subr.bf16.mxu0 0
        %3193 = vmatpush1.bf16.msra.mxu0 %v3183
        %3194 = vmatprep.subr.bf16.mxu0 0
        %3195 = vmatpush1.bf16.msra.mxu0 %v3182
        %3196 = vmatprep.subr.bf16.mxu0 0
        %3197 = vmatpush1.bf16.msra.mxu0 %v3181
        %3198 = vmatprep.subr.bf16.mxu0 0
        %3199 = vmatpush1.bf16.msra.mxu0 %v3180
        %3200 = vmatprep.subr.bf16.mxu0 0
        %3201 = vmatpush1.bf16.msra.mxu0 %v3179
        %3202 = vmatprep.subr.bf16.mxu0 0
        %3203 = vmatpush1.bf16.msra.mxu0 %v3178
        %3204 = vmatprep.subr.bf16.mxu0 0
        %3205 = vmatpush1.bf16.msra.mxu0 %v3177
        %3206 = vmatprep.subr.bf16.mxu0 0
        %3207 = vmatpush1.bf16.msra.mxu0 %v3176
        %3208 = vmatprep.subr.bf16.mxu0 0
        %3209 = vmatpush2.bf16.msra.mxu0 0
        %3210 = vmatprep.subr.bf16.mxu0 0
        %3211 = vmatpush2.bf16.msra.mxu0 0
        %3212 = vmatprep.subr.bf16.mxu0 0
        %3213 = vmatpush2.bf16.msra.mxu0 0
        %3214 = vmatprep.subr.bf16.mxu0 0
        %3215 = vmatpush2.bf16.msra.mxu0 0
        %3216 = vmatprep.subr.bf16.mxu0 0
        %3217 = vmatpush2.bf16.msra.mxu0 0
        %3218 = vmatprep.subr.bf16.mxu0 0
        %3219 = vmatpush2.bf16.msra.mxu0 0
        %3220 = vmatprep.subr.bf16.mxu0 0
        %3221 = vmatpush2.bf16.msra.mxu0 0
        %3222 = vmatprep.subr.bf16.mxu0 0
        %3223 = vmatpush2.bf16.msra.mxu0 0
        %3224 = vmatprep.mubr.bf16.mxu0 0
        %3225 = vmatmul.mubr.bf16.gmra.mxu0 %v3089
        %v3226 = vpop.f32.mrf.mxu0
        %v3227 = vadd.f32 %v3142, %v3226
        %v3228 = vpop.f32.mrf.mxu0
        %v3229 = vpop.f32.mrf.mxu0
        %v3230 = vadd.f32 %v3142, %v3229
        %v3231 = vpop.f32.mrf.mxu0
        %3232 = vmatprep.mubr.bf16.mxu0 0
        %3233 = vmatmul.mubr.bf16.gmra.mxu0 %v3090
        %v3234 = vpop.f32.mrf.mxu0
        %v3235 = vadd.f32 %v3142, %v3234
        %v3236 = vpop.f32.mrf.mxu0
        %v3237 = vpop.f32.mrf.mxu0
        %v3238 = vadd.f32 %v3142, %v3237
        %v3239 = vpop.f32.mrf.mxu0
        %3240 = vmatprep.mubr.bf16.mxu0 0
        %3241 = vmatmul.mubr.bf16.gmra.mxu0 %v3091
        %v3242 = vpop.f32.mrf.mxu0
        %v3243 = vadd.f32 %v3142, %v3242
        %v3244 = vpop.f32.mrf.mxu0
        %v3245 = vpop.f32.mrf.mxu0
        %v3246 = vadd.f32 %v3142, %v3245
        %v3247 = vpop.f32.mrf.mxu0
        %3248 = vmatprep.mubr.bf16.mxu0 0
        %3249 = vmatmul.mubr.bf16.gmra.mxu0 %v3092
        %v3250 = vpop.f32.mrf.mxu0
        %v3251 = vadd.f32 %v3142, %v3250
        %v3252 = vpop.f32.mrf.mxu0
        %v3253 = vpop.f32.mrf.mxu0
        %v3254 = vadd.f32 %v3142, %v3253
        %v3255 = vpop.f32.mrf.mxu0
        %3256 = vmatprep.mubr.bf16.mxu0 0
        %3257 = vmatmul.mubr.bf16.gmra.mxu0 %v3093
        %v3258 = vpop.f32.mrf.mxu0
        %v3259 = vadd.f32 %v3142, %v3258
        %v3260 = vpop.f32.mrf.mxu0
        %v3261 = vpop.f32.mrf.mxu0
        %v3262 = vadd.f32 %v3142, %v3261
        %v3263 = vpop.f32.mrf.mxu0
        %3264 = vmatprep.mubr.bf16.mxu0 0
        %3265 = vmatmul.mubr.bf16.gmra.mxu0 %v3094
        %v3266 = vpop.f32.mrf.mxu0
        %v3267 = vadd.f32 %v3142, %v3266
        %v3268 = vpop.f32.mrf.mxu0
        %v3269 = vpop.f32.mrf.mxu0
        %v3270 = vadd.f32 %v3142, %v3269
        %v3271 = vpop.f32.mrf.mxu0
        %3272 = vmatprep.mubr.bf16.mxu0 0
        %3273 = vmatmul.mubr.bf16.gmra.mxu0 %v3095
        %v3274 = vpop.f32.mrf.mxu0
        %v3275 = vadd.f32 %v3142, %v3274
        %v3276 = vpop.f32.mrf.mxu0
        %v3277 = vpop.f32.mrf.mxu0
        %v3278 = vadd.f32 %v3142, %v3277
        %v3279 = vpop.f32.mrf.mxu0
        %3280 = vmatprep.mubr.bf16.mxu0 0
        %3281 = vmatmul.mubr.bf16.gmra.mxu0 %v3096
        %v3282 = vpop.f32.mrf.mxu0
        %v3283 = vadd.f32 %v3142, %v3282
        %v3284 = vpop.f32.mrf.mxu0
        %v3285 = vpop.f32.mrf.mxu0
        %v3286 = vadd.f32 %v3142, %v3285
        %v3287 = vpop.f32.mrf.mxu0
        %3288 = vmatprep.mubr.bf16.mxu0 0
        %3289 = vmatmul.mubr.bf16.gmra.mxu0 %v3097
        %v3290 = vpop.f32.mrf.mxu0
        %v3291 = vadd.f32 %v3142, %v3290
        %v3292 = vpop.f32.mrf.mxu0
        %v3293 = vpop.f32.mrf.mxu0
        %v3294 = vadd.f32 %v3142, %v3293
        %v3295 = vpop.f32.mrf.mxu0
        %3296 = vmatprep.mubr.bf16.mxu0 0
        %3297 = vmatmul.mubr.bf16.gmra.mxu0 %v3098
        %v3298 = vpop.f32.mrf.mxu0
        %v3299 = vadd.f32 %v3142, %v3298
        %v3300 = vpop.f32.mrf.mxu0
        %v3301 = vpop.f32.mrf.mxu0
        %v3302 = vadd.f32 %v3142, %v3301
        %v3303 = vpop.f32.mrf.mxu0
        %3304 = vmatprep.mubr.bf16.mxu0 0
        %3305 = vmatmul.mubr.bf16.gmra.mxu0 %v3099
        %v3306 = vpop.f32.mrf.mxu0
        %v3307 = vadd.f32 %v3142, %v3306
        %v3308 = vpop.f32.mrf.mxu0
        %v3309 = vpop.f32.mrf.mxu0
        %v3310 = vadd.f32 %v3142, %v3309
        %v3311 = vpop.f32.mrf.mxu0
        %3312 = vmatprep.mubr.bf16.mxu0 0
        %3313 = vmatmul.mubr.bf16.gmra.mxu0 %v3100
        %v3314 = vpop.f32.mrf.mxu0
        %v3315 = vadd.f32 %v3142, %v3314
        %v3316 = vpop.f32.mrf.mxu0
        %v3317 = vpop.f32.mrf.mxu0
        %v3318 = vadd.f32 %v3142, %v3317
        %v3319 = vpop.f32.mrf.mxu0
        %3320 = vmatprep.mubr.bf16.mxu0 0
        %3321 = vmatmul.mubr.bf16.gmra.mxu0 %v3101
        %v3322 = vpop.f32.mrf.mxu0
        %v3323 = vadd.f32 %v3142, %v3322
        %v3324 = vpop.f32.mrf.mxu0
        %v3325 = vpop.f32.mrf.mxu0
        %v3326 = vadd.f32 %v3142, %v3325
        %v3327 = vpop.f32.mrf.mxu0
        %3328 = vmatprep.mubr.bf16.mxu0 0
        %3329 = vmatmul.mubr.bf16.gmra.mxu0 %v3102
        %v3330 = vpop.f32.mrf.mxu0
        %v3331 = vadd.f32 %v3142, %v3330
        %v3332 = vpop.f32.mrf.mxu0
        %v3333 = vpop.f32.mrf.mxu0
        %v3334 = vadd.f32 %v3142, %v3333
        %v3335 = vpop.f32.mrf.mxu0
        %3336 = vmatprep.mubr.bf16.mxu0 0
        %3337 = vmatmul.mubr.bf16.gmra.mxu0 %v3103
        %v3338 = vpop.f32.mrf.mxu0
        %v3339 = vadd.f32 %v3142, %v3338
        %v3340 = vpop.f32.mrf.mxu0
        %v3341 = vpop.f32.mrf.mxu0
        %v3342 = vadd.f32 %v3142, %v3341
        %v3343 = vpop.f32.mrf.mxu0
        %3344 = vmatprep.mubr.bf16.mxu0 0
        %3345 = vmatmul.mubr.bf16.gmra.mxu0 %v3104
        %v3346 = vpop.f32.mrf.mxu0
        %v3347 = vadd.f32 %v3142, %v3346
        %v3348 = vpop.f32.mrf.mxu0
        %v3349 = vpop.f32.mrf.mxu0
        %v3350 = vadd.f32 %v3142, %v3349
        %v3351 = vpop.f32.mrf.mxu0
        %3352 = vmatprep.mubr.bf16.mxu0 0
        %3353 = vmatmul.mubr.bf16.gmra.mxu0 %v3105
        %v3354 = vpop.f32.mrf.mxu0
        %v3355 = vadd.f32 %v3142, %v3354
        %v3356 = vpop.f32.mrf.mxu0
        %v3357 = vpop.f32.mrf.mxu0
        %v3358 = vadd.f32 %v3142, %v3357
        %v3359 = vpop.f32.mrf.mxu0
        %3360 = vmatprep.mubr.bf16.mxu0 0
        %3361 = vmatmul.mubr.bf16.gmra.mxu0 %v3106
        %v3362 = vpop.f32.mrf.mxu0
        %v3363 = vadd.f32 %v3142, %v3362
        %v3364 = vpop.f32.mrf.mxu0
        %v3365 = vpop.f32.mrf.mxu0
        %v3366 = vadd.f32 %v3142, %v3365
        %v3367 = vpop.f32.mrf.mxu0
        %3368 = vmatprep.mubr.bf16.mxu0 0
        %3369 = vmatmul.mubr.bf16.gmra.mxu0 %v3107
        %v3370 = vpop.f32.mrf.mxu0
        %v3371 = vadd.f32 %v3142, %v3370
        %v3372 = vpop.f32.mrf.mxu0
        %v3373 = vpop.f32.mrf.mxu0
        %v3374 = vadd.f32 %v3142, %v3373
        %v3375 = vpop.f32.mrf.mxu0
        %3376 = vmatprep.mubr.bf16.mxu0 0
        %3377 = vmatmul.mubr.bf16.gmra.mxu0 %v3108
        %v3378 = vpop.f32.mrf.mxu0
        %v3379 = vadd.f32 %v3142, %v3378
        %v3380 = vpop.f32.mrf.mxu0
        %v3381 = vpop.f32.mrf.mxu0
        %v3382 = vadd.f32 %v3142, %v3381
        %v3383 = vpop.f32.mrf.mxu0
        %3384 = vmatprep.mubr.bf16.mxu0 0
        %3385 = vmatmul.mubr.bf16.gmra.mxu0 %v3109
        %v3386 = vpop.f32.mrf.mxu0
        %v3387 = vadd.f32 %v3142, %v3386
        %v3388 = vpop.f32.mrf.mxu0
        %v3389 = vpop.f32.mrf.mxu0
        %v3390 = vadd.f32 %v3142, %v3389
        %v3391 = vpop.f32.mrf.mxu0
        %3392 = vmatprep.mubr.bf16.mxu0 0
        %3393 = vmatmul.mubr.bf16.gmra.mxu0 %v3110
        %v3394 = vpop.f32.mrf.mxu0
        %v3395 = vadd.f32 %v3142, %v3394
        %v3396 = vpop.f32.mrf.mxu0
        %v3397 = vpop.f32.mrf.mxu0
        %v3398 = vadd.f32 %v3142, %v3397
        %v3399 = vpop.f32.mrf.mxu0
        %3400 = vmatprep.mubr.bf16.mxu0 0
        %3401 = vmatmul.mubr.bf16.gmra.mxu0 %v3111
        %v3402 = vpop.f32.mrf.mxu0
        %v3403 = vadd.f32 %v3142, %v3402
        %v3404 = vpop.f32.mrf.mxu0
        %v3405 = vpop.f32.mrf.mxu0
        %v3406 = vadd.f32 %v3142, %v3405
        %v3407 = vpop.f32.mrf.mxu0
        %3408 = vmatprep.mubr.bf16.mxu0 0
        %3409 = vmatmul.mubr.bf16.gmra.mxu0 %v3112
        %v3410 = vpop.f32.mrf.mxu0
        %v3411 = vadd.f32 %v3142, %v3410
        %v3412 = vpop.f32.mrf.mxu0
        %v3413 = vpop.f32.mrf.mxu0
        %v3414 = vadd.f32 %v3142, %v3413
        %v3415 = vpop.f32.mrf.mxu0
        %3416 = vmatprep.mubr.bf16.mxu0 0
        %3417 = vmatmul.mubr.bf16.gmra.mxu0 %v3113
        %v3418 = vpop.f32.mrf.mxu0
        %v3419 = vadd.f32 %v3142, %v3418
        %v3420 = vpop.f32.mrf.mxu0
        %v3421 = vpop.f32.mrf.mxu0
        %v3422 = vadd.f32 %v3142, %v3421
        %v3423 = vpop.f32.mrf.mxu0
        %3424 = vmatprep.mubr.bf16.mxu0 0
        %3425 = vmatmul.mubr.bf16.gmra.mxu0 %v3114
        %v3426 = vpop.f32.mrf.mxu0
        %v3427 = vadd.f32 %v3142, %v3426
        %v3428 = vpop.f32.mrf.mxu0
        %v3429 = vpop.f32.mrf.mxu0
        %v3430 = vadd.f32 %v3142, %v3429
        %v3431 = vpop.f32.mrf.mxu0
        %3432 = vmatprep.mubr.bf16.mxu0 0
        %3433 = vmatmul.mubr.bf16.gmra.mxu0 %v3115
        %v3434 = vpop.f32.mrf.mxu0
        %v3435 = vadd.f32 %v3142, %v3434
        %v3436 = vpop.f32.mrf.mxu0
        %v3437 = vpop.f32.mrf.mxu0
        %v3438 = vadd.f32 %v3142, %v3437
        %v3439 = vpop.f32.mrf.mxu0
        %3440 = vmatprep.mubr.bf16.mxu0 0
        %3441 = vmatmul.mubr.bf16.gmra.mxu0 %v3116
        %v3442 = vpop.f32.mrf.mxu0
        %v3443 = vadd.f32 %v3142, %v3442
        %v3444 = vpop.f32.mrf.mxu0
        %v3445 = vpop.f32.mrf.mxu0
        %v3446 = vadd.f32 %v3142, %v3445
        %v3447 = vpop.f32.mrf.mxu0
        %3448 = vmatprep.mubr.bf16.mxu0 0
        %3449 = vmatmul.mubr.bf16.gmra.mxu0 %v3117
        %v3450 = vpop.f32.mrf.mxu0
        %v3451 = vadd.f32 %v3142, %v3450
        %v3452 = vpop.f32.mrf.mxu0
        %v3453 = vpop.f32.mrf.mxu0
        %v3454 = vadd.f32 %v3142, %v3453
        %v3455 = vpop.f32.mrf.mxu0
        %3456 = vmatprep.mubr.bf16.mxu0 0
        %3457 = vmatmul.mubr.bf16.gmra.mxu0 %v3118
        %v3458 = vpop.f32.mrf.mxu0
        %v3459 = vadd.f32 %v3142, %v3458
        %v3460 = vpop.f32.mrf.mxu0
        %v3461 = vpop.f32.mrf.mxu0
        %v3462 = vadd.f32 %v3142, %v3461
        %v3463 = vpop.f32.mrf.mxu0
        %3464 = vmatprep.mubr.bf16.mxu0 0
        %3465 = vmatmul.mubr.bf16.gmra.mxu0 %v3119
        %v3466 = vpop.f32.mrf.mxu0
        %v3467 = vadd.f32 %v3142, %v3466
        %v3468 = vpop.f32.mrf.mxu0
        %v3469 = vpop.f32.mrf.mxu0
        %v3470 = vadd.f32 %v3142, %v3469
        %v3471 = vpop.f32.mrf.mxu0
        %3472 = vmatprep.mubr.bf16.mxu0 0
        %3473 = vmatmul.mubr.bf16.gmra.mxu0 %v3120
        %v3474 = vpop.f32.mrf.mxu0
        %v3475 = vadd.f32 %v3142, %v3474
        %v3476 = vpop.f32.mrf.mxu0
        %v3477 = vpop.f32.mrf.mxu0
        %v3478 = vadd.f32 %v3142, %v3477
        %v3479 = vpop.f32.mrf.mxu0
        %3480 = vdwg.mxu0
        %3481 = vst [vmem:[%s327] sm:$0xff] %v3227
        %3482 = vst [vmem:[%s327 + $0x8] sm:$0xff] %v3230
        %3483 = vst [vmem:[%s327 + $0x10] sm:$0xff] %v3235
        %3484 = vst [vmem:[%s327 + $0x18] sm:$0xff] %v3238
        %3485 = vst [vmem:[%s327 + $0x20] sm:$0xff] %v3243
        %3486 = vst [vmem:[%s327 + $0x28] sm:$0xff] %v3246
        %3487 = vst [vmem:[%s327 + $0x30] sm:$0xff] %v3251
        %3488 = vst [vmem:[%s327 + $0x38] sm:$0xff] %v3254
        %3489 = vst [vmem:[%s327 + $0x40] sm:$0xff] %v3259
        %3490 = vst [vmem:[%s327 + $0x48] sm:$0xff] %v3262
        %3491 = vst [vmem:[%s327 + $0x50] sm:$0xff] %v3267
        %3492 = vst [vmem:[%s327 + $0x58] sm:$0xff] %v3270
        %3493 = vst [vmem:[%s327 + $0x60] sm:$0xff] %v3275
        %3494 = vst [vmem:[%s327 + $0x68] sm:$0xff] %v3278
        %3495 = vst [vmem:[%s327 + $0x70] sm:$0xff] %v3283
        %3496 = vst [vmem:[%s327 + $0x78] sm:$0xff] %v3286
        %3497 = vst [vmem:[%s327 + $0x80] sm:$0xff] %v3291
        %3498 = vst [vmem:[%s327 + $0x88] sm:$0xff] %v3294
        %3499 = vst [vmem:[%s327 + $0x90] sm:$0xff] %v3299
        %3500 = vst [vmem:[%s327 + $0x98] sm:$0xff] %v3302
        %3501 = vst [vmem:[%s327 + $0xa0] sm:$0xff] %v3307
        %3502 = vst [vmem:[%s327 + $0xa8] sm:$0xff] %v3310
        %3503 = vst [vmem:[%s327 + $0xb0] sm:$0xff] %v3315
        %3504 = vst [vmem:[%s327 + $0xb8] sm:$0xff] %v3318
        %3505 = vst [vmem:[%s327 + $0xc0] sm:$0xff] %v3323
        %3506 = vst [vmem:[%s327 + $0xc8] sm:$0xff] %v3326
        %3507 = vst [vmem:[%s327 + $0xd0] sm:$0xff] %v3331
        %3508 = vst [vmem:[%s327 + $0xd8] sm:$0xff] %v3334
        %3509 = vst [vmem:[%s327 + $0xe0] sm:$0xff] %v3339
        %3510 = vst [vmem:[%s327 + $0xe8] sm:$0xff] %v3342
        %3511 = vst [vmem:[%s327 + $0xf0] sm:$0xff] %v3347
        %3512 = vst [vmem:[%s327 + $0xf8] sm:$0xff] %v3350
        %3513 = vst [vmem:[%s327 + $0x100] sm:$0xff] %v3355
        %3514 = vst [vmem:[%s327 + $0x108] sm:$0xff] %v3358
        %3515 = vst [vmem:[%s327 + $0x110] sm:$0xff] %v3363
        %3516 = vst [vmem:[%s327 + $0x118] sm:$0xff] %v3366
        %3517 = vst [vmem:[%s327 + $0x120] sm:$0xff] %v3371
        %3518 = vst [vmem:[%s327 + $0x128] sm:$0xff] %v3374
        %3519 = vst [vmem:[%s327 + $0x130] sm:$0xff] %v3379
        %3520 = vst [vmem:[%s327 + $0x138] sm:$0xff] %v3382
        %3521 = vst [vmem:[%s327 + $0x140] sm:$0xff] %v3387
        %3522 = vst [vmem:[%s327 + $0x148] sm:$0xff] %v3390
        %3523 = vst [vmem:[%s327 + $0x150] sm:$0xff] %v3395
        %3524 = vst [vmem:[%s327 + $0x158] sm:$0xff] %v3398
        %3525 = vst [vmem:[%s327 + $0x160] sm:$0xff] %v3403
        %3526 = vst [vmem:[%s327 + $0x168] sm:$0xff] %v3406
        %3527 = vst [vmem:[%s327 + $0x170] sm:$0xff] %v3411
        %3528 = vst [vmem:[%s327 + $0x178] sm:$0xff] %v3414
        %3529 = vst [vmem:[%s327 + $0x180] sm:$0xff] %v3419
        %3530 = vst [vmem:[%s327 + $0x188] sm:$0xff] %v3422
        %3531 = vst [vmem:[%s327 + $0x190] sm:$0xff] %v3427
        %3532 = vst [vmem:[%s327 + $0x198] sm:$0xff] %v3430
        %3533 = vst [vmem:[%s327 + $0x1a0] sm:$0xff] %v3435
        %3534 = vst [vmem:[%s327 + $0x1a8] sm:$0xff] %v3438
        %3535 = vst [vmem:[%s327 + $0x1b0] sm:$0xff] %v3443
        %3536 = vst [vmem:[%s327 + $0x1b8] sm:$0xff] %v3446
        %3537 = vst [vmem:[%s327 + $0x1c0] sm:$0xff] %v3451
        %3538 = vst [vmem:[%s327 + $0x1c8] sm:$0xff] %v3454
        %3539 = vst [vmem:[%s327 + $0x1d0] sm:$0xff] %v3459
        %3540 = vst [vmem:[%s327 + $0x1d8] sm:$0xff] %v3462
        %3541 = vst [vmem:[%s327 + $0x1e0] sm:$0xff] %v3467
        %3542 = vst [vmem:[%s327 + $0x1e8] sm:$0xff] %v3470
        %3543 = vst [vmem:[%s327 + $0x1f0] sm:$0xff] %v3475
        %3544 = vst [vmem:[%s327 + $0x1f8] sm:$0xff] %v3478
        %s3545 = sand.u32 %s164, 1
        %s3546 = scalar_lea.sflag [#allocation5], %s3545
        %s3547 = sand.u32 %s164, 1
        %s3548 = smul.addr %s3547, 512
        %s3549 = scalar_lea.vmem [#allocation12], %s3548
        // Predicated region
        $region65: #{tpu_custom_call.1} parent=43 // pred_check
          %p3550 = pneg %p174
        $region66: #{tpu_custom_call.1} parent=43 // pred_check_branch
          %3552 = sbr.rel (%p3550) target = $region68
        $region67: #{tpu_custom_call.1} parent=43 // pred_region
          %s3553 = smul.u32 64, %s25
          %s3555 = ssub.s32 8192, 8192
          %3556 = vsyncadd %s3546, %s3555
          %s3557 = smul.addr %s3553, 128
          %s3558 = scalar_lea.hbm %s6, %s3557
          %s3559 = sshll.u32 %s3549, 4
          %s3560 = int_to_ptr.vmem [resolvable:$true] %s3559
          %3565 = dma.vmem_to_hbm [thread:$0]  %s3560, 8192, %s3558, %s3546, 128, 128, 8
        $region68: #{tpu_custom_call.1} parent=43 // pred_fallthru
          _
      $region44: #{tpu_custom_call.1} parent=5 // pred_fallthru
        _
      %p3566 = scmp.le.s32.totalorder 2, %s20
      // Predicated region
      $region69: #{tpu_custom_call.1} parent=5 // pred_check
        %p3567 = pneg %p3566
      $region70: #{tpu_custom_call.1} parent=5 // pred_check_branch
        %3569 = sbr.rel (%p3567) target = $region72
      $region71: #{tpu_custom_call.1} parent=5 // pred_region
        %s3570 = ssub.s32 %s20, 2
        // Predicated region
        $region73: #{tpu_custom_call.1} parent=71 // pred_check
          %p3571 = pneg %p180
        $region74: #{tpu_custom_call.1} parent=71 // pred_check_branch
          %3573 = sbr.rel (%p3571) target = $region76
        $region75: #{tpu_custom_call.1} parent=71 // pred_region
          %s3574 = sand.u32 %s165, 1
          %s3575 = scalar_lea.sflag [#allocation5], %s3574
          %s3576 = sand.u32 %s165, 1
          %s3577 = smul.addr %s3576, 512
          %s3578 = scalar_lea.vmem [#allocation12], %s3577
          %3579 = dma.done %s3575, 8192
        $region76: #{tpu_custom_call.1} parent=71 // pred_fallthru
          _
      $region72: #{tpu_custom_call.1} parent=5 // pred_fallthru
        _
    $region6: #{tpu_custom_call.1} parent=1 // loop_footer
      %s24 = sadd.s32 1, %s20
    $region7: #{tpu_custom_call.1} parent=1 // loop_footer_branch
      %19 = sbr.rel target = $region3
    $region8: #{tpu_custom_call.1} parent=1 // loop_exit
      _
    %3580 = vsyncpa [#allocation4], 1
    %s3581 = scalar_lea.sflag [#allocation4], 1
    %3582 = vsyncpa %s3581, 1
    %3583 = vsyncpa [#allocation7], 1
    %3584 = vsyncpa [#allocation10], 1
    %3585 = vsyncpa [#allocation5], 1
    %s3586 = scalar_lea.sflag [#allocation5], 1
    %3587 = vsyncpa %s3586, 1

// kernel: tpu_custom_call.1
$region0: #{tpu_custom_call.1}
  #allocation0 [shape = 'u32[]', space=smem, size = 0x4, offset = 0x4, fixed_abs, tag = 'smem constant byte address 0x4 - core index']
  #allocation1 [shape = 'u32[144,128]{1,0:T(1,128)}', space=vmem, size = 0x12000, scoped, tag = 'internal scratch']
  #allocation2 [shape = 'f32[512,256]{1,0:T(8,128)}', space=vmem, size = 0x80000, scoped, tag = 'scratch operand']
  %s0 = inlined_call_operand.hbm [shape: f32[1024,128], index: 0, kind: input, shape index: {}]
  %s1 = inlined_call_operand.hbm [shape: bf16[256,384], index: 1, kind: input, shape index: {}]
  %s2 = inlined_call_operand.hbm [shape: bf16[128,128], index: 2, kind: input, shape index: {}]
  %s3 = inlined_call_operand.hbm [shape: bf16[128,128], index: 3, kind: input, shape index: {}]
  %s4 = inlined_call_operand.hbm [shape: bf16[128,128], index: 4, kind: input, shape index: {}]
  %s5 = inlined_call_operand.vmem [shape: f32[1,128], index: 5, kind: input, shape index: {}]
  %s6 = inlined_call_operand.hbm [shape: f32[1024,128], index: 6, kind: output, shape index: {}]
  %s7 = sld [smem:[#allocation0]]
  $region77: #{tpu_custom_call.1} parent=0
    _
  %s9 = ssub.s32 1, %s7
  %s10 = scalar_select 0, %s9, %s7
  $region1: #{tpu_custom_call.1} parent=0
    #allocation3 [shape = 'u8[524288]{0}', space=vmem, size = 0x80000, scoped, tag = 'input window, operand 0']
    #allocation4 [shape = 's32[2]{0}', space=sflag, size = 0x8, scoped, tag = 'scoped memory for tpu_custom_call.1']
    #allocation5 [shape = 's32[2]{0}', space=sflag, size = 0x8, scoped, tag = 'scoped memory for tpu_custom_call.1']
    #allocation6 [shape = 'u8[196608]{0}', space=vmem, size = 0x30000, scoped, tag = 'input window, operand 1, single buffered']
    #allocation7 [shape = 's32[1]{0}', space=sflag, size = 0x4, scoped, tag = 'scoped memory for tpu_custom_call.1']
    #allocation8 [shape = 'u8[32768]{0}', space=vmem, size = 0x8000, scoped, tag = 'input window, operand 2, single buffered']
    #allocation9 [shape = 'u8[32768]{0}', space=vmem, size = 0x8000, scoped, tag = 'input window, operand 3, single buffered']
    #allocation10 [shape = 's32[1]{0}', space=sflag, size = 0x4, scoped, tag = 'scoped memory for tpu_custom_call.1']
    #allocation11 [shape = 'u8[32768]{0}', space=vmem, size = 0x8000, scoped, tag = 'input window, operand 4, single buffered']
    #allocation12 [shape = 'u8[524288]{0}', space=vmem, size = 0x80000, scoped, tag = 'output window, operand 0']
    %11 = vsyncpa [#allocation4], 0
    %s12 = scalar_lea.sflag [#allocation4], 1
    %13 = vsyncpa %s12, 0
    %14 = vsyncpa [#allocation7], 0
    %15 = vsyncpa [#allocation10], 0
    %16 = vsyncpa [#allocation5], 0
    %s17 = scalar_lea.sflag [#allocation5], 1
    %18 = vsyncpa %s17, 0
    loop: start=0, step=1, limit=4
    $region2: #{tpu_custom_call.1} parent=1 // loop_pre_header
      _
    $region3: #{tpu_custom_call.1} parent=1 // loop_header
      %s20 = sphi 0, %s24
      %p21 = scmp.ge.s32.totalorder %s20, 4
      %s30 = sphi 0, %s32
      %s33 = sphi 0, %s30
      %s34 = sphi 0, %s33
      %s50 = sphi 0, %s34
      %s54 = sphi 0, %s54
      %s56 = sphi 0, %s54
      %s57 = sphi 0, %s56
      %s71 = sphi 0, %s57
      %s75 = sphi 0, %s75
      %s77 = sphi 0, %s75
      %s78 = sphi 0, %s77
      %s92 = sphi 0, %s78
      %s96 = sphi 0, %s96
      %s98 = sphi 0, %s96
      %s99 = sphi 0, %s98
      %s113 = sphi 0, %s99
      %s117 = sphi 0, %s117
      %s119 = sphi 0, %s117
      %s120 = sphi 0, %s119
      %s134 = sphi 0, %s120
      %s138 = sphi 0, %s138
      %s140 = sphi 0, %s138
      %s141 = sphi 0, %s140
      %s155 = sphi 0, %s141
      %s161 = sphi 0, %s163
      %s164 = sphi 0, %s161
      %s165 = sphi 0, %s164
      %s181 = sphi 0, %s165
    $region4: #{tpu_custom_call.1} parent=1 // loop_header_branch
      %23 = sbr.rel (%p21) target = $region8
    $region5: #{tpu_custom_call.1} parent=1 // loop_body
      %s25 = ssub.s32 %s20, 1
      %s26 = ssub.s32 %s20, 2
      %s27 = sadd.s32 %s20, 1
      %s28 = ssub.s32 %s20, %s27
      %p29 = scmp.eq.s32.totalorder %s28, 0
      %s31 = sadd.s32 %s30, 1
      %s32 = scalar_select %p29, %s30, %s31
      %p35 = pneg %p29
      %p36 = scmp.eq.s32.totalorder %s20, 1
      %p37 = por %p35, %p36
      %p38 = scmp.ne.s32.totalorder %s30, %s33
      %p39 = scmp.eq.s32.totalorder %s20, 0
      %p40 = por %p38, %p39
      %p41 = scmp.ne.s32.totalorder %s30, %s33
      %p42 = scmp.eq.s32.totalorder %s25, 1
      %p43 = por %p41, %p42
      %p44 = scmp.ne.s32.totalorder %s33, %s34
      %p45 = scmp.eq.s32.totalorder %s25, 0
      %p46 = por %p44, %p45
      %p47 = scmp.ne.s32.totalorder %s33, %s34
      %p48 = scmp.eq.s32.totalorder %s26, 1
      %p49 = por %p47, %p48
      %p51 = scmp.ne.s32.totalorder %s34, %s50
      %p52 = scmp.eq.s32.totalorder %s26, 0
      %p53 = por %p51, %p52
      %s55 = sadd.s32 %s54, 1
      %p58 = scmp.eq.s32.totalorder %s20, 1
      %p59 = scmp.ne.s32.totalorder %s54, %s56
      %p60 = scmp.eq.s32.totalorder %s20, 0
      %p61 = por %p59, %p60
      %p62 = scmp.ne.s32.totalorder %s54, %s56
      %p63 = scmp.eq.s32.totalorder %s25, 1
      %p64 = por %p62, %p63
      %p65 = scmp.ne.s32.totalorder %s56, %s57
      %p66 = scmp.eq.s32.totalorder %s25, 0
      %p67 = por %p65, %p66
      %p68 = scmp.ne.s32.totalorder %s56, %s57
      %p69 = scmp.eq.s32.totalorder %s26, 1
      %p70 = por %p68, %p69
      %p72 = scmp.ne.s32.totalorder %s57, %s71
      %p73 = scmp.eq.s32.totalorder %s26, 0
      %p74 = por %p72, %p73
      %s76 = sadd.s32 %s75, 1
      %p79 = scmp.eq.s32.totalorder %s20, 1
      %p80 = scmp.ne.s32.totalorder %s75, %s77
      %p81 = scmp.eq.s32.totalorder %s20, 0
      %p82 = por %p80, %p81
      %p83 = scmp.ne.s32.totalorder %s75, %s77
      %p84 = scmp.eq.s32.totalorder %s25, 1
      %p85 = por %p83, %p84
      %p86 = scmp.ne.s32.totalorder %s77, %s78
      %p87 = scmp.eq.s32.totalorder %s25, 0
      %p88 = por %p86, %p87
      %p89 = scmp.ne.s32.totalorder %s77, %s78
      %p90 = scmp.eq.s32.totalorder %s26, 1
      %p91 = por %p89, %p90
      %p93 = scmp.ne.s32.totalorder %s78, %s92
      %p94 = scmp.eq.s32.totalorder %s26, 0
      %p95 = por %p93, %p94
      %s97 = sadd.s32 %s96, 1
      %p100 = scmp.eq.s32.totalorder %s20, 1
      %p101 = scmp.ne.s32.totalorder %s96, %s98
      %p102 = scmp.eq.s32.totalorder %s20, 0
      %p103 = por %p101, %p102
      %p104 = scmp.ne.s32.totalorder %s96, %s98
      %p105 = scmp.eq.s32.totalorder %s25, 1
      %p106 = por %p104, %p105
      %p107 = scmp.ne.s32.totalorder %s98, %s99
      %p108 = scmp.eq.s32.totalorder %s25, 0
      %p109 = por %p107, %p108
      %p110 = scmp.ne.s32.totalorder %s98, %s99
      %p111 = scmp.eq.s32.totalorder %s26, 1
      %p112 = por %p110, %p111
      %p114 = scmp.ne.s32.totalorder %s99, %s113
      %p115 = scmp.eq.s32.totalorder %s26, 0
      %p116 = por %p114, %p115
      %s118 = sadd.s32 %s117, 1
      %p121 = scmp.eq.s32.totalorder %s20, 1
      %p122 = scmp.ne.s32.totalorder %s117, %s119
      %p123 = scmp.eq.s32.totalorder %s20, 0
      %p124 = por %p122, %p123
      %p125 = scmp.ne.s32.totalorder %s117, %s119
      %p126 = scmp.eq.s32.totalorder %s25, 1
      %p127 = por %p125, %p126
      %p128 = scmp.ne.s32.totalorder %s119, %s120
      %p129 = scmp.eq.s32.totalorder %s25, 0
      %p130 = por %p128, %p129
      %p131 = scmp.ne.s32.totalorder %s119, %s120
      %p132 = scmp.eq.s32.totalorder %s26, 1
      %p133 = por %p131, %p132
      %p135 = scmp.ne.s32.totalorder %s120, %s134
      %p136 = scmp.eq.s32.totalorder %s26, 0
      %p137 = por %p135, %p136
      %s139 = sadd.s32 %s138, 1
      %p142 = scmp.eq.s32.totalorder %s20, 1
      %p143 = scmp.ne.s32.totalorder %s138, %s140
      %p144 = scmp.eq.s32.totalorder %s20, 0
      %p145 = por %p143, %p144
      %p146 = scmp.ne.s32.totalorder %s138, %s140
      %p147 = scmp.eq.s32.totalorder %s25, 1
      %p148 = por %p146, %p147
      %p149 = scmp.ne.s32.totalorder %s140, %s141
      %p150 = scmp.eq.s32.totalorder %s25, 0
      %p151 = por %p149, %p150
      %p152 = scmp.ne.s32.totalorder %s140, %s141
      %p153 = scmp.eq.s32.totalorder %s26, 1
      %p154 = por %p152, %p153
      %p156 = scmp.ne.s32.totalorder %s141, %s155
      %p157 = scmp.eq.s32.totalorder %s26, 0
      %p158 = por %p156, %p157
      %s159 = ssub.s32 %s20, %s27
      %p160 = scmp.eq.s32.totalorder %s159, 0
      %s162 = sadd.s32 %s161, 1
      %s163 = scalar_select %p160, %s161, %s162
      %p166 = pneg %p160
      %p167 = scmp.eq.s32.totalorder %s20, 1
      %p168 = por %p166, %p167
      %p169 = scmp.ne.s32.totalorder %s161, %s164
      %p170 = scmp.eq.s32.totalorder %s20, 0
      %p171 = por %p169, %p170
      %p172 = scmp.ne.s32.totalorder %s161, %s164
      %p173 = scmp.eq.s32.totalorder %s25, 1
      %p174 = por %p172, %p173
      %p175 = scmp.ne.s32.totalorder %s164, %s165
      %p176 = scmp.eq.s32.totalorder %s25, 0
      %p177 = por %p175, %p176
      %p178 = scmp.ne.s32.totalorder %s164, %s165
      %p179 = scmp.eq.s32.totalorder %s26, 1
      %p180 = por %p178, %p179
      %p182 = scmp.ne.s32.totalorder %s165, %s181
      %p183 = scmp.eq.s32.totalorder %s26, 0
      %p184 = por %p182, %p183
      %p185 = scmp.le.s32.totalorder 1, %s20
      %p186 = scmp.lt.s32.totalorder %s20, 3
      %p187 = pnand %p185, %p186
      %p188 = pneg %p187
      // Predicated region
      $region9: #{tpu_custom_call.1} parent=5 // pred_check
        _
      $region10: #{tpu_custom_call.1} parent=5 // pred_check_branch
        %190 = sbr.rel (%p187) target = $region12
      $region11: #{tpu_custom_call.1} parent=5 // pred_region
        %s191 = ssub.s32 %s20, 1
        // Predicated region
        $region13: #{tpu_custom_call.1} parent=11 // pred_check
          %p192 = pneg %p67
        $region14: #{tpu_custom_call.1} parent=11 // pred_check_branch
          %194 = sbr.rel (%p192) target = $region16
        $region15: #{tpu_custom_call.1} parent=11 // pred_region
          %s196 = ssub.s32 6144, 6144
          %197 = vsyncadd [#allocation7], %s196
          %s198 = sshll.u32 [#allocation6], 4
          %s199 = int_to_ptr.vmem [resolvable:$true] %s198
          %204 = dma.hbm_to_vmem [thread:$0]  %s1, 6144, %s199, [#allocation7], 192, 192, 12
        $region16: #{tpu_custom_call.1} parent=11 // pred_fallthru
          _
        // Predicated region
        $region17: #{tpu_custom_call.1} parent=11 // pred_check
          %p205 = pneg %p88
        $region18: #{tpu_custom_call.1} parent=11 // pred_check_branch
          %207 = sbr.rel (%p205) target = $region20
        $region19: #{tpu_custom_call.1} parent=11 // pred_region
          %s209 = ssub.s32 1024, 1024
          %210 = vsyncadd [#allocation7], %s209
          %s211 = sshll.u32 [#allocation8], 4
          %s212 = int_to_ptr.vmem [resolvable:$true] %s211
          %217 = dma.hbm_to_vmem [thread:$0]  %s2, 1024, %s212, [#allocation7], 64, 64, 4
        $region20: #{tpu_custom_call.1} parent=11 // pred_fallthru
          _
        // Predicated region
        $region21: #{tpu_custom_call.1} parent=11 // pred_check
          %p218 = pneg %p109
        $region22: #{tpu_custom_call.1} parent=11 // pred_check_branch
          %220 = sbr.rel (%p218) target = $region24
        $region23: #{tpu_custom_call.1} parent=11 // pred_region
          %s222 = ssub.s32 1024, 1024
          %223 = vsyncadd [#allocation10], %s222
          %s224 = sshll.u32 [#allocation9], 4
          %s225 = int_to_ptr.vmem [resolvable:$true] %s224
          %230 = dma.hbm_to_vmem [thread:$0]  %s3, 1024, %s225, [#allocation10], 64, 64, 4
        $region24: #{tpu_custom_call.1} parent=11 // pred_fallthru
          _
        // Predicated region
        $region25: #{tpu_custom_call.1} parent=11 // pred_check
          %p231 = pneg %p130
        $region26: #{tpu_custom_call.1} parent=11 // pred_check_branch
          %233 = sbr.rel (%p231) target = $region28
        $region27: #{tpu_custom_call.1} parent=11 // pred_region
          %s235 = ssub.s32 1024, 1024
          %236 = vsyncadd [#allocation10], %s235
          %s237 = sshll.u32 [#allocation11], 4
          %s238 = int_to_ptr.vmem [resolvable:$true] %s237
          %243 = dma.hbm_to_vmem [thread:$0]  %s4, 1024, %s238, [#allocation10], 64, 64, 4
        $region28: #{tpu_custom_call.1} parent=11 // pred_fallthru
          _
        // Predicated region
        $region29: #{tpu_custom_call.1} parent=11 // pred_check
          %p244 = pneg %p151
        $region30: #{tpu_custom_call.1} parent=11 // pred_check_branch
          %246 = sbr.rel (%p244) target = $region32
        $region31: #{tpu_custom_call.1} parent=11 // pred_region
          _
        $region32: #{tpu_custom_call.1} parent=11 // pred_fallthru
          _
      $region12: #{tpu_custom_call.1} parent=5 // pred_fallthru
        _
      %p247 = scmp.lt.s32.totalorder %s20, 2
      // Predicated region
      $region33: #{tpu_custom_call.1} parent=5 // pred_check
        %p248 = pneg %p247
      $region34: #{tpu_custom_call.1} parent=5 // pred_check_branch
        %250 = sbr.rel (%p248) target = $region36
      $region35: #{tpu_custom_call.1} parent=5 // pred_region
        // Predicated region
        $region37: #{tpu_custom_call.1} parent=35 // pred_check
          %p251 = pneg %p40
        $region38: #{tpu_custom_call.1} parent=35 // pred_check_branch
          %253 = sbr.rel (%p251) target = $region40
        $region39: #{tpu_custom_call.1} parent=35 // pred_region
          %s254 = sand.u32 %s30, 1
          %s255 = scalar_lea.sflag [#allocation4], %s254
          %s256 = sand.u32 %s30, 1
          %s257 = smul.addr %s256, 512
          %s258 = scalar_lea.vmem [#allocation3], %s257
          %s259 = smul.u32 64, %s20
          %s261 = ssub.s32 8192, 8192
          %262 = vsyncadd %s255, %s261
          %s263 = smul.addr %s259, 128
          %s264 = scalar_lea.hbm %s0, %s263
          %s265 = sshll.u32 %s258, 4
          %s266 = int_to_ptr.vmem [resolvable:$true] %s265
          %271 = dma.hbm_to_vmem [thread:$0]  %s264, 8192, %s266, %s255, 128, 128, 8
        $region40: #{tpu_custom_call.1} parent=35 // pred_fallthru
          _
      $region36: #{tpu_custom_call.1} parent=5 // pred_fallthru
        _
      %p272 = scmp.le.s32.totalorder 1, %s20
      %p273 = scmp.lt.s32.totalorder %s20, 3
      %p274 = pnand %p272, %p273
      %p275 = pneg %p274
      // Predicated region
      $region41: #{tpu_custom_call.1} parent=5 // pred_check
        _
      $region42: #{tpu_custom_call.1} parent=5 // pred_check_branch
        %277 = sbr.rel (%p274) target = $region44
      $region43: #{tpu_custom_call.1} parent=5 // pred_region
        %s278 = ssub.s32 %s20, 1
        %s279 = sand.u32 %s33, 1
        %s280 = scalar_lea.sflag [#allocation4], %s279
        %s281 = sand.u32 %s33, 1
        %s282 = smul.addr %s281, 512
        %s283 = scalar_lea.vmem [#allocation3], %s282
        // Predicated region
        $region45: #{tpu_custom_call.1} parent=43 // pred_check
          %p284 = pneg %p46
        $region46: #{tpu_custom_call.1} parent=43 // pred_check_branch
          %286 = sbr.rel (%p284) target = $region48
        $region47: #{tpu_custom_call.1} parent=43 // pred_region
          %287 = dma.done %s280, 8192
        $region48: #{tpu_custom_call.1} parent=43 // pred_fallthru
          _
        // Predicated region
        $region49: #{tpu_custom_call.1} parent=43 // pred_check
          %p288 = pneg %p67
        $region50: #{tpu_custom_call.1} parent=43 // pred_check_branch
          %290 = sbr.rel (%p288) target = $region52
        $region51: #{tpu_custom_call.1} parent=43 // pred_region
          %291 = dma.done [#allocation7], 6144
        $region52: #{tpu_custom_call.1} parent=43 // pred_fallthru
          _
        // Predicated region
        $region53: #{tpu_custom_call.1} parent=43 // pred_check
          %p292 = pneg %p88
        $region54: #{tpu_custom_call.1} parent=43 // pred_check_branch
          %294 = sbr.rel (%p292) target = $region56
        $region55: #{tpu_custom_call.1} parent=43 // pred_region
          %295 = dma.done [#allocation7], 1024
        $region56: #{tpu_custom_call.1} parent=43 // pred_fallthru
          _
        // Predicated region
        $region57: #{tpu_custom_call.1} parent=43 // pred_check
          %p296 = pneg %p109
        $region58: #{tpu_custom_call.1} parent=43 // pred_check_branch
          %298 = sbr.rel (%p296) target = $region60
        $region59: #{tpu_custom_call.1} parent=43 // pred_region
          %299 = dma.done [#allocation10], 1024
        $region60: #{tpu_custom_call.1} parent=43 // pred_fallthru
          _
        // Predicated region
        $region61: #{tpu_custom_call.1} parent=43 // pred_check
          %p300 = pneg %p130
        $region62: #{tpu_custom_call.1} parent=43 // pred_check_branch
          %302 = sbr.rel (%p300) target = $region64
        $region63: #{tpu_custom_call.1} parent=43 // pred_region
          %303 = dma.done [#allocation10], 1024
        $region64: #{tpu_custom_call.1} parent=43 // pred_fallthru
          _
        %s304 = sand.u32 %s33, 1
        %s305 = scalar_lea.sflag [#allocation4], %s304
        %s306 = sand.u32 %s33, 1
        %s307 = smul.addr %s306, 512
        %s308 = scalar_lea.vmem [#allocation3], %s307
        %p309 = pneg %p46
        %p310 = pneg %p43
        %p311 = pneg %p67
        %p312 = pneg %p64
        %p313 = pneg %p88
        %p314 = pneg %p85
        %p315 = pneg %p109
        %p316 = pneg %p106
        %p317 = pneg %p130
        %p318 = pneg %p127
        %p319 = pneg %p151
        %p320 = pneg %p148
        %p321 = pneg %p177
        %p322 = pneg %p174
        %s323 = sand.u32 %s164, 1
        %s324 = scalar_lea.sflag [#allocation5], %s323
        %s325 = sand.u32 %s164, 1
        %s326 = smul.addr %s325, 512
        %s327 = scalar_lea.vmem [#allocation12], %s326
        %s328 = smul.u32 64, %s25
        %s329 = smul.u32 64, %s25
        %v331 = vld [vmem:[%s283] sm:$0xff]
        %v332 = vld [vmem:[%s283 + $0x8] sm:$0xff]
        %v333 = vld [vmem:[%s283 + $0x10] sm:$0xff]
        %v334 = vld [vmem:[%s283 + $0x18] sm:$0xff]
        %v335 = vld [vmem:[%s283 + $0x20] sm:$0xff]
        %v336 = vld [vmem:[%s283 + $0x28] sm:$0xff]
        %v337 = vld [vmem:[%s283 + $0x30] sm:$0xff]
        %v338 = vld [vmem:[%s283 + $0x38] sm:$0xff]
        %v339 = vld [vmem:[%s283 + $0x40] sm:$0xff]
        %v340 = vld [vmem:[%s283 + $0x48] sm:$0xff]
        %v341 = vld [vmem:[%s283 + $0x50] sm:$0xff]
        %v342 = vld [vmem:[%s283 + $0x58] sm:$0xff]
        %v343 = vld [vmem:[%s283 + $0x60] sm:$0xff]
        %v344 = vld [vmem:[%s283 + $0x68] sm:$0xff]
        %v345 = vld [vmem:[%s283 + $0x70] sm:$0xff]
        %v346 = vld [vmem:[%s283 + $0x78] sm:$0xff]
        %v347 = vld [vmem:[%s283 + $0x80] sm:$0xff]
        %v348 = vld [vmem:[%s283 + $0x88] sm:$0xff]
        %v349 = vld [vmem:[%s283 + $0x90] sm:$0xff]
        %v350 = vld [vmem:[%s283 + $0x98] sm:$0xff]
        %v351 = vld [vmem:[%s283 + $0xa0] sm:$0xff]
        %v352 = vld [vmem:[%s283 + $0xa8] sm:$0xff]
        %v353 = vld [vmem:[%s283 + $0xb0] sm:$0xff]
        %v354 = vld [vmem:[%s283 + $0xb8] sm:$0xff]
        %v355 = vld [vmem:[%s283 + $0xc0] sm:$0xff]
        %v356 = vld [vmem:[%s283 + $0xc8] sm:$0xff]
        %v357 = vld [vmem:[%s283 + $0xd0] sm:$0xff]
        %v358 = vld [vmem:[%s283 + $0xd8] sm:$0xff]
        %v359 = vld [vmem:[%s283 + $0xe0] sm:$0xff]
        %v360 = vld [vmem:[%s283 + $0xe8] sm:$0xff]
        %v361 = vld [vmem:[%s283 + $0xf0] sm:$0xff]
        %v362 = vld [vmem:[%s283 + $0xf8] sm:$0xff]
        %v363 = vld [vmem:[%s283 + $0x100] sm:$0xff]
        %v364 = vld [vmem:[%s283 + $0x108] sm:$0xff]
        %v365 = vld [vmem:[%s283 + $0x110] sm:$0xff]
        %v366 = vld [vmem:[%s283 + $0x118] sm:$0xff]
        %v367 = vld [vmem:[%s283 + $0x120] sm:$0xff]
        %v368 = vld [vmem:[%s283 + $0x128] sm:$0xff]
        %v369 = vld [vmem:[%s283 + $0x130] sm:$0xff]
        %v370 = vld [vmem:[%s283 + $0x138] sm:$0xff]
        %v371 = vld [vmem:[%s283 + $0x140] sm:$0xff]
        %v372 = vld [vmem:[%s283 + $0x148] sm:$0xff]
        %v373 = vld [vmem:[%s283 + $0x150] sm:$0xff]
        %v374 = vld [vmem:[%s283 + $0x158] sm:$0xff]
        %v375 = vld [vmem:[%s283 + $0x160] sm:$0xff]
        %v376 = vld [vmem:[%s283 + $0x168] sm:$0xff]
        %v377 = vld [vmem:[%s283 + $0x170] sm:$0xff]
        %v378 = vld [vmem:[%s283 + $0x178] sm:$0xff]
        %v379 = vld [vmem:[%s283 + $0x180] sm:$0xff]
        %v380 = vld [vmem:[%s283 + $0x188] sm:$0xff]
        %v381 = vld [vmem:[%s283 + $0x190] sm:$0xff]
        %v382 = vld [vmem:[%s283 + $0x198] sm:$0xff]
        %v383 = vld [vmem:[%s283 + $0x1a0] sm:$0xff]
        %v384 = vld [vmem:[%s283 + $0x1a8] sm:$0xff]
        %v385 = vld [vmem:[%s283 + $0x1b0] sm:$0xff]
        %v386 = vld [vmem:[%s283 + $0x1b8] sm:$0xff]
        %v387 = vld [vmem:[%s283 + $0x1c0] sm:$0xff]
        %v388 = vld [vmem:[%s283 + $0x1c8] sm:$0xff]
        %v389 = vld [vmem:[%s283 + $0x1d0] sm:$0xff]
        %v390 = vld [vmem:[%s283 + $0x1d8] sm:$0xff]
        %v391 = vld [vmem:[%s283 + $0x1e0] sm:$0xff]
        %v392 = vld [vmem:[%s283 + $0x1e8] sm:$0xff]
        %v393 = vld [vmem:[%s283 + $0x1f0] sm:$0xff]
        %v394 = vld [vmem:[%s283 + $0x1f8] sm:$0xff]
        %v395 = vcvt.f32.s32.to.zero.pseudo %v331
        %v396 = vcvt.f32.s32.to.zero.pseudo %v332
        %v397 = vcvt.f32.s32.to.zero.pseudo %v333
        %v398 = vcvt.f32.s32.to.zero.pseudo %v334
        %v399 = vcvt.f32.s32.to.zero.pseudo %v335
        %v400 = vcvt.f32.s32.to.zero.pseudo %v336
        %v401 = vcvt.f32.s32.to.zero.pseudo %v337
        %v402 = vcvt.f32.s32.to.zero.pseudo %v338
        %v403 = vcvt.f32.s32.to.zero.pseudo %v339
        %v404 = vcvt.f32.s32.to.zero.pseudo %v340
        %v405 = vcvt.f32.s32.to.zero.pseudo %v341
        %v406 = vcvt.f32.s32.to.zero.pseudo %v342
        %v407 = vcvt.f32.s32.to.zero.pseudo %v343
        %v408 = vcvt.f32.s32.to.zero.pseudo %v344
        %v409 = vcvt.f32.s32.to.zero.pseudo %v345
        %v410 = vcvt.f32.s32.to.zero.pseudo %v346
        %v411 = vcvt.f32.s32.to.zero.pseudo %v347
        %v412 = vcvt.f32.s32.to.zero.pseudo %v348
        %v413 = vcvt.f32.s32.to.zero.pseudo %v349
        %v414 = vcvt.f32.s32.to.zero.pseudo %v350
        %v415 = vcvt.f32.s32.to.zero.pseudo %v351
        %v416 = vcvt.f32.s32.to.zero.pseudo %v352
        %v417 = vcvt.f32.s32.to.zero.pseudo %v353
        %v418 = vcvt.f32.s32.to.zero.pseudo %v354
        %v419 = vcvt.f32.s32.to.zero.pseudo %v355
        %v420 = vcvt.f32.s32.to.zero.pseudo %v356
        %v421 = vcvt.f32.s32.to.zero.pseudo %v357
        %v422 = vcvt.f32.s32.to.zero.pseudo %v358
        %v423 = vcvt.f32.s32.to.zero.pseudo %v359
        %v424 = vcvt.f32.s32.to.zero.pseudo %v360
        %v425 = vcvt.f32.s32.to.zero.pseudo %v361
        %v426 = vcvt.f32.s32.to.zero.pseudo %v362
        %v427 = vcvt.f32.s32.to.zero.pseudo %v363
        %v428 = vcvt.f32.s32.to.zero.pseudo %v364
        %v429 = vcvt.f32.s32.to.zero.pseudo %v365
        %v430 = vcvt.f32.s32.to.zero.pseudo %v366
        %v431 = vcvt.f32.s32.to.zero.pseudo %v367
        %v432 = vcvt.f32.s32.to.zero.pseudo %v368
        %v433 = vcvt.f32.s32.to.zero.pseudo %v369
        %v434 = vcvt.f32.s32.to.zero.pseudo %v370
        %v435 = vcvt.f32.s32.to.zero.pseudo %v371
        %v436 = vcvt.f32.s32.to.zero.pseudo %v372
        %v437 = vcvt.f32.s32.to.zero.pseudo %v373
        %v438 = vcvt.f32.s32.to.zero.pseudo %v374
        %v439 = vcvt.f32.s32.to.zero.pseudo %v375
        %v440 = vcvt.f32.s32.to.zero.pseudo %v376
        %v441 = vcvt.f32.s32.to.zero.pseudo %v377
        %v442 = vcvt.f32.s32.to.zero.pseudo %v378
        %v443 = vcvt.f32.s32.to.zero.pseudo %v379
        %v444 = vcvt.f32.s32.to.zero.pseudo %v380
        %v445 = vcvt.f32.s32.to.zero.pseudo %v381
        %v446 = vcvt.f32.s32.to.zero.pseudo %v382
        %v447 = vcvt.f32.s32.to.zero.pseudo %v383
        %v448 = vcvt.f32.s32.to.zero.pseudo %v384
        %v449 = vcvt.f32.s32.to.zero.pseudo %v385
        %v450 = vcvt.f32.s32.to.zero.pseudo %v386
        %v451 = vcvt.f32.s32.to.zero.pseudo %v387
        %v452 = vcvt.f32.s32.to.zero.pseudo %v388
        %v453 = vcvt.f32.s32.to.zero.pseudo %v389
        %v454 = vcvt.f32.s32.to.zero.pseudo %v390
        %v455 = vcvt.f32.s32.to.zero.pseudo %v391
        %v456 = vcvt.f32.s32.to.zero.pseudo %v392
        %v457 = vcvt.f32.s32.to.zero.pseudo %v393
        %v458 = vcvt.f32.s32.to.zero.pseudo %v394
        %v459 = vlaneseq
        %v460 = vand.u32 %v459, 127
        %461 = vset.pattern.permute.xlu0 16
        %462 = vperm.xlu0 %461, %v395
        %v463 = vpop.permute.xlu0 %462
        %464 = vset.pattern.permute.xlu0 16
        %465 = vperm.xlu0 %464, %v396
        %v466 = vpop.permute.xlu0 %465
        %467 = vset.pattern.permute.xlu0 16
        %468 = vperm.xlu0 %467, %v397
        %v469 = vpop.permute.xlu0 %468
        %470 = vset.pattern.permute.xlu0 16
        %471 = vperm.xlu0 %470, %v398
        %v472 = vpop.permute.xlu0 %471
        %473 = vset.pattern.permute.xlu0 16
        %474 = vperm.xlu0 %473, %v399
        %v475 = vpop.permute.xlu0 %474
        %476 = vset.pattern.permute.xlu0 16
        %477 = vperm.xlu0 %476, %v400
        %v478 = vpop.permute.xlu0 %477
        %479 = vset.pattern.permute.xlu0 16
        %480 = vperm.xlu0 %479, %v401
        %v481 = vpop.permute.xlu0 %480
        %482 = vset.pattern.permute.xlu0 16
        %483 = vperm.xlu0 %482, %v402
        %v484 = vpop.permute.xlu0 %483
        %485 = vset.pattern.permute.xlu0 16
        %486 = vperm.xlu0 %485, %v403
        %v487 = vpop.permute.xlu0 %486
        %488 = vset.pattern.permute.xlu0 16
        %489 = vperm.xlu0 %488, %v404
        %v490 = vpop.permute.xlu0 %489
        %491 = vset.pattern.permute.xlu0 16
        %492 = vperm.xlu0 %491, %v405
        %v493 = vpop.permute.xlu0 %492
        %494 = vset.pattern.permute.xlu0 16
        %495 = vperm.xlu0 %494, %v406
        %v496 = vpop.permute.xlu0 %495
        %497 = vset.pattern.permute.xlu0 16
        %498 = vperm.xlu0 %497, %v407
        %v499 = vpop.permute.xlu0 %498
        %500 = vset.pattern.permute.xlu0 16
        %501 = vperm.xlu0 %500, %v408
        %v502 = vpop.permute.xlu0 %501
        %503 = vset.pattern.permute.xlu0 16
        %504 = vperm.xlu0 %503, %v409
        %v505 = vpop.permute.xlu0 %504
        %506 = vset.pattern.permute.xlu0 16
        %507 = vperm.xlu0 %506, %v410
        %v508 = vpop.permute.xlu0 %507
        %509 = vset.pattern.permute.xlu0 16
        %510 = vperm.xlu0 %509, %v411
        %v511 = vpop.permute.xlu0 %510
        %512 = vset.pattern.permute.xlu0 16
        %513 = vperm.xlu0 %512, %v412
        %v514 = vpop.permute.xlu0 %513
        %515 = vset.pattern.permute.xlu0 16
        %516 = vperm.xlu0 %515, %v413
        %v517 = vpop.permute.xlu0 %516
        %518 = vset.pattern.permute.xlu0 16
        %519 = vperm.xlu0 %518, %v414
        %v520 = vpop.permute.xlu0 %519
        %521 = vset.pattern.permute.xlu0 16
        %522 = vperm.xlu0 %521, %v415
        %v523 = vpop.permute.xlu0 %522
        %524 = vset.pattern.permute.xlu0 16
        %525 = vperm.xlu0 %524, %v416
        %v526 = vpop.permute.xlu0 %525
        %527 = vset.pattern.permute.xlu0 16
        %528 = vperm.xlu0 %527, %v417
        %v529 = vpop.permute.xlu0 %528
        %530 = vset.pattern.permute.xlu0 16
        %531 = vperm.xlu0 %530, %v418
        %v532 = vpop.permute.xlu0 %531
        %533 = vset.pattern.permute.xlu0 16
        %534 = vperm.xlu0 %533, %v419
        %v535 = vpop.permute.xlu0 %534
        %536 = vset.pattern.permute.xlu0 16
        %537 = vperm.xlu0 %536, %v420
        %v538 = vpop.permute.xlu0 %537
        %539 = vset.pattern.permute.xlu0 16
        %540 = vperm.xlu0 %539, %v421
        %v541 = vpop.permute.xlu0 %540
        %542 = vset.pattern.permute.xlu0 16
        %543 = vperm.xlu0 %542, %v422
        %v544 = vpop.permute.xlu0 %543
        %545 = vset.pattern.permute.xlu0 16
        %546 = vperm.xlu0 %545, %v423
        %v547 = vpop.permute.xlu0 %546
        %548 = vset.pattern.permute.xlu0 16
        %549 = vperm.xlu0 %548, %v424
        %v550 = vpop.permute.xlu0 %549
        %551 = vset.pattern.permute.xlu0 16
        %552 = vperm.xlu0 %551, %v425
        %v553 = vpop.permute.xlu0 %552
        %554 = vset.pattern.permute.xlu0 16
        %555 = vperm.xlu0 %554, %v426
        %v556 = vpop.permute.xlu0 %555
        %557 = vset.pattern.permute.xlu0 16
        %558 = vperm.xlu0 %557, %v427
        %v559 = vpop.permute.xlu0 %558
        %560 = vset.pattern.permute.xlu0 16
        %561 = vperm.xlu0 %560, %v428
        %v562 = vpop.permute.xlu0 %561
        %563 = vset.pattern.permute.xlu0 16
        %564 = vperm.xlu0 %563, %v429
        %v565 = vpop.permute.xlu0 %564
        %566 = vset.pattern.permute.xlu0 16
        %567 = vperm.xlu0 %566, %v430
        %v568 = vpop.permute.xlu0 %567
        %569 = vset.pattern.permute.xlu0 16
        %570 = vperm.xlu0 %569, %v431
        %v571 = vpop.permute.xlu0 %570
        %572 = vset.pattern.permute.xlu0 16
        %573 = vperm.xlu0 %572, %v432
        %v574 = vpop.permute.xlu0 %573
        %575 = vset.pattern.permute.xlu0 16
        %576 = vperm.xlu0 %575, %v433
        %v577 = vpop.permute.xlu0 %576
        %578 = vset.pattern.permute.xlu0 16
        %579 = vperm.xlu0 %578, %v434
        %v580 = vpop.permute.xlu0 %579
        %581 = vset.pattern.permute.xlu0 16
        %582 = vperm.xlu0 %581, %v435
        %v583 = vpop.permute.xlu0 %582
        %584 = vset.pattern.permute.xlu0 16
        %585 = vperm.xlu0 %584, %v436
        %v586 = vpop.permute.xlu0 %585
        %587 = vset.pattern.permute.xlu0 16
        %588 = vperm.xlu0 %587, %v437
        %v589 = vpop.permute.xlu0 %588
        %590 = vset.pattern.permute.xlu0 16
        %591 = vperm.xlu0 %590, %v438
        %v592 = vpop.permute.xlu0 %591
        %593 = vset.pattern.permute.xlu0 16
        %594 = vperm.xlu0 %593, %v439
        %v595 = vpop.permute.xlu0 %594
        %596 = vset.pattern.permute.xlu0 16
        %597 = vperm.xlu0 %596, %v440
        %v598 = vpop.permute.xlu0 %597
        %599 = vset.pattern.permute.xlu0 16
        %600 = vperm.xlu0 %599, %v441
        %v601 = vpop.permute.xlu0 %600
        %602 = vset.pattern.permute.xlu0 16
        %603 = vperm.xlu0 %602, %v442
        %v604 = vpop.permute.xlu0 %603
        %605 = vset.pattern.permute.xlu0 16
        %606 = vperm.xlu0 %605, %v443
        %v607 = vpop.permute.xlu0 %606
        %608 = vset.pattern.permute.xlu0 16
        %609 = vperm.xlu0 %608, %v444
        %v610 = vpop.permute.xlu0 %609
        %611 = vset.pattern.permute.xlu0 16
        %612 = vperm.xlu0 %611, %v445
        %v613 = vpop.permute.xlu0 %612
        %614 = vset.pattern.permute.xlu0 16
        %615 = vperm.xlu0 %614, %v446
        %v616 = vpop.permute.xlu0 %615
        %617 = vset.pattern.permute.xlu0 16
        %618 = vperm.xlu0 %617, %v447
        %v619 = vpop.permute.xlu0 %618
        %620 = vset.pattern.permute.xlu0 16
        %621 = vperm.xlu0 %620, %v448
        %v622 = vpop.permute.xlu0 %621
        %623 = vset.pattern.permute.xlu0 16
        %624 = vperm.xlu0 %623, %v449
        %v625 = vpop.permute.xlu0 %624
        %626 = vset.pattern.permute.xlu0 16
        %627 = vperm.xlu0 %626, %v450
        %v628 = vpop.permute.xlu0 %627
        %629 = vset.pattern.permute.xlu0 16
        %630 = vperm.xlu0 %629, %v451
        %v631 = vpop.permute.xlu0 %630
        %632 = vset.pattern.permute.xlu0 16
        %633 = vperm.xlu0 %632, %v452
        %v634 = vpop.permute.xlu0 %633
        %635 = vset.pattern.permute.xlu0 16
        %636 = vperm.xlu0 %635, %v453
        %v637 = vpop.permute.xlu0 %636
        %638 = vset.pattern.permute.xlu0 16
        %639 = vperm.xlu0 %638, %v454
        %v640 = vpop.permute.xlu0 %639
        %641 = vset.pattern.permute.xlu0 16
        %642 = vperm.xlu0 %641, %v455
        %v643 = vpop.permute.xlu0 %642
        %644 = vset.pattern.permute.xlu0 16
        %645 = vperm.xlu0 %644, %v456
        %v646 = vpop.permute.xlu0 %645
        %647 = vset.pattern.permute.xlu0 16
        %648 = vperm.xlu0 %647, %v457
        %v649 = vpop.permute.xlu0 %648
        %650 = vset.pattern.permute.xlu0 16
        %651 = vperm.xlu0 %650, %v458
        %v652 = vpop.permute.xlu0 %651
        %vm653 = vcmp.eq.s32.totalorder %v460, %v463
        %vm654 = vcmp.eq.s32.totalorder %v460, %v466
        %vm655 = vcmp.eq.s32.totalorder %v460, %v469
        %vm656 = vcmp.eq.s32.totalorder %v460, %v472
        %vm657 = vcmp.eq.s32.totalorder %v460, %v475
        %vm658 = vcmp.eq.s32.totalorder %v460, %v478
        %vm659 = vcmp.eq.s32.totalorder %v460, %v481
        %vm660 = vcmp.eq.s32.totalorder %v460, %v484
        %vm661 = vcmp.eq.s32.totalorder %v460, %v487
        %vm662 = vcmp.eq.s32.totalorder %v460, %v490
        %vm663 = vcmp.eq.s32.totalorder %v460, %v493
        %vm664 = vcmp.eq.s32.totalorder %v460, %v496
        %vm665 = vcmp.eq.s32.totalorder %v460, %v499
        %vm666 = vcmp.eq.s32.totalorder %v460, %v502
        %vm667 = vcmp.eq.s32.totalorder %v460, %v505
        %vm668 = vcmp.eq.s32.totalorder %v460, %v508
        %vm669 = vcmp.eq.s32.totalorder %v460, %v511
        %vm670 = vcmp.eq.s32.totalorder %v460, %v514
        %vm671 = vcmp.eq.s32.totalorder %v460, %v517
        %vm672 = vcmp.eq.s32.totalorder %v460, %v520
        %vm673 = vcmp.eq.s32.totalorder %v460, %v523
        %vm674 = vcmp.eq.s32.totalorder %v460, %v526
        %vm675 = vcmp.eq.s32.totalorder %v460, %v529
        %vm676 = vcmp.eq.s32.totalorder %v460, %v532
        %vm677 = vcmp.eq.s32.totalorder %v460, %v535
        %vm678 = vcmp.eq.s32.totalorder %v460, %v538
        %vm679 = vcmp.eq.s32.totalorder %v460, %v541
        %vm680 = vcmp.eq.s32.totalorder %v460, %v544
        %vm681 = vcmp.eq.s32.totalorder %v460, %v547
        %vm682 = vcmp.eq.s32.totalorder %v460, %v550
        %vm683 = vcmp.eq.s32.totalorder %v460, %v553
        %vm684 = vcmp.eq.s32.totalorder %v460, %v556
        %vm685 = vcmp.eq.s32.totalorder %v460, %v559
        %vm686 = vcmp.eq.s32.totalorder %v460, %v562
        %vm687 = vcmp.eq.s32.totalorder %v460, %v565
        %vm688 = vcmp.eq.s32.totalorder %v460, %v568
        %vm689 = vcmp.eq.s32.totalorder %v460, %v571
        %vm690 = vcmp.eq.s32.totalorder %v460, %v574
        %vm691 = vcmp.eq.s32.totalorder %v460, %v577
        %vm692 = vcmp.eq.s32.totalorder %v460, %v580
        %vm693 = vcmp.eq.s32.totalorder %v460, %v583
        %vm694 = vcmp.eq.s32.totalorder %v460, %v586
        %vm695 = vcmp.eq.s32.totalorder %v460, %v589
        %vm696 = vcmp.eq.s32.totalorder %v460, %v592
        %vm697 = vcmp.eq.s32.totalorder %v460, %v595
        %vm698 = vcmp.eq.s32.totalorder %v460, %v598
        %vm699 = vcmp.eq.s32.totalorder %v460, %v601
        %vm700 = vcmp.eq.s32.totalorder %v460, %v604
        %vm701 = vcmp.eq.s32.totalorder %v460, %v607
        %vm702 = vcmp.eq.s32.totalorder %v460, %v610
        %vm703 = vcmp.eq.s32.totalorder %v460, %v613
        %vm704 = vcmp.eq.s32.totalorder %v460, %v616
        %vm705 = vcmp.eq.s32.totalorder %v460, %v619
        %vm706 = vcmp.eq.s32.totalorder %v460, %v622
        %vm707 = vcmp.eq.s32.totalorder %v460, %v625
        %vm708 = vcmp.eq.s32.totalorder %v460, %v628
        %vm709 = vcmp.eq.s32.totalorder %v460, %v631
        %vm710 = vcmp.eq.s32.totalorder %v460, %v634
        %vm711 = vcmp.eq.s32.totalorder %v460, %v637
        %vm712 = vcmp.eq.s32.totalorder %v460, %v640
        %vm713 = vcmp.eq.s32.totalorder %v460, %v643
        %vm714 = vcmp.eq.s32.totalorder %v460, %v646
        %vm715 = vcmp.eq.s32.totalorder %v460, %v649
        %vm716 = vcmp.eq.s32.totalorder %v460, %v652
        %v717 = vsel %vm653, 1, 0
        %v718 = vsel %vm654, 1, 0
        %v719 = vsel %vm655, 1, 0
        %v720 = vsel %vm656, 1, 0
        %v721 = vsel %vm657, 1, 0
        %v722 = vsel %vm658, 1, 0
        %v723 = vsel %vm659, 1, 0
        %v724 = vsel %vm660, 1, 0
        %v725 = vsel %vm661, 1, 0
        %v726 = vsel %vm662, 1, 0
        %v727 = vsel %vm663, 1, 0
        %v728 = vsel %vm664, 1, 0
        %v729 = vsel %vm665, 1, 0
        %v730 = vsel %vm666, 1, 0
        %v731 = vsel %vm667, 1, 0
        %v732 = vsel %vm668, 1, 0
        %v733 = vsel %vm669, 1, 0
        %v734 = vsel %vm670, 1, 0
        %v735 = vsel %vm671, 1, 0
        %v736 = vsel %vm672, 1, 0
        %v737 = vsel %vm673, 1, 0
        %v738 = vsel %vm674, 1, 0
        %v739 = vsel %vm675, 1, 0
        %v740 = vsel %vm676, 1, 0
        %v741 = vsel %vm677, 1, 0
        %v742 = vsel %vm678, 1, 0
        %v743 = vsel %vm679, 1, 0
        %v744 = vsel %vm680, 1, 0
        %v745 = vsel %vm681, 1, 0
        %v746 = vsel %vm682, 1, 0
        %v747 = vsel %vm683, 1, 0
        %v748 = vsel %vm684, 1, 0
        %v749 = vsel %vm685, 1, 0
        %v750 = vsel %vm686, 1, 0
        %v751 = vsel %vm687, 1, 0
        %v752 = vsel %vm688, 1, 0
        %v753 = vsel %vm689, 1, 0
        %v754 = vsel %vm690, 1, 0
        %v755 = vsel %vm691, 1, 0
        %v756 = vsel %vm692, 1, 0
        %v757 = vsel %vm693, 1, 0
        %v758 = vsel %vm694, 1, 0
        %v759 = vsel %vm695, 1, 0
        %v760 = vsel %vm696, 1, 0
        %v761 = vsel %vm697, 1, 0
        %v762 = vsel %vm698, 1, 0
        %v763 = vsel %vm699, 1, 0
        %v764 = vsel %vm700, 1, 0
        %v765 = vsel %vm701, 1, 0
        %v766 = vsel %vm702, 1, 0
        %v767 = vsel %vm703, 1, 0
        %v768 = vsel %vm704, 1, 0
        %v769 = vsel %vm705, 1, 0
        %v770 = vsel %vm706, 1, 0
        %v771 = vsel %vm707, 1, 0
        %v772 = vsel %vm708, 1, 0
        %v773 = vsel %vm709, 1, 0
        %v774 = vsel %vm710, 1, 0
        %v775 = vsel %vm711, 1, 0
        %v776 = vsel %vm712, 1, 0
        %v777 = vsel %vm713, 1, 0
        %v778 = vsel %vm714, 1, 0
        %v779 = vsel %vm715, 1, 0
        %v780 = vsel %vm716, 1, 0
        %v781 = vcvt.s32.f32 %v717
        %v782 = vcvt.s32.f32 %v718
        %v783 = vcvt.s32.f32 %v719
        %v784 = vcvt.s32.f32 %v720
        %v785 = vcvt.s32.f32 %v721
        %v786 = vcvt.s32.f32 %v722
        %v787 = vcvt.s32.f32 %v723
        %v788 = vcvt.s32.f32 %v724
        %v789 = vcvt.s32.f32 %v725
        %v790 = vcvt.s32.f32 %v726
        %v791 = vcvt.s32.f32 %v727
        %v792 = vcvt.s32.f32 %v728
        %v793 = vcvt.s32.f32 %v729
        %v794 = vcvt.s32.f32 %v730
        %v795 = vcvt.s32.f32 %v731
        %v796 = vcvt.s32.f32 %v732
        %v797 = vcvt.s32.f32 %v733
        %v798 = vcvt.s32.f32 %v734
        %v799 = vcvt.s32.f32 %v735
        %v800 = vcvt.s32.f32 %v736
        %v801 = vcvt.s32.f32 %v737
        %v802 = vcvt.s32.f32 %v738
        %v803 = vcvt.s32.f32 %v739
        %v804 = vcvt.s32.f32 %v740
        %v805 = vcvt.s32.f32 %v741
        %v806 = vcvt.s32.f32 %v742
        %v807 = vcvt.s32.f32 %v743
        %v808 = vcvt.s32.f32 %v744
        %v809 = vcvt.s32.f32 %v745
        %v810 = vcvt.s32.f32 %v746
        %v811 = vcvt.s32.f32 %v747
        %v812 = vcvt.s32.f32 %v748
        %v813 = vcvt.s32.f32 %v749
        %v814 = vcvt.s32.f32 %v750
        %v815 = vcvt.s32.f32 %v751
        %v816 = vcvt.s32.f32 %v752
        %v817 = vcvt.s32.f32 %v753
        %v818 = vcvt.s32.f32 %v754
        %v819 = vcvt.s32.f32 %v755
        %v820 = vcvt.s32.f32 %v756
        %v821 = vcvt.s32.f32 %v757
        %v822 = vcvt.s32.f32 %v758
        %v823 = vcvt.s32.f32 %v759
        %v824 = vcvt.s32.f32 %v760
        %v825 = vcvt.s32.f32 %v761
        %v826 = vcvt.s32.f32 %v762
        %v827 = vcvt.s32.f32 %v763
        %v828 = vcvt.s32.f32 %v764
        %v829 = vcvt.s32.f32 %v765
        %v830 = vcvt.s32.f32 %v766
        %v831 = vcvt.s32.f32 %v767
        %v832 = vcvt.s32.f32 %v768
        %v833 = vcvt.s32.f32 %v769
        %v834 = vcvt.s32.f32 %v770
        %v835 = vcvt.s32.f32 %v771
        %v836 = vcvt.s32.f32 %v772
        %v837 = vcvt.s32.f32 %v773
        %v838 = vcvt.s32.f32 %v774
        %v839 = vcvt.s32.f32 %v775
        %v840 = vcvt.s32.f32 %v776
        %v841 = vcvt.s32.f32 %v777
        %v842 = vcvt.s32.f32 %v778
        %v843 = vcvt.s32.f32 %v779
        %v844 = vcvt.s32.f32 %v780
        %v845 = vpack.c.bf16 %v782, %v781
        %v846 = vpack.c.bf16 %v784, %v783
        %v847 = vpack.c.bf16 %v786, %v785
        %v848 = vpack.c.bf16 %v788, %v787
        %v849 = vpack.c.bf16 %v790, %v789
        %v850 = vpack.c.bf16 %v792, %v791
        %v851 = vpack.c.bf16 %v794, %v793
        %v852 = vpack.c.bf16 %v796, %v795
        %v853 = vpack.c.bf16 %v798, %v797
        %v854 = vpack.c.bf16 %v800, %v799
        %v855 = vpack.c.bf16 %v802, %v801
        %v856 = vpack.c.bf16 %v804, %v803
        %v857 = vpack.c.bf16 %v806, %v805
        %v858 = vpack.c.bf16 %v808, %v807
        %v859 = vpack.c.bf16 %v810, %v809
        %v860 = vpack.c.bf16 %v812, %v811
        %v861 = vpack.c.bf16 %v814, %v813
        %v862 = vpack.c.bf16 %v816, %v815
        %v863 = vpack.c.bf16 %v818, %v817
        %v864 = vpack.c.bf16 %v820, %v819
        %v865 = vpack.c.bf16 %v822, %v821
        %v866 = vpack.c.bf16 %v824, %v823
        %v867 = vpack.c.bf16 %v826, %v825
        %v868 = vpack.c.bf16 %v828, %v827
        %v869 = vpack.c.bf16 %v830, %v829
        %v870 = vpack.c.bf16 %v832, %v831
        %v871 = vpack.c.bf16 %v834, %v833
        %v872 = vpack.c.bf16 %v836, %v835
        %v873 = vpack.c.bf16 %v838, %v837
        %v874 = vpack.c.bf16 %v840, %v839
        %v875 = vpack.c.bf16 %v842, %v841
        %v876 = vpack.c.bf16 %v844, %v843
        %v877 = vpack.c.bf16 %v332, %v331
        %v878 = vpack.c.bf16 %v334, %v333
        %v879 = vpack.c.bf16 %v336, %v335
        %v880 = vpack.c.bf16 %v338, %v337
        %v881 = vpack.c.bf16 %v340, %v339
        %v882 = vpack.c.bf16 %v342, %v341
        %v883 = vpack.c.bf16 %v344, %v343
        %v884 = vpack.c.bf16 %v346, %v345
        %v885 = vpack.c.bf16 %v348, %v347
        %v886 = vpack.c.bf16 %v350, %v349
        %v887 = vpack.c.bf16 %v352, %v351
        %v888 = vpack.c.bf16 %v354, %v353
        %v889 = vpack.c.bf16 %v356, %v355
        %v890 = vpack.c.bf16 %v358, %v357
        %v891 = vpack.c.bf16 %v360, %v359
        %v892 = vpack.c.bf16 %v362, %v361
        %v893 = vpack.c.bf16 %v364, %v363
        %v894 = vpack.c.bf16 %v366, %v365
        %v895 = vpack.c.bf16 %v368, %v367
        %v896 = vpack.c.bf16 %v370, %v369
        %v897 = vpack.c.bf16 %v372, %v371
        %v898 = vpack.c.bf16 %v374, %v373
        %v899 = vpack.c.bf16 %v376, %v375
        %v900 = vpack.c.bf16 %v378, %v377
        %v901 = vpack.c.bf16 %v380, %v379
        %v902 = vpack.c.bf16 %v382, %v381
        %v903 = vpack.c.bf16 %v384, %v383
        %v904 = vpack.c.bf16 %v386, %v385
        %v905 = vpack.c.bf16 %v388, %v387
        %v906 = vpack.c.bf16 %v390, %v389
        %v907 = vpack.c.bf16 %v392, %v391
        %v908 = vpack.c.bf16 %v394, %v393
        %v909 = vld [vmem:[#allocation6] sm:$0xff]
        %v910 = vld [vmem:[#allocation6 + $0x8] sm:$0xf]
        %v911 = vld [vmem:[#allocation6 + $0xc] sm:$0xff]
        %v912 = vld [vmem:[#allocation6 + $0x14] sm:$0xf]
        %v913 = vld [vmem:[#allocation6 + $0x18] sm:$0xff]
        %v914 = vld [vmem:[#allocation6 + $0x20] sm:$0xf]
        %v915 = vld [vmem:[#allocation6 + $0x24] sm:$0xff]
        %v916 = vld [vmem:[#allocation6 + $0x2c] sm:$0xf]
        %v917 = vld [vmem:[#allocation6 + $0x30] sm:$0xff]
        %v918 = vld [vmem:[#allocation6 + $0x38] sm:$0xf]
        %v919 = vld [vmem:[#allocation6 + $0x3c] sm:$0xff]
        %v920 = vld [vmem:[#allocation6 + $0x44] sm:$0xf]
        %v921 = vld [vmem:[#allocation6 + $0x48] sm:$0xff]
        %v922 = vld [vmem:[#allocation6 + $0x50] sm:$0xf]
        %v923 = vld [vmem:[#allocation6 + $0x54] sm:$0xff]
        %v924 = vld [vmem:[#allocation6 + $0x5c] sm:$0xf]
        %v925 = vld [vmem:[#allocation6 + $0x60] sm:$0xff]
        %v926 = vld [vmem:[#allocation6 + $0x68] sm:$0xf]
        %v927 = vld [vmem:[#allocation6 + $0x6c] sm:$0xff]
        %v928 = vld [vmem:[#allocation6 + $0x74] sm:$0xf]
        %v929 = vld [vmem:[#allocation6 + $0x78] sm:$0xff]
        %v930 = vld [vmem:[#allocation6 + $0x80] sm:$0xf]
        %v931 = vld [vmem:[#allocation6 + $0x84] sm:$0xff]
        %v932 = vld [vmem:[#allocation6 + $0x8c] sm:$0xf]
        %v933 = vld [vmem:[#allocation6 + $0x90] sm:$0xff]
        %v934 = vld [vmem:[#allocation6 + $0x98] sm:$0xf]
        %v935 = vld [vmem:[#allocation6 + $0x9c] sm:$0xff]
        %v936 = vld [vmem:[#allocation6 + $0xa4] sm:$0xf]
        %v937 = vld [vmem:[#allocation6 + $0xa8] sm:$0xff]
        %v938 = vld [vmem:[#allocation6 + $0xb0] sm:$0xf]
        %v939 = vld [vmem:[#allocation6 + $0xb4] sm:$0xff]
        %v940 = vld [vmem:[#allocation6 + $0xbc] sm:$0xf]
        %v941 = vld [vmem:[#allocation6 + $0xc0] sm:$0xff]
        %v942 = vld [vmem:[#allocation6 + $0xc8] sm:$0xf]
        %v943 = vld [vmem:[#allocation6 + $0xcc] sm:$0xff]
        %v944 = vld [vmem:[#allocation6 + $0xd4] sm:$0xf]
        %v945 = vld [vmem:[#allocation6 + $0xd8] sm:$0xff]
        %v946 = vld [vmem:[#allocation6 + $0xe0] sm:$0xf]
        %v947 = vld [vmem:[#allocation6 + $0xe4] sm:$0xff]
        %v948 = vld [vmem:[#allocation6 + $0xec] sm:$0xf]
        %v949 = vld [vmem:[#allocation6 + $0xf0] sm:$0xff]
        %v950 = vld [vmem:[#allocation6 + $0xf8] sm:$0xf]
        %v951 = vld [vmem:[#allocation6 + $0xfc] sm:$0xff]
        %v952 = vld [vmem:[#allocation6 + $0x104] sm:$0xf]
        %v953 = vld [vmem:[#allocation6 + $0x108] sm:$0xff]
        %v954 = vld [vmem:[#allocation6 + $0x110] sm:$0xf]
        %v955 = vld [vmem:[#allocation6 + $0x114] sm:$0xff]
        %v956 = vld [vmem:[#allocation6 + $0x11c] sm:$0xf]
        %v957 = vld [vmem:[#allocation6 + $0x120] sm:$0xff]
        %v958 = vld [vmem:[#allocation6 + $0x128] sm:$0xf]
        %v959 = vld [vmem:[#allocation6 + $0x12c] sm:$0xff]
        %v960 = vld [vmem:[#allocation6 + $0x134] sm:$0xf]
        %v961 = vld [vmem:[#allocation6 + $0x138] sm:$0xff]
        %v962 = vld [vmem:[#allocation6 + $0x140] sm:$0xf]
        %v963 = vld [vmem:[#allocation6 + $0x144] sm:$0xff]
        %v964 = vld [vmem:[#allocation6 + $0x14c] sm:$0xf]
        %v965 = vld [vmem:[#allocation6 + $0x150] sm:$0xff]
        %v966 = vld [vmem:[#allocation6 + $0x158] sm:$0xf]
        %v967 = vld [vmem:[#allocation6 + $0x15c] sm:$0xff]
        %v968 = vld [vmem:[#allocation6 + $0x164] sm:$0xf]
        %v969 = vld [vmem:[#allocation6 + $0x168] sm:$0xff]
        %v970 = vld [vmem:[#allocation6 + $0x170] sm:$0xf]
        %v971 = vld [vmem:[#allocation6 + $0x174] sm:$0xff]
        %v972 = vld [vmem:[#allocation6 + $0x17c] sm:$0xf]
        %v1037 = vunpack.c.l.b16 %v909
        %v1038 = vunpack.c.h.b16 %v909
        %v1039 = vunpack.c.l.b16 %v910
        %v1040 = vunpack.c.l.b16 %v911
        %v1041 = vunpack.c.h.b16 %v911
        %v1042 = vunpack.c.l.b16 %v912
        %v1043 = vunpack.c.l.b16 %v913
        %v1044 = vunpack.c.h.b16 %v913
        %v1045 = vunpack.c.l.b16 %v914
        %v1046 = vunpack.c.l.b16 %v915
        %v1047 = vunpack.c.h.b16 %v915
        %v1048 = vunpack.c.l.b16 %v916
        %v1049 = vunpack.c.l.b16 %v917
        %v1050 = vunpack.c.h.b16 %v917
        %v1051 = vunpack.c.l.b16 %v918
        %v1052 = vunpack.c.l.b16 %v919
        %v1053 = vunpack.c.h.b16 %v919
        %v1054 = vunpack.c.l.b16 %v920
        %v1055 = vunpack.c.l.b16 %v921
        %v1056 = vunpack.c.h.b16 %v921
        %v1057 = vunpack.c.l.b16 %v922
        %v1058 = vunpack.c.l.b16 %v923
        %v1059 = vunpack.c.h.b16 %v923
        %v1060 = vunpack.c.l.b16 %v924
        %v1061 = vunpack.c.l.b16 %v925
        %v1062 = vunpack.c.h.b16 %v925
        %v1063 = vunpack.c.l.b16 %v926
        %v1064 = vunpack.c.l.b16 %v927
        %v1065 = vunpack.c.h.b16 %v927
        %v1066 = vunpack.c.l.b16 %v928
        %v1067 = vunpack.c.l.b16 %v929
        %v1068 = vunpack.c.h.b16 %v929
        %v1069 = vunpack.c.l.b16 %v930
        %v1070 = vunpack.c.l.b16 %v931
        %v1071 = vunpack.c.h.b16 %v931
        %v1072 = vunpack.c.l.b16 %v932
        %v1073 = vunpack.c.l.b16 %v933
        %v1074 = vunpack.c.h.b16 %v933
        %v1075 = vunpack.c.l.b16 %v934
        %v1076 = vunpack.c.l.b16 %v935
        %v1077 = vunpack.c.h.b16 %v935
        %v1078 = vunpack.c.l.b16 %v936
        %v1079 = vunpack.c.l.b16 %v937
        %v1080 = vunpack.c.h.b16 %v937
        %v1081 = vunpack.c.l.b16 %v938
        %v1082 = vunpack.c.l.b16 %v939
        %v1083 = vunpack.c.h.b16 %v939
        %v1084 = vunpack.c.l.b16 %v940
        %v1085 = vunpack.c.l.b16 %v941
        %v1086 = vunpack.c.h.b16 %v941
        %v1087 = vunpack.c.l.b16 %v942
        %v1088 = vunpack.c.l.b16 %v943
        %v1089 = vunpack.c.h.b16 %v943
        %v1090 = vunpack.c.l.b16 %v944
        %v1091 = vunpack.c.l.b16 %v945
        %v1092 = vunpack.c.h.b16 %v945
        %v1093 = vunpack.c.l.b16 %v946
        %v1094 = vunpack.c.l.b16 %v947
        %v1095 = vunpack.c.h.b16 %v947
        %v1096 = vunpack.c.l.b16 %v948
        %v1097 = vunpack.c.l.b16 %v949
        %v1098 = vunpack.c.h.b16 %v949
        %v1099 = vunpack.c.l.b16 %v950
        %v1100 = vunpack.c.l.b16 %v951
        %v1101 = vunpack.c.h.b16 %v951
        %v1102 = vunpack.c.l.b16 %v952
        %v1103 = vunpack.c.l.b16 %v953
        %v1104 = vunpack.c.h.b16 %v953
        %v1105 = vunpack.c.l.b16 %v954
        %v1106 = vunpack.c.l.b16 %v955
        %v1107 = vunpack.c.h.b16 %v955
        %v1108 = vunpack.c.l.b16 %v956
        %v1109 = vunpack.c.l.b16 %v957
        %v1110 = vunpack.c.h.b16 %v957
        %v1111 = vunpack.c.l.b16 %v958
        %v1112 = vunpack.c.l.b16 %v959
        %v1113 = vunpack.c.h.b16 %v959
        %v1114 = vunpack.c.l.b16 %v960
        %v1115 = vunpack.c.l.b16 %v961
        %v1116 = vunpack.c.h.b16 %v961
        %v1117 = vunpack.c.l.b16 %v962
        %v1118 = vunpack.c.l.b16 %v963
        %v1119 = vunpack.c.h.b16 %v963
        %v1120 = vunpack.c.l.b16 %v964
        %v1121 = vunpack.c.l.b16 %v965
        %v1122 = vunpack.c.h.b16 %v965
        %v1123 = vunpack.c.l.b16 %v966
        %v1124 = vunpack.c.l.b16 %v967
        %v1125 = vunpack.c.h.b16 %v967
        %v1126 = vunpack.c.l.b16 %v968
        %v1127 = vunpack.c.l.b16 %v969
        %v1128 = vunpack.c.h.b16 %v969
        %v1129 = vunpack.c.l.b16 %v970
        %v1130 = vunpack.c.l.b16 %v971
        %v1131 = vunpack.c.h.b16 %v971
        %v1132 = vunpack.c.l.b16 %v972
        %v1133 = vpack.c.b16 %v1040, %v1037
        %v1134 = vpack.c.b16 %v1041, %v1038
        %v1135 = vpack.c.b16 %v1042, %v1039
        %v1136 = vpack.c.b16 %v1046, %v1043
        %v1137 = vpack.c.b16 %v1047, %v1044
        %v1138 = vpack.c.b16 %v1048, %v1045
        %v1139 = vpack.c.b16 %v1052, %v1049
        %v1140 = vpack.c.b16 %v1053, %v1050
        %v1141 = vpack.c.b16 %v1054, %v1051
        %v1142 = vpack.c.b16 %v1058, %v1055
        %v1143 = vpack.c.b16 %v1059, %v1056
        %v1144 = vpack.c.b16 %v1060, %v1057
        %v1145 = vpack.c.b16 %v1064, %v1061
        %v1146 = vpack.c.b16 %v1065, %v1062
        %v1147 = vpack.c.b16 %v1066, %v1063
        %v1148 = vpack.c.b16 %v1070, %v1067
        %v1149 = vpack.c.b16 %v1071, %v1068
        %v1150 = vpack.c.b16 %v1072, %v1069
        %v1151 = vpack.c.b16 %v1076, %v1073
        %v1152 = vpack.c.b16 %v1077, %v1074
        %v1153 = vpack.c.b16 %v1078, %v1075
        %v1154 = vpack.c.b16 %v1082, %v1079
        %v1155 = vpack.c.b16 %v1083, %v1080
        %v1156 = vpack.c.b16 %v1084, %v1081
        %v1157 = vpack.c.b16 %v1088, %v1085
        %v1158 = vpack.c.b16 %v1089, %v1086
        %v1159 = vpack.c.b16 %v1090, %v1087
        %v1160 = vpack.c.b16 %v1094, %v1091
        %v1161 = vpack.c.b16 %v1095, %v1092
        %v1162 = vpack.c.b16 %v1096, %v1093
        %v1163 = vpack.c.b16 %v1100, %v1097
        %v1164 = vpack.c.b16 %v1101, %v1098
        %v1165 = vpack.c.b16 %v1102, %v1099
        %v1166 = vpack.c.b16 %v1106, %v1103
        %v1167 = vpack.c.b16 %v1107, %v1104
        %v1168 = vpack.c.b16 %v1108, %v1105
        %v1169 = vpack.c.b16 %v1112, %v1109
        %v1170 = vpack.c.b16 %v1113, %v1110
        %v1171 = vpack.c.b16 %v1114, %v1111
        %v1172 = vpack.c.b16 %v1118, %v1115
        %v1173 = vpack.c.b16 %v1119, %v1116
        %v1174 = vpack.c.b16 %v1120, %v1117
        %v1175 = vpack.c.b16 %v1124, %v1121
        %v1176 = vpack.c.b16 %v1125, %v1122
        %v1177 = vpack.c.b16 %v1126, %v1123
        %v1178 = vpack.c.b16 %v1130, %v1127
        %v1179 = vpack.c.b16 %v1131, %v1128
        %v1180 = vpack.c.b16 %v1132, %v1129
        %1229 = vmatprep.subr.bf16.mxu0 %v1155
        %1230 = vmatpush1.bf16.msra.mxu0 %v1154
        %1231 = vmatprep.subr.bf16.mxu0 %v1152
        %1232 = vmatpush1.bf16.msra.mxu0 %v1151
        %1233 = vmatprep.subr.bf16.mxu0 %v1149
        %1234 = vmatpush1.bf16.msra.mxu0 %v1148
        %1235 = vmatprep.subr.bf16.mxu0 %v1146
        %1236 = vmatpush1.bf16.msra.mxu0 %v1145
        %1237 = vmatprep.subr.bf16.mxu0 %v1143
        %1238 = vmatpush1.bf16.msra.mxu0 %v1142
        %1239 = vmatprep.subr.bf16.mxu0 %v1140
        %1240 = vmatpush1.bf16.msra.mxu0 %v1139
        %1241 = vmatprep.subr.bf16.mxu0 %v1137
        %1242 = vmatpush1.bf16.msra.mxu0 %v1136
        %1243 = vmatprep.subr.bf16.mxu0 %v1134
        %1244 = vmatpush1.bf16.msra.mxu0 %v1133
        %1245 = vmatprep.subr.bf16.mxu0 %v1179
        %1246 = vmatpush2.bf16.msra.mxu0 %v1178
        %1247 = vmatprep.subr.bf16.mxu0 %v1176
        %1248 = vmatpush2.bf16.msra.mxu0 %v1175
        %1249 = vmatprep.subr.bf16.mxu0 %v1173
        %1250 = vmatpush2.bf16.msra.mxu0 %v1172
        %1251 = vmatprep.subr.bf16.mxu0 %v1170
        %1252 = vmatpush2.bf16.msra.mxu0 %v1169
        %1253 = vmatprep.subr.bf16.mxu0 %v1167
        %1254 = vmatpush2.bf16.msra.mxu0 %v1166
        %1255 = vmatprep.subr.bf16.mxu0 %v1164
        %1256 = vmatpush2.bf16.msra.mxu0 %v1163
        %1257 = vmatprep.subr.bf16.mxu0 %v1161
        %1258 = vmatpush2.bf16.msra.mxu0 %v1160
        %1259 = vmatprep.subr.bf16.mxu0 %v1158
        %1260 = vmatpush2.bf16.msra.mxu0 %v1157
        %1261 = vmatprep.mubr.bf16.mxu0 %v845
        %1262 = vmatmul.mubr.bf16.gmra.mxu0 %v877
        %v1263 = vpop.f32.mrf.mxu0
        %v1264 = vadd.f32 0.0, %v1263
        %v1265 = vpop.f32.mrf.mxu0
        %v1266 = vadd.f32 0.0, %v1265
        %v1267 = vpop.f32.mrf.mxu0
        %v1268 = vadd.f32 0.0, %v1267
        %v1269 = vpop.f32.mrf.mxu0
        %v1270 = vadd.f32 0.0, %v1269
        %1271 = vmatprep.mubr.bf16.mxu0 %v846
        %1272 = vmatmul.mubr.bf16.gmra.mxu0 %v878
        %v1273 = vpop.f32.mrf.mxu0
        %v1274 = vadd.f32 0.0, %v1273
        %v1275 = vpop.f32.mrf.mxu0
        %v1276 = vadd.f32 0.0, %v1275
        %v1277 = vpop.f32.mrf.mxu0
        %v1278 = vadd.f32 0.0, %v1277
        %v1279 = vpop.f32.mrf.mxu0
        %v1280 = vadd.f32 0.0, %v1279
        %1281 = vmatprep.mubr.bf16.mxu0 %v847
        %1282 = vmatmul.mubr.bf16.gmra.mxu0 %v879
        %v1283 = vpop.f32.mrf.mxu0
        %v1284 = vadd.f32 0.0, %v1283
        %v1285 = vpop.f32.mrf.mxu0
        %v1286 = vadd.f32 0.0, %v1285
        %v1287 = vpop.f32.mrf.mxu0
        %v1288 = vadd.f32 0.0, %v1287
        %v1289 = vpop.f32.mrf.mxu0
        %v1290 = vadd.f32 0.0, %v1289
        %1291 = vmatprep.mubr.bf16.mxu0 %v848
        %1292 = vmatmul.mubr.bf16.gmra.mxu0 %v880
        %v1293 = vpop.f32.mrf.mxu0
        %v1294 = vadd.f32 0.0, %v1293
        %v1295 = vpop.f32.mrf.mxu0
        %v1296 = vadd.f32 0.0, %v1295
        %v1297 = vpop.f32.mrf.mxu0
        %v1298 = vadd.f32 0.0, %v1297
        %v1299 = vpop.f32.mrf.mxu0
        %v1300 = vadd.f32 0.0, %v1299
        %1301 = vmatprep.mubr.bf16.mxu0 %v849
        %1302 = vmatmul.mubr.bf16.gmra.mxu0 %v881
        %v1303 = vpop.f32.mrf.mxu0
        %v1304 = vadd.f32 0.0, %v1303
        %v1305 = vpop.f32.mrf.mxu0
        %v1306 = vadd.f32 0.0, %v1305
        %v1307 = vpop.f32.mrf.mxu0
        %v1308 = vadd.f32 0.0, %v1307
        %v1309 = vpop.f32.mrf.mxu0
        %v1310 = vadd.f32 0.0, %v1309
        %1311 = vmatprep.mubr.bf16.mxu0 %v850
        %1312 = vmatmul.mubr.bf16.gmra.mxu0 %v882
        %v1313 = vpop.f32.mrf.mxu0
        %v1314 = vadd.f32 0.0, %v1313
        %v1315 = vpop.f32.mrf.mxu0
        %v1316 = vadd.f32 0.0, %v1315
        %v1317 = vpop.f32.mrf.mxu0
        %v1318 = vadd.f32 0.0, %v1317
        %v1319 = vpop.f32.mrf.mxu0
        %v1320 = vadd.f32 0.0, %v1319
        %1321 = vmatprep.mubr.bf16.mxu0 %v851
        %1322 = vmatmul.mubr.bf16.gmra.mxu0 %v883
        %v1323 = vpop.f32.mrf.mxu0
        %v1324 = vadd.f32 0.0, %v1323
        %v1325 = vpop.f32.mrf.mxu0
        %v1326 = vadd.f32 0.0, %v1325
        %v1327 = vpop.f32.mrf.mxu0
        %v1328 = vadd.f32 0.0, %v1327
        %v1329 = vpop.f32.mrf.mxu0
        %v1330 = vadd.f32 0.0, %v1329
        %1331 = vmatprep.mubr.bf16.mxu0 %v852
        %1332 = vmatmul.mubr.bf16.gmra.mxu0 %v884
        %v1333 = vpop.f32.mrf.mxu0
        %v1334 = vadd.f32 0.0, %v1333
        %v1335 = vpop.f32.mrf.mxu0
        %v1336 = vadd.f32 0.0, %v1335
        %v1337 = vpop.f32.mrf.mxu0
        %v1338 = vadd.f32 0.0, %v1337
        %v1339 = vpop.f32.mrf.mxu0
        %v1340 = vadd.f32 0.0, %v1339
        %1341 = vmatprep.mubr.bf16.mxu0 %v853
        %1342 = vmatmul.mubr.bf16.gmra.mxu0 %v885
        %v1343 = vpop.f32.mrf.mxu0
        %v1344 = vadd.f32 0.0, %v1343
        %v1345 = vpop.f32.mrf.mxu0
        %v1346 = vadd.f32 0.0, %v1345
        %v1347 = vpop.f32.mrf.mxu0
        %v1348 = vadd.f32 0.0, %v1347
        %v1349 = vpop.f32.mrf.mxu0
        %v1350 = vadd.f32 0.0, %v1349
        %1351 = vmatprep.mubr.bf16.mxu0 %v854
        %1352 = vmatmul.mubr.bf16.gmra.mxu0 %v886
        %v1353 = vpop.f32.mrf.mxu0
        %v1354 = vadd.f32 0.0, %v1353
        %v1355 = vpop.f32.mrf.mxu0
        %v1356 = vadd.f32 0.0, %v1355
        %v1357 = vpop.f32.mrf.mxu0
        %v1358 = vadd.f32 0.0, %v1357
        %v1359 = vpop.f32.mrf.mxu0
        %v1360 = vadd.f32 0.0, %v1359
        %1361 = vmatprep.mubr.bf16.mxu0 %v855
        %1362 = vmatmul.mubr.bf16.gmra.mxu0 %v887
        %v1363 = vpop.f32.mrf.mxu0
        %v1364 = vadd.f32 0.0, %v1363
        %v1365 = vpop.f32.mrf.mxu0
        %v1366 = vadd.f32 0.0, %v1365
        %v1367 = vpop.f32.mrf.mxu0
        %v1368 = vadd.f32 0.0, %v1367
        %v1369 = vpop.f32.mrf.mxu0
        %v1370 = vadd.f32 0.0, %v1369
        %1371 = vmatprep.mubr.bf16.mxu0 %v856
        %1372 = vmatmul.mubr.bf16.gmra.mxu0 %v888
        %v1373 = vpop.f32.mrf.mxu0
        %v1374 = vadd.f32 0.0, %v1373
        %v1375 = vpop.f32.mrf.mxu0
        %v1376 = vadd.f32 0.0, %v1375
        %v1377 = vpop.f32.mrf.mxu0
        %v1378 = vadd.f32 0.0, %v1377
        %v1379 = vpop.f32.mrf.mxu0
        %v1380 = vadd.f32 0.0, %v1379
        %1381 = vmatprep.mubr.bf16.mxu0 %v857
        %1382 = vmatmul.mubr.bf16.gmra.mxu0 %v889
        %v1383 = vpop.f32.mrf.mxu0
        %v1384 = vadd.f32 0.0, %v1383
        %v1385 = vpop.f32.mrf.mxu0
        %v1386 = vadd.f32 0.0, %v1385
        %v1387 = vpop.f32.mrf.mxu0
        %v1388 = vadd.f32 0.0, %v1387
        %v1389 = vpop.f32.mrf.mxu0
        %v1390 = vadd.f32 0.0, %v1389
        %1391 = vmatprep.mubr.bf16.mxu0 %v858
        %1392 = vmatmul.mubr.bf16.gmra.mxu0 %v890
        %v1393 = vpop.f32.mrf.mxu0
        %v1394 = vadd.f32 0.0, %v1393
        %v1395 = vpop.f32.mrf.mxu0
        %v1396 = vadd.f32 0.0, %v1395
        %v1397 = vpop.f32.mrf.mxu0
        %v1398 = vadd.f32 0.0, %v1397
        %v1399 = vpop.f32.mrf.mxu0
        %v1400 = vadd.f32 0.0, %v1399
        %1401 = vmatprep.mubr.bf16.mxu0 %v859
        %1402 = vmatmul.mubr.bf16.gmra.mxu0 %v891
        %v1403 = vpop.f32.mrf.mxu0
        %v1404 = vadd.f32 0.0, %v1403
        %v1405 = vpop.f32.mrf.mxu0
        %v1406 = vadd.f32 0.0, %v1405
        %v1407 = vpop.f32.mrf.mxu0
        %v1408 = vadd.f32 0.0, %v1407
        %v1409 = vpop.f32.mrf.mxu0
        %v1410 = vadd.f32 0.0, %v1409
        %1411 = vmatprep.mubr.bf16.mxu0 %v860
        %1412 = vmatmul.mubr.bf16.gmra.mxu0 %v892
        %v1413 = vpop.f32.mrf.mxu0
        %v1414 = vadd.f32 0.0, %v1413
        %v1415 = vpop.f32.mrf.mxu0
        %v1416 = vadd.f32 0.0, %v1415
        %v1417 = vpop.f32.mrf.mxu0
        %v1418 = vadd.f32 0.0, %v1417
        %v1419 = vpop.f32.mrf.mxu0
        %v1420 = vadd.f32 0.0, %v1419
        %1421 = vmatprep.mubr.bf16.mxu0 %v861
        %1422 = vmatmul.mubr.bf16.gmra.mxu0 %v893
        %v1423 = vpop.f32.mrf.mxu0
        %v1424 = vadd.f32 0.0, %v1423
        %v1425 = vpop.f32.mrf.mxu0
        %v1426 = vadd.f32 0.0, %v1425
        %v1427 = vpop.f32.mrf.mxu0
        %v1428 = vadd.f32 0.0, %v1427
        %v1429 = vpop.f32.mrf.mxu0
        %v1430 = vadd.f32 0.0, %v1429
        %1431 = vmatprep.mubr.bf16.mxu0 %v862
        %1432 = vmatmul.mubr.bf16.gmra.mxu0 %v894
        %v1433 = vpop.f32.mrf.mxu0
        %v1434 = vadd.f32 0.0, %v1433
        %v1435 = vpop.f32.mrf.mxu0
        %v1436 = vadd.f32 0.0, %v1435
        %v1437 = vpop.f32.mrf.mxu0
        %v1438 = vadd.f32 0.0, %v1437
        %v1439 = vpop.f32.mrf.mxu0
        %v1440 = vadd.f32 0.0, %v1439
        %1441 = vmatprep.mubr.bf16.mxu0 %v863
        %1442 = vmatmul.mubr.bf16.gmra.mxu0 %v895
        %v1443 = vpop.f32.mrf.mxu0
        %v1444 = vadd.f32 0.0, %v1443
        %v1445 = vpop.f32.mrf.mxu0
        %v1446 = vadd.f32 0.0, %v1445
        %v1447 = vpop.f32.mrf.mxu0
        %v1448 = vadd.f32 0.0, %v1447
        %v1449 = vpop.f32.mrf.mxu0
        %v1450 = vadd.f32 0.0, %v1449
        %1451 = vmatprep.mubr.bf16.mxu0 %v864
        %1452 = vmatmul.mubr.bf16.gmra.mxu0 %v896
        %v1453 = vpop.f32.mrf.mxu0
        %v1454 = vadd.f32 0.0, %v1453
        %v1455 = vpop.f32.mrf.mxu0
        %v1456 = vadd.f32 0.0, %v1455
        %v1457 = vpop.f32.mrf.mxu0
        %v1458 = vadd.f32 0.0, %v1457
        %v1459 = vpop.f32.mrf.mxu0
        %v1460 = vadd.f32 0.0, %v1459
        %1461 = vmatprep.mubr.bf16.mxu0 %v865
        %1462 = vmatmul.mubr.bf16.gmra.mxu0 %v897
        %v1463 = vpop.f32.mrf.mxu0
        %v1464 = vadd.f32 0.0, %v1463
        %v1465 = vpop.f32.mrf.mxu0
        %v1466 = vadd.f32 0.0, %v1465
        %v1467 = vpop.f32.mrf.mxu0
        %v1468 = vadd.f32 0.0, %v1467
        %v1469 = vpop.f32.mrf.mxu0
        %v1470 = vadd.f32 0.0, %v1469
        %1471 = vmatprep.mubr.bf16.mxu0 %v866
        %1472 = vmatmul.mubr.bf16.gmra.mxu0 %v898
        %v1473 = vpop.f32.mrf.mxu0
        %v1474 = vadd.f32 0.0, %v1473
        %v1475 = vpop.f32.mrf.mxu0
        %v1476 = vadd.f32 0.0, %v1475
        %v1477 = vpop.f32.mrf.mxu0
        %v1478 = vadd.f32 0.0, %v1477
        %v1479 = vpop.f32.mrf.mxu0
        %v1480 = vadd.f32 0.0, %v1479
        %1481 = vmatprep.mubr.bf16.mxu0 %v867
        %1482 = vmatmul.mubr.bf16.gmra.mxu0 %v899
        %v1483 = vpop.f32.mrf.mxu0
        %v1484 = vadd.f32 0.0, %v1483
        %v1485 = vpop.f32.mrf.mxu0
        %v1486 = vadd.f32 0.0, %v1485
        %v1487 = vpop.f32.mrf.mxu0
        %v1488 = vadd.f32 0.0, %v1487
        %v1489 = vpop.f32.mrf.mxu0
        %v1490 = vadd.f32 0.0, %v1489
        %1491 = vmatprep.mubr.bf16.mxu0 %v868
        %1492 = vmatmul.mubr.bf16.gmra.mxu0 %v900
        %v1493 = vpop.f32.mrf.mxu0
        %v1494 = vadd.f32 0.0, %v1493
        %v1495 = vpop.f32.mrf.mxu0
        %v1496 = vadd.f32 0.0, %v1495
        %v1497 = vpop.f32.mrf.mxu0
        %v1498 = vadd.f32 0.0, %v1497
        %v1499 = vpop.f32.mrf.mxu0
        %v1500 = vadd.f32 0.0, %v1499
        %1501 = vmatprep.mubr.bf16.mxu0 %v869
        %1502 = vmatmul.mubr.bf16.gmra.mxu0 %v901
        %v1503 = vpop.f32.mrf.mxu0
        %v1504 = vadd.f32 0.0, %v1503
        %v1505 = vpop.f32.mrf.mxu0
        %v1506 = vadd.f32 0.0, %v1505
        %v1507 = vpop.f32.mrf.mxu0
        %v1508 = vadd.f32 0.0, %v1507
        %v1509 = vpop.f32.mrf.mxu0
        %v1510 = vadd.f32 0.0, %v1509
        %1511 = vmatprep.mubr.bf16.mxu0 %v870
        %1512 = vmatmul.mubr.bf16.gmra.mxu0 %v902
        %v1513 = vpop.f32.mrf.mxu0
        %v1514 = vadd.f32 0.0, %v1513
        %v1515 = vpop.f32.mrf.mxu0
        %v1516 = vadd.f32 0.0, %v1515
        %v1517 = vpop.f32.mrf.mxu0
        %v1518 = vadd.f32 0.0, %v1517
        %v1519 = vpop.f32.mrf.mxu0
        %v1520 = vadd.f32 0.0, %v1519
        %1521 = vmatprep.mubr.bf16.mxu0 %v871
        %1522 = vmatmul.mubr.bf16.gmra.mxu0 %v903
        %v1523 = vpop.f32.mrf.mxu0
        %v1524 = vadd.f32 0.0, %v1523
        %v1525 = vpop.f32.mrf.mxu0
        %v1526 = vadd.f32 0.0, %v1525
        %v1527 = vpop.f32.mrf.mxu0
        %v1528 = vadd.f32 0.0, %v1527
        %v1529 = vpop.f32.mrf.mxu0
        %v1530 = vadd.f32 0.0, %v1529
        %1531 = vmatprep.mubr.bf16.mxu0 %v872
        %1532 = vmatmul.mubr.bf16.gmra.mxu0 %v904
        %v1533 = vpop.f32.mrf.mxu0
        %v1534 = vadd.f32 0.0, %v1533
        %v1535 = vpop.f32.mrf.mxu0
        %v1536 = vadd.f32 0.0, %v1535
        %v1537 = vpop.f32.mrf.mxu0
        %v1538 = vadd.f32 0.0, %v1537
        %v1539 = vpop.f32.mrf.mxu0
        %v1540 = vadd.f32 0.0, %v1539
        %1541 = vmatprep.mubr.bf16.mxu0 %v873
        %1542 = vmatmul.mubr.bf16.gmra.mxu0 %v905
        %v1543 = vpop.f32.mrf.mxu0
        %v1544 = vadd.f32 0.0, %v1543
        %v1545 = vpop.f32.mrf.mxu0
        %v1546 = vadd.f32 0.0, %v1545
        %v1547 = vpop.f32.mrf.mxu0
        %v1548 = vadd.f32 0.0, %v1547
        %v1549 = vpop.f32.mrf.mxu0
        %v1550 = vadd.f32 0.0, %v1549
        %1551 = vmatprep.mubr.bf16.mxu0 %v874
        %1552 = vmatmul.mubr.bf16.gmra.mxu0 %v906
        %v1553 = vpop.f32.mrf.mxu0
        %v1554 = vadd.f32 0.0, %v1553
        %v1555 = vpop.f32.mrf.mxu0
        %v1556 = vadd.f32 0.0, %v1555
        %v1557 = vpop.f32.mrf.mxu0
        %v1558 = vadd.f32 0.0, %v1557
        %v1559 = vpop.f32.mrf.mxu0
        %v1560 = vadd.f32 0.0, %v1559
        %1561 = vmatprep.mubr.bf16.mxu0 %v875
        %1562 = vmatmul.mubr.bf16.gmra.mxu0 %v907
        %v1563 = vpop.f32.mrf.mxu0
        %v1564 = vadd.f32 0.0, %v1563
        %v1565 = vpop.f32.mrf.mxu0
        %v1566 = vadd.f32 0.0, %v1565
        %v1567 = vpop.f32.mrf.mxu0
        %v1568 = vadd.f32 0.0, %v1567
        %v1569 = vpop.f32.mrf.mxu0
        %v1570 = vadd.f32 0.0, %v1569
        %1571 = vmatprep.mubr.bf16.mxu0 %v876
        %1572 = vmatmul.mubr.bf16.gmra.mxu0 %v908
        %v1573 = vpop.f32.mrf.mxu0
        %v1574 = vadd.f32 0.0, %v1573
        %v1575 = vpop.f32.mrf.mxu0
        %v1576 = vadd.f32 0.0, %v1575
        %v1577 = vpop.f32.mrf.mxu0
        %v1578 = vadd.f32 0.0, %v1577
        %v1579 = vpop.f32.mrf.mxu0
        %v1580 = vadd.f32 0.0, %v1579
        %1581 = vdwg.mxu0
        %1582 = vmatprep.subr.bf16.mxu0 0
        %1583 = vmatpush1.bf16.msra.mxu0 %v1156
        %1584 = vmatprep.subr.bf16.mxu0 0
        %1585 = vmatpush1.bf16.msra.mxu0 %v1153
        %1586 = vmatprep.subr.bf16.mxu0 0
        %1587 = vmatpush1.bf16.msra.mxu0 %v1150
        %1588 = vmatprep.subr.bf16.mxu0 0
        %1589 = vmatpush1.bf16.msra.mxu0 %v1147
        %1590 = vmatprep.subr.bf16.mxu0 0
        %1591 = vmatpush1.bf16.msra.mxu0 %v1144
        %1592 = vmatprep.subr.bf16.mxu0 0
        %1593 = vmatpush1.bf16.msra.mxu0 %v1141
        %1594 = vmatprep.subr.bf16.mxu0 0
        %1595 = vmatpush1.bf16.msra.mxu0 %v1138
        %1596 = vmatprep.subr.bf16.mxu0 0
        %1597 = vmatpush1.bf16.msra.mxu0 %v1135
        %1598 = vmatprep.subr.bf16.mxu0 0
        %1599 = vmatpush2.bf16.msra.mxu0 %v1180
        %1600 = vmatprep.subr.bf16.mxu0 0
        %1601 = vmatpush2.bf16.msra.mxu0 %v1177
        %1602 = vmatprep.subr.bf16.mxu0 0
        %1603 = vmatpush2.bf16.msra.mxu0 %v1174
        %1604 = vmatprep.subr.bf16.mxu0 0
        %1605 = vmatpush2.bf16.msra.mxu0 %v1171
        %1606 = vmatprep.subr.bf16.mxu0 0
        %1607 = vmatpush2.bf16.msra.mxu0 %v1168
        %1608 = vmatprep.subr.bf16.mxu0 0
        %1609 = vmatpush2.bf16.msra.mxu0 %v1165
        %1610 = vmatprep.subr.bf16.mxu0 0
        %1611 = vmatpush2.bf16.msra.mxu0 %v1162
        %1612 = vmatprep.subr.bf16.mxu0 0
        %1613 = vmatpush2.bf16.msra.mxu0 %v1159
        %1614 = vmatprep.mubr.bf16.mxu0 %v845
        %1615 = vmatmul.mubr.bf16.gmra.mxu0 %v877
        %v1616 = vpop.f32.mrf.mxu0
        %v1617 = vadd.f32 0.0, %v1616
        %v1618 = vpop.f32.mrf.mxu0
        %v1619 = vpop.f32.mrf.mxu0
        %v1620 = vadd.f32 0.0, %v1619
        %v1621 = vpop.f32.mrf.mxu0
        %1622 = vmatprep.mubr.bf16.mxu0 %v846
        %1623 = vmatmul.mubr.bf16.gmra.mxu0 %v878
        %v1624 = vpop.f32.mrf.mxu0
        %v1625 = vadd.f32 0.0, %v1624
        %v1626 = vpop.f32.mrf.mxu0
        %v1627 = vpop.f32.mrf.mxu0
        %v1628 = vadd.f32 0.0, %v1627
        %v1629 = vpop.f32.mrf.mxu0
        %1630 = vmatprep.mubr.bf16.mxu0 %v847
        %1631 = vmatmul.mubr.bf16.gmra.mxu0 %v879
        %v1632 = vpop.f32.mrf.mxu0
        %v1633 = vadd.f32 0.0, %v1632
        %v1634 = vpop.f32.mrf.mxu0
        %v1635 = vpop.f32.mrf.mxu0
        %v1636 = vadd.f32 0.0, %v1635
        %v1637 = vpop.f32.mrf.mxu0
        %1638 = vmatprep.mubr.bf16.mxu0 %v848
        %1639 = vmatmul.mubr.bf16.gmra.mxu0 %v880
        %v1640 = vpop.f32.mrf.mxu0
        %v1641 = vadd.f32 0.0, %v1640
        %v1642 = vpop.f32.mrf.mxu0
        %v1643 = vpop.f32.mrf.mxu0
        %v1644 = vadd.f32 0.0, %v1643
        %v1645 = vpop.f32.mrf.mxu0
        %1646 = vmatprep.mubr.bf16.mxu0 %v849
        %1647 = vmatmul.mubr.bf16.gmra.mxu0 %v881
        %v1648 = vpop.f32.mrf.mxu0
        %v1649 = vadd.f32 0.0, %v1648
        %v1650 = vpop.f32.mrf.mxu0
        %v1651 = vpop.f32.mrf.mxu0
        %v1652 = vadd.f32 0.0, %v1651
        %v1653 = vpop.f32.mrf.mxu0
        %1654 = vmatprep.mubr.bf16.mxu0 %v850
        %1655 = vmatmul.mubr.bf16.gmra.mxu0 %v882
        %v1656 = vpop.f32.mrf.mxu0
        %v1657 = vadd.f32 0.0, %v1656
        %v1658 = vpop.f32.mrf.mxu0
        %v1659 = vpop.f32.mrf.mxu0
        %v1660 = vadd.f32 0.0, %v1659
        %v1661 = vpop.f32.mrf.mxu0
        %1662 = vmatprep.mubr.bf16.mxu0 %v851
        %1663 = vmatmul.mubr.bf16.gmra.mxu0 %v883
        %v1664 = vpop.f32.mrf.mxu0
        %v1665 = vadd.f32 0.0, %v1664
        %v1666 = vpop.f32.mrf.mxu0
        %v1667 = vpop.f32.mrf.mxu0
        %v1668 = vadd.f32 0.0, %v1667
        %v1669 = vpop.f32.mrf.mxu0
        %1670 = vmatprep.mubr.bf16.mxu0 %v852
        %1671 = vmatmul.mubr.bf16.gmra.mxu0 %v884
        %v1672 = vpop.f32.mrf.mxu0
        %v1673 = vadd.f32 0.0, %v1672
        %v1674 = vpop.f32.mrf.mxu0
        %v1675 = vpop.f32.mrf.mxu0
        %v1676 = vadd.f32 0.0, %v1675
        %v1677 = vpop.f32.mrf.mxu0
        %1678 = vmatprep.mubr.bf16.mxu0 %v853
        %1679 = vmatmul.mubr.bf16.gmra.mxu0 %v885
        %v1680 = vpop.f32.mrf.mxu0
        %v1681 = vadd.f32 0.0, %v1680
        %v1682 = vpop.f32.mrf.mxu0
        %v1683 = vpop.f32.mrf.mxu0
        %v1684 = vadd.f32 0.0, %v1683
        %v1685 = vpop.f32.mrf.mxu0
        %1686 = vmatprep.mubr.bf16.mxu0 %v854
        %1687 = vmatmul.mubr.bf16.gmra.mxu0 %v886
        %v1688 = vpop.f32.mrf.mxu0
        %v1689 = vadd.f32 0.0, %v1688
        %v1690 = vpop.f32.mrf.mxu0
        %v1691 = vpop.f32.mrf.mxu0
        %v1692 = vadd.f32 0.0, %v1691
        %v1693 = vpop.f32.mrf.mxu0
        %1694 = vmatprep.mubr.bf16.mxu0 %v855
        %1695 = vmatmul.mubr.bf16.gmra.mxu0 %v887
        %v1696 = vpop.f32.mrf.mxu0
        %v1697 = vadd.f32 0.0, %v1696
        %v1698 = vpop.f32.mrf.mxu0
        %v1699 = vpop.f32.mrf.mxu0
        %v1700 = vadd.f32 0.0, %v1699
        %v1701 = vpop.f32.mrf.mxu0
        %1702 = vmatprep.mubr.bf16.mxu0 %v856
        %1703 = vmatmul.mubr.bf16.gmra.mxu0 %v888
        %v1704 = vpop.f32.mrf.mxu0
        %v1705 = vadd.f32 0.0, %v1704
        %v1706 = vpop.f32.mrf.mxu0
        %v1707 = vpop.f32.mrf.mxu0
        %v1708 = vadd.f32 0.0, %v1707
        %v1709 = vpop.f32.mrf.mxu0
        %1710 = vmatprep.mubr.bf16.mxu0 %v857
        %1711 = vmatmul.mubr.bf16.gmra.mxu0 %v889
        %v1712 = vpop.f32.mrf.mxu0
        %v1713 = vadd.f32 0.0, %v1712
        %v1714 = vpop.f32.mrf.mxu0
        %v1715 = vpop.f32.mrf.mxu0
        %v1716 = vadd.f32 0.0, %v1715
        %v1717 = vpop.f32.mrf.mxu0
        %1718 = vmatprep.mubr.bf16.mxu0 %v858
        %1719 = vmatmul.mubr.bf16.gmra.mxu0 %v890
        %v1720 = vpop.f32.mrf.mxu0
        %v1721 = vadd.f32 0.0, %v1720
        %v1722 = vpop.f32.mrf.mxu0
        %v1723 = vpop.f32.mrf.mxu0
        %v1724 = vadd.f32 0.0, %v1723
        %v1725 = vpop.f32.mrf.mxu0
        %1726 = vmatprep.mubr.bf16.mxu0 %v859
        %1727 = vmatmul.mubr.bf16.gmra.mxu0 %v891
        %v1728 = vpop.f32.mrf.mxu0
        %v1729 = vadd.f32 0.0, %v1728
        %v1730 = vpop.f32.mrf.mxu0
        %v1731 = vpop.f32.mrf.mxu0
        %v1732 = vadd.f32 0.0, %v1731
        %v1733 = vpop.f32.mrf.mxu0
        %1734 = vmatprep.mubr.bf16.mxu0 %v860
        %1735 = vmatmul.mubr.bf16.gmra.mxu0 %v892
        %v1736 = vpop.f32.mrf.mxu0
        %v1737 = vadd.f32 0.0, %v1736
        %v1738 = vpop.f32.mrf.mxu0
        %v1739 = vpop.f32.mrf.mxu0
        %v1740 = vadd.f32 0.0, %v1739
        %v1741 = vpop.f32.mrf.mxu0
        %1742 = vmatprep.mubr.bf16.mxu0 %v861
        %1743 = vmatmul.mubr.bf16.gmra.mxu0 %v893
        %v1744 = vpop.f32.mrf.mxu0
        %v1745 = vadd.f32 0.0, %v1744
        %v1746 = vpop.f32.mrf.mxu0
        %v1747 = vpop.f32.mrf.mxu0
        %v1748 = vadd.f32 0.0, %v1747
        %v1749 = vpop.f32.mrf.mxu0
        %1750 = vmatprep.mubr.bf16.mxu0 %v862
        %1751 = vmatmul.mubr.bf16.gmra.mxu0 %v894
        %v1752 = vpop.f32.mrf.mxu0
        %v1753 = vadd.f32 0.0, %v1752
        %v1754 = vpop.f32.mrf.mxu0
        %v1755 = vpop.f32.mrf.mxu0
        %v1756 = vadd.f32 0.0, %v1755
        %v1757 = vpop.f32.mrf.mxu0
        %1758 = vmatprep.mubr.bf16.mxu0 %v863
        %1759 = vmatmul.mubr.bf16.gmra.mxu0 %v895
        %v1760 = vpop.f32.mrf.mxu0
        %v1761 = vadd.f32 0.0, %v1760
        %v1762 = vpop.f32.mrf.mxu0
        %v1763 = vpop.f32.mrf.mxu0
        %v1764 = vadd.f32 0.0, %v1763
        %v1765 = vpop.f32.mrf.mxu0
        %1766 = vmatprep.mubr.bf16.mxu0 %v864
        %1767 = vmatmul.mubr.bf16.gmra.mxu0 %v896
        %v1768 = vpop.f32.mrf.mxu0
        %v1769 = vadd.f32 0.0, %v1768
        %v1770 = vpop.f32.mrf.mxu0
        %v1771 = vpop.f32.mrf.mxu0
        %v1772 = vadd.f32 0.0, %v1771
        %v1773 = vpop.f32.mrf.mxu0
        %1774 = vmatprep.mubr.bf16.mxu0 %v865
        %1775 = vmatmul.mubr.bf16.gmra.mxu0 %v897
        %v1776 = vpop.f32.mrf.mxu0
        %v1777 = vadd.f32 0.0, %v1776
        %v1778 = vpop.f32.mrf.mxu0
        %v1779 = vpop.f32.mrf.mxu0
        %v1780 = vadd.f32 0.0, %v1779
        %v1781 = vpop.f32.mrf.mxu0
        %1782 = vmatprep.mubr.bf16.mxu0 %v866
        %1783 = vmatmul.mubr.bf16.gmra.mxu0 %v898
        %v1784 = vpop.f32.mrf.mxu0
        %v1785 = vadd.f32 0.0, %v1784
        %v1786 = vpop.f32.mrf.mxu0
        %v1787 = vpop.f32.mrf.mxu0
        %v1788 = vadd.f32 0.0, %v1787
        %v1789 = vpop.f32.mrf.mxu0
        %1790 = vmatprep.mubr.bf16.mxu0 %v867
        %1791 = vmatmul.mubr.bf16.gmra.mxu0 %v899
        %v1792 = vpop.f32.mrf.mxu0
        %v1793 = vadd.f32 0.0, %v1792
        %v1794 = vpop.f32.mrf.mxu0
        %v1795 = vpop.f32.mrf.mxu0
        %v1796 = vadd.f32 0.0, %v1795
        %v1797 = vpop.f32.mrf.mxu0
        %1798 = vmatprep.mubr.bf16.mxu0 %v868
        %1799 = vmatmul.mubr.bf16.gmra.mxu0 %v900
        %v1800 = vpop.f32.mrf.mxu0
        %v1801 = vadd.f32 0.0, %v1800
        %v1802 = vpop.f32.mrf.mxu0
        %v1803 = vpop.f32.mrf.mxu0
        %v1804 = vadd.f32 0.0, %v1803
        %v1805 = vpop.f32.mrf.mxu0
        %1806 = vmatprep.mubr.bf16.mxu0 %v869
        %1807 = vmatmul.mubr.bf16.gmra.mxu0 %v901
        %v1808 = vpop.f32.mrf.mxu0
        %v1809 = vadd.f32 0.0, %v1808
        %v1810 = vpop.f32.mrf.mxu0
        %v1811 = vpop.f32.mrf.mxu0
        %v1812 = vadd.f32 0.0, %v1811
        %v1813 = vpop.f32.mrf.mxu0
        %1814 = vmatprep.mubr.bf16.mxu0 %v870
        %1815 = vmatmul.mubr.bf16.gmra.mxu0 %v902
        %v1816 = vpop.f32.mrf.mxu0
        %v1817 = vadd.f32 0.0, %v1816
        %v1818 = vpop.f32.mrf.mxu0
        %v1819 = vpop.f32.mrf.mxu0
        %v1820 = vadd.f32 0.0, %v1819
        %v1821 = vpop.f32.mrf.mxu0
        %1822 = vmatprep.mubr.bf16.mxu0 %v871
        %1823 = vmatmul.mubr.bf16.gmra.mxu0 %v903
        %v1824 = vpop.f32.mrf.mxu0
        %v1825 = vadd.f32 0.0, %v1824
        %v1826 = vpop.f32.mrf.mxu0
        %v1827 = vpop.f32.mrf.mxu0
        %v1828 = vadd.f32 0.0, %v1827
        %v1829 = vpop.f32.mrf.mxu0
        %1830 = vmatprep.mubr.bf16.mxu0 %v872
        %1831 = vmatmul.mubr.bf16.gmra.mxu0 %v904
        %v1832 = vpop.f32.mrf.mxu0
        %v1833 = vadd.f32 0.0, %v1832
        %v1834 = vpop.f32.mrf.mxu0
        %v1835 = vpop.f32.mrf.mxu0
        %v1836 = vadd.f32 0.0, %v1835
        %v1837 = vpop.f32.mrf.mxu0
        %1838 = vmatprep.mubr.bf16.mxu0 %v873
        %1839 = vmatmul.mubr.bf16.gmra.mxu0 %v905
        %v1840 = vpop.f32.mrf.mxu0
        %v1841 = vadd.f32 0.0, %v1840
        %v1842 = vpop.f32.mrf.mxu0
        %v1843 = vpop.f32.mrf.mxu0
        %v1844 = vadd.f32 0.0, %v1843
        %v1845 = vpop.f32.mrf.mxu0
        %1846 = vmatprep.mubr.bf16.mxu0 %v874
        %1847 = vmatmul.mubr.bf16.gmra.mxu0 %v906
        %v1848 = vpop.f32.mrf.mxu0
        %v1849 = vadd.f32 0.0, %v1848
        %v1850 = vpop.f32.mrf.mxu0
        %v1851 = vpop.f32.mrf.mxu0
        %v1852 = vadd.f32 0.0, %v1851
        %v1853 = vpop.f32.mrf.mxu0
        %1854 = vmatprep.mubr.bf16.mxu0 %v875
        %1855 = vmatmul.mubr.bf16.gmra.mxu0 %v907
        %v1856 = vpop.f32.mrf.mxu0
        %v1857 = vadd.f32 0.0, %v1856
        %v1858 = vpop.f32.mrf.mxu0
        %v1859 = vpop.f32.mrf.mxu0
        %v1860 = vadd.f32 0.0, %v1859
        %v1861 = vpop.f32.mrf.mxu0
        %1862 = vmatprep.mubr.bf16.mxu0 %v876
        %1863 = vmatmul.mubr.bf16.gmra.mxu0 %v908
        %v1864 = vpop.f32.mrf.mxu0
        %v1865 = vadd.f32 0.0, %v1864
        %v1866 = vpop.f32.mrf.mxu0
        %v1867 = vpop.f32.mrf.mxu0
        %v1868 = vadd.f32 0.0, %v1867
        %v1869 = vpop.f32.mrf.mxu0
        %1870 = vdwg.mxu0
        %1871 = vst [vmem:[#allocation2] sm:$0xff] %v1266
        %1872 = vst [vmem:[#allocation2 + $0x8] sm:$0xff] %v1617
        %1873 = vst [vmem:[#allocation2 + $0x10] sm:$0xff] %v1270
        %1874 = vst [vmem:[#allocation2 + $0x18] sm:$0xff] %v1620
        %1875 = vst [vmem:[#allocation2 + $0x20] sm:$0xff] %v1276
        %1876 = vst [vmem:[#allocation2 + $0x28] sm:$0xff] %v1625
        %1877 = vst [vmem:[#allocation2 + $0x30] sm:$0xff] %v1280
        %1878 = vst [vmem:[#allocation2 + $0x38] sm:$0xff] %v1628
        %1879 = vst [vmem:[#allocation2 + $0x40] sm:$0xff] %v1286
        %1880 = vst [vmem:[#allocation2 + $0x48] sm:$0xff] %v1633
        %1881 = vst [vmem:[#allocation2 + $0x50] sm:$0xff] %v1290
        %1882 = vst [vmem:[#allocation2 + $0x58] sm:$0xff] %v1636
        %1883 = vst [vmem:[#allocation2 + $0x60] sm:$0xff] %v1296
        %1884 = vst [vmem:[#allocation2 + $0x68] sm:$0xff] %v1641
        %1885 = vst [vmem:[#allocation2 + $0x70] sm:$0xff] %v1300
        %1886 = vst [vmem:[#allocation2 + $0x78] sm:$0xff] %v1644
        %1887 = vst [vmem:[#allocation2 + $0x80] sm:$0xff] %v1306
        %1888 = vst [vmem:[#allocation2 + $0x88] sm:$0xff] %v1649
        %1889 = vst [vmem:[#allocation2 + $0x90] sm:$0xff] %v1310
        %1890 = vst [vmem:[#allocation2 + $0x98] sm:$0xff] %v1652
        %1891 = vst [vmem:[#allocation2 + $0xa0] sm:$0xff] %v1316
        %1892 = vst [vmem:[#allocation2 + $0xa8] sm:$0xff] %v1657
        %1893 = vst [vmem:[#allocation2 + $0xb0] sm:$0xff] %v1320
        %1894 = vst [vmem:[#allocation2 + $0xb8] sm:$0xff] %v1660
        %1895 = vst [vmem:[#allocation2 + $0xc0] sm:$0xff] %v1326
        %1896 = vst [vmem:[#allocation2 + $0xc8] sm:$0xff] %v1665
        %1897 = vst [vmem:[#allocation2 + $0xd0] sm:$0xff] %v1330
        %1898 = vst [vmem:[#allocation2 + $0xd8] sm:$0xff] %v1668
        %1899 = vst [vmem:[#allocation2 + $0xe0] sm:$0xff] %v1336
        %1900 = vst [vmem:[#allocation2 + $0xe8] sm:$0xff] %v1673
        %1901 = vst [vmem:[#allocation2 + $0xf0] sm:$0xff] %v1340
        %1902 = vst [vmem:[#allocation2 + $0xf8] sm:$0xff] %v1676
        %1903 = vst [vmem:[#allocation2 + $0x100] sm:$0xff] %v1346
        %1904 = vst [vmem:[#allocation2 + $0x108] sm:$0xff] %v1681
        %1905 = vst [vmem:[#allocation2 + $0x110] sm:$0xff] %v1350
        %1906 = vst [vmem:[#allocation2 + $0x118] sm:$0xff] %v1684
        %1907 = vst [vmem:[#allocation2 + $0x120] sm:$0xff] %v1356
        %1908 = vst [vmem:[#allocation2 + $0x128] sm:$0xff] %v1689
        %1909 = vst [vmem:[#allocation2 + $0x130] sm:$0xff] %v1360
        %1910 = vst [vmem:[#allocation2 + $0x138] sm:$0xff] %v1692
        %1911 = vst [vmem:[#allocation2 + $0x140] sm:$0xff] %v1366
        %1912 = vst [vmem:[#allocation2 + $0x148] sm:$0xff] %v1697
        %1913 = vst [vmem:[#allocation2 + $0x150] sm:$0xff] %v1370
        %1914 = vst [vmem:[#allocation2 + $0x158] sm:$0xff] %v1700
        %1915 = vst [vmem:[#allocation2 + $0x160] sm:$0xff] %v1376
        %1916 = vst [vmem:[#allocation2 + $0x168] sm:$0xff] %v1705
        %1917 = vst [vmem:[#allocation2 + $0x170] sm:$0xff] %v1380
        %1918 = vst [vmem:[#allocation2 + $0x178] sm:$0xff] %v1708
        %1919 = vst [vmem:[#allocation2 + $0x180] sm:$0xff] %v1386
        %1920 = vst [vmem:[#allocation2 + $0x188] sm:$0xff] %v1713
        %1921 = vst [vmem:[#allocation2 + $0x190] sm:$0xff] %v1390
        %1922 = vst [vmem:[#allocation2 + $0x198] sm:$0xff] %v1716
        %1923 = vst [vmem:[#allocation2 + $0x1a0] sm:$0xff] %v1396
        %1924 = vst [vmem:[#allocation2 + $0x1a8] sm:$0xff] %v1721
        %1925 = vst [vmem:[#allocation2 + $0x1b0] sm:$0xff] %v1400
        %1926 = vst [vmem:[#allocation2 + $0x1b8] sm:$0xff] %v1724
        %1927 = vst [vmem:[#allocation2 + $0x1c0] sm:$0xff] %v1406
        %1928 = vst [vmem:[#allocation2 + $0x1c8] sm:$0xff] %v1729
        %1929 = vst [vmem:[#allocation2 + $0x1d0] sm:$0xff] %v1410
        %1930 = vst [vmem:[#allocation2 + $0x1d8] sm:$0xff] %v1732
        %1931 = vst [vmem:[#allocation2 + $0x1e0] sm:$0xff] %v1416
        %1932 = vst [vmem:[#allocation2 + $0x1e8] sm:$0xff] %v1737
        %1933 = vst [vmem:[#allocation2 + $0x1f0] sm:$0xff] %v1420
        %1934 = vst [vmem:[#allocation2 + $0x1f8] sm:$0xff] %v1740
        %1935 = vst [vmem:[#allocation2 + $0x200] sm:$0xff] %v1426
        %1936 = vst [vmem:[#allocation2 + $0x208] sm:$0xff] %v1745
        %1937 = vst [vmem:[#allocation2 + $0x210] sm:$0xff] %v1430
        %1938 = vst [vmem:[#allocation2 + $0x218] sm:$0xff] %v1748
        %1939 = vst [vmem:[#allocation2 + $0x220] sm:$0xff] %v1436
        %1940 = vst [vmem:[#allocation2 + $0x228] sm:$0xff] %v1753
        %1941 = vst [vmem:[#allocation2 + $0x230] sm:$0xff] %v1440
        %1942 = vst [vmem:[#allocation2 + $0x238] sm:$0xff] %v1756
        %1943 = vst [vmem:[#allocation2 + $0x240] sm:$0xff] %v1446
        %1944 = vst [vmem:[#allocation2 + $0x248] sm:$0xff] %v1761
        %1945 = vst [vmem:[#allocation2 + $0x250] sm:$0xff] %v1450
        %1946 = vst [vmem:[#allocation2 + $0x258] sm:$0xff] %v1764
        %1947 = vst [vmem:[#allocation2 + $0x260] sm:$0xff] %v1456
        %1948 = vst [vmem:[#allocation2 + $0x268] sm:$0xff] %v1769
        %1949 = vst [vmem:[#allocation2 + $0x270] sm:$0xff] %v1460
        %1950 = vst [vmem:[#allocation2 + $0x278] sm:$0xff] %v1772
        %1951 = vst [vmem:[#allocation2 + $0x280] sm:$0xff] %v1466
        %1952 = vst [vmem:[#allocation2 + $0x288] sm:$0xff] %v1777
        %1953 = vst [vmem:[#allocation2 + $0x290] sm:$0xff] %v1470
        %1954 = vst [vmem:[#allocation2 + $0x298] sm:$0xff] %v1780
        %1955 = vst [vmem:[#allocation2 + $0x2a0] sm:$0xff] %v1476
        %1956 = vst [vmem:[#allocation2 + $0x2a8] sm:$0xff] %v1785
        %1957 = vst [vmem:[#allocation2 + $0x2b0] sm:$0xff] %v1480
        %1958 = vst [vmem:[#allocation2 + $0x2b8] sm:$0xff] %v1788
        %1959 = vst [vmem:[#allocation2 + $0x2c0] sm:$0xff] %v1486
        %1960 = vst [vmem:[#allocation2 + $0x2c8] sm:$0xff] %v1793
        %1961 = vst [vmem:[#allocation2 + $0x2d0] sm:$0xff] %v1490
        %1962 = vst [vmem:[#allocation2 + $0x2d8] sm:$0xff] %v1796
        %1963 = vst [vmem:[#allocation2 + $0x2e0] sm:$0xff] %v1496
        %1964 = vst [vmem:[#allocation2 + $0x2e8] sm:$0xff] %v1801
        %1965 = vst [vmem:[#allocation2 + $0x2f0] sm:$0xff] %v1500
        %1966 = vst [vmem:[#allocation2 + $0x2f8] sm:$0xff] %v1804
        %1967 = vst [vmem:[#allocation2 + $0x300] sm:$0xff] %v1506
        %1968 = vst [vmem:[#allocation2 + $0x308] sm:$0xff] %v1809
        %1969 = vst [vmem:[#allocation2 + $0x310] sm:$0xff] %v1510
        %1970 = vst [vmem:[#allocation2 + $0x318] sm:$0xff] %v1812
        %1971 = vst [vmem:[#allocation2 + $0x320] sm:$0xff] %v1516
        %1972 = vst [vmem:[#allocation2 + $0x328] sm:$0xff] %v1817
        %1973 = vst [vmem:[#allocation2 + $0x330] sm:$0xff] %v1520
        %1974 = vst [vmem:[#allocation2 + $0x338] sm:$0xff] %v1820
        %1975 = vst [vmem:[#allocation2 + $0x340] sm:$0xff] %v1526
        %1976 = vst [vmem:[#allocation2 + $0x348] sm:$0xff] %v1825
        %1977 = vst [vmem:[#allocation2 + $0x350] sm:$0xff] %v1530
        %1978 = vst [vmem:[#allocation2 + $0x358] sm:$0xff] %v1828
        %1979 = vst [vmem:[#allocation2 + $0x360] sm:$0xff] %v1536
        %1980 = vst [vmem:[#allocation2 + $0x368] sm:$0xff] %v1833
        %1981 = vst [vmem:[#allocation2 + $0x370] sm:$0xff] %v1540
        %1982 = vst [vmem:[#allocation2 + $0x378] sm:$0xff] %v1836
        %1983 = vst [vmem:[#allocation2 + $0x380] sm:$0xff] %v1546
        %1984 = vst [vmem:[#allocation2 + $0x388] sm:$0xff] %v1841
        %1985 = vst [vmem:[#allocation2 + $0x390] sm:$0xff] %v1550
        %1986 = vst [vmem:[#allocation2 + $0x398] sm:$0xff] %v1844
        %1987 = vst [vmem:[#allocation2 + $0x3a0] sm:$0xff] %v1556
        %1988 = vst [vmem:[#allocation2 + $0x3a8] sm:$0xff] %v1849
        %1989 = vst [vmem:[#allocation2 + $0x3b0] sm:$0xff] %v1560
        %1990 = vst [vmem:[#allocation2 + $0x3b8] sm:$0xff] %v1852
        %1991 = vst [vmem:[#allocation2 + $0x3c0] sm:$0xff] %v1566
        %1992 = vst [vmem:[#allocation2 + $0x3c8] sm:$0xff] %v1857
        %1993 = vst [vmem:[#allocation2 + $0x3d0] sm:$0xff] %v1570
        %1994 = vst [vmem:[#allocation2 + $0x3d8] sm:$0xff] %v1860
        %1995 = vst [vmem:[#allocation2 + $0x3e0] sm:$0xff] %v1576
        %1996 = vst [vmem:[#allocation2 + $0x3e8] sm:$0xff] %v1865
        %1997 = vst [vmem:[#allocation2 + $0x3f0] sm:$0xff] %v1580
        %1998 = vst [vmem:[#allocation2 + $0x3f8] sm:$0xff] %v1868
        %v1999 = vmax.f32 %v1264, 0.0
        %v2000 = vmax.f32 %v1268, 0.0
        %v2001 = vmax.f32 %v1274, 0.0
        %v2002 = vmax.f32 %v1278, 0.0
        %v2003 = vmax.f32 %v1284, 0.0
        %v2004 = vmax.f32 %v1288, 0.0
        %v2005 = vmax.f32 %v1294, 0.0
        %v2006 = vmax.f32 %v1298, 0.0
        %v2007 = vmax.f32 %v1304, 0.0
        %v2008 = vmax.f32 %v1308, 0.0
        %v2009 = vmax.f32 %v1314, 0.0
        %v2010 = vmax.f32 %v1318, 0.0
        %v2011 = vmax.f32 %v1324, 0.0
        %v2012 = vmax.f32 %v1328, 0.0
        %v2013 = vmax.f32 %v1334, 0.0
        %v2014 = vmax.f32 %v1338, 0.0
        %v2015 = vmax.f32 %v1344, 0.0
        %v2016 = vmax.f32 %v1348, 0.0
        %v2017 = vmax.f32 %v1354, 0.0
        %v2018 = vmax.f32 %v1358, 0.0
        %v2019 = vmax.f32 %v1364, 0.0
        %v2020 = vmax.f32 %v1368, 0.0
        %v2021 = vmax.f32 %v1374, 0.0
        %v2022 = vmax.f32 %v1378, 0.0
        %v2023 = vmax.f32 %v1384, 0.0
        %v2024 = vmax.f32 %v1388, 0.0
        %v2025 = vmax.f32 %v1394, 0.0
        %v2026 = vmax.f32 %v1398, 0.0
        %v2027 = vmax.f32 %v1404, 0.0
        %v2028 = vmax.f32 %v1408, 0.0
        %v2029 = vmax.f32 %v1414, 0.0
        %v2030 = vmax.f32 %v1418, 0.0
        %v2031 = vmax.f32 %v1424, 0.0
        %v2032 = vmax.f32 %v1428, 0.0
        %v2033 = vmax.f32 %v1434, 0.0
        %v2034 = vmax.f32 %v1438, 0.0
        %v2035 = vmax.f32 %v1444, 0.0
        %v2036 = vmax.f32 %v1448, 0.0
        %v2037 = vmax.f32 %v1454, 0.0
        %v2038 = vmax.f32 %v1458, 0.0
        %v2039 = vmax.f32 %v1464, 0.0
        %v2040 = vmax.f32 %v1468, 0.0
        %v2041 = vmax.f32 %v1474, 0.0
        %v2042 = vmax.f32 %v1478, 0.0
        %v2043 = vmax.f32 %v1484, 0.0
        %v2044 = vmax.f32 %v1488, 0.0
        %v2045 = vmax.f32 %v1494, 0.0
        %v2046 = vmax.f32 %v1498, 0.0
        %v2047 = vmax.f32 %v1504, 0.0
        %v2048 = vmax.f32 %v1508, 0.0
        %v2049 = vmax.f32 %v1514, 0.0
        %v2050 = vmax.f32 %v1518, 0.0
        %v2051 = vmax.f32 %v1524, 0.0
        %v2052 = vmax.f32 %v1528, 0.0
        %v2053 = vmax.f32 %v1534, 0.0
        %v2054 = vmax.f32 %v1538, 0.0
        %v2055 = vmax.f32 %v1544, 0.0
        %v2056 = vmax.f32 %v1548, 0.0
        %v2057 = vmax.f32 %v1554, 0.0
        %v2058 = vmax.f32 %v1558, 0.0
        %v2059 = vmax.f32 %v1564, 0.0
        %v2060 = vmax.f32 %v1568, 0.0
        %v2061 = vmax.f32 %v1574, 0.0
        %v2062 = vmax.f32 %v1578, 0.0
        %v2063 = vpack.c.bf16 %v2000, %v1999
        %v2064 = vpack.c.bf16 %v2002, %v2001
        %v2065 = vpack.c.bf16 %v2004, %v2003
        %v2066 = vpack.c.bf16 %v2006, %v2005
        %v2067 = vpack.c.bf16 %v2008, %v2007
        %v2068 = vpack.c.bf16 %v2010, %v2009
        %v2069 = vpack.c.bf16 %v2012, %v2011
        %v2070 = vpack.c.bf16 %v2014, %v2013
        %v2071 = vpack.c.bf16 %v2016, %v2015
        %v2072 = vpack.c.bf16 %v2018, %v2017
        %v2073 = vpack.c.bf16 %v2020, %v2019
        %v2074 = vpack.c.bf16 %v2022, %v2021
        %v2075 = vpack.c.bf16 %v2024, %v2023
        %v2076 = vpack.c.bf16 %v2026, %v2025
        %v2077 = vpack.c.bf16 %v2028, %v2027
        %v2078 = vpack.c.bf16 %v2030, %v2029
        %v2079 = vpack.c.bf16 %v2032, %v2031
        %v2080 = vpack.c.bf16 %v2034, %v2033
        %v2081 = vpack.c.bf16 %v2036, %v2035
        %v2082 = vpack.c.bf16 %v2038, %v2037
        %v2083 = vpack.c.bf16 %v2040, %v2039
        %v2084 = vpack.c.bf16 %v2042, %v2041
        %v2085 = vpack.c.bf16 %v2044, %v2043
        %v2086 = vpack.c.bf16 %v2046, %v2045
        %v2087 = vpack.c.bf16 %v2048, %v2047
        %v2088 = vpack.c.bf16 %v2050, %v2049
        %v2089 = vpack.c.bf16 %v2052, %v2051
        %v2090 = vpack.c.bf16 %v2054, %v2053
        %v2091 = vpack.c.bf16 %v2056, %v2055
        %v2092 = vpack.c.bf16 %v2058, %v2057
        %v2093 = vpack.c.bf16 %v2060, %v2059
        %v2094 = vpack.c.bf16 %v2062, %v2061
        %v2095 = vld [vmem:[#allocation8] sm:$0xf]
        %v2096 = vld [vmem:[#allocation8 + $0x4] sm:$0xf]
        %v2097 = vld [vmem:[#allocation8 + $0x8] sm:$0xf]
        %v2098 = vld [vmem:[#allocation8 + $0xc] sm:$0xf]
        %v2099 = vld [vmem:[#allocation8 + $0x10] sm:$0xf]
        %v2100 = vld [vmem:[#allocation8 + $0x14] sm:$0xf]
        %v2101 = vld [vmem:[#allocation8 + $0x18] sm:$0xf]
        %v2102 = vld [vmem:[#allocation8 + $0x1c] sm:$0xf]
        %v2103 = vld [vmem:[#allocation8 + $0x20] sm:$0xf]
        %v2104 = vld [vmem:[#allocation8 + $0x24] sm:$0xf]
        %v2105 = vld [vmem:[#allocation8 + $0x28] sm:$0xf]
        %v2106 = vld [vmem:[#allocation8 + $0x2c] sm:$0xf]
        %v2107 = vld [vmem:[#allocation8 + $0x30] sm:$0xf]
        %v2108 = vld [vmem:[#allocation8 + $0x34] sm:$0xf]
        %v2109 = vld [vmem:[#allocation8 + $0x38] sm:$0xf]
        %v2110 = vld [vmem:[#allocation8 + $0x3c] sm:$0xf]
        %v2111 = vld [vmem:[#allocation2] sm:$0xff]
        %v2112 = vld [vmem:[#allocation2 + $0x10] sm:$0xff]
        %v2113 = vld [vmem:[#allocation2 + $0x20] sm:$0xff]
        %v2114 = vld [vmem:[#allocation2 + $0x30] sm:$0xff]
        %v2115 = vld [vmem:[#allocation2 + $0x40] sm:$0xff]
        %v2116 = vld [vmem:[#allocation2 + $0x50] sm:$0xff]
        %v2117 = vld [vmem:[#allocation2 + $0x60] sm:$0xff]
        %v2118 = vld [vmem:[#allocation2 + $0x70] sm:$0xff]
        %v2119 = vld [vmem:[#allocation2 + $0x80] sm:$0xff]
        %v2120 = vld [vmem:[#allocation2 + $0x90] sm:$0xff]
        %v2121 = vld [vmem:[#allocation2 + $0xa0] sm:$0xff]
        %v2122 = vld [vmem:[#allocation2 + $0xb0] sm:$0xff]
        %v2123 = vld [vmem:[#allocation2 + $0xc0] sm:$0xff]
        %v2124 = vld [vmem:[#allocation2 + $0xd0] sm:$0xff]
        %v2125 = vld [vmem:[#allocation2 + $0xe0] sm:$0xff]
        %v2126 = vld [vmem:[#allocation2 + $0xf0] sm:$0xff]
        %v2127 = vld [vmem:[#allocation2 + $0x100] sm:$0xff]
        %v2128 = vld [vmem:[#allocation2 + $0x110] sm:$0xff]
        %v2129 = vld [vmem:[#allocation2 + $0x120] sm:$0xff]
        %v2130 = vld [vmem:[#allocation2 + $0x130] sm:$0xff]
        %v2131 = vld [vmem:[#allocation2 + $0x140] sm:$0xff]
        %v2132 = vld [vmem:[#allocation2 + $0x150] sm:$0xff]
        %v2133 = vld [vmem:[#allocation2 + $0x160] sm:$0xff]
        %v2134 = vld [vmem:[#allocation2 + $0x170] sm:$0xff]
        %v2135 = vld [vmem:[#allocation2 + $0x180] sm:$0xff]
        %v2136 = vld [vmem:[#allocation2 + $0x190] sm:$0xff]
        %v2137 = vld [vmem:[#allocation2 + $0x1a0] sm:$0xff]
        %v2138 = vld [vmem:[#allocation2 + $0x1b0] sm:$0xff]
        %v2139 = vld [vmem:[#allocation2 + $0x1c0] sm:$0xff]
        %v2140 = vld [vmem:[#allocation2 + $0x1d0] sm:$0xff]
        %v2141 = vld [vmem:[#allocation2 + $0x1e0] sm:$0xff]
        %v2142 = vld [vmem:[#allocation2 + $0x1f0] sm:$0xff]
        %v2143 = vld [vmem:[#allocation2 + $0x200] sm:$0xff]
        %v2144 = vld [vmem:[#allocation2 + $0x210] sm:$0xff]
        %v2145 = vld [vmem:[#allocation2 + $0x220] sm:$0xff]
        %v2146 = vld [vmem:[#allocation2 + $0x230] sm:$0xff]
        %v2147 = vld [vmem:[#allocation2 + $0x240] sm:$0xff]
        %v2148 = vld [vmem:[#allocation2 + $0x250] sm:$0xff]
        %v2149 = vld [vmem:[#allocation2 + $0x260] sm:$0xff]
        %v2150 = vld [vmem:[#allocation2 + $0x270] sm:$0xff]
        %v2151 = vld [vmem:[#allocation2 + $0x280] sm:$0xff]
        %v2152 = vld [vmem:[#allocation2 + $0x290] sm:$0xff]
        %v2153 = vld [vmem:[#allocation2 + $0x2a0] sm:$0xff]
        %v2154 = vld [vmem:[#allocation2 + $0x2b0] sm:$0xff]
        %v2155 = vld [vmem:[#allocation2 + $0x2c0] sm:$0xff]
        %v2156 = vld [vmem:[#allocation2 + $0x2d0] sm:$0xff]
        %v2157 = vld [vmem:[#allocation2 + $0x2e0] sm:$0xff]
        %v2158 = vld [vmem:[#allocation2 + $0x2f0] sm:$0xff]
        %v2159 = vld [vmem:[#allocation2 + $0x300] sm:$0xff]
        %v2160 = vld [vmem:[#allocation2 + $0x310] sm:$0xff]
        %v2161 = vld [vmem:[#allocation2 + $0x320] sm:$0xff]
        %v2162 = vld [vmem:[#allocation2 + $0x330] sm:$0xff]
        %v2163 = vld [vmem:[#allocation2 + $0x340] sm:$0xff]
        %v2164 = vld [vmem:[#allocation2 + $0x350] sm:$0xff]
        %v2165 = vld [vmem:[#allocation2 + $0x360] sm:$0xff]
        %v2166 = vld [vmem:[#allocation2 + $0x370] sm:$0xff]
        %v2167 = vld [vmem:[#allocation2 + $0x380] sm:$0xff]
        %v2168 = vld [vmem:[#allocation2 + $0x390] sm:$0xff]
        %v2169 = vld [vmem:[#allocation2 + $0x3a0] sm:$0xff]
        %v2170 = vld [vmem:[#allocation2 + $0x3b0] sm:$0xff]
        %v2171 = vld [vmem:[#allocation2 + $0x3c0] sm:$0xff]
        %v2172 = vld [vmem:[#allocation2 + $0x3d0] sm:$0xff]
        %v2173 = vld [vmem:[#allocation2 + $0x3e0] sm:$0xff]
        %v2174 = vld [vmem:[#allocation2 + $0x3f0] sm:$0xff]
        %v2191 = vunpack.c.l.b16 %v2095
        %v2192 = vunpack.c.l.b16 %v2096
        %v2193 = vunpack.c.l.b16 %v2097
        %v2194 = vunpack.c.l.b16 %v2098
        %v2195 = vunpack.c.l.b16 %v2099
        %v2196 = vunpack.c.l.b16 %v2100
        %v2197 = vunpack.c.l.b16 %v2101
        %v2198 = vunpack.c.l.b16 %v2102
        %v2199 = vunpack.c.l.b16 %v2103
        %v2200 = vunpack.c.l.b16 %v2104
        %v2201 = vunpack.c.l.b16 %v2105
        %v2202 = vunpack.c.l.b16 %v2106
        %v2203 = vunpack.c.l.b16 %v2107
        %v2204 = vunpack.c.l.b16 %v2108
        %v2205 = vunpack.c.l.b16 %v2109
        %v2206 = vunpack.c.l.b16 %v2110
        %v2207 = vpack.c.b16 %v2192, %v2191
        %v2208 = vpack.c.b16 %v2194, %v2193
        %v2209 = vpack.c.b16 %v2196, %v2195
        %v2210 = vpack.c.b16 %v2198, %v2197
        %v2211 = vpack.c.b16 %v2200, %v2199
        %v2212 = vpack.c.b16 %v2202, %v2201
        %v2213 = vpack.c.b16 %v2204, %v2203
        %v2214 = vpack.c.b16 %v2206, %v2205
        %2223 = vmatprep.subr.bf16.mxu0 0
        %2224 = vmatpush1.bf16.msra.mxu0 %v2214
        %2225 = vmatprep.subr.bf16.mxu0 0
        %2226 = vmatpush1.bf16.msra.mxu0 %v2213
        %2227 = vmatprep.subr.bf16.mxu0 0
        %2228 = vmatpush1.bf16.msra.mxu0 %v2212
        %2229 = vmatprep.subr.bf16.mxu0 0
        %2230 = vmatpush1.bf16.msra.mxu0 %v2211
        %2231 = vmatprep.subr.bf16.mxu0 0
        %2232 = vmatpush1.bf16.msra.mxu0 %v2210
        %2233 = vmatprep.subr.bf16.mxu0 0
        %2234 = vmatpush1.bf16.msra.mxu0 %v2209
        %2235 = vmatprep.subr.bf16.mxu0 0
        %2236 = vmatpush1.bf16.msra.mxu0 %v2208
        %2237 = vmatprep.subr.bf16.mxu0 0
        %2238 = vmatpush1.bf16.msra.mxu0 %v2207
        %2239 = vmatprep.subr.bf16.mxu0 0
        %2240 = vmatpush2.bf16.msra.mxu0 0
        %2241 = vmatprep.subr.bf16.mxu0 0
        %2242 = vmatpush2.bf16.msra.mxu0 0
        %2243 = vmatprep.subr.bf16.mxu0 0
        %2244 = vmatpush2.bf16.msra.mxu0 0
        %2245 = vmatprep.subr.bf16.mxu0 0
        %2246 = vmatpush2.bf16.msra.mxu0 0
        %2247 = vmatprep.subr.bf16.mxu0 0
        %2248 = vmatpush2.bf16.msra.mxu0 0
        %2249 = vmatprep.subr.bf16.mxu0 0
        %2250 = vmatpush2.bf16.msra.mxu0 0
        %2251 = vmatprep.subr.bf16.mxu0 0
        %2252 = vmatpush2.bf16.msra.mxu0 0
        %2253 = vmatprep.subr.bf16.mxu0 0
        %2254 = vmatpush2.bf16.msra.mxu0 0
        %2255 = vmatprep.mubr.bf16.mxu0 0
        %2256 = vmatmul.mubr.bf16.gmra.mxu0 %v2063
        %v2257 = vpop.f32.mrf.mxu0
        %v2258 = vadd.f32 %v2111, %v2257
        %v2259 = vpop.f32.mrf.mxu0
        %v2260 = vpop.f32.mrf.mxu0
        %v2261 = vadd.f32 %v2112, %v2260
        %v2262 = vpop.f32.mrf.mxu0
        %2263 = vmatprep.mubr.bf16.mxu0 0
        %2264 = vmatmul.mubr.bf16.gmra.mxu0 %v2064
        %v2265 = vpop.f32.mrf.mxu0
        %v2266 = vadd.f32 %v2113, %v2265
        %v2267 = vpop.f32.mrf.mxu0
        %v2268 = vpop.f32.mrf.mxu0
        %v2269 = vadd.f32 %v2114, %v2268
        %v2270 = vpop.f32.mrf.mxu0
        %2271 = vmatprep.mubr.bf16.mxu0 0
        %2272 = vmatmul.mubr.bf16.gmra.mxu0 %v2065
        %v2273 = vpop.f32.mrf.mxu0
        %v2274 = vadd.f32 %v2115, %v2273
        %v2275 = vpop.f32.mrf.mxu0
        %v2276 = vpop.f32.mrf.mxu0
        %v2277 = vadd.f32 %v2116, %v2276
        %v2278 = vpop.f32.mrf.mxu0
        %2279 = vmatprep.mubr.bf16.mxu0 0
        %2280 = vmatmul.mubr.bf16.gmra.mxu0 %v2066
        %v2281 = vpop.f32.mrf.mxu0
        %v2282 = vadd.f32 %v2117, %v2281
        %v2283 = vpop.f32.mrf.mxu0
        %v2284 = vpop.f32.mrf.mxu0
        %v2285 = vadd.f32 %v2118, %v2284
        %v2286 = vpop.f32.mrf.mxu0
        %2287 = vmatprep.mubr.bf16.mxu0 0
        %2288 = vmatmul.mubr.bf16.gmra.mxu0 %v2067
        %v2289 = vpop.f32.mrf.mxu0
        %v2290 = vadd.f32 %v2119, %v2289
        %v2291 = vpop.f32.mrf.mxu0
        %v2292 = vpop.f32.mrf.mxu0
        %v2293 = vadd.f32 %v2120, %v2292
        %v2294 = vpop.f32.mrf.mxu0
        %2295 = vmatprep.mubr.bf16.mxu0 0
        %2296 = vmatmul.mubr.bf16.gmra.mxu0 %v2068
        %v2297 = vpop.f32.mrf.mxu0
        %v2298 = vadd.f32 %v2121, %v2297
        %v2299 = vpop.f32.mrf.mxu0
        %v2300 = vpop.f32.mrf.mxu0
        %v2301 = vadd.f32 %v2122, %v2300
        %v2302 = vpop.f32.mrf.mxu0
        %2303 = vmatprep.mubr.bf16.mxu0 0
        %2304 = vmatmul.mubr.bf16.gmra.mxu0 %v2069
        %v2305 = vpop.f32.mrf.mxu0
        %v2306 = vadd.f32 %v2123, %v2305
        %v2307 = vpop.f32.mrf.mxu0
        %v2308 = vpop.f32.mrf.mxu0
        %v2309 = vadd.f32 %v2124, %v2308
        %v2310 = vpop.f32.mrf.mxu0
        %2311 = vmatprep.mubr.bf16.mxu0 0
        %2312 = vmatmul.mubr.bf16.gmra.mxu0 %v2070
        %v2313 = vpop.f32.mrf.mxu0
        %v2314 = vadd.f32 %v2125, %v2313
        %v2315 = vpop.f32.mrf.mxu0
        %v2316 = vpop.f32.mrf.mxu0
        %v2317 = vadd.f32 %v2126, %v2316
        %v2318 = vpop.f32.mrf.mxu0
        %2319 = vmatprep.mubr.bf16.mxu0 0
        %2320 = vmatmul.mubr.bf16.gmra.mxu0 %v2071
        %v2321 = vpop.f32.mrf.mxu0
        %v2322 = vadd.f32 %v2127, %v2321
        %v2323 = vpop.f32.mrf.mxu0
        %v2324 = vpop.f32.mrf.mxu0
        %v2325 = vadd.f32 %v2128, %v2324
        %v2326 = vpop.f32.mrf.mxu0
        %2327 = vmatprep.mubr.bf16.mxu0 0
        %2328 = vmatmul.mubr.bf16.gmra.mxu0 %v2072
        %v2329 = vpop.f32.mrf.mxu0
        %v2330 = vadd.f32 %v2129, %v2329
        %v2331 = vpop.f32.mrf.mxu0
        %v2332 = vpop.f32.mrf.mxu0
        %v2333 = vadd.f32 %v2130, %v2332
        %v2334 = vpop.f32.mrf.mxu0
        %2335 = vmatprep.mubr.bf16.mxu0 0
        %2336 = vmatmul.mubr.bf16.gmra.mxu0 %v2073
        %v2337 = vpop.f32.mrf.mxu0
        %v2338 = vadd.f32 %v2131, %v2337
        %v2339 = vpop.f32.mrf.mxu0
        %v2340 = vpop.f32.mrf.mxu0
        %v2341 = vadd.f32 %v2132, %v2340
        %v2342 = vpop.f32.mrf.mxu0
        %2343 = vmatprep.mubr.bf16.mxu0 0
        %2344 = vmatmul.mubr.bf16.gmra.mxu0 %v2074
        %v2345 = vpop.f32.mrf.mxu0
        %v2346 = vadd.f32 %v2133, %v2345
        %v2347 = vpop.f32.mrf.mxu0
        %v2348 = vpop.f32.mrf.mxu0
        %v2349 = vadd.f32 %v2134, %v2348
        %v2350 = vpop.f32.mrf.mxu0
        %2351 = vmatprep.mubr.bf16.mxu0 0
        %2352 = vmatmul.mubr.bf16.gmra.mxu0 %v2075
        %v2353 = vpop.f32.mrf.mxu0
        %v2354 = vadd.f32 %v2135, %v2353
        %v2355 = vpop.f32.mrf.mxu0
        %v2356 = vpop.f32.mrf.mxu0
        %v2357 = vadd.f32 %v2136, %v2356
        %v2358 = vpop.f32.mrf.mxu0
        %2359 = vmatprep.mubr.bf16.mxu0 0
        %2360 = vmatmul.mubr.bf16.gmra.mxu0 %v2076
        %v2361 = vpop.f32.mrf.mxu0
        %v2362 = vadd.f32 %v2137, %v2361
        %v2363 = vpop.f32.mrf.mxu0
        %v2364 = vpop.f32.mrf.mxu0
        %v2365 = vadd.f32 %v2138, %v2364
        %v2366 = vpop.f32.mrf.mxu0
        %2367 = vmatprep.mubr.bf16.mxu0 0
        %2368 = vmatmul.mubr.bf16.gmra.mxu0 %v2077
        %v2369 = vpop.f32.mrf.mxu0
        %v2370 = vadd.f32 %v2139, %v2369
        %v2371 = vpop.f32.mrf.mxu0
        %v2372 = vpop.f32.mrf.mxu0
        %v2373 = vadd.f32 %v2140, %v2372
        %v2374 = vpop.f32.mrf.mxu0
        %2375 = vmatprep.mubr.bf16.mxu0 0
        %2376 = vmatmul.mubr.bf16.gmra.mxu0 %v2078
        %v2377 = vpop.f32.mrf.mxu0
        %v2378 = vadd.f32 %v2141, %v2377
        %v2379 = vpop.f32.mrf.mxu0
        %v2380 = vpop.f32.mrf.mxu0
        %v2381 = vadd.f32 %v2142, %v2380
        %v2382 = vpop.f32.mrf.mxu0
        %2383 = vmatprep.mubr.bf16.mxu0 0
        %2384 = vmatmul.mubr.bf16.gmra.mxu0 %v2079
        %v2385 = vpop.f32.mrf.mxu0
        %v2386 = vadd.f32 %v2143, %v2385
        %v2387 = vpop.f32.mrf.mxu0
        %v2388 = vpop.f32.mrf.mxu0
        %v2389 = vadd.f32 %v2144, %v2388
        %v2390 = vpop.f32.mrf.mxu0
        %2391 = vmatprep.mubr.bf16.mxu0 0
        %2392 = vmatmul.mubr.bf16.gmra.mxu0 %v2080
        %v2393 = vpop.f32.mrf.mxu0
        %v2394 = vadd.f32 %v2145, %v2393
        %v2395 = vpop.f32.mrf.mxu0
        %v2396 = vpop.f32.mrf.mxu0
        %v2397 = vadd.f32 %v2146, %v2396
        %v2398 = vpop.f32.mrf.mxu0
        %2399 = vmatprep.mubr.bf16.mxu0 0
        %2400 = vmatmul.mubr.bf16.gmra.mxu0 %v2081
        %v2401 = vpop.f32.mrf.mxu0
        %v2402 = vadd.f32 %v2147, %v2401
        %v2403 = vpop.f32.mrf.mxu0
        %v2404 = vpop.f32.mrf.mxu0
        %v2405 = vadd.f32 %v2148, %v2404
        %v2406 = vpop.f32.mrf.mxu0
        %2407 = vmatprep.mubr.bf16.mxu0 0
        %2408 = vmatmul.mubr.bf16.gmra.mxu0 %v2082
        %v2409 = vpop.f32.mrf.mxu0
        %v2410 = vadd.f32 %v2149, %v2409
        %v2411 = vpop.f32.mrf.mxu0
        %v2412 = vpop.f32.mrf.mxu0
        %v2413 = vadd.f32 %v2150, %v2412
        %v2414 = vpop.f32.mrf.mxu0
        %2415 = vmatprep.mubr.bf16.mxu0 0
        %2416 = vmatmul.mubr.bf16.gmra.mxu0 %v2083
        %v2417 = vpop.f32.mrf.mxu0
        %v2418 = vadd.f32 %v2151, %v2417
        %v2419 = vpop.f32.mrf.mxu0
        %v2420 = vpop.f32.mrf.mxu0
        %v2421 = vadd.f32 %v2152, %v2420
        %v2422 = vpop.f32.mrf.mxu0
        %2423 = vmatprep.mubr.bf16.mxu0 0
        %2424 = vmatmul.mubr.bf16.gmra.mxu0 %v2084
        %v2425 = vpop.f32.mrf.mxu0
        %v2426 = vadd.f32 %v2153, %v2425
        %v2427 = vpop.f32.mrf.mxu0
        %v2428 = vpop.f32.mrf.mxu0
        %v2429 = vadd.f32 %v2154, %v2428
        %v2430 = vpop.f32.mrf.mxu0
        %2431 = vmatprep.mubr.bf16.mxu0 0
        %2432 = vmatmul.mubr.bf16.gmra.mxu0 %v2085
        %v2433 = vpop.f32.mrf.mxu0
        %v2434 = vadd.f32 %v2155, %v2433
        %v2435 = vpop.f32.mrf.mxu0
        %v2436 = vpop.f32.mrf.mxu0
        %v2437 = vadd.f32 %v2156, %v2436
        %v2438 = vpop.f32.mrf.mxu0
        %2439 = vmatprep.mubr.bf16.mxu0 0
        %2440 = vmatmul.mubr.bf16.gmra.mxu0 %v2086
        %v2441 = vpop.f32.mrf.mxu0
        %v2442 = vadd.f32 %v2157, %v2441
        %v2443 = vpop.f32.mrf.mxu0
        %v2444 = vpop.f32.mrf.mxu0
        %v2445 = vadd.f32 %v2158, %v2444
        %v2446 = vpop.f32.mrf.mxu0
        %2447 = vmatprep.mubr.bf16.mxu0 0
        %2448 = vmatmul.mubr.bf16.gmra.mxu0 %v2087
        %v2449 = vpop.f32.mrf.mxu0
        %v2450 = vadd.f32 %v2159, %v2449
        %v2451 = vpop.f32.mrf.mxu0
        %v2452 = vpop.f32.mrf.mxu0
        %v2453 = vadd.f32 %v2160, %v2452
        %v2454 = vpop.f32.mrf.mxu0
        %2455 = vmatprep.mubr.bf16.mxu0 0
        %2456 = vmatmul.mubr.bf16.gmra.mxu0 %v2088
        %v2457 = vpop.f32.mrf.mxu0
        %v2458 = vadd.f32 %v2161, %v2457
        %v2459 = vpop.f32.mrf.mxu0
        %v2460 = vpop.f32.mrf.mxu0
        %v2461 = vadd.f32 %v2162, %v2460
        %v2462 = vpop.f32.mrf.mxu0
        %2463 = vmatprep.mubr.bf16.mxu0 0
        %2464 = vmatmul.mubr.bf16.gmra.mxu0 %v2089
        %v2465 = vpop.f32.mrf.mxu0
        %v2466 = vadd.f32 %v2163, %v2465
        %v2467 = vpop.f32.mrf.mxu0
        %v2468 = vpop.f32.mrf.mxu0
        %v2469 = vadd.f32 %v2164, %v2468
        %v2470 = vpop.f32.mrf.mxu0
        %2471 = vmatprep.mubr.bf16.mxu0 0
        %2472 = vmatmul.mubr.bf16.gmra.mxu0 %v2090
        %v2473 = vpop.f32.mrf.mxu0
        %v2474 = vadd.f32 %v2165, %v2473
        %v2475 = vpop.f32.mrf.mxu0
        %v2476 = vpop.f32.mrf.mxu0
        %v2477 = vadd.f32 %v2166, %v2476
        %v2478 = vpop.f32.mrf.mxu0
        %2479 = vmatprep.mubr.bf16.mxu0 0
        %2480 = vmatmul.mubr.bf16.gmra.mxu0 %v2091
        %v2481 = vpop.f32.mrf.mxu0
        %v2482 = vadd.f32 %v2167, %v2481
        %v2483 = vpop.f32.mrf.mxu0
        %v2484 = vpop.f32.mrf.mxu0
        %v2485 = vadd.f32 %v2168, %v2484
        %v2486 = vpop.f32.mrf.mxu0
        %2487 = vmatprep.mubr.bf16.mxu0 0
        %2488 = vmatmul.mubr.bf16.gmra.mxu0 %v2092
        %v2489 = vpop.f32.mrf.mxu0
        %v2490 = vadd.f32 %v2169, %v2489
        %v2491 = vpop.f32.mrf.mxu0
        %v2492 = vpop.f32.mrf.mxu0
        %v2493 = vadd.f32 %v2170, %v2492
        %v2494 = vpop.f32.mrf.mxu0
        %2495 = vmatprep.mubr.bf16.mxu0 0
        %2496 = vmatmul.mubr.bf16.gmra.mxu0 %v2093
        %v2497 = vpop.f32.mrf.mxu0
        %v2498 = vadd.f32 %v2171, %v2497
        %v2499 = vpop.f32.mrf.mxu0
        %v2500 = vpop.f32.mrf.mxu0
        %v2501 = vadd.f32 %v2172, %v2500
        %v2502 = vpop.f32.mrf.mxu0
        %2503 = vmatprep.mubr.bf16.mxu0 0
        %2504 = vmatmul.mubr.bf16.gmra.mxu0 %v2094
        %v2505 = vpop.f32.mrf.mxu0
        %v2506 = vadd.f32 %v2173, %v2505
        %v2507 = vpop.f32.mrf.mxu0
        %v2508 = vpop.f32.mrf.mxu0
        %v2509 = vadd.f32 %v2174, %v2508
        %v2510 = vpop.f32.mrf.mxu0
        %2511 = vdwg.mxu0
        %v2512 = vmax.f32 %v2258, 0.0
        %v2513 = vmax.f32 %v2261, 0.0
        %v2514 = vmax.f32 %v2266, 0.0
        %v2515 = vmax.f32 %v2269, 0.0
        %v2516 = vmax.f32 %v2274, 0.0
        %v2517 = vmax.f32 %v2277, 0.0
        %v2518 = vmax.f32 %v2282, 0.0
        %v2519 = vmax.f32 %v2285, 0.0
        %v2520 = vmax.f32 %v2290, 0.0
        %v2521 = vmax.f32 %v2293, 0.0
        %v2522 = vmax.f32 %v2298, 0.0
        %v2523 = vmax.f32 %v2301, 0.0
        %v2524 = vmax.f32 %v2306, 0.0
        %v2525 = vmax.f32 %v2309, 0.0
        %v2526 = vmax.f32 %v2314, 0.0
        %v2527 = vmax.f32 %v2317, 0.0
        %v2528 = vmax.f32 %v2322, 0.0
        %v2529 = vmax.f32 %v2325, 0.0
        %v2530 = vmax.f32 %v2330, 0.0
        %v2531 = vmax.f32 %v2333, 0.0
        %v2532 = vmax.f32 %v2338, 0.0
        %v2533 = vmax.f32 %v2341, 0.0
        %v2534 = vmax.f32 %v2346, 0.0
        %v2535 = vmax.f32 %v2349, 0.0
        %v2536 = vmax.f32 %v2354, 0.0
        %v2537 = vmax.f32 %v2357, 0.0
        %v2538 = vmax.f32 %v2362, 0.0
        %v2539 = vmax.f32 %v2365, 0.0
        %v2540 = vmax.f32 %v2370, 0.0
        %v2541 = vmax.f32 %v2373, 0.0
        %v2542 = vmax.f32 %v2378, 0.0
        %v2543 = vmax.f32 %v2381, 0.0
        %v2544 = vmax.f32 %v2386, 0.0
        %v2545 = vmax.f32 %v2389, 0.0
        %v2546 = vmax.f32 %v2394, 0.0
        %v2547 = vmax.f32 %v2397, 0.0
        %v2548 = vmax.f32 %v2402, 0.0
        %v2549 = vmax.f32 %v2405, 0.0
        %v2550 = vmax.f32 %v2410, 0.0
        %v2551 = vmax.f32 %v2413, 0.0
        %v2552 = vmax.f32 %v2418, 0.0
        %v2553 = vmax.f32 %v2421, 0.0
        %v2554 = vmax.f32 %v2426, 0.0
        %v2555 = vmax.f32 %v2429, 0.0
        %v2556 = vmax.f32 %v2434, 0.0
        %v2557 = vmax.f32 %v2437, 0.0
        %v2558 = vmax.f32 %v2442, 0.0
        %v2559 = vmax.f32 %v2445, 0.0
        %v2560 = vmax.f32 %v2450, 0.0
        %v2561 = vmax.f32 %v2453, 0.0
        %v2562 = vmax.f32 %v2458, 0.0
        %v2563 = vmax.f32 %v2461, 0.0
        %v2564 = vmax.f32 %v2466, 0.0
        %v2565 = vmax.f32 %v2469, 0.0
        %v2566 = vmax.f32 %v2474, 0.0
        %v2567 = vmax.f32 %v2477, 0.0
        %v2568 = vmax.f32 %v2482, 0.0
        %v2569 = vmax.f32 %v2485, 0.0
        %v2570 = vmax.f32 %v2490, 0.0
        %v2571 = vmax.f32 %v2493, 0.0
        %v2572 = vmax.f32 %v2498, 0.0
        %v2573 = vmax.f32 %v2501, 0.0
        %v2574 = vmax.f32 %v2506, 0.0
        %v2575 = vmax.f32 %v2509, 0.0
        %v2576 = vpack.c.bf16 %v2513, %v2512
        %v2577 = vpack.c.bf16 %v2515, %v2514
        %v2578 = vpack.c.bf16 %v2517, %v2516
        %v2579 = vpack.c.bf16 %v2519, %v2518
        %v2580 = vpack.c.bf16 %v2521, %v2520
        %v2581 = vpack.c.bf16 %v2523, %v2522
        %v2582 = vpack.c.bf16 %v2525, %v2524
        %v2583 = vpack.c.bf16 %v2527, %v2526
        %v2584 = vpack.c.bf16 %v2529, %v2528
        %v2585 = vpack.c.bf16 %v2531, %v2530
        %v2586 = vpack.c.bf16 %v2533, %v2532
        %v2587 = vpack.c.bf16 %v2535, %v2534
        %v2588 = vpack.c.bf16 %v2537, %v2536
        %v2589 = vpack.c.bf16 %v2539, %v2538
        %v2590 = vpack.c.bf16 %v2541, %v2540
        %v2591 = vpack.c.bf16 %v2543, %v2542
        %v2592 = vpack.c.bf16 %v2545, %v2544
        %v2593 = vpack.c.bf16 %v2547, %v2546
        %v2594 = vpack.c.bf16 %v2549, %v2548
        %v2595 = vpack.c.bf16 %v2551, %v2550
        %v2596 = vpack.c.bf16 %v2553, %v2552
        %v2597 = vpack.c.bf16 %v2555, %v2554
        %v2598 = vpack.c.bf16 %v2557, %v2556
        %v2599 = vpack.c.bf16 %v2559, %v2558
        %v2600 = vpack.c.bf16 %v2561, %v2560
        %v2601 = vpack.c.bf16 %v2563, %v2562
        %v2602 = vpack.c.bf16 %v2565, %v2564
        %v2603 = vpack.c.bf16 %v2567, %v2566
        %v2604 = vpack.c.bf16 %v2569, %v2568
        %v2605 = vpack.c.bf16 %v2571, %v2570
        %v2606 = vpack.c.bf16 %v2573, %v2572
        %v2607 = vpack.c.bf16 %v2575, %v2574
        %v2608 = vld [vmem:[#allocation9] sm:$0xf]
        %v2609 = vld [vmem:[#allocation9 + $0x4] sm:$0xf]
        %v2610 = vld [vmem:[#allocation9 + $0x8] sm:$0xf]
        %v2611 = vld [vmem:[#allocation9 + $0xc] sm:$0xf]
        %v2612 = vld [vmem:[#allocation9 + $0x10] sm:$0xf]
        %v2613 = vld [vmem:[#allocation9 + $0x14] sm:$0xf]
        %v2614 = vld [vmem:[#allocation9 + $0x18] sm:$0xf]
        %v2615 = vld [vmem:[#allocation9 + $0x1c] sm:$0xf]
        %v2616 = vld [vmem:[#allocation9 + $0x20] sm:$0xf]
        %v2617 = vld [vmem:[#allocation9 + $0x24] sm:$0xf]
        %v2618 = vld [vmem:[#allocation9 + $0x28] sm:$0xf]
        %v2619 = vld [vmem:[#allocation9 + $0x2c] sm:$0xf]
        %v2620 = vld [vmem:[#allocation9 + $0x30] sm:$0xf]
        %v2621 = vld [vmem:[#allocation9 + $0x34] sm:$0xf]
        %v2622 = vld [vmem:[#allocation9 + $0x38] sm:$0xf]
        %v2623 = vld [vmem:[#allocation9 + $0x3c] sm:$0xf]
        %v2624 = vld [vmem:[#allocation2 + $0x8] sm:$0xff]
        %v2625 = vld [vmem:[#allocation2 + $0x18] sm:$0xff]
        %v2626 = vld [vmem:[#allocation2 + $0x28] sm:$0xff]
        %v2627 = vld [vmem:[#allocation2 + $0x38] sm:$0xff]
        %v2628 = vld [vmem:[#allocation2 + $0x48] sm:$0xff]
        %v2629 = vld [vmem:[#allocation2 + $0x58] sm:$0xff]
        %v2630 = vld [vmem:[#allocation2 + $0x68] sm:$0xff]
        %v2631 = vld [vmem:[#allocation2 + $0x78] sm:$0xff]
        %v2632 = vld [vmem:[#allocation2 + $0x88] sm:$0xff]
        %v2633 = vld [vmem:[#allocation2 + $0x98] sm:$0xff]
        %v2634 = vld [vmem:[#allocation2 + $0xa8] sm:$0xff]
        %v2635 = vld [vmem:[#allocation2 + $0xb8] sm:$0xff]
        %v2636 = vld [vmem:[#allocation2 + $0xc8] sm:$0xff]
        %v2637 = vld [vmem:[#allocation2 + $0xd8] sm:$0xff]
        %v2638 = vld [vmem:[#allocation2 + $0xe8] sm:$0xff]
        %v2639 = vld [vmem:[#allocation2 + $0xf8] sm:$0xff]
        %v2640 = vld [vmem:[#allocation2 + $0x108] sm:$0xff]
        %v2641 = vld [vmem:[#allocation2 + $0x118] sm:$0xff]
        %v2642 = vld [vmem:[#allocation2 + $0x128] sm:$0xff]
        %v2643 = vld [vmem:[#allocation2 + $0x138] sm:$0xff]
        %v2644 = vld [vmem:[#allocation2 + $0x148] sm:$0xff]
        %v2645 = vld [vmem:[#allocation2 + $0x158] sm:$0xff]
        %v2646 = vld [vmem:[#allocation2 + $0x168] sm:$0xff]
        %v2647 = vld [vmem:[#allocation2 + $0x178] sm:$0xff]
        %v2648 = vld [vmem:[#allocation2 + $0x188] sm:$0xff]
        %v2649 = vld [vmem:[#allocation2 + $0x198] sm:$0xff]
        %v2650 = vld [vmem:[#allocation2 + $0x1a8] sm:$0xff]
        %v2651 = vld [vmem:[#allocation2 + $0x1b8] sm:$0xff]
        %v2652 = vld [vmem:[#allocation2 + $0x1c8] sm:$0xff]
        %v2653 = vld [vmem:[#allocation2 + $0x1d8] sm:$0xff]
        %v2654 = vld [vmem:[#allocation2 + $0x1e8] sm:$0xff]
        %v2655 = vld [vmem:[#allocation2 + $0x1f8] sm:$0xff]
        %v2656 = vld [vmem:[#allocation2 + $0x208] sm:$0xff]
        %v2657 = vld [vmem:[#allocation2 + $0x218] sm:$0xff]
        %v2658 = vld [vmem:[#allocation2 + $0x228] sm:$0xff]
        %v2659 = vld [vmem:[#allocation2 + $0x238] sm:$0xff]
        %v2660 = vld [vmem:[#allocation2 + $0x248] sm:$0xff]
        %v2661 = vld [vmem:[#allocation2 + $0x258] sm:$0xff]
        %v2662 = vld [vmem:[#allocation2 + $0x268] sm:$0xff]
        %v2663 = vld [vmem:[#allocation2 + $0x278] sm:$0xff]
        %v2664 = vld [vmem:[#allocation2 + $0x288] sm:$0xff]
        %v2665 = vld [vmem:[#allocation2 + $0x298] sm:$0xff]
        %v2666 = vld [vmem:[#allocation2 + $0x2a8] sm:$0xff]
        %v2667 = vld [vmem:[#allocation2 + $0x2b8] sm:$0xff]
        %v2668 = vld [vmem:[#allocation2 + $0x2c8] sm:$0xff]
        %v2669 = vld [vmem:[#allocation2 + $0x2d8] sm:$0xff]
        %v2670 = vld [vmem:[#allocation2 + $0x2e8] sm:$0xff]
        %v2671 = vld [vmem:[#allocation2 + $0x2f8] sm:$0xff]
        %v2672 = vld [vmem:[#allocation2 + $0x308] sm:$0xff]
        %v2673 = vld [vmem:[#allocation2 + $0x318] sm:$0xff]
        %v2674 = vld [vmem:[#allocation2 + $0x328] sm:$0xff]
        %v2675 = vld [vmem:[#allocation2 + $0x338] sm:$0xff]
        %v2676 = vld [vmem:[#allocation2 + $0x348] sm:$0xff]
        %v2677 = vld [vmem:[#allocation2 + $0x358] sm:$0xff]
        %v2678 = vld [vmem:[#allocation2 + $0x368] sm:$0xff]
        %v2679 = vld [vmem:[#allocation2 + $0x378] sm:$0xff]
        %v2680 = vld [vmem:[#allocation2 + $0x388] sm:$0xff]
        %v2681 = vld [vmem:[#allocation2 + $0x398] sm:$0xff]
        %v2682 = vld [vmem:[#allocation2 + $0x3a8] sm:$0xff]
        %v2683 = vld [vmem:[#allocation2 + $0x3b8] sm:$0xff]
        %v2684 = vld [vmem:[#allocation2 + $0x3c8] sm:$0xff]
        %v2685 = vld [vmem:[#allocation2 + $0x3d8] sm:$0xff]
        %v2686 = vld [vmem:[#allocation2 + $0x3e8] sm:$0xff]
        %v2687 = vld [vmem:[#allocation2 + $0x3f8] sm:$0xff]
        %v2704 = vunpack.c.l.b16 %v2608
        %v2705 = vunpack.c.l.b16 %v2609
        %v2706 = vunpack.c.l.b16 %v2610
        %v2707 = vunpack.c.l.b16 %v2611
        %v2708 = vunpack.c.l.b16 %v2612
        %v2709 = vunpack.c.l.b16 %v2613
        %v2710 = vunpack.c.l.b16 %v2614
        %v2711 = vunpack.c.l.b16 %v2615
        %v2712 = vunpack.c.l.b16 %v2616
        %v2713 = vunpack.c.l.b16 %v2617
        %v2714 = vunpack.c.l.b16 %v2618
        %v2715 = vunpack.c.l.b16 %v2619
        %v2716 = vunpack.c.l.b16 %v2620
        %v2717 = vunpack.c.l.b16 %v2621
        %v2718 = vunpack.c.l.b16 %v2622
        %v2719 = vunpack.c.l.b16 %v2623
        %v2720 = vpack.c.b16 %v2705, %v2704
        %v2721 = vpack.c.b16 %v2707, %v2706
        %v2722 = vpack.c.b16 %v2709, %v2708
        %v2723 = vpack.c.b16 %v2711, %v2710
        %v2724 = vpack.c.b16 %v2713, %v2712
        %v2725 = vpack.c.b16 %v2715, %v2714
        %v2726 = vpack.c.b16 %v2717, %v2716
        %v2727 = vpack.c.b16 %v2719, %v2718
        %2736 = vmatprep.subr.bf16.mxu0 0
        %2737 = vmatpush1.bf16.msra.mxu0 %v2727
        %2738 = vmatprep.subr.bf16.mxu0 0
        %2739 = vmatpush1.bf16.msra.mxu0 %v2726
        %2740 = vmatprep.subr.bf16.mxu0 0
        %2741 = vmatpush1.bf16.msra.mxu0 %v2725
        %2742 = vmatprep.subr.bf16.mxu0 0
        %2743 = vmatpush1.bf16.msra.mxu0 %v2724
        %2744 = vmatprep.subr.bf16.mxu0 0
        %2745 = vmatpush1.bf16.msra.mxu0 %v2723
        %2746 = vmatprep.subr.bf16.mxu0 0
        %2747 = vmatpush1.bf16.msra.mxu0 %v2722
        %2748 = vmatprep.subr.bf16.mxu0 0
        %2749 = vmatpush1.bf16.msra.mxu0 %v2721
        %2750 = vmatprep.subr.bf16.mxu0 0
        %2751 = vmatpush1.bf16.msra.mxu0 %v2720
        %2752 = vmatprep.subr.bf16.mxu0 0
        %2753 = vmatpush2.bf16.msra.mxu0 0
        %2754 = vmatprep.subr.bf16.mxu0 0
        %2755 = vmatpush2.bf16.msra.mxu0 0
        %2756 = vmatprep.subr.bf16.mxu0 0
        %2757 = vmatpush2.bf16.msra.mxu0 0
        %2758 = vmatprep.subr.bf16.mxu0 0
        %2759 = vmatpush2.bf16.msra.mxu0 0
        %2760 = vmatprep.subr.bf16.mxu0 0
        %2761 = vmatpush2.bf16.msra.mxu0 0
        %2762 = vmatprep.subr.bf16.mxu0 0
        %2763 = vmatpush2.bf16.msra.mxu0 0
        %2764 = vmatprep.subr.bf16.mxu0 0
        %2765 = vmatpush2.bf16.msra.mxu0 0
        %2766 = vmatprep.subr.bf16.mxu0 0
        %2767 = vmatpush2.bf16.msra.mxu0 0
        %2768 = vmatprep.mubr.bf16.mxu0 0
        %2769 = vmatmul.mubr.bf16.gmra.mxu0 %v2576
        %v2770 = vpop.f32.mrf.mxu0
        %v2771 = vadd.f32 %v2624, %v2770
        %v2772 = vpop.f32.mrf.mxu0
        %v2773 = vpop.f32.mrf.mxu0
        %v2774 = vadd.f32 %v2625, %v2773
        %v2775 = vpop.f32.mrf.mxu0
        %2776 = vmatprep.mubr.bf16.mxu0 0
        %2777 = vmatmul.mubr.bf16.gmra.mxu0 %v2577
        %v2778 = vpop.f32.mrf.mxu0
        %v2779 = vadd.f32 %v2626, %v2778
        %v2780 = vpop.f32.mrf.mxu0
        %v2781 = vpop.f32.mrf.mxu0
        %v2782 = vadd.f32 %v2627, %v2781
        %v2783 = vpop.f32.mrf.mxu0
        %2784 = vmatprep.mubr.bf16.mxu0 0
        %2785 = vmatmul.mubr.bf16.gmra.mxu0 %v2578
        %v2786 = vpop.f32.mrf.mxu0
        %v2787 = vadd.f32 %v2628, %v2786
        %v2788 = vpop.f32.mrf.mxu0
        %v2789 = vpop.f32.mrf.mxu0
        %v2790 = vadd.f32 %v2629, %v2789
        %v2791 = vpop.f32.mrf.mxu0
        %2792 = vmatprep.mubr.bf16.mxu0 0
        %2793 = vmatmul.mubr.bf16.gmra.mxu0 %v2579
        %v2794 = vpop.f32.mrf.mxu0
        %v2795 = vadd.f32 %v2630, %v2794
        %v2796 = vpop.f32.mrf.mxu0
        %v2797 = vpop.f32.mrf.mxu0
        %v2798 = vadd.f32 %v2631, %v2797
        %v2799 = vpop.f32.mrf.mxu0
        %2800 = vmatprep.mubr.bf16.mxu0 0
        %2801 = vmatmul.mubr.bf16.gmra.mxu0 %v2580
        %v2802 = vpop.f32.mrf.mxu0
        %v2803 = vadd.f32 %v2632, %v2802
        %v2804 = vpop.f32.mrf.mxu0
        %v2805 = vpop.f32.mrf.mxu0
        %v2806 = vadd.f32 %v2633, %v2805
        %v2807 = vpop.f32.mrf.mxu0
        %2808 = vmatprep.mubr.bf16.mxu0 0
        %2809 = vmatmul.mubr.bf16.gmra.mxu0 %v2581
        %v2810 = vpop.f32.mrf.mxu0
        %v2811 = vadd.f32 %v2634, %v2810
        %v2812 = vpop.f32.mrf.mxu0
        %v2813 = vpop.f32.mrf.mxu0
        %v2814 = vadd.f32 %v2635, %v2813
        %v2815 = vpop.f32.mrf.mxu0
        %2816 = vmatprep.mubr.bf16.mxu0 0
        %2817 = vmatmul.mubr.bf16.gmra.mxu0 %v2582
        %v2818 = vpop.f32.mrf.mxu0
        %v2819 = vadd.f32 %v2636, %v2818
        %v2820 = vpop.f32.mrf.mxu0
        %v2821 = vpop.f32.mrf.mxu0
        %v2822 = vadd.f32 %v2637, %v2821
        %v2823 = vpop.f32.mrf.mxu0
        %2824 = vmatprep.mubr.bf16.mxu0 0
        %2825 = vmatmul.mubr.bf16.gmra.mxu0 %v2583
        %v2826 = vpop.f32.mrf.mxu0
        %v2827 = vadd.f32 %v2638, %v2826
        %v2828 = vpop.f32.mrf.mxu0
        %v2829 = vpop.f32.mrf.mxu0
        %v2830 = vadd.f32 %v2639, %v2829
        %v2831 = vpop.f32.mrf.mxu0
        %2832 = vmatprep.mubr.bf16.mxu0 0
        %2833 = vmatmul.mubr.bf16.gmra.mxu0 %v2584
        %v2834 = vpop.f32.mrf.mxu0
        %v2835 = vadd.f32 %v2640, %v2834
        %v2836 = vpop.f32.mrf.mxu0
        %v2837 = vpop.f32.mrf.mxu0
        %v2838 = vadd.f32 %v2641, %v2837
        %v2839 = vpop.f32.mrf.mxu0
        %2840 = vmatprep.mubr.bf16.mxu0 0
        %2841 = vmatmul.mubr.bf16.gmra.mxu0 %v2585
        %v2842 = vpop.f32.mrf.mxu0
        %v2843 = vadd.f32 %v2642, %v2842
        %v2844 = vpop.f32.mrf.mxu0
        %v2845 = vpop.f32.mrf.mxu0
        %v2846 = vadd.f32 %v2643, %v2845
        %v2847 = vpop.f32.mrf.mxu0
        %2848 = vmatprep.mubr.bf16.mxu0 0
        %2849 = vmatmul.mubr.bf16.gmra.mxu0 %v2586
        %v2850 = vpop.f32.mrf.mxu0
        %v2851 = vadd.f32 %v2644, %v2850
        %v2852 = vpop.f32.mrf.mxu0
        %v2853 = vpop.f32.mrf.mxu0
        %v2854 = vadd.f32 %v2645, %v2853
        %v2855 = vpop.f32.mrf.mxu0
        %2856 = vmatprep.mubr.bf16.mxu0 0
        %2857 = vmatmul.mubr.bf16.gmra.mxu0 %v2587
        %v2858 = vpop.f32.mrf.mxu0
        %v2859 = vadd.f32 %v2646, %v2858
        %v2860 = vpop.f32.mrf.mxu0
        %v2861 = vpop.f32.mrf.mxu0
        %v2862 = vadd.f32 %v2647, %v2861
        %v2863 = vpop.f32.mrf.mxu0
        %2864 = vmatprep.mubr.bf16.mxu0 0
        %2865 = vmatmul.mubr.bf16.gmra.mxu0 %v2588
        %v2866 = vpop.f32.mrf.mxu0
        %v2867 = vadd.f32 %v2648, %v2866
        %v2868 = vpop.f32.mrf.mxu0
        %v2869 = vpop.f32.mrf.mxu0
        %v2870 = vadd.f32 %v2649, %v2869
        %v2871 = vpop.f32.mrf.mxu0
        %2872 = vmatprep.mubr.bf16.mxu0 0
        %2873 = vmatmul.mubr.bf16.gmra.mxu0 %v2589
        %v2874 = vpop.f32.mrf.mxu0
        %v2875 = vadd.f32 %v2650, %v2874
        %v2876 = vpop.f32.mrf.mxu0
        %v2877 = vpop.f32.mrf.mxu0
        %v2878 = vadd.f32 %v2651, %v2877
        %v2879 = vpop.f32.mrf.mxu0
        %2880 = vmatprep.mubr.bf16.mxu0 0
        %2881 = vmatmul.mubr.bf16.gmra.mxu0 %v2590
        %v2882 = vpop.f32.mrf.mxu0
        %v2883 = vadd.f32 %v2652, %v2882
        %v2884 = vpop.f32.mrf.mxu0
        %v2885 = vpop.f32.mrf.mxu0
        %v2886 = vadd.f32 %v2653, %v2885
        %v2887 = vpop.f32.mrf.mxu0
        %2888 = vmatprep.mubr.bf16.mxu0 0
        %2889 = vmatmul.mubr.bf16.gmra.mxu0 %v2591
        %v2890 = vpop.f32.mrf.mxu0
        %v2891 = vadd.f32 %v2654, %v2890
        %v2892 = vpop.f32.mrf.mxu0
        %v2893 = vpop.f32.mrf.mxu0
        %v2894 = vadd.f32 %v2655, %v2893
        %v2895 = vpop.f32.mrf.mxu0
        %2896 = vmatprep.mubr.bf16.mxu0 0
        %2897 = vmatmul.mubr.bf16.gmra.mxu0 %v2592
        %v2898 = vpop.f32.mrf.mxu0
        %v2899 = vadd.f32 %v2656, %v2898
        %v2900 = vpop.f32.mrf.mxu0
        %v2901 = vpop.f32.mrf.mxu0
        %v2902 = vadd.f32 %v2657, %v2901
        %v2903 = vpop.f32.mrf.mxu0
        %2904 = vmatprep.mubr.bf16.mxu0 0
        %2905 = vmatmul.mubr.bf16.gmra.mxu0 %v2593
        %v2906 = vpop.f32.mrf.mxu0
        %v2907 = vadd.f32 %v2658, %v2906
        %v2908 = vpop.f32.mrf.mxu0
        %v2909 = vpop.f32.mrf.mxu0
        %v2910 = vadd.f32 %v2659, %v2909
        %v2911 = vpop.f32.mrf.mxu0
        %2912 = vmatprep.mubr.bf16.mxu0 0
        %2913 = vmatmul.mubr.bf16.gmra.mxu0 %v2594
        %v2914 = vpop.f32.mrf.mxu0
        %v2915 = vadd.f32 %v2660, %v2914
        %v2916 = vpop.f32.mrf.mxu0
        %v2917 = vpop.f32.mrf.mxu0
        %v2918 = vadd.f32 %v2661, %v2917
        %v2919 = vpop.f32.mrf.mxu0
        %2920 = vmatprep.mubr.bf16.mxu0 0
        %2921 = vmatmul.mubr.bf16.gmra.mxu0 %v2595
        %v2922 = vpop.f32.mrf.mxu0
        %v2923 = vadd.f32 %v2662, %v2922
        %v2924 = vpop.f32.mrf.mxu0
        %v2925 = vpop.f32.mrf.mxu0
        %v2926 = vadd.f32 %v2663, %v2925
        %v2927 = vpop.f32.mrf.mxu0
        %2928 = vmatprep.mubr.bf16.mxu0 0
        %2929 = vmatmul.mubr.bf16.gmra.mxu0 %v2596
        %v2930 = vpop.f32.mrf.mxu0
        %v2931 = vadd.f32 %v2664, %v2930
        %v2932 = vpop.f32.mrf.mxu0
        %v2933 = vpop.f32.mrf.mxu0
        %v2934 = vadd.f32 %v2665, %v2933
        %v2935 = vpop.f32.mrf.mxu0
        %2936 = vmatprep.mubr.bf16.mxu0 0
        %2937 = vmatmul.mubr.bf16.gmra.mxu0 %v2597
        %v2938 = vpop.f32.mrf.mxu0
        %v2939 = vadd.f32 %v2666, %v2938
        %v2940 = vpop.f32.mrf.mxu0
        %v2941 = vpop.f32.mrf.mxu0
        %v2942 = vadd.f32 %v2667, %v2941
        %v2943 = vpop.f32.mrf.mxu0
        %2944 = vmatprep.mubr.bf16.mxu0 0
        %2945 = vmatmul.mubr.bf16.gmra.mxu0 %v2598
        %v2946 = vpop.f32.mrf.mxu0
        %v2947 = vadd.f32 %v2668, %v2946
        %v2948 = vpop.f32.mrf.mxu0
        %v2949 = vpop.f32.mrf.mxu0
        %v2950 = vadd.f32 %v2669, %v2949
        %v2951 = vpop.f32.mrf.mxu0
        %2952 = vmatprep.mubr.bf16.mxu0 0
        %2953 = vmatmul.mubr.bf16.gmra.mxu0 %v2599
        %v2954 = vpop.f32.mrf.mxu0
        %v2955 = vadd.f32 %v2670, %v2954
        %v2956 = vpop.f32.mrf.mxu0
        %v2957 = vpop.f32.mrf.mxu0
        %v2958 = vadd.f32 %v2671, %v2957
        %v2959 = vpop.f32.mrf.mxu0
        %2960 = vmatprep.mubr.bf16.mxu0 0
        %2961 = vmatmul.mubr.bf16.gmra.mxu0 %v2600
        %v2962 = vpop.f32.mrf.mxu0
        %v2963 = vadd.f32 %v2672, %v2962
        %v2964 = vpop.f32.mrf.mxu0
        %v2965 = vpop.f32.mrf.mxu0
        %v2966 = vadd.f32 %v2673, %v2965
        %v2967 = vpop.f32.mrf.mxu0
        %2968 = vmatprep.mubr.bf16.mxu0 0
        %2969 = vmatmul.mubr.bf16.gmra.mxu0 %v2601
        %v2970 = vpop.f32.mrf.mxu0
        %v2971 = vadd.f32 %v2674, %v2970
        %v2972 = vpop.f32.mrf.mxu0
        %v2973 = vpop.f32.mrf.mxu0
        %v2974 = vadd.f32 %v2675, %v2973
        %v2975 = vpop.f32.mrf.mxu0
        %2976 = vmatprep.mubr.bf16.mxu0 0
        %2977 = vmatmul.mubr.bf16.gmra.mxu0 %v2602
        %v2978 = vpop.f32.mrf.mxu0
        %v2979 = vadd.f32 %v2676, %v2978
        %v2980 = vpop.f32.mrf.mxu0
        %v2981 = vpop.f32.mrf.mxu0
        %v2982 = vadd.f32 %v2677, %v2981
        %v2983 = vpop.f32.mrf.mxu0
        %2984 = vmatprep.mubr.bf16.mxu0 0
        %2985 = vmatmul.mubr.bf16.gmra.mxu0 %v2603
        %v2986 = vpop.f32.mrf.mxu0
        %v2987 = vadd.f32 %v2678, %v2986
        %v2988 = vpop.f32.mrf.mxu0
        %v2989 = vpop.f32.mrf.mxu0
        %v2990 = vadd.f32 %v2679, %v2989
        %v2991 = vpop.f32.mrf.mxu0
        %2992 = vmatprep.mubr.bf16.mxu0 0
        %2993 = vmatmul.mubr.bf16.gmra.mxu0 %v2604
        %v2994 = vpop.f32.mrf.mxu0
        %v2995 = vadd.f32 %v2680, %v2994
        %v2996 = vpop.f32.mrf.mxu0
        %v2997 = vpop.f32.mrf.mxu0
        %v2998 = vadd.f32 %v2681, %v2997
        %v2999 = vpop.f32.mrf.mxu0
        %3000 = vmatprep.mubr.bf16.mxu0 0
        %3001 = vmatmul.mubr.bf16.gmra.mxu0 %v2605
        %v3002 = vpop.f32.mrf.mxu0
        %v3003 = vadd.f32 %v2682, %v3002
        %v3004 = vpop.f32.mrf.mxu0
        %v3005 = vpop.f32.mrf.mxu0
        %v3006 = vadd.f32 %v2683, %v3005
        %v3007 = vpop.f32.mrf.mxu0
        %3008 = vmatprep.mubr.bf16.mxu0 0
        %3009 = vmatmul.mubr.bf16.gmra.mxu0 %v2606
        %v3010 = vpop.f32.mrf.mxu0
        %v3011 = vadd.f32 %v2684, %v3010
        %v3012 = vpop.f32.mrf.mxu0
        %v3013 = vpop.f32.mrf.mxu0
        %v3014 = vadd.f32 %v2685, %v3013
        %v3015 = vpop.f32.mrf.mxu0
        %3016 = vmatprep.mubr.bf16.mxu0 0
        %3017 = vmatmul.mubr.bf16.gmra.mxu0 %v2607
        %v3018 = vpop.f32.mrf.mxu0
        %v3019 = vadd.f32 %v2686, %v3018
        %v3020 = vpop.f32.mrf.mxu0
        %v3021 = vpop.f32.mrf.mxu0
        %v3022 = vadd.f32 %v2687, %v3021
        %v3023 = vpop.f32.mrf.mxu0
        %3024 = vdwg.mxu0
        %v3025 = vmax.f32 %v2771, 0.0
        %v3026 = vmax.f32 %v2774, 0.0
        %v3027 = vmax.f32 %v2779, 0.0
        %v3028 = vmax.f32 %v2782, 0.0
        %v3029 = vmax.f32 %v2787, 0.0
        %v3030 = vmax.f32 %v2790, 0.0
        %v3031 = vmax.f32 %v2795, 0.0
        %v3032 = vmax.f32 %v2798, 0.0
        %v3033 = vmax.f32 %v2803, 0.0
        %v3034 = vmax.f32 %v2806, 0.0
        %v3035 = vmax.f32 %v2811, 0.0
        %v3036 = vmax.f32 %v2814, 0.0
        %v3037 = vmax.f32 %v2819, 0.0
        %v3038 = vmax.f32 %v2822, 0.0
        %v3039 = vmax.f32 %v2827, 0.0
        %v3040 = vmax.f32 %v2830, 0.0
        %v3041 = vmax.f32 %v2835, 0.0
        %v3042 = vmax.f32 %v2838, 0.0
        %v3043 = vmax.f32 %v2843, 0.0
        %v3044 = vmax.f32 %v2846, 0.0
        %v3045 = vmax.f32 %v2851, 0.0
        %v3046 = vmax.f32 %v2854, 0.0
        %v3047 = vmax.f32 %v2859, 0.0
        %v3048 = vmax.f32 %v2862, 0.0
        %v3049 = vmax.f32 %v2867, 0.0
        %v3050 = vmax.f32 %v2870, 0.0
        %v3051 = vmax.f32 %v2875, 0.0
        %v3052 = vmax.f32 %v2878, 0.0
        %v3053 = vmax.f32 %v2883, 0.0
        %v3054 = vmax.f32 %v2886, 0.0
        %v3055 = vmax.f32 %v2891, 0.0
        %v3056 = vmax.f32 %v2894, 0.0
        %v3057 = vmax.f32 %v2899, 0.0
        %v3058 = vmax.f32 %v2902, 0.0
        %v3059 = vmax.f32 %v2907, 0.0
        %v3060 = vmax.f32 %v2910, 0.0
        %v3061 = vmax.f32 %v2915, 0.0
        %v3062 = vmax.f32 %v2918, 0.0
        %v3063 = vmax.f32 %v2923, 0.0
        %v3064 = vmax.f32 %v2926, 0.0
        %v3065 = vmax.f32 %v2931, 0.0
        %v3066 = vmax.f32 %v2934, 0.0
        %v3067 = vmax.f32 %v2939, 0.0
        %v3068 = vmax.f32 %v2942, 0.0
        %v3069 = vmax.f32 %v2947, 0.0
        %v3070 = vmax.f32 %v2950, 0.0
        %v3071 = vmax.f32 %v2955, 0.0
        %v3072 = vmax.f32 %v2958, 0.0
        %v3073 = vmax.f32 %v2963, 0.0
        %v3074 = vmax.f32 %v2966, 0.0
        %v3075 = vmax.f32 %v2971, 0.0
        %v3076 = vmax.f32 %v2974, 0.0
        %v3077 = vmax.f32 %v2979, 0.0
        %v3078 = vmax.f32 %v2982, 0.0
        %v3079 = vmax.f32 %v2987, 0.0
        %v3080 = vmax.f32 %v2990, 0.0
        %v3081 = vmax.f32 %v2995, 0.0
        %v3082 = vmax.f32 %v2998, 0.0
        %v3083 = vmax.f32 %v3003, 0.0
        %v3084 = vmax.f32 %v3006, 0.0
        %v3085 = vmax.f32 %v3011, 0.0
        %v3086 = vmax.f32 %v3014, 0.0
        %v3087 = vmax.f32 %v3019, 0.0
        %v3088 = vmax.f32 %v3022, 0.0
        %v3089 = vpack.c.bf16 %v3026, %v3025
        %v3090 = vpack.c.bf16 %v3028, %v3027
        %v3091 = vpack.c.bf16 %v3030, %v3029
        %v3092 = vpack.c.bf16 %v3032, %v3031
        %v3093 = vpack.c.bf16 %v3034, %v3033
        %v3094 = vpack.c.bf16 %v3036, %v3035
        %v3095 = vpack.c.bf16 %v3038, %v3037
        %v3096 = vpack.c.bf16 %v3040, %v3039
        %v3097 = vpack.c.bf16 %v3042, %v3041
        %v3098 = vpack.c.bf16 %v3044, %v3043
        %v3099 = vpack.c.bf16 %v3046, %v3045
        %v3100 = vpack.c.bf16 %v3048, %v3047
        %v3101 = vpack.c.bf16 %v3050, %v3049
        %v3102 = vpack.c.bf16 %v3052, %v3051
        %v3103 = vpack.c.bf16 %v3054, %v3053
        %v3104 = vpack.c.bf16 %v3056, %v3055
        %v3105 = vpack.c.bf16 %v3058, %v3057
        %v3106 = vpack.c.bf16 %v3060, %v3059
        %v3107 = vpack.c.bf16 %v3062, %v3061
        %v3108 = vpack.c.bf16 %v3064, %v3063
        %v3109 = vpack.c.bf16 %v3066, %v3065
        %v3110 = vpack.c.bf16 %v3068, %v3067
        %v3111 = vpack.c.bf16 %v3070, %v3069
        %v3112 = vpack.c.bf16 %v3072, %v3071
        %v3113 = vpack.c.bf16 %v3074, %v3073
        %v3114 = vpack.c.bf16 %v3076, %v3075
        %v3115 = vpack.c.bf16 %v3078, %v3077
        %v3116 = vpack.c.bf16 %v3080, %v3079
        %v3117 = vpack.c.bf16 %v3082, %v3081
        %v3118 = vpack.c.bf16 %v3084, %v3083
        %v3119 = vpack.c.bf16 %v3086, %v3085
        %v3120 = vpack.c.bf16 %v3088, %v3087
        %v3121 = vld [vmem:[#allocation11] sm:$0xf]
        %v3122 = vld [vmem:[#allocation11 + $0x4] sm:$0xf]
        %v3123 = vld [vmem:[#allocation11 + $0x8] sm:$0xf]
        %v3124 = vld [vmem:[#allocation11 + $0xc] sm:$0xf]
        %v3125 = vld [vmem:[#allocation11 + $0x10] sm:$0xf]
        %v3126 = vld [vmem:[#allocation11 + $0x14] sm:$0xf]
        %v3127 = vld [vmem:[#allocation11 + $0x18] sm:$0xf]
        %v3128 = vld [vmem:[#allocation11 + $0x1c] sm:$0xf]
        %v3129 = vld [vmem:[#allocation11 + $0x20] sm:$0xf]
        %v3130 = vld [vmem:[#allocation11 + $0x24] sm:$0xf]
        %v3131 = vld [vmem:[#allocation11 + $0x28] sm:$0xf]
        %v3132 = vld [vmem:[#allocation11 + $0x2c] sm:$0xf]
        %v3133 = vld [vmem:[#allocation11 + $0x30] sm:$0xf]
        %v3134 = vld [vmem:[#allocation11 + $0x34] sm:$0xf]
        %v3135 = vld [vmem:[#allocation11 + $0x38] sm:$0xf]
        %v3136 = vld [vmem:[#allocation11 + $0x3c] sm:$0xf]
        %v3137 = vld [vmem:[%s5] sm:$0x1]
        %v3139 = vlaneseq
        %v3140 = vshrl.u32 %v3139, 7
        %v3141 = vsub.s32 0, %v3140
        %v3142 = vrot.slane %v3137, %v3141
        %v3160 = vunpack.c.l.b16 %v3121
        %v3161 = vunpack.c.l.b16 %v3122
        %v3162 = vunpack.c.l.b16 %v3123
        %v3163 = vunpack.c.l.b16 %v3124
        %v3164 = vunpack.c.l.b16 %v3125
        %v3165 = vunpack.c.l.b16 %v3126
        %v3166 = vunpack.c.l.b16 %v3127
        %v3167 = vunpack.c.l.b16 %v3128
        %v3168 = vunpack.c.l.b16 %v3129
        %v3169 = vunpack.c.l.b16 %v3130
        %v3170 = vunpack.c.l.b16 %v3131
        %v3171 = vunpack.c.l.b16 %v3132
        %v3172 = vunpack.c.l.b16 %v3133
        %v3173 = vunpack.c.l.b16 %v3134
        %v3174 = vunpack.c.l.b16 %v3135
        %v3175 = vunpack.c.l.b16 %v3136
        %v3176 = vpack.c.b16 %v3161, %v3160
        %v3177 = vpack.c.b16 %v3163, %v3162
        %v3178 = vpack.c.b16 %v3165, %v3164
        %v3179 = vpack.c.b16 %v3167, %v3166
        %v3180 = vpack.c.b16 %v3169, %v3168
        %v3181 = vpack.c.b16 %v3171, %v3170
        %v3182 = vpack.c.b16 %v3173, %v3172
        %v3183 = vpack.c.b16 %v3175, %v3174
        %3192 = vmatprep.subr.bf16.mxu0 0
        %3193 = vmatpush1.bf16.msra.mxu0 %v3183
        %3194 = vmatprep.subr.bf16.mxu0 0
        %3195 = vmatpush1.bf16.msra.mxu0 %v3182
        %3196 = vmatprep.subr.bf16.mxu0 0
        %3197 = vmatpush1.bf16.msra.mxu0 %v3181
        %3198 = vmatprep.subr.bf16.mxu0 0
        %3199 = vmatpush1.bf16.msra.mxu0 %v3180
        %3200 = vmatprep.subr.bf16.mxu0 0
        %3201 = vmatpush1.bf16.msra.mxu0 %v3179
        %3202 = vmatprep.subr.bf16.mxu0 0
        %3203 = vmatpush1.bf16.msra.mxu0 %v3178
        %3204 = vmatprep.subr.bf16.mxu0 0
        %3205 = vmatpush1.bf16.msra.mxu0 %v3177
        %3206 = vmatprep.subr.bf16.mxu0 0
        %3207 = vmatpush1.bf16.msra.mxu0 %v3176
        %3208 = vmatprep.subr.bf16.mxu0 0
        %3209 = vmatpush2.bf16.msra.mxu0 0
        %3210 = vmatprep.subr.bf16.mxu0 0
        %3211 = vmatpush2.bf16.msra.mxu0 0
        %3212 = vmatprep.subr.bf16.mxu0 0
        %3213 = vmatpush2.bf16.msra.mxu0 0
        %3214 = vmatprep.subr.bf16.mxu0 0
        %3215 = vmatpush2.bf16.msra.mxu0 0
        %3216 = vmatprep.subr.bf16.mxu0 0
        %3217 = vmatpush2.bf16.msra.mxu0 0
        %3218 = vmatprep.subr.bf16.mxu0 0
        %3219 = vmatpush2.bf16.msra.mxu0 0
        %3220 = vmatprep.subr.bf16.mxu0 0
        %3221 = vmatpush2.bf16.msra.mxu0 0
        %3222 = vmatprep.subr.bf16.mxu0 0
        %3223 = vmatpush2.bf16.msra.mxu0 0
        %3224 = vmatprep.mubr.bf16.mxu0 0
        %3225 = vmatmul.mubr.bf16.gmra.mxu0 %v3089
        %v3226 = vpop.f32.mrf.mxu0
        %v3227 = vadd.f32 %v3142, %v3226
        %v3228 = vpop.f32.mrf.mxu0
        %v3229 = vpop.f32.mrf.mxu0
        %v3230 = vadd.f32 %v3142, %v3229
        %v3231 = vpop.f32.mrf.mxu0
        %3232 = vmatprep.mubr.bf16.mxu0 0
        %3233 = vmatmul.mubr.bf16.gmra.mxu0 %v3090
        %v3234 = vpop.f32.mrf.mxu0
        %v3235 = vadd.f32 %v3142, %v3234
        %v3236 = vpop.f32.mrf.mxu0
        %v3237 = vpop.f32.mrf.mxu0
        %v3238 = vadd.f32 %v3142, %v3237
        %v3239 = vpop.f32.mrf.mxu0
        %3240 = vmatprep.mubr.bf16.mxu0 0
        %3241 = vmatmul.mubr.bf16.gmra.mxu0 %v3091
        %v3242 = vpop.f32.mrf.mxu0
        %v3243 = vadd.f32 %v3142, %v3242
        %v3244 = vpop.f32.mrf.mxu0
        %v3245 = vpop.f32.mrf.mxu0
        %v3246 = vadd.f32 %v3142, %v3245
        %v3247 = vpop.f32.mrf.mxu0
        %3248 = vmatprep.mubr.bf16.mxu0 0
        %3249 = vmatmul.mubr.bf16.gmra.mxu0 %v3092
        %v3250 = vpop.f32.mrf.mxu0
        %v3251 = vadd.f32 %v3142, %v3250
        %v3252 = vpop.f32.mrf.mxu0
        %v3253 = vpop.f32.mrf.mxu0
        %v3254 = vadd.f32 %v3142, %v3253
        %v3255 = vpop.f32.mrf.mxu0
        %3256 = vmatprep.mubr.bf16.mxu0 0
        %3257 = vmatmul.mubr.bf16.gmra.mxu0 %v3093
        %v3258 = vpop.f32.mrf.mxu0
        %v3259 = vadd.f32 %v3142, %v3258
        %v3260 = vpop.f32.mrf.mxu0
        %v3261 = vpop.f32.mrf.mxu0
        %v3262 = vadd.f32 %v3142, %v3261
        %v3263 = vpop.f32.mrf.mxu0
        %3264 = vmatprep.mubr.bf16.mxu0 0
        %3265 = vmatmul.mubr.bf16.gmra.mxu0 %v3094
        %v3266 = vpop.f32.mrf.mxu0
        %v3267 = vadd.f32 %v3142, %v3266
        %v3268 = vpop.f32.mrf.mxu0
        %v3269 = vpop.f32.mrf.mxu0
        %v3270 = vadd.f32 %v3142, %v3269
        %v3271 = vpop.f32.mrf.mxu0
        %3272 = vmatprep.mubr.bf16.mxu0 0
        %3273 = vmatmul.mubr.bf16.gmra.mxu0 %v3095
        %v3274 = vpop.f32.mrf.mxu0
        %v3275 = vadd.f32 %v3142, %v3274
        %v3276 = vpop.f32.mrf.mxu0
        %v3277 = vpop.f32.mrf.mxu0
        %v3278 = vadd.f32 %v3142, %v3277
        %v3279 = vpop.f32.mrf.mxu0
        %3280 = vmatprep.mubr.bf16.mxu0 0
        %3281 = vmatmul.mubr.bf16.gmra.mxu0 %v3096
        %v3282 = vpop.f32.mrf.mxu0
        %v3283 = vadd.f32 %v3142, %v3282
        %v3284 = vpop.f32.mrf.mxu0
        %v3285 = vpop.f32.mrf.mxu0
        %v3286 = vadd.f32 %v3142, %v3285
        %v3287 = vpop.f32.mrf.mxu0
        %3288 = vmatprep.mubr.bf16.mxu0 0
        %3289 = vmatmul.mubr.bf16.gmra.mxu0 %v3097
        %v3290 = vpop.f32.mrf.mxu0
        %v3291 = vadd.f32 %v3142, %v3290
        %v3292 = vpop.f32.mrf.mxu0
        %v3293 = vpop.f32.mrf.mxu0
        %v3294 = vadd.f32 %v3142, %v3293
        %v3295 = vpop.f32.mrf.mxu0
        %3296 = vmatprep.mubr.bf16.mxu0 0
        %3297 = vmatmul.mubr.bf16.gmra.mxu0 %v3098
        %v3298 = vpop.f32.mrf.mxu0
        %v3299 = vadd.f32 %v3142, %v3298
        %v3300 = vpop.f32.mrf.mxu0
        %v3301 = vpop.f32.mrf.mxu0
        %v3302 = vadd.f32 %v3142, %v3301
        %v3303 = vpop.f32.mrf.mxu0
        %3304 = vmatprep.mubr.bf16.mxu0 0
        %3305 = vmatmul.mubr.bf16.gmra.mxu0 %v3099
        %v3306 = vpop.f32.mrf.mxu0
        %v3307 = vadd.f32 %v3142, %v3306
        %v3308 = vpop.f32.mrf.mxu0
        %v3309 = vpop.f32.mrf.mxu0
        %v3310 = vadd.f32 %v3142, %v3309
        %v3311 = vpop.f32.mrf.mxu0
        %3312 = vmatprep.mubr.bf16.mxu0 0
        %3313 = vmatmul.mubr.bf16.gmra.mxu0 %v3100
        %v3314 = vpop.f32.mrf.mxu0
        %v3315 = vadd.f32 %v3142, %v3314
        %v3316 = vpop.f32.mrf.mxu0
        %v3317 = vpop.f32.mrf.mxu0
        %v3318 = vadd.f32 %v3142, %v3317
        %v3319 = vpop.f32.mrf.mxu0
        %3320 = vmatprep.mubr.bf16.mxu0 0
        %3321 = vmatmul.mubr.bf16.gmra.mxu0 %v3101
        %v3322 = vpop.f32.mrf.mxu0
        %v3323 = vadd.f32 %v3142, %v3322
        %v3324 = vpop.f32.mrf.mxu0
        %v3325 = vpop.f32.mrf.mxu0
        %v3326 = vadd.f32 %v3142, %v3325
        %v3327 = vpop.f32.mrf.mxu0
        %3328 = vmatprep.mubr.bf16.mxu0 0
        %3329 = vmatmul.mubr.bf16.gmra.mxu0 %v3102
        %v3330 = vpop.f32.mrf.mxu0
        %v3331 = vadd.f32 %v3142, %v3330
        %v3332 = vpop.f32.mrf.mxu0
        %v3333 = vpop.f32.mrf.mxu0
        %v3334 = vadd.f32 %v3142, %v3333
        %v3335 = vpop.f32.mrf.mxu0
        %3336 = vmatprep.mubr.bf16.mxu0 0
        %3337 = vmatmul.mubr.bf16.gmra.mxu0 %v3103
        %v3338 = vpop.f32.mrf.mxu0
        %v3339 = vadd.f32 %v3142, %v3338
        %v3340 = vpop.f32.mrf.mxu0
        %v3341 = vpop.f32.mrf.mxu0
        %v3342 = vadd.f32 %v3142, %v3341
        %v3343 = vpop.f32.mrf.mxu0
        %3344 = vmatprep.mubr.bf16.mxu0 0
        %3345 = vmatmul.mubr.bf16.gmra.mxu0 %v3104
        %v3346 = vpop.f32.mrf.mxu0
        %v3347 = vadd.f32 %v3142, %v3346
        %v3348 = vpop.f32.mrf.mxu0
        %v3349 = vpop.f32.mrf.mxu0
        %v3350 = vadd.f32 %v3142, %v3349
        %v3351 = vpop.f32.mrf.mxu0
        %3352 = vmatprep.mubr.bf16.mxu0 0
        %3353 = vmatmul.mubr.bf16.gmra.mxu0 %v3105
        %v3354 = vpop.f32.mrf.mxu0
        %v3355 = vadd.f32 %v3142, %v3354
        %v3356 = vpop.f32.mrf.mxu0
        %v3357 = vpop.f32.mrf.mxu0
        %v3358 = vadd.f32 %v3142, %v3357
        %v3359 = vpop.f32.mrf.mxu0
        %3360 = vmatprep.mubr.bf16.mxu0 0
        %3361 = vmatmul.mubr.bf16.gmra.mxu0 %v3106
        %v3362 = vpop.f32.mrf.mxu0
        %v3363 = vadd.f32 %v3142, %v3362
        %v3364 = vpop.f32.mrf.mxu0
        %v3365 = vpop.f32.mrf.mxu0
        %v3366 = vadd.f32 %v3142, %v3365
        %v3367 = vpop.f32.mrf.mxu0
        %3368 = vmatprep.mubr.bf16.mxu0 0
        %3369 = vmatmul.mubr.bf16.gmra.mxu0 %v3107
        %v3370 = vpop.f32.mrf.mxu0
        %v3371 = vadd.f32 %v3142, %v3370
        %v3372 = vpop.f32.mrf.mxu0
        %v3373 = vpop.f32.mrf.mxu0
        %v3374 = vadd.f32 %v3142, %v3373
        %v3375 = vpop.f32.mrf.mxu0
        %3376 = vmatprep.mubr.bf16.mxu0 0
        %3377 = vmatmul.mubr.bf16.gmra.mxu0 %v3108
        %v3378 = vpop.f32.mrf.mxu0
        %v3379 = vadd.f32 %v3142, %v3378
        %v3380 = vpop.f32.mrf.mxu0
        %v3381 = vpop.f32.mrf.mxu0
        %v3382 = vadd.f32 %v3142, %v3381
        %v3383 = vpop.f32.mrf.mxu0
        %3384 = vmatprep.mubr.bf16.mxu0 0
        %3385 = vmatmul.mubr.bf16.gmra.mxu0 %v3109
        %v3386 = vpop.f32.mrf.mxu0
        %v3387 = vadd.f32 %v3142, %v3386
        %v3388 = vpop.f32.mrf.mxu0
        %v3389 = vpop.f32.mrf.mxu0
        %v3390 = vadd.f32 %v3142, %v3389
        %v3391 = vpop.f32.mrf.mxu0
        %3392 = vmatprep.mubr.bf16.mxu0 0
        %3393 = vmatmul.mubr.bf16.gmra.mxu0 %v3110
        %v3394 = vpop.f32.mrf.mxu0
        %v3395 = vadd.f32 %v3142, %v3394
        %v3396 = vpop.f32.mrf.mxu0
        %v3397 = vpop.f32.mrf.mxu0
        %v3398 = vadd.f32 %v3142, %v3397
        %v3399 = vpop.f32.mrf.mxu0
        %3400 = vmatprep.mubr.bf16.mxu0 0
        %3401 = vmatmul.mubr.bf16.gmra.mxu0 %v3111
        %v3402 = vpop.f32.mrf.mxu0
        %v3403 = vadd.f32 %v3142, %v3402
        %v3404 = vpop.f32.mrf.mxu0
        %v3405 = vpop.f32.mrf.mxu0
        %v3406 = vadd.f32 %v3142, %v3405
        %v3407 = vpop.f32.mrf.mxu0
        %3408 = vmatprep.mubr.bf16.mxu0 0
        %3409 = vmatmul.mubr.bf16.gmra.mxu0 %v3112
        %v3410 = vpop.f32.mrf.mxu0
        %v3411 = vadd.f32 %v3142, %v3410
        %v3412 = vpop.f32.mrf.mxu0
        %v3413 = vpop.f32.mrf.mxu0
        %v3414 = vadd.f32 %v3142, %v3413
        %v3415 = vpop.f32.mrf.mxu0
        %3416 = vmatprep.mubr.bf16.mxu0 0
        %3417 = vmatmul.mubr.bf16.gmra.mxu0 %v3113
        %v3418 = vpop.f32.mrf.mxu0
        %v3419 = vadd.f32 %v3142, %v3418
        %v3420 = vpop.f32.mrf.mxu0
        %v3421 = vpop.f32.mrf.mxu0
        %v3422 = vadd.f32 %v3142, %v3421
        %v3423 = vpop.f32.mrf.mxu0
        %3424 = vmatprep.mubr.bf16.mxu0 0
        %3425 = vmatmul.mubr.bf16.gmra.mxu0 %v3114
        %v3426 = vpop.f32.mrf.mxu0
        %v3427 = vadd.f32 %v3142, %v3426
        %v3428 = vpop.f32.mrf.mxu0
        %v3429 = vpop.f32.mrf.mxu0
        %v3430 = vadd.f32 %v3142, %v3429
        %v3431 = vpop.f32.mrf.mxu0
        %3432 = vmatprep.mubr.bf16.mxu0 0
        %3433 = vmatmul.mubr.bf16.gmra.mxu0 %v3115
        %v3434 = vpop.f32.mrf.mxu0
        %v3435 = vadd.f32 %v3142, %v3434
        %v3436 = vpop.f32.mrf.mxu0
        %v3437 = vpop.f32.mrf.mxu0
        %v3438 = vadd.f32 %v3142, %v3437
        %v3439 = vpop.f32.mrf.mxu0
        %3440 = vmatprep.mubr.bf16.mxu0 0
        %3441 = vmatmul.mubr.bf16.gmra.mxu0 %v3116
        %v3442 = vpop.f32.mrf.mxu0
        %v3443 = vadd.f32 %v3142, %v3442
        %v3444 = vpop.f32.mrf.mxu0
        %v3445 = vpop.f32.mrf.mxu0
        %v3446 = vadd.f32 %v3142, %v3445
        %v3447 = vpop.f32.mrf.mxu0
        %3448 = vmatprep.mubr.bf16.mxu0 0
        %3449 = vmatmul.mubr.bf16.gmra.mxu0 %v3117
        %v3450 = vpop.f32.mrf.mxu0
        %v3451 = vadd.f32 %v3142, %v3450
        %v3452 = vpop.f32.mrf.mxu0
        %v3453 = vpop.f32.mrf.mxu0
        %v3454 = vadd.f32 %v3142, %v3453
        %v3455 = vpop.f32.mrf.mxu0
        %3456 = vmatprep.mubr.bf16.mxu0 0
        %3457 = vmatmul.mubr.bf16.gmra.mxu0 %v3118
        %v3458 = vpop.f32.mrf.mxu0
        %v3459 = vadd.f32 %v3142, %v3458
        %v3460 = vpop.f32.mrf.mxu0
        %v3461 = vpop.f32.mrf.mxu0
        %v3462 = vadd.f32 %v3142, %v3461
        %v3463 = vpop.f32.mrf.mxu0
        %3464 = vmatprep.mubr.bf16.mxu0 0
        %3465 = vmatmul.mubr.bf16.gmra.mxu0 %v3119
        %v3466 = vpop.f32.mrf.mxu0
        %v3467 = vadd.f32 %v3142, %v3466
        %v3468 = vpop.f32.mrf.mxu0
        %v3469 = vpop.f32.mrf.mxu0
        %v3470 = vadd.f32 %v3142, %v3469
        %v3471 = vpop.f32.mrf.mxu0
        %3472 = vmatprep.mubr.bf16.mxu0 0
        %3473 = vmatmul.mubr.bf16.gmra.mxu0 %v3120
        %v3474 = vpop.f32.mrf.mxu0
        %v3475 = vadd.f32 %v3142, %v3474
        %v3476 = vpop.f32.mrf.mxu0
        %v3477 = vpop.f32.mrf.mxu0
        %v3478 = vadd.f32 %v3142, %v3477
        %v3479 = vpop.f32.mrf.mxu0
        %3480 = vdwg.mxu0
        %3481 = vst [vmem:[%s327] sm:$0xff] %v3227
        %3482 = vst [vmem:[%s327 + $0x8] sm:$0xff] %v3230
        %3483 = vst [vmem:[%s327 + $0x10] sm:$0xff] %v3235
        %3484 = vst [vmem:[%s327 + $0x18] sm:$0xff] %v3238
        %3485 = vst [vmem:[%s327 + $0x20] sm:$0xff] %v3243
        %3486 = vst [vmem:[%s327 + $0x28] sm:$0xff] %v3246
        %3487 = vst [vmem:[%s327 + $0x30] sm:$0xff] %v3251
        %3488 = vst [vmem:[%s327 + $0x38] sm:$0xff] %v3254
        %3489 = vst [vmem:[%s327 + $0x40] sm:$0xff] %v3259
        %3490 = vst [vmem:[%s327 + $0x48] sm:$0xff] %v3262
        %3491 = vst [vmem:[%s327 + $0x50] sm:$0xff] %v3267
        %3492 = vst [vmem:[%s327 + $0x58] sm:$0xff] %v3270
        %3493 = vst [vmem:[%s327 + $0x60] sm:$0xff] %v3275
        %3494 = vst [vmem:[%s327 + $0x68] sm:$0xff] %v3278
        %3495 = vst [vmem:[%s327 + $0x70] sm:$0xff] %v3283
        %3496 = vst [vmem:[%s327 + $0x78] sm:$0xff] %v3286
        %3497 = vst [vmem:[%s327 + $0x80] sm:$0xff] %v3291
        %3498 = vst [vmem:[%s327 + $0x88] sm:$0xff] %v3294
        %3499 = vst [vmem:[%s327 + $0x90] sm:$0xff] %v3299
        %3500 = vst [vmem:[%s327 + $0x98] sm:$0xff] %v3302
        %3501 = vst [vmem:[%s327 + $0xa0] sm:$0xff] %v3307
        %3502 = vst [vmem:[%s327 + $0xa8] sm:$0xff] %v3310
        %3503 = vst [vmem:[%s327 + $0xb0] sm:$0xff] %v3315
        %3504 = vst [vmem:[%s327 + $0xb8] sm:$0xff] %v3318
        %3505 = vst [vmem:[%s327 + $0xc0] sm:$0xff] %v3323
        %3506 = vst [vmem:[%s327 + $0xc8] sm:$0xff] %v3326
        %3507 = vst [vmem:[%s327 + $0xd0] sm:$0xff] %v3331
        %3508 = vst [vmem:[%s327 + $0xd8] sm:$0xff] %v3334
        %3509 = vst [vmem:[%s327 + $0xe0] sm:$0xff] %v3339
        %3510 = vst [vmem:[%s327 + $0xe8] sm:$0xff] %v3342
        %3511 = vst [vmem:[%s327 + $0xf0] sm:$0xff] %v3347
        %3512 = vst [vmem:[%s327 + $0xf8] sm:$0xff] %v3350
        %3513 = vst [vmem:[%s327 + $0x100] sm:$0xff] %v3355
        %3514 = vst [vmem:[%s327 + $0x108] sm:$0xff] %v3358
        %3515 = vst [vmem:[%s327 + $0x110] sm:$0xff] %v3363
        %3516 = vst [vmem:[%s327 + $0x118] sm:$0xff] %v3366
        %3517 = vst [vmem:[%s327 + $0x120] sm:$0xff] %v3371
        %3518 = vst [vmem:[%s327 + $0x128] sm:$0xff] %v3374
        %3519 = vst [vmem:[%s327 + $0x130] sm:$0xff] %v3379
        %3520 = vst [vmem:[%s327 + $0x138] sm:$0xff] %v3382
        %3521 = vst [vmem:[%s327 + $0x140] sm:$0xff] %v3387
        %3522 = vst [vmem:[%s327 + $0x148] sm:$0xff] %v3390
        %3523 = vst [vmem:[%s327 + $0x150] sm:$0xff] %v3395
        %3524 = vst [vmem:[%s327 + $0x158] sm:$0xff] %v3398
        %3525 = vst [vmem:[%s327 + $0x160] sm:$0xff] %v3403
        %3526 = vst [vmem:[%s327 + $0x168] sm:$0xff] %v3406
        %3527 = vst [vmem:[%s327 + $0x170] sm:$0xff] %v3411
        %3528 = vst [vmem:[%s327 + $0x178] sm:$0xff] %v3414
        %3529 = vst [vmem:[%s327 + $0x180] sm:$0xff] %v3419
        %3530 = vst [vmem:[%s327 + $0x188] sm:$0xff] %v3422
        %3531 = vst [vmem:[%s327 + $0x190] sm:$0xff] %v3427
        %3532 = vst [vmem:[%s327 + $0x198] sm:$0xff] %v3430
        %3533 = vst [vmem:[%s327 + $0x1a0] sm:$0xff] %v3435
        %3534 = vst [vmem:[%s327 + $0x1a8] sm:$0xff] %v3438
        %3535 = vst [vmem:[%s327 + $0x1b0] sm:$0xff] %v3443
        %3536 = vst [vmem:[%s327 + $0x1b8] sm:$0xff] %v3446
        %3537 = vst [vmem:[%s327 + $0x1c0] sm:$0xff] %v3451
        %3538 = vst [vmem:[%s327 + $0x1c8] sm:$0xff] %v3454
        %3539 = vst [vmem:[%s327 + $0x1d0] sm:$0xff] %v3459
        %3540 = vst [vmem:[%s327 + $0x1d8] sm:$0xff] %v3462
        %3541 = vst [vmem:[%s327 + $0x1e0] sm:$0xff] %v3467
        %3542 = vst [vmem:[%s327 + $0x1e8] sm:$0xff] %v3470
        %3543 = vst [vmem:[%s327 + $0x1f0] sm:$0xff] %v3475
        %3544 = vst [vmem:[%s327 + $0x1f8] sm:$0xff] %v3478
        %s3545 = sand.u32 %s164, 1
        %s3546 = scalar_lea.sflag [#allocation5], %s3545
        %s3547 = sand.u32 %s164, 1
        %s3548 = smul.addr %s3547, 512
        %s3549 = scalar_lea.vmem [#allocation12], %s3548
        // Predicated region
        $region65: #{tpu_custom_call.1} parent=43 // pred_check
          %p3550 = pneg %p174
        $region66: #{tpu_custom_call.1} parent=43 // pred_check_branch
          %3552 = sbr.rel (%p3550) target = $region68
        $region67: #{tpu_custom_call.1} parent=43 // pred_region
          %s3553 = smul.u32 64, %s25
          %s3555 = ssub.s32 8192, 8192
          %3556 = vsyncadd %s3546, %s3555
          %s3557 = smul.addr %s3553, 128
          %s3558 = scalar_lea.hbm %s6, %s3557
          %s3559 = sshll.u32 %s3549, 4
          %s3560 = int_to_ptr.vmem [resolvable:$true] %s3559
          %3565 = dma.vmem_to_hbm [thread:$0]  %s3560, 8192, %s3558, %s3546, 128, 128, 8
        $region68: #{tpu_custom_call.1} parent=43 // pred_fallthru
          _
      $region44: #{tpu_custom_call.1} parent=5 // pred_fallthru
        _
      %p3566 = scmp.le.s32.totalorder 2, %s20
      // Predicated region
      $region69: #{tpu_custom_call.1} parent=5 // pred_check
        %p3567 = pneg %p3566
      $region70: #{tpu_custom_call.1} parent=5 // pred_check_branch
        %3569 = sbr.rel (%p3567) target = $region72
      $region71: #{tpu_custom_call.1} parent=5 // pred_region
        %s3570 = ssub.s32 %s20, 2
        // Predicated region
        $region73: #{tpu_custom_call.1} parent=71 // pred_check
          %p3571 = pneg %p180
        $region74: #{tpu_custom_call.1} parent=71 // pred_check_branch
          %3573 = sbr.rel (%p3571) target = $region76
        $region75: #{tpu_custom_call.1} parent=71 // pred_region
          %s3574 = sand.u32 %s165, 1
          %s3575 = scalar_lea.sflag [#allocation5], %s3574
          %s3576 = sand.u32 %s165, 1
          %s3577 = smul.addr %s3576, 512
          %s3578 = scalar_lea.vmem [#allocation12], %s3577
          %3579 = dma.done %s3575, 8192
        $region76: #{tpu_custom_call.1} parent=71 // pred_fallthru
          _
      $region72: #{tpu_custom_call.1} parent=5 // pred_fallthru
        _
    $region6: #{tpu_custom_call.1} parent=1 // loop_footer
      %s24 = sadd.s32 1, %s20
    $region7: #{tpu_custom_call.1} parent=1 // loop_footer_branch
      %19 = sbr.rel target = $region3
    $region8: #{tpu_custom_call.1} parent=1 // loop_exit
      _
    %3580 = vsyncpa [#allocation4], 1
    %s3581 = scalar_lea.sflag [#allocation4], 1
    %3582 = vsyncpa %s3581, 1
    %3583 = vsyncpa [#allocation7], 1
    %3584 = vsyncpa [#allocation10], 1
    %3585 = vsyncpa [#allocation5], 1
    %s3586 = scalar_lea.sflag [#allocation5], 1
    %3587 = vsyncpa %s3586, 1

</llo_original>
